<compile_context>
chip_gen: v7x
topology: tpu7x:2x2x1
jax: 0.10.0
libtpu: 0.0.40
codegen_flags: <defaults>
</compile_context>

<pallas_src>
import functools

import jax
import jax.numpy as jnp
from jax import lax
from jax.experimental import pallas as pl
from jax.experimental.pallas import tpu as pltpu

# The nine 3x3 source offsets (r, c) in raster order; this order defines both
# the lane order of the in-kernel tap slab and the row-block order of the
# packed effective weight matrix.
_OFFSETS = tuple((r, c) for r in (-1, 0, 1) for c in (-1, 0, 1))


def _packed_phase_weights(weight, stride, compute_dtype):
    """OIHW [Cout, Cin, 3, 3] -> [9*Cin, stride*stride*Cout] effective weights.

    Row block k (offset (r, c) = _OFFSETS[k]), column block p = ph*stride + pw
    holds sum_{dy,dx} W[:, :, dy, dx]^T over the original 3x3 taps whose
    upsampled-space receptive field maps to source offset (r, c) for output
    phase (ph, pw); zero where a phase does not touch that offset.
    """
    Cout, Cin = int(weight.shape[0]), int(weight.shape[1])
    S = int(stride)
    w_hwio = jnp.transpose(weight, (2, 3, 1, 0)).astype(jnp.float32)  # [3,3,Cin,Cout]
    row_blocks = []
    for (r, c) in _OFFSETS:
        col_blocks = []
        for ph in range(S):
            for pw in range(S):
                acc = jnp.zeros((Cin, Cout), jnp.float32)
                for dy in range(3):
                    if (ph + dy - 1) // S != r:
                        continue
                    for dx in range(3):
                        if (pw + dx - 1) // S != c:
                            continue
                        acc = acc + w_hwio[dy, dx]
                col_blocks.append(acc)
        row_blocks.append(jnp.concatenate(col_blocks, axis=1))  # [Cin, S*S*Cout]
    return jnp.concatenate(row_blocks, axis=0).astype(compute_dtype)


def _row_rotate(x, off):
    """result[m] = x[(m + off) % n] for a static integer offset (axis 0)."""
    n = x.shape[0]
    off = off % n
    if off == 0:
        return x
    return jnp.concatenate([x[off:, :], x[:off, :]], axis=0)


def _make_conv_block(H, W):
    """Builds conv+bias for one [H*W, Cin] image block (all phases fused)."""
    HW = H * W

    def conv_block(x_ref, w_ref, b_ref):
        x = x_ref[...]                                          # [HW, Cin]
        # Flat row index -> border validity (built once, reused by all taps,
        # pure VPU work that hides under the MXU dot).
        row = lax.broadcasted_iota(jnp.int32, (HW, 1), 0)
        col = row % W
        taps = []
        for (r, c) in _OFFSETS:
            t = _row_rotate(x, r * W + c)
            conds = []
            if r == -1:
                conds.append(row >= W)
            elif r == 1:
                conds.append(row < (H - 1) * W)
            if c == -1:
                conds.append(col >= 1)
            elif c == 1:
                conds.append(col < (W - 1))
            if conds:
                valid = conds[0]
                for extra in conds[1:]:
                    valid = valid & extra
                t = t * valid.astype(t.dtype)
            taps.append(t)
        slab = jnp.concatenate(taps, axis=1)                    # [HW, 9*Cin]
        y = jnp.dot(slab, w_ref[...], preferred_element_type=jnp.float32)
        return y + b_ref[...]                                   # [HW, P*Cout] f32

    return conv_block


def conv_up_bn_relu(x, weight, bias, bn_gamma, bn_beta, *, stride=2, eps=1e-5,
                    negative_slope=0.01, compute_dtype=jnp.float32):
    """Forward of ConvUpBNReLU (training-mode BatchNorm).

    x: NCHW [B, Cin, H, W] f32; weight: OIHW [Cout, Cin, 3, 3];
    bias / bn_gamma / bn_beta: [Cout]. Returns NCHW [B, Cout, H*stride, W*stride].
    Set compute_dtype=jnp.bfloat16 for faster MXU operands (BN/LeakyReLU stay f32).
    """
    B, Cin, H, W = map(int, x.shape)
    Cout = int(weight.shape[0])
    S = int(stride)
    P = S * S
    HW = H * W
    PC = P * Cout
    KC = 9 * Cin
    itemsize = jnp.dtype(compute_dtype).itemsize

    weff = _packed_phase_weights(weight, S, compute_dtype)                # [9*Cin, PC]
    bias_row = jnp.tile(bias.astype(jnp.float32).reshape(1, Cout), (1, P))  # [1, PC]

    # NCHW -> per-image flat [B, HW, Cin]. In an NHWC pipeline this transpose
    # (and the output one below) disappears entirely.
    x_img = jnp.transpose(x, (0, 2, 3, 1)).reshape(B, HW, Cin).astype(compute_dtype)

    conv_block = _make_conv_block(H, W)

    def stats_kernel(x_ref, w_ref, b_ref, s_ref):
        y = conv_block(x_ref, w_ref, b_ref)                     # [HW, PC] f32
        s_ref[0:1, :] = jnp.sum(y, axis=0, keepdims=True)
        s_ref[1:2, :] = jnp.sum(y * y, axis=0, keepdims=True)

    def apply_kernel(x_ref, w_ref, b_ref, ss_ref, o_ref):
        y = conv_block(x_ref, w_ref, b_ref)                     # [HW, PC] f32
        z = y * ss_ref[0:1, :] + ss_ref[1:2, :]
        o_ref[...] = jnp.where(z >= 0.0, z, negative_slope * z).astype(o_ref.dtype)

    flops = int(2 * B * HW * KC * PC)
    comp = pltpu.CompilerParams(
        dimension_semantics=("parallel",),          # batch axis -> v7x dual TC
        vmem_limit_bytes=48 * 1024 * 1024,          # headroom under v7x's 64 MiB
    )
    x_spec = pl.BlockSpec((None, HW, Cin), lambda b: (b, 0, 0))
    w_spec = pl.BlockSpec((KC, PC), lambda b: (0, 0))
    b_spec = pl.BlockSpec((1, PC), lambda b: (0, 0))

    # Pass 1: per-image (sum, sum-of-squares) partials -> exact batch statistics.
    stats = pl.pallas_call(
        stats_kernel,
        out_shape=jax.ShapeDtypeStruct((B, 2, PC), jnp.float32),
        grid=(B,),
        in_specs=[x_spec, w_spec, b_spec],
        out_specs=pl.BlockSpec((None, 2, PC), lambda b: (b, 0, 0)),
        compiler_params=comp,
        cost_estimate=pl.CostEstimate(
            flops=flops, transcendentals=0,
            bytes_accessed=int(B * HW * Cin * itemsize + KC * PC * itemsize
                               + B * 2 * PC * 4)),
    )(x_img, weff, bias_row)

    # Tiny cross-image / cross-phase reduction + BN folding (runs in XLA).
    pooled = jnp.sum(stats, axis=0).reshape(2, P, Cout).sum(axis=1)       # [2, Cout]
    count = float(B * HW * P)
    mean = pooled[0] / count
    var = jnp.maximum(pooled[1] / count - mean * mean, 0.0)   # biased var, f32
    # TODO(synk): for channels with very large means, switch to per-block
    # mean-shifted (Chan) variance accumulation to avoid E[y^2]-mean^2 cancellation.
    scale_c = bn_gamma.astype(jnp.float32) * lax.rsqrt(var + eps)
    shift_c = bn_beta.astype(jnp.float32) - mean * scale_c
    scale_shift = jnp.stack([jnp.tile(scale_c, P), jnp.tile(shift_c, P)])  # [2, PC]

    # Pass 2: recompute conv (cheaper in HBM bytes than spilling the pre-BN
    # activation since P*Cout >= Cin), fuse normalize + LeakyReLU, and store
    # the lane-dense [HW, P*Cout] output rows.
    out_flat = pl.pallas_call(
        apply_kernel,
        out_shape=jax.ShapeDtypeStruct((B, HW, PC), jnp.float32),
        grid=(B,),
        in_specs=[x_spec, w_spec, b_spec, pl.BlockSpec((2, PC), lambda b: (0, 0))],
        out_specs=pl.BlockSpec((None, HW, PC), lambda b: (b, 0, 0)),
        compiler_params=comp,
        cost_estimate=pl.CostEstimate(
            flops=flops, transcendentals=0,
            bytes_accessed=int(B * HW * Cin * itemsize + KC * PC * itemsize
                               + B * HW * PC * 4)),
    )(x_img, weff, bias_row, scale_shift)

    # TODO(synk): for images whose [HW, Cin] block exceeds VMEM, add a second
    # grid axis of ~512-row tiles within each image (halo via manual DMA or
    # pl.Element row offsets) instead of one whole-image block.

    # Phase de-interleave + NHWC->NCHW is a single fused XLA transpose; keep
    # the lane-dense layout and drop this entirely when the consumer is NHWC.
    out = out_flat.reshape(B, H, W, S, S, Cout)
    return jnp.transpose(out, (0, 5, 1, 3, 2, 4)).reshape(B, Cout, H * S, W * S)


def _reference_forward(x, weight, bias, bn_gamma, bn_beta, *, stride=2, eps=1e-5,
                       negative_slope=0.01):
    """Plain-JAX reference matching the PyTorch module (training-mode BN)."""
    if stride > 1:
        x = jnp.repeat(jnp.repeat(x, stride, axis=2), stride, axis=3)
    y = lax.conv_general_dilated(
        x, weight, window_strides=(1, 1), padding=((1, 1), (1, 1)),
        dimension_numbers=("NCHW", "OIHW", "NCHW"),
        precision=lax.Precision.HIGHEST)
    y = y + bias.reshape(1, -1, 1, 1)
    mean = jnp.mean(y, axis=(0, 2, 3), keepdims=True)
    var = jnp.mean((y - mean) ** 2, axis=(0, 2, 3), keepdims=True)
    y = (y - mean) * lax.rsqrt(var + eps)
    y = y * bn_gamma.reshape(1, -1, 1, 1) + bn_beta.reshape(1, -1, 1, 1)
    return jnp.where(y >= 0.0, y, negative_slope * y)


if __name__ == "__main__":
    root = jax.random.PRNGKey(0)

    # (B, Cin, H, W, Cout, stride): Pix2Pix-style decoder block, stride=1
    # degenerate (plain 3x3 conv), and an H != W / non-power-of-two-width case
    # to exercise the border masks and phase decomposition.
    configs = [
        (2, 64, 16, 16, 32, 2),
        (2, 16, 8, 8, 32, 1),
        (3, 8, 6, 10, 16, 2),
    ]
    for (B, Cin, H, W, Cout, stride) in configs:
        root, kx, kw, kb, kg, kbt = jax.random.split(root, 6)
        # Activations rounded to bf16 and weights drawn on a coarse dyadic grid
        # so that effective tap weights (sums of up to 4 taps) stay exactly
        # representable by the MXU operand format: the comparison against the
        # HIGHEST-precision XLA reference then isolates kernel-logic errors
        # from matmul pass-count differences, allowing a tight tolerance.
        x = jax.random.normal(kx, (B, Cin, H, W), jnp.float32)
        x = x.astype(jnp.bfloat16).astype(jnp.float32)
        weight = jax.random.randint(kw, (Cout, Cin, 3, 3), -8, 9).astype(
            jnp.float32) * (1.0 / 32.0)
        bias = jax.random.normal(kb, (Cout,), jnp.float32) * 0.1
        bn_gamma = 1.0 + 0.1 * jax.random.normal(kg, (Cout,), jnp.float32)
        bn_beta = 0.1 * jax.random.normal(kbt, (Cout,), jnp.float32)

        fwd = jax.jit(functools.partial(conv_up_bn_relu, stride=stride))
        out = fwd(x, weight, bias, bn_gamma, bn_beta)
        jax.block_until_ready(out)

        assert out.shape == (B, Cout, H * stride, W * stride), out.shape
        assert out.dtype == jnp.float32
        assert bool(jnp.all(jnp.isfinite(out)))

        ref = _reference_forward(x, weight, bias, bn_gamma, bn_beta, stride=stride)
        max_err = float(jnp.max(jnp.abs(out - ref)))
        assert max_err < 1e-3, (
            f"config {(B, Cin, H, W, Cout, stride)}: max abs err {max_err}")

    print("KERNEL_OK")
</pallas_src>

<mosaic_0001>
module attributes {stable_mosaic.version = 11 : i64} {
  func.func @stats_kernel(%arg0: i32, %arg1: memref<1x256x64xf32, #tpu.memory_space<vmem>>, %arg2: memref<576x128xf32, #tpu.memory_space<vmem>>, %arg3: memref<1x128xf32, #tpu.memory_space<vmem>>, %arg4: memref<1x2x128xf32, #tpu.memory_space<vmem>>) attributes {dimension_semantics = [#tpu.dimension_semantics<parallel>], iteration_bounds = array<i64: 2>, scalar_prefetch = 0 : i64, scratch_operands = 0 : i64, tpu.core_type = #tpu.core_type<tc>, window_params = [{transform_indices = @transform_0, window_bounds = array<i64: 1, 256, 64>}, {pipeline_mode = #tpu.pipeline_mode<synchronous>, transform_indices = @transform_1, window_bounds = array<i64: 576, 128>}, {pipeline_mode = #tpu.pipeline_mode<synchronous>, transform_indices = @transform_2, window_bounds = array<i64: 1, 128>}, {transform_indices = @transform_3, window_bounds = array<i64: 1, 2, 128>}]} {
    %c0 = arith.constant 0 : index
    %c0_0 = arith.constant 0 : index
    %c0_1 = arith.constant 0 : index
    %0 = vector.load %arg1[%c0, %c0_0, %c0_1] : memref<1x256x64xf32, #tpu.memory_space<vmem>>, vector<1x256x64xf32>
    %1 = vector.shape_cast %0 : vector<1x256x64xf32> to vector<256x64xf32>
    %2 = tpu.iota {dimensions = array<i32: 0>} : vector<256x1xi32>
    %c16_i32 = arith.constant 16 : i32
    %c0_i32 = arith.constant 0 : i32
    %3 = arith.cmpi eq, %c16_i32, %c0_i32 : i32
    %c1_i32 = arith.constant 1 : i32
    %4 = arith.select %3, %c1_i32, %c16_i32 : i32
    %5 = vector.broadcast %4 : i32 to vector<256x1xi32>
    %6 = arith.remsi %2, %5 : vector<256x1xi32>
    %c0_i32_2 = arith.constant 0 : i32
    %7 = vector.broadcast %c0_i32_2 : i32 to vector<256x1xi32>
    %8 = arith.cmpi ne, %6, %7 : vector<256x1xi32>
    %c0_i32_3 = arith.constant 0 : i32
    %9 = vector.broadcast %c0_i32_3 : i32 to vector<256x1xi32>
    %10 = arith.cmpi slt, %6, %9 : vector<256x1xi32>
    %c0_i32_4 = arith.constant 0 : i32
    %11 = arith.cmpi slt, %4, %c0_i32_4 : i32
    %12 = vector.broadcast %11 : i1 to vector<256x1xi1>
    %13 = vector.broadcast %12 : vector<256x1xi1> to vector<256x1xi1>
    %14 = arith.xori %10, %13 : vector<256x1xi1>
    %15 = arith.andi %14, %8 : vector<256x1xi1>
    %16 = vector.broadcast %4 : i32 to vector<256x1xi32>
    %17 = arith.addi %6, %16 : vector<256x1xi32>
    %18 = arith.select %15, %17, %6 : vector<256x1xi1>, vector<256x1xi32>
    %19 = vector.extract_strided_slice %1 {offsets = [239, 0], sizes = [17, 64], strides = [1, 1]} : vector<256x64xf32> to vector<17x64xf32>
    %20 = vector.extract_strided_slice %1 {offsets = [0, 0], sizes = [239, 64], strides = [1, 1]} : vector<256x64xf32> to vector<239x64xf32>
    %21 = tpu.concatenate %19, %20 in 0 : vector<17x64xf32>, vector<239x64xf32> -> vector<256x64xf32>
    %c16_i32_5 = arith.constant 16 : i32
    %22 = vector.broadcast %c16_i32_5 : i32 to vector<256x1xi32>
    %23 = arith.cmpi sge, %2, %22 : vector<256x1xi32>
    %c1_i32_6 = arith.constant 1 : i32
    %24 = vector.broadcast %c1_i32_6 : i32 to vector<256x1xi32>
    %25 = arith.cmpi sge, %18, %24 : vector<256x1xi32>
    %26 = arith.andi %23, %25 : vector<256x1xi1>
    %27 = arith.extui %26 : vector<256x1xi1> to vector<256x1xi32>
    %28 = arith.sitofp %27 : vector<256x1xi32> to vector<256x1xf32>
    %29 = vector.broadcast %28 : vector<256x1xf32> to vector<256x64xf32>
    %30 = arith.mulf %21, %29 : vector<256x64xf32>
    %31 = vector.extract_strided_slice %1 {offsets = [240, 0], sizes = [16, 64], strides = [1, 1]} : vector<256x64xf32> to vector<16x64xf32>
    %32 = vector.extract_strided_slice %1 {offsets = [0, 0], sizes = [240, 64], strides = [1, 1]} : vector<256x64xf32> to vector<240x64xf32>
    %33 = tpu.concatenate %31, %32 in 0 : vector<16x64xf32>, vector<240x64xf32> -> vector<256x64xf32>
    %c16_i32_7 = arith.constant 16 : i32
    %34 = vector.broadcast %c16_i32_7 : i32 to vector<256x1xi32>
    %35 = arith.cmpi sge, %2, %34 : vector<256x1xi32>
    %36 = arith.extui %35 : vector<256x1xi1> to vector<256x1xi32>
    %37 = arith.sitofp %36 : vector<256x1xi32> to vector<256x1xf32>
    %38 = vector.broadcast %37 : vector<256x1xf32> to vector<256x64xf32>
    %39 = arith.mulf %33, %38 : vector<256x64xf32>
    %40 = vector.extract_strided_slice %1 {offsets = [241, 0], sizes = [15, 64], strides = [1, 1]} : vector<256x64xf32> to vector<15x64xf32>
    %41 = vector.extract_strided_slice %1 {offsets = [0, 0], sizes = [241, 64], strides = [1, 1]} : vector<256x64xf32> to vector<241x64xf32>
    %42 = tpu.concatenate %40, %41 in 0 : vector<15x64xf32>, vector<241x64xf32> -> vector<256x64xf32>
    %c16_i32_8 = arith.constant 16 : i32
    %43 = vector.broadcast %c16_i32_8 : i32 to vector<256x1xi32>
    %44 = arith.cmpi sge, %2, %43 : vector<256x1xi32>
    %c15_i32 = arith.constant 15 : i32
    %45 = vector.broadcast %c15_i32 : i32 to vector<256x1xi32>
    %46 = arith.cmpi slt, %18, %45 : vector<256x1xi32>
    %47 = arith.andi %44, %46 : vector<256x1xi1>
    %48 = arith.extui %47 : vector<256x1xi1> to vector<256x1xi32>
    %49 = arith.sitofp %48 : vector<256x1xi32> to vector<256x1xf32>
    %50 = vector.broadcast %49 : vector<256x1xf32> to vector<256x64xf32>
    %51 = arith.mulf %42, %50 : vector<256x64xf32>
    %52 = vector.extract_strided_slice %1 {offsets = [255, 0], sizes = [1, 64], strides = [1, 1]} : vector<256x64xf32> to vector<1x64xf32>
    %53 = vector.extract_strided_slice %1 {offsets = [0, 0], sizes = [255, 64], strides = [1, 1]} : vector<256x64xf32> to vector<255x64xf32>
    %54 = tpu.concatenate %52, %53 in 0 : vector<1x64xf32>, vector<255x64xf32> -> vector<256x64xf32>
    %c1_i32_9 = arith.constant 1 : i32
    %55 = vector.broadcast %c1_i32_9 : i32 to vector<256x1xi32>
    %56 = arith.cmpi sge, %18, %55 : vector<256x1xi32>
    %57 = arith.extui %56 : vector<256x1xi1> to vector<256x1xi32>
    %58 = arith.sitofp %57 : vector<256x1xi32> to vector<256x1xf32>
    %59 = vector.broadcast %58 : vector<256x1xf32> to vector<256x64xf32>
    %60 = arith.mulf %54, %59 : vector<256x64xf32>
    %61 = vector.extract_strided_slice %1 {offsets = [1, 0], sizes = [255, 64], strides = [1, 1]} : vector<256x64xf32> to vector<255x64xf32>
    %62 = vector.extract_strided_slice %1 {offsets = [0, 0], sizes = [1, 64], strides = [1, 1]} : vector<256x64xf32> to vector<1x64xf32>
    %63 = tpu.concatenate %61, %62 in 0 : vector<255x64xf32>, vector<1x64xf32> -> vector<256x64xf32>
    %c15_i32_10 = arith.constant 15 : i32
    %64 = vector.broadcast %c15_i32_10 : i32 to vector<256x1xi32>
    %65 = arith.cmpi slt, %18, %64 : vector<256x1xi32>
    %66 = arith.extui %65 : vector<256x1xi1> to vector<256x1xi32>
    %67 = arith.sitofp %66 : vector<256x1xi32> to vector<256x1xf32>
    %68 = vector.broadcast %67 : vector<256x1xf32> to vector<256x64xf32>
    %69 = arith.mulf %63, %68 : vector<256x64xf32>
    %70 = vector.extract_strided_slice %1 {offsets = [15, 0], sizes = [241, 64], strides = [1, 1]} : vector<256x64xf32> to vector<241x64xf32>
    %71 = vector.extract_strided_slice %1 {offsets = [0, 0], sizes = [15, 64], strides = [1, 1]} : vector<256x64xf32> to vector<15x64xf32>
    %72 = tpu.concatenate %70, %71 in 0 : vector<241x64xf32>, vector<15x64xf32> -> vector<256x64xf32>
    %c240_i32 = arith.constant 240 : i32
    %73 = vector.broadcast %c240_i32 : i32 to vector<256x1xi32>
    %74 = arith.cmpi slt, %2, %73 : vector<256x1xi32>
    %c1_i32_11 = arith.constant 1 : i32
    %75 = vector.broadcast %c1_i32_11 : i32 to vector<256x1xi32>
    %76 = arith.cmpi sge, %18, %75 : vector<256x1xi32>
    %77 = arith.andi %74, %76 : vector<256x1xi1>
    %78 = arith.extui %77 : vector<256x1xi1> to vector<256x1xi32>
    %79 = arith.sitofp %78 : vector<256x1xi32> to vector<256x1xf32>
    %80 = vector.broadcast %79 : vector<256x1xf32> to vector<256x64xf32>
    %81 = arith.mulf %72, %80 : vector<256x64xf32>
    %82 = vector.extract_strided_slice %1 {offsets = [16, 0], sizes = [240, 64], strides = [1, 1]} : vector<256x64xf32> to vector<240x64xf32>
    %83 = vector.extract_strided_slice %1 {offsets = [0, 0], sizes = [16, 64], strides = [1, 1]} : vector<256x64xf32> to vector<16x64xf32>
    %84 = tpu.concatenate %82, %83 in 0 : vector<240x64xf32>, vector<16x64xf32> -> vector<256x64xf32>
    %c240_i32_12 = arith.constant 240 : i32
    %85 = vector.broadcast %c240_i32_12 : i32 to vector<256x1xi32>
    %86 = arith.cmpi slt, %2, %85 : vector<256x1xi32>
    %87 = arith.extui %86 : vector<256x1xi1> to vector<256x1xi32>
    %88 = arith.sitofp %87 : vector<256x1xi32> to vector<256x1xf32>
    %89 = vector.broadcast %88 : vector<256x1xf32> to vector<256x64xf32>
    %90 = arith.mulf %84, %89 : vector<256x64xf32>
    %91 = vector.extract_strided_slice %1 {offsets = [17, 0], sizes = [239, 64], strides = [1, 1]} : vector<256x64xf32> to vector<239x64xf32>
    %92 = vector.extract_strided_slice %1 {offsets = [0, 0], sizes = [17, 64], strides = [1, 1]} : vector<256x64xf32> to vector<17x64xf32>
    %93 = tpu.concatenate %91, %92 in 0 : vector<239x64xf32>, vector<17x64xf32> -> vector<256x64xf32>
    %c240_i32_13 = arith.constant 240 : i32
    %94 = vector.broadcast %c240_i32_13 : i32 to vector<256x1xi32>
    %95 = arith.cmpi slt, %2, %94 : vector<256x1xi32>
    %c15_i32_14 = arith.constant 15 : i32
    %96 = vector.broadcast %c15_i32_14 : i32 to vector<256x1xi32>
    %97 = arith.cmpi slt, %18, %96 : vector<256x1xi32>
    %98 = arith.andi %95, %97 : vector<256x1xi1>
    %99 = arith.extui %98 : vector<256x1xi1> to vector<256x1xi32>
    %100 = arith.sitofp %99 : vector<256x1xi32> to vector<256x1xf32>
    %101 = vector.broadcast %100 : vector<256x1xf32> to vector<256x64xf32>
    %102 = arith.mulf %93, %101 : vector<256x64xf32>
    %103 = tpu.concatenate %30, %39, %51, %60, %1, %69, %81, %90, %102 in 1 : vector<256x64xf32>, vector<256x64xf32>, vector<256x64xf32>, vector<256x64xf32>, vector<256x64xf32>, vector<256x64xf32>, vector<256x64xf32>, vector<256x64xf32>, vector<256x64xf32> -> vector<256x576xf32>
    %c0_15 = arith.constant 0 : index
    %c0_16 = arith.constant 0 : index
    %104 = vector.load %arg2[%c0_15, %c0_16] : memref<576x128xf32, #tpu.memory_space<vmem>>, vector<576x128xf32>
    %cst = arith.constant dense<0.000000e+00> : vector<256x128xf32>
    %105 = tpu.matmul %103, %104, %cst {dimension_numbers = #tpu.dot_dimension_numbers<[1], [0], [0], [1], [0, 0, 1, 1], [], []>} : vector<256x576xf32>, vector<576x128xf32>, vector<256x128xf32> -> vector<256x128xf32>
    %c0_17 = arith.constant 0 : index
    %c0_18 = arith.constant 0 : index
    %106 = vector.load %arg3[%c0_17, %c0_18] : memref<1x128xf32, #tpu.memory_space<vmem>>, vector<1x128xf32>
    %107 = vector.broadcast %106 : vector<1x128xf32> to vector<256x128xf32>
    %108 = arith.addf %105, %107 : vector<256x128xf32>
    %cst_19 = arith.constant dense<0.000000e+00> : vector<128xf32>
    %109 = vector.multi_reduction <add>, %108, %cst_19 [0] : vector<256x128xf32> to vector<128xf32>
    %110 = vector.shape_cast %109 : vector<128xf32> to vector<1x128xf32>
    %c0_20 = arith.constant 0 : index
    %c0_21 = arith.constant 0 : index
    %c0_22 = arith.constant 0 : index
    %111 = vector.load %arg4[%c0_20, %c0_21, %c0_22] : memref<1x2x128xf32, #tpu.memory_space<vmem>>, vector<1x1x128xf32>
    %112 = vector.shape_cast %111 : vector<1x1x128xf32> to vector<1x128xf32>
    %113 = vector.shape_cast %110 : vector<1x128xf32> to vector<1x1x128xf32>
    tpu.vector_store %arg4[%c0_20, %c0_21, %c0_22], %113 {strides = array<i32>} : memref<1x2x128xf32, #tpu.memory_space<vmem>>, vector<1x1x128xf32>,
    %114 = arith.mulf %108, %108 : vector<256x128xf32>
    %cst_23 = arith.constant dense<0.000000e+00> : vector<128xf32>
    %115 = vector.multi_reduction <add>, %114, %cst_23 [0] : vector<256x128xf32> to vector<128xf32>
    %116 = vector.shape_cast %115 : vector<128xf32> to vector<1x128xf32>
    %c0_24 = arith.constant 0 : index
    %c1 = arith.constant 1 : index
    %c0_25 = arith.constant 0 : index
    %117 = vector.load %arg4[%c0_24, %c1, %c0_25] : memref<1x2x128xf32, #tpu.memory_space<vmem>>, vector<1x1x128xf32>
    %118 = vector.shape_cast %117 : vector<1x1x128xf32> to vector<1x128xf32>
    %119 = vector.shape_cast %116 : vector<1x128xf32> to vector<1x1x128xf32>
    tpu.vector_store %arg4[%c0_24, %c1, %c0_25], %119 {strides = array<i32>} : memref<1x2x128xf32, #tpu.memory_space<vmem>>, vector<1x1x128xf32>,
    return
  }
  func.func @transform_0(%arg0: i32) -> (i32, i32, i32) {
    %c0_i32 = arith.constant 0 : i32
    %c0_i32_0 = arith.constant 0 : i32
    %c0_i32_1 = arith.constant 0 : i32
    return %arg0, %c0_i32, %c0_i32_0 : i32, i32, i32
  }
  func.func @transform_1(%arg0: i32) -> (i32, i32) {
    %c0_i32 = arith.constant 0 : i32
    %c0_i32_0 = arith.constant 0 : i32
    %c0_i32_1 = arith.constant 0 : i32
    return %c0_i32, %c0_i32_0 : i32, i32
  }
  func.func @transform_2(%arg0: i32) -> (i32, i32) {
    %c0_i32 = arith.constant 0 : i32
    %c0_i32_0 = arith.constant 0 : i32
    %c0_i32_1 = arith.constant 0 : i32
    return %c0_i32, %c0_i32_0 : i32, i32
  }
  func.func @transform_3(%arg0: i32) -> (i32, i32, i32) {
    %c0_i32 = arith.constant 0 : i32
    %c0_i32_0 = arith.constant 0 : i32
    %c0_i32_1 = arith.constant 0 : i32
    return %arg0, %c0_i32, %c0_i32_0 : i32, i32, i32
  }
}

module attributes {stable_mosaic.version = 11 : i64} {
  func.func @apply_kernel(%arg0: i32, %arg1: memref<1x256x64xf32, #tpu.memory_space<vmem>>, %arg2: memref<576x128xf32, #tpu.memory_space<vmem>>, %arg3: memref<1x128xf32, #tpu.memory_space<vmem>>, %arg4: memref<2x128xf32, #tpu.memory_space<vmem>>, %arg5: memref<1x256x128xf32, #tpu.memory_space<vmem>>) attributes {dimension_semantics = [#tpu.dimension_semantics<parallel>], iteration_bounds = array<i64: 2>, scalar_prefetch = 0 : i64, scratch_operands = 0 : i64, tpu.core_type = #tpu.core_type<tc>, window_params = [{transform_indices = @transform_0, window_bounds = array<i64: 1, 256, 64>}, {pipeline_mode = #tpu.pipeline_mode<synchronous>, transform_indices = @transform_1, window_bounds = array<i64: 576, 128>}, {pipeline_mode = #tpu.pipeline_mode<synchronous>, transform_indices = @transform_2, window_bounds = array<i64: 1, 128>}, {pipeline_mode = #tpu.pipeline_mode<synchronous>, transform_indices = @transform_3, window_bounds = array<i64: 2, 128>}, {transform_indices = @transform_4, window_bounds = array<i64: 1, 256, 128>}]} {
    %c0 = arith.constant 0 : index
    %c0_0 = arith.constant 0 : index
    %c0_1 = arith.constant 0 : index
    %0 = vector.load %arg1[%c0, %c0_0, %c0_1] : memref<1x256x64xf32, #tpu.memory_space<vmem>>, vector<1x256x64xf32>
    %1 = vector.shape_cast %0 : vector<1x256x64xf32> to vector<256x64xf32>
    %2 = tpu.iota {dimensions = array<i32: 0>} : vector<256x1xi32>
    %c16_i32 = arith.constant 16 : i32
    %c0_i32 = arith.constant 0 : i32
    %3 = arith.cmpi eq, %c16_i32, %c0_i32 : i32
    %c1_i32 = arith.constant 1 : i32
    %4 = arith.select %3, %c1_i32, %c16_i32 : i32
    %5 = vector.broadcast %4 : i32 to vector<256x1xi32>
    %6 = arith.remsi %2, %5 : vector<256x1xi32>
    %c0_i32_2 = arith.constant 0 : i32
    %7 = vector.broadcast %c0_i32_2 : i32 to vector<256x1xi32>
    %8 = arith.cmpi ne, %6, %7 : vector<256x1xi32>
    %c0_i32_3 = arith.constant 0 : i32
    %9 = vector.broadcast %c0_i32_3 : i32 to vector<256x1xi32>
    %10 = arith.cmpi slt, %6, %9 : vector<256x1xi32>
    %c0_i32_4 = arith.constant 0 : i32
    %11 = arith.cmpi slt, %4, %c0_i32_4 : i32
    %12 = vector.broadcast %11 : i1 to vector<256x1xi1>
    %13 = vector.broadcast %12 : vector<256x1xi1> to vector<256x1xi1>
    %14 = arith.xori %10, %13 : vector<256x1xi1>
    %15 = arith.andi %14, %8 : vector<256x1xi1>
    %16 = vector.broadcast %4 : i32 to vector<256x1xi32>
    %17 = arith.addi %6, %16 : vector<256x1xi32>
    %18 = arith.select %15, %17, %6 : vector<256x1xi1>, vector<256x1xi32>
    %19 = vector.extract_strided_slice %1 {offsets = [239, 0], sizes = [17, 64], strides = [1, 1]} : vector<256x64xf32> to vector<17x64xf32>
    %20 = vector.extract_strided_slice %1 {offsets = [0, 0], sizes = [239, 64], strides = [1, 1]} : vector<256x64xf32> to vector<239x64xf32>
    %21 = tpu.concatenate %19, %20 in 0 : vector<17x64xf32>, vector<239x64xf32> -> vector<256x64xf32>
    %c16_i32_5 = arith.constant 16 : i32
    %22 = vector.broadcast %c16_i32_5 : i32 to vector<256x1xi32>
    %23 = arith.cmpi sge, %2, %22 : vector<256x1xi32>
    %c1_i32_6 = arith.constant 1 : i32
    %24 = vector.broadcast %c1_i32_6 : i32 to vector<256x1xi32>
    %25 = arith.cmpi sge, %18, %24 : vector<256x1xi32>
    %26 = arith.andi %23, %25 : vector<256x1xi1>
    %27 = arith.extui %26 : vector<256x1xi1> to vector<256x1xi32>
    %28 = arith.sitofp %27 : vector<256x1xi32> to vector<256x1xf32>
    %29 = vector.broadcast %28 : vector<256x1xf32> to vector<256x64xf32>
    %30 = arith.mulf %21, %29 : vector<256x64xf32>
    %31 = vector.extract_strided_slice %1 {offsets = [240, 0], sizes = [16, 64], strides = [1, 1]} : vector<256x64xf32> to vector<16x64xf32>
    %32 = vector.extract_strided_slice %1 {offsets = [0, 0], sizes = [240, 64], strides = [1, 1]} : vector<256x64xf32> to vector<240x64xf32>
    %33 = tpu.concatenate %31, %32 in 0 : vector<16x64xf32>, vector<240x64xf32> -> vector<256x64xf32>
    %c16_i32_7 = arith.constant 16 : i32
    %34 = vector.broadcast %c16_i32_7 : i32 to vector<256x1xi32>
    %35 = arith.cmpi sge, %2, %34 : vector<256x1xi32>
    %36 = arith.extui %35 : vector<256x1xi1> to vector<256x1xi32>
    %37 = arith.sitofp %36 : vector<256x1xi32> to vector<256x1xf32>
    %38 = vector.broadcast %37 : vector<256x1xf32> to vector<256x64xf32>
    %39 = arith.mulf %33, %38 : vector<256x64xf32>
    %40 = vector.extract_strided_slice %1 {offsets = [241, 0], sizes = [15, 64], strides = [1, 1]} : vector<256x64xf32> to vector<15x64xf32>
    %41 = vector.extract_strided_slice %1 {offsets = [0, 0], sizes = [241, 64], strides = [1, 1]} : vector<256x64xf32> to vector<241x64xf32>
    %42 = tpu.concatenate %40, %41 in 0 : vector<15x64xf32>, vector<241x64xf32> -> vector<256x64xf32>
    %c16_i32_8 = arith.constant 16 : i32
    %43 = vector.broadcast %c16_i32_8 : i32 to vector<256x1xi32>
    %44 = arith.cmpi sge, %2, %43 : vector<256x1xi32>
    %c15_i32 = arith.constant 15 : i32
    %45 = vector.broadcast %c15_i32 : i32 to vector<256x1xi32>
    %46 = arith.cmpi slt, %18, %45 : vector<256x1xi32>
    %47 = arith.andi %44, %46 : vector<256x1xi1>
    %48 = arith.extui %47 : vector<256x1xi1> to vector<256x1xi32>
    %49 = arith.sitofp %48 : vector<256x1xi32> to vector<256x1xf32>
    %50 = vector.broadcast %49 : vector<256x1xf32> to vector<256x64xf32>
    %51 = arith.mulf %42, %50 : vector<256x64xf32>
    %52 = vector.extract_strided_slice %1 {offsets = [255, 0], sizes = [1, 64], strides = [1, 1]} : vector<256x64xf32> to vector<1x64xf32>
    %53 = vector.extract_strided_slice %1 {offsets = [0, 0], sizes = [255, 64], strides = [1, 1]} : vector<256x64xf32> to vector<255x64xf32>
    %54 = tpu.concatenate %52, %53 in 0 : vector<1x64xf32>, vector<255x64xf32> -> vector<256x64xf32>
    %c1_i32_9 = arith.constant 1 : i32
    %55 = vector.broadcast %c1_i32_9 : i32 to vector<256x1xi32>
    %56 = arith.cmpi sge, %18, %55 : vector<256x1xi32>
    %57 = arith.extui %56 : vector<256x1xi1> to vector<256x1xi32>
    %58 = arith.sitofp %57 : vector<256x1xi32> to vector<256x1xf32>
    %59 = vector.broadcast %58 : vector<256x1xf32> to vector<256x64xf32>
    %60 = arith.mulf %54, %59 : vector<256x64xf32>
    %61 = vector.extract_strided_slice %1 {offsets = [1, 0], sizes = [255, 64], strides = [1, 1]} : vector<256x64xf32> to vector<255x64xf32>
    %62 = vector.extract_strided_slice %1 {offsets = [0, 0], sizes = [1, 64], strides = [1, 1]} : vector<256x64xf32> to vector<1x64xf32>
    %63 = tpu.concatenate %61, %62 in 0 : vector<255x64xf32>, vector<1x64xf32> -> vector<256x64xf32>
    %c15_i32_10 = arith.constant 15 : i32
    %64 = vector.broadcast %c15_i32_10 : i32 to vector<256x1xi32>
    %65 = arith.cmpi slt, %18, %64 : vector<256x1xi32>
    %66 = arith.extui %65 : vector<256x1xi1> to vector<256x1xi32>
    %67 = arith.sitofp %66 : vector<256x1xi32> to vector<256x1xf32>
    %68 = vector.broadcast %67 : vector<256x1xf32> to vector<256x64xf32>
    %69 = arith.mulf %63, %68 : vector<256x64xf32>
    %70 = vector.extract_strided_slice %1 {offsets = [15, 0], sizes = [241, 64], strides = [1, 1]} : vector<256x64xf32> to vector<241x64xf32>
    %71 = vector.extract_strided_slice %1 {offsets = [0, 0], sizes = [15, 64], strides = [1, 1]} : vector<256x64xf32> to vector<15x64xf32>
    %72 = tpu.concatenate %70, %71 in 0 : vector<241x64xf32>, vector<15x64xf32> -> vector<256x64xf32>
    %c240_i32 = arith.constant 240 : i32
    %73 = vector.broadcast %c240_i32 : i32 to vector<256x1xi32>
    %74 = arith.cmpi slt, %2, %73 : vector<256x1xi32>
    %c1_i32_11 = arith.constant 1 : i32
    %75 = vector.broadcast %c1_i32_11 : i32 to vector<256x1xi32>
    %76 = arith.cmpi sge, %18, %75 : vector<256x1xi32>
    %77 = arith.andi %74, %76 : vector<256x1xi1>
    %78 = arith.extui %77 : vector<256x1xi1> to vector<256x1xi32>
    %79 = arith.sitofp %78 : vector<256x1xi32> to vector<256x1xf32>
    %80 = vector.broadcast %79 : vector<256x1xf32> to vector<256x64xf32>
    %81 = arith.mulf %72, %80 : vector<256x64xf32>
    %82 = vector.extract_strided_slice %1 {offsets = [16, 0], sizes = [240, 64], strides = [1, 1]} : vector<256x64xf32> to vector<240x64xf32>
    %83 = vector.extract_strided_slice %1 {offsets = [0, 0], sizes = [16, 64], strides = [1, 1]} : vector<256x64xf32> to vector<16x64xf32>
    %84 = tpu.concatenate %82, %83 in 0 : vector<240x64xf32>, vector<16x64xf32> -> vector<256x64xf32>
    %c240_i32_12 = arith.constant 240 : i32
    %85 = vector.broadcast %c240_i32_12 : i32 to vector<256x1xi32>
    %86 = arith.cmpi slt, %2, %85 : vector<256x1xi32>
    %87 = arith.extui %86 : vector<256x1xi1> to vector<256x1xi32>
    %88 = arith.sitofp %87 : vector<256x1xi32> to vector<256x1xf32>
    %89 = vector.broadcast %88 : vector<256x1xf32> to vector<256x64xf32>
    %90 = arith.mulf %84, %89 : vector<256x64xf32>
    %91 = vector.extract_strided_slice %1 {offsets = [17, 0], sizes = [239, 64], strides = [1, 1]} : vector<256x64xf32> to vector<239x64xf32>
    %92 = vector.extract_strided_slice %1 {offsets = [0, 0], sizes = [17, 64], strides = [1, 1]} : vector<256x64xf32> to vector<17x64xf32>
    %93 = tpu.concatenate %91, %92 in 0 : vector<239x64xf32>, vector<17x64xf32> -> vector<256x64xf32>
    %c240_i32_13 = arith.constant 240 : i32
    %94 = vector.broadcast %c240_i32_13 : i32 to vector<256x1xi32>
    %95 = arith.cmpi slt, %2, %94 : vector<256x1xi32>
    %c15_i32_14 = arith.constant 15 : i32
    %96 = vector.broadcast %c15_i32_14 : i32 to vector<256x1xi32>
    %97 = arith.cmpi slt, %18, %96 : vector<256x1xi32>
    %98 = arith.andi %95, %97 : vector<256x1xi1>
    %99 = arith.extui %98 : vector<256x1xi1> to vector<256x1xi32>
    %100 = arith.sitofp %99 : vector<256x1xi32> to vector<256x1xf32>
    %101 = vector.broadcast %100 : vector<256x1xf32> to vector<256x64xf32>
    %102 = arith.mulf %93, %101 : vector<256x64xf32>
    %103 = tpu.concatenate %30, %39, %51, %60, %1, %69, %81, %90, %102 in 1 : vector<256x64xf32>, vector<256x64xf32>, vector<256x64xf32>, vector<256x64xf32>, vector<256x64xf32>, vector<256x64xf32>, vector<256x64xf32>, vector<256x64xf32>, vector<256x64xf32> -> vector<256x576xf32>
    %c0_15 = arith.constant 0 : index
    %c0_16 = arith.constant 0 : index
    %104 = vector.load %arg2[%c0_15, %c0_16] : memref<576x128xf32, #tpu.memory_space<vmem>>, vector<576x128xf32>
    %cst = arith.constant dense<0.000000e+00> : vector<256x128xf32>
    %105 = tpu.matmul %103, %104, %cst {dimension_numbers = #tpu.dot_dimension_numbers<[1], [0], [0], [1], [0, 0, 1, 1], [], []>} : vector<256x576xf32>, vector<576x128xf32>, vector<256x128xf32> -> vector<256x128xf32>
    %c0_17 = arith.constant 0 : index
    %c0_18 = arith.constant 0 : index
    %106 = vector.load %arg3[%c0_17, %c0_18] : memref<1x128xf32, #tpu.memory_space<vmem>>, vector<1x128xf32>
    %107 = vector.broadcast %106 : vector<1x128xf32> to vector<256x128xf32>
    %108 = arith.addf %105, %107 : vector<256x128xf32>
    %c0_19 = arith.constant 0 : index
    %c0_20 = arith.constant 0 : index
    %109 = vector.load %arg4[%c0_19, %c0_20] : memref<2x128xf32, #tpu.memory_space<vmem>>, vector<1x128xf32>
    %110 = vector.broadcast %109 : vector<1x128xf32> to vector<256x128xf32>
    %111 = arith.mulf %108, %110 : vector<256x128xf32>
    %c1 = arith.constant 1 : index
    %c0_21 = arith.constant 0 : index
    %112 = vector.load %arg4[%c1, %c0_21] : memref<2x128xf32, #tpu.memory_space<vmem>>, vector<1x128xf32>
    %113 = vector.broadcast %112 : vector<1x128xf32> to vector<256x128xf32>
    %114 = arith.addf %111, %113 : vector<256x128xf32>
    %cst_22 = arith.constant 0.000000e+00 : f32
    %115 = vector.broadcast %cst_22 : f32 to vector<256x128xf32>
    %116 = arith.cmpf oge, %114, %115 : vector<256x128xf32>
    %cst_23 = arith.constant 0.00999999977 : f32
    %117 = vector.broadcast %cst_23 : f32 to vector<256x128xf32>
    %118 = arith.mulf %117, %114 : vector<256x128xf32>
    %119 = arith.select %116, %114, %118 : vector<256x128xi1>, vector<256x128xf32>
    %c0_24 = arith.constant 0 : index
    %c0_25 = arith.constant 0 : index
    %c0_26 = arith.constant 0 : index
    %120 = vector.load %arg5[%c0_24, %c0_25, %c0_26] : memref<1x256x128xf32, #tpu.memory_space<vmem>>, vector<1x256x128xf32>
    %121 = vector.shape_cast %120 : vector<1x256x128xf32> to vector<256x128xf32>
    %122 = vector.shape_cast %119 : vector<256x128xf32> to vector<1x256x128xf32>
    tpu.vector_store %arg5[%c0_24, %c0_25, %c0_26], %122 {strides = array<i32>} : memref<1x256x128xf32, #tpu.memory_space<vmem>>, vector<1x256x128xf32>,
    return
  }
  func.func @transform_0(%arg0: i32) -> (i32, i32, i32) {
    %c0_i32 = arith.constant 0 : i32
    %c0_i32_0 = arith.constant 0 : i32
    %c0_i32_1 = arith.constant 0 : i32
    return %arg0, %c0_i32, %c0_i32_0 : i32, i32, i32
  }
  func.func @transform_1(%arg0: i32) -> (i32, i32) {
    %c0_i32 = arith.constant 0 : i32
    %c0_i32_0 = arith.constant 0 : i32
    %c0_i32_1 = arith.constant 0 : i32
    return %c0_i32, %c0_i32_0 : i32, i32
  }
  func.func @transform_2(%arg0: i32) -> (i32, i32) {
    %c0_i32 = arith.constant 0 : i32
    %c0_i32_0 = arith.constant 0 : i32
    %c0_i32_1 = arith.constant 0 : i32
    return %c0_i32, %c0_i32_0 : i32, i32
  }
  func.func @transform_3(%arg0: i32) -> (i32, i32) {
    %c0_i32 = arith.constant 0 : i32
    %c0_i32_0 = arith.constant 0 : i32
    %c0_i32_1 = arith.constant 0 : i32
    return %c0_i32, %c0_i32_0 : i32, i32
  }
  func.func @transform_4(%arg0: i32) -> (i32, i32, i32) {
    %c0_i32 = arith.constant 0 : i32
    %c0_i32_0 = arith.constant 0 : i32
    %c0_i32_1 = arith.constant 0 : i32
    return %arg0, %c0_i32, %c0_i32_0 : i32, i32, i32
  }
}

</mosaic_0001>

<llo_original>
// kernel: conv_up_bn_relu.2
$region0: #{conv_up_bn_relu.2}
  #allocation0 [shape = 'u32[]', space=smem, size = 0x4, offset = 0x4, fixed_abs, tag = 'smem constant byte address 0x4 - core index']
  #allocation1 [shape = 'u32[144,128]{1,0:T(1,128)}', space=vmem, size = 0x12000, scoped, tag = 'internal scratch']
  %s0 = inlined_call_operand.vmem [shape: f32[2,256,64], index: 0, kind: input, shape index: {}]
  %s1 = inlined_call_operand.vmem [shape: f32[576,128], index: 1, kind: input, shape index: {}]
  %s2 = inlined_call_operand.vmem [shape: f32[1,128], index: 2, kind: input, shape index: {}]
  %s3 = inlined_call_operand.vmem [shape: f32[2,2,128], index: 3, kind: output, shape index: {}]
  %s4 = sld [smem:[#allocation0]]
  $region45: #{conv_up_bn_relu.2} parent=0
    _
  %s6 = ssub.s32 1, %s4
  %s7 = scalar_select 0, %s6, %s4
  loop: start=0, step=1, limit=4
  $region2: #{conv_up_bn_relu.2} parent=0 // loop_pre_header
    _
  $region3: #{conv_up_bn_relu.2} parent=0 // loop_header
    %s9 = sphi 0, %s13
    %p10 = scmp.ge.s32.totalorder %s9, 4
    %s19 = sphi 0, %s21
    %s22 = sphi 0, %s19
    %s23 = sphi 0, %s22
    %s39 = sphi 0, %s23
    %s43 = sphi 0, %s43
    %s45 = sphi 0, %s43
    %s46 = sphi 0, %s45
    %s60 = sphi 0, %s46
    %s64 = sphi 0, %s64
    %s66 = sphi 0, %s64
    %s67 = sphi 0, %s66
    %s81 = sphi 0, %s67
    %s87 = sphi 0, %s89
    %s90 = sphi 0, %s87
    %s91 = sphi 0, %s90
    %s107 = sphi 0, %s91
  $region4: #{conv_up_bn_relu.2} parent=0 // loop_header_branch
    %12 = sbr.rel (%p10) target = $region8
  $region5: #{conv_up_bn_relu.2} parent=0 // loop_body
    %s14 = ssub.s32 %s9, 1
    %s15 = ssub.s32 %s9, 2
    %s16 = sadd.s32 %s9, 1
    %s17 = ssub.s32 %s9, %s16
    %p18 = scmp.eq.s32.totalorder %s17, 0
    %s20 = sadd.s32 %s19, 1
    %s21 = scalar_select %p18, %s19, %s20
    %p24 = pneg %p18
    %p25 = scmp.eq.s32.totalorder %s9, 1
    %p26 = por %p24, %p25
    %p27 = scmp.ne.s32.totalorder %s19, %s22
    %p28 = scmp.eq.s32.totalorder %s9, 0
    %p29 = por %p27, %p28
    %p30 = scmp.ne.s32.totalorder %s19, %s22
    %p31 = scmp.eq.s32.totalorder %s14, 1
    %p32 = por %p30, %p31
    %p33 = scmp.ne.s32.totalorder %s22, %s23
    %p34 = scmp.eq.s32.totalorder %s14, 0
    %p35 = por %p33, %p34
    %p36 = scmp.ne.s32.totalorder %s22, %s23
    %p37 = scmp.eq.s32.totalorder %s15, 1
    %p38 = por %p36, %p37
    %p40 = scmp.ne.s32.totalorder %s23, %s39
    %p41 = scmp.eq.s32.totalorder %s15, 0
    %p42 = por %p40, %p41
    %s44 = sadd.s32 %s43, 1
    %p47 = scmp.eq.s32.totalorder %s9, 1
    %p48 = scmp.ne.s32.totalorder %s43, %s45
    %p49 = scmp.eq.s32.totalorder %s9, 0
    %p50 = por %p48, %p49
    %p51 = scmp.ne.s32.totalorder %s43, %s45
    %p52 = scmp.eq.s32.totalorder %s14, 1
    %p53 = por %p51, %p52
    %p54 = scmp.ne.s32.totalorder %s45, %s46
    %p55 = scmp.eq.s32.totalorder %s14, 0
    %p56 = por %p54, %p55
    %p57 = scmp.ne.s32.totalorder %s45, %s46
    %p58 = scmp.eq.s32.totalorder %s15, 1
    %p59 = por %p57, %p58
    %p61 = scmp.ne.s32.totalorder %s46, %s60
    %p62 = scmp.eq.s32.totalorder %s15, 0
    %p63 = por %p61, %p62
    %s65 = sadd.s32 %s64, 1
    %p68 = scmp.eq.s32.totalorder %s9, 1
    %p69 = scmp.ne.s32.totalorder %s64, %s66
    %p70 = scmp.eq.s32.totalorder %s9, 0
    %p71 = por %p69, %p70
    %p72 = scmp.ne.s32.totalorder %s64, %s66
    %p73 = scmp.eq.s32.totalorder %s14, 1
    %p74 = por %p72, %p73
    %p75 = scmp.ne.s32.totalorder %s66, %s67
    %p76 = scmp.eq.s32.totalorder %s14, 0
    %p77 = por %p75, %p76
    %p78 = scmp.ne.s32.totalorder %s66, %s67
    %p79 = scmp.eq.s32.totalorder %s15, 1
    %p80 = por %p78, %p79
    %p82 = scmp.ne.s32.totalorder %s67, %s81
    %p83 = scmp.eq.s32.totalorder %s15, 0
    %p84 = por %p82, %p83
    %s85 = ssub.s32 %s9, %s16
    %p86 = scmp.eq.s32.totalorder %s85, 0
    %s88 = sadd.s32 %s87, 1
    %s89 = scalar_select %p86, %s87, %s88
    %p92 = pneg %p86
    %p93 = scmp.eq.s32.totalorder %s9, 1
    %p94 = por %p92, %p93
    %p95 = scmp.ne.s32.totalorder %s87, %s90
    %p96 = scmp.eq.s32.totalorder %s9, 0
    %p97 = por %p95, %p96
    %p98 = scmp.ne.s32.totalorder %s87, %s90
    %p99 = scmp.eq.s32.totalorder %s14, 1
    %p100 = por %p98, %p99
    %p101 = scmp.ne.s32.totalorder %s90, %s91
    %p102 = scmp.eq.s32.totalorder %s14, 0
    %p103 = por %p101, %p102
    %p104 = scmp.ne.s32.totalorder %s90, %s91
    %p105 = scmp.eq.s32.totalorder %s15, 1
    %p106 = por %p104, %p105
    %p108 = scmp.ne.s32.totalorder %s91, %s107
    %p109 = scmp.eq.s32.totalorder %s15, 0
    %p110 = por %p108, %p109
    %p111 = scmp.le.s32.totalorder 1, %s9
    %p112 = scmp.lt.s32.totalorder %s9, 3
    %p113 = pnand %p111, %p112
    %p114 = pneg %p113
    // Predicated region
    $region9: #{conv_up_bn_relu.2} parent=5 // pred_check
      _
    $region10: #{conv_up_bn_relu.2} parent=5 // pred_check_branch
      %116 = sbr.rel (%p113) target = $region12
    $region11: #{conv_up_bn_relu.2} parent=5 // pred_region
      %s117 = ssub.s32 %s9, 1
      // Predicated region
      $region13: #{conv_up_bn_relu.2} parent=11 // pred_check
        %p118 = pneg %p56
      $region14: #{conv_up_bn_relu.2} parent=11 // pred_check_branch
        %120 = sbr.rel (%p118) target = $region16
      $region15: #{conv_up_bn_relu.2} parent=11 // pred_region
        _
      $region16: #{conv_up_bn_relu.2} parent=11 // pred_fallthru
        _
      // Predicated region
      $region17: #{conv_up_bn_relu.2} parent=11 // pred_check
        %p121 = pneg %p77
      $region18: #{conv_up_bn_relu.2} parent=11 // pred_check_branch
        %123 = sbr.rel (%p121) target = $region20
      $region19: #{conv_up_bn_relu.2} parent=11 // pred_region
        _
      $region20: #{conv_up_bn_relu.2} parent=11 // pred_fallthru
        _
    $region12: #{conv_up_bn_relu.2} parent=5 // pred_fallthru
      _
    %p124 = scmp.lt.s32.totalorder %s9, 2
    // Predicated region
    $region21: #{conv_up_bn_relu.2} parent=5 // pred_check
      %p125 = pneg %p124
    $region22: #{conv_up_bn_relu.2} parent=5 // pred_check_branch
      %127 = sbr.rel (%p125) target = $region24
    $region23: #{conv_up_bn_relu.2} parent=5 // pred_region
      // Predicated region
      $region25: #{conv_up_bn_relu.2} parent=23 // pred_check
        %p128 = pneg %p29
      $region26: #{conv_up_bn_relu.2} parent=23 // pred_check_branch
        %130 = sbr.rel (%p128) target = $region28
      $region27: #{conv_up_bn_relu.2} parent=23 // pred_region
        %p131 = scmp.lt.s32.totalorder %s9, 1
        %s132 = scalar_select %p131, %s9, 1
        %s133 = smul.addr %s132, 32
        %s134 = smul.addr %s133, 8
        %s135 = scalar_lea.vmem %s0, %s134
      $region28: #{conv_up_bn_relu.2} parent=23 // pred_fallthru
        _
    $region24: #{conv_up_bn_relu.2} parent=5 // pred_fallthru
      _
    %p136 = scmp.le.s32.totalorder 1, %s9
    %p137 = scmp.lt.s32.totalorder %s9, 3
    %p138 = pnand %p136, %p137
    %p139 = pneg %p138
    // Predicated region
    $region29: #{conv_up_bn_relu.2} parent=5 // pred_check
      _
    $region30: #{conv_up_bn_relu.2} parent=5 // pred_check_branch
      %141 = sbr.rel (%p138) target = $region32
    $region31: #{conv_up_bn_relu.2} parent=5 // pred_region
      %s142 = ssub.s32 %s9, 1
      %p143 = scmp.lt.s32.totalorder %s14, 1
      %s144 = scalar_select %p143, %s14, 1
      %s145 = smul.addr %s144, 32
      %s146 = smul.addr %s145, 8
      %s147 = scalar_lea.vmem %s0, %s146
      %p148 = pneg %p35
      %p149 = pneg %p32
      %p150 = pneg %p56
      %p151 = pneg %p53
      %p152 = pneg %p77
      %p153 = pneg %p74
      %p154 = pneg %p103
      %p155 = pneg %p100
      %p156 = scmp.lt.s32.totalorder %s14, 1
      %s157 = scalar_select %p156, %s14, 1
      %s158 = smul.addr %s157, 2
      %s159 = scalar_lea.vmem %s3, %s158
      %p160 = scmp.lt.s32.totalorder %s14, 1
      %s161 = scalar_select %p160, %s14, 1
      %s162 = smul.addr %s161, 32
      %s163 = smul.addr %s162, 8
      %s164 = scalar_lea.vmem %s0, %s163
      %p165 = scmp.lt.s32.totalorder %s14, 1
      %s166 = scalar_select %p165, %s14, 1
      %s167 = smul.addr %s166, 2
      %s168 = scalar_lea.vmem %s3, %s167
      %v169 = vld [vmem:[%s164] sm:$0xff]
      %v170 = vld [vmem:[%s164 + $0x8] sm:$0xff]
      %v171 = vld [vmem:[%s164 + $0x10] sm:$0xff]
      %v172 = vld [vmem:[%s164 + $0x18] sm:$0xff]
      %v173 = vld [vmem:[%s164 + $0x20] sm:$0xff]
      %v174 = vld [vmem:[%s164 + $0x28] sm:$0xff]
      %v175 = vld [vmem:[%s164 + $0x30] sm:$0xff]
      %v176 = vld [vmem:[%s164 + $0x38] sm:$0xff]
      %v177 = vld [vmem:[%s164 + $0x40] sm:$0xff]
      %v178 = vld [vmem:[%s164 + $0x48] sm:$0xff]
      %v179 = vld [vmem:[%s164 + $0x50] sm:$0xff]
      %v180 = vld [vmem:[%s164 + $0x58] sm:$0xff]
      %v181 = vld [vmem:[%s164 + $0x60] sm:$0xff]
      %v182 = vld [vmem:[%s164 + $0x68] sm:$0xff]
      %v183 = vld [vmem:[%s164 + $0x70] sm:$0xff]
      %v184 = vld [vmem:[%s164 + $0x78] sm:$0xff]
      %v185 = vld [vmem:[%s164 + $0x80] sm:$0xff]
      %v186 = vld [vmem:[%s164 + $0x88] sm:$0xff]
      %v187 = vld [vmem:[%s164 + $0x90] sm:$0xff]
      %v188 = vld [vmem:[%s164 + $0x98] sm:$0xff]
      %v189 = vld [vmem:[%s164 + $0xa0] sm:$0xff]
      %v190 = vld [vmem:[%s164 + $0xa8] sm:$0xff]
      %v191 = vld [vmem:[%s164 + $0xb0] sm:$0xff]
      %v192 = vld [vmem:[%s164 + $0xb8] sm:$0xff]
      %v193 = vld [vmem:[%s164 + $0xc0] sm:$0xff]
      %v194 = vld [vmem:[%s164 + $0xc8] sm:$0xff]
      %v195 = vld [vmem:[%s164 + $0xd0] sm:$0xff]
      %v196 = vld [vmem:[%s164 + $0xd8] sm:$0xff]
      %v197 = vld [vmem:[%s164 + $0xe0] sm:$0xff]
      %v198 = vld [vmem:[%s164 + $0xe8] sm:$0xff]
      %v199 = vld [vmem:[%s164 + $0xf0] sm:$0xff]
      %v200 = vld [vmem:[%s164 + $0xf8] sm:$0xff]
      %v201 = vlaneseq
      %v202 = vshrl.u32 %v201, 7
      %v203 = vadd.s32 %v202, 8
      %v204 = vadd.s32 %v202, 16
      %v205 = vadd.s32 %v202, 24
      %v206 = vadd.s32 %v202, 32
      %v207 = vadd.s32 %v202, 40
      %v208 = vadd.s32 %v202, 48
      %v209 = vadd.s32 %v202, 56
      %v210 = vadd.s32 %v202, 64
      %v211 = vadd.s32 %v202, 72
      %v212 = vadd.s32 %v202, 80
      %v213 = vadd.s32 %v202, 88
      %v214 = vadd.s32 %v202, 96
      %v215 = vadd.s32 %v202, 104
      %v216 = vadd.s32 %v202, 112
      %v217 = vadd.s32 %v202, 120
      %v218 = vadd.s32 %v202, 128
      %v219 = vadd.s32 %v202, 136
      %v220 = vadd.s32 %v202, 144
      %v221 = vadd.s32 %v202, 152
      %v222 = vadd.s32 %v202, 160
      %v223 = vadd.s32 %v202, 168
      %v224 = vadd.s32 %v202, 176
      %v225 = vadd.s32 %v202, 184
      %v226 = vadd.s32 %v202, 192
      %v227 = vadd.s32 %v202, 200
      %v228 = vadd.s32 %v202, 208
      %v229 = vadd.s32 %v202, 216
      %v230 = vadd.s32 %v202, 224
      %v231 = vadd.s32 %v202, 232
      %v232 = vadd.s32 %v202, 240
      %v233 = vadd.s32 %v202, 248
      %vm234 = vcmp.lt.s32.totalorder %v202, 0
      %v235 = vsub.s32 0, %v202
      %v236 = vsel %vm234, %v235, %v202
      %v237 = vshrl.u32 %v236, 4
      %v238 = vand.u32 %v236, 15
      %v239 = vsub.s32 0, %v238
      %v240 = vsel %vm234, %v239, %v238
      %vm241 = vcmp.lt.s32.totalorder %v203, 0
      %v242 = vsub.s32 0, %v203
      %v243 = vsel %vm241, %v242, %v203
      %v244 = vshrl.u32 %v243, 4
      %v245 = vand.u32 %v243, 15
      %v246 = vsub.s32 0, %v245
      %v247 = vsel %vm241, %v246, %v245
      %vm248 = vcmp.lt.s32.totalorder %v204, 0
      %v249 = vsub.s32 0, %v204
      %v250 = vsel %vm248, %v249, %v204
      %v251 = vshrl.u32 %v250, 4
      %v252 = vand.u32 %v250, 15
      %v253 = vsub.s32 0, %v252
      %v254 = vsel %vm248, %v253, %v252
      %vm255 = vcmp.lt.s32.totalorder %v205, 0
      %v256 = vsub.s32 0, %v205
      %v257 = vsel %vm255, %v256, %v205
      %v258 = vshrl.u32 %v257, 4
      %v259 = vand.u32 %v257, 15
      %v260 = vsub.s32 0, %v259
      %v261 = vsel %vm255, %v260, %v259
      %vm262 = vcmp.lt.s32.totalorder %v206, 0
      %v263 = vsub.s32 0, %v206
      %v264 = vsel %vm262, %v263, %v206
      %v265 = vshrl.u32 %v264, 4
      %v266 = vand.u32 %v264, 15
      %v267 = vsub.s32 0, %v266
      %v268 = vsel %vm262, %v267, %v266
      %vm269 = vcmp.lt.s32.totalorder %v207, 0
      %v270 = vsub.s32 0, %v207
      %v271 = vsel %vm269, %v270, %v207
      %v272 = vshrl.u32 %v271, 4
      %v273 = vand.u32 %v271, 15
      %v274 = vsub.s32 0, %v273
      %v275 = vsel %vm269, %v274, %v273
      %vm276 = vcmp.lt.s32.totalorder %v208, 0
      %v277 = vsub.s32 0, %v208
      %v278 = vsel %vm276, %v277, %v208
      %v279 = vshrl.u32 %v278, 4
      %v280 = vand.u32 %v278, 15
      %v281 = vsub.s32 0, %v280
      %v282 = vsel %vm276, %v281, %v280
      %vm283 = vcmp.lt.s32.totalorder %v209, 0
      %v284 = vsub.s32 0, %v209
      %v285 = vsel %vm283, %v284, %v209
      %v286 = vshrl.u32 %v285, 4
      %v287 = vand.u32 %v285, 15
      %v288 = vsub.s32 0, %v287
      %v289 = vsel %vm283, %v288, %v287
      %vm290 = vcmp.lt.s32.totalorder %v210, 0
      %v291 = vsub.s32 0, %v210
      %v292 = vsel %vm290, %v291, %v210
      %v293 = vshrl.u32 %v292, 4
      %v294 = vand.u32 %v292, 15
      %v295 = vsub.s32 0, %v294
      %v296 = vsel %vm290, %v295, %v294
      %vm297 = vcmp.lt.s32.totalorder %v211, 0
      %v298 = vsub.s32 0, %v211
      %v299 = vsel %vm297, %v298, %v211
      %v300 = vshrl.u32 %v299, 4
      %v301 = vand.u32 %v299, 15
      %v302 = vsub.s32 0, %v301
      %v303 = vsel %vm297, %v302, %v301
      %vm304 = vcmp.lt.s32.totalorder %v212, 0
      %v305 = vsub.s32 0, %v212
      %v306 = vsel %vm304, %v305, %v212
      %v307 = vshrl.u32 %v306, 4
      %v308 = vand.u32 %v306, 15
      %v309 = vsub.s32 0, %v308
      %v310 = vsel %vm304, %v309, %v308
      %vm311 = vcmp.lt.s32.totalorder %v213, 0
      %v312 = vsub.s32 0, %v213
      %v313 = vsel %vm311, %v312, %v213
      %v314 = vshrl.u32 %v313, 4
      %v315 = vand.u32 %v313, 15
      %v316 = vsub.s32 0, %v315
      %v317 = vsel %vm311, %v316, %v315
      %vm318 = vcmp.lt.s32.totalorder %v214, 0
      %v319 = vsub.s32 0, %v214
      %v320 = vsel %vm318, %v319, %v214
      %v321 = vshrl.u32 %v320, 4
      %v322 = vand.u32 %v320, 15
      %v323 = vsub.s32 0, %v322
      %v324 = vsel %vm318, %v323, %v322
      %vm325 = vcmp.lt.s32.totalorder %v215, 0
      %v326 = vsub.s32 0, %v215
      %v327 = vsel %vm325, %v326, %v215
      %v328 = vshrl.u32 %v327, 4
      %v329 = vand.u32 %v327, 15
      %v330 = vsub.s32 0, %v329
      %v331 = vsel %vm325, %v330, %v329
      %vm332 = vcmp.lt.s32.totalorder %v216, 0
      %v333 = vsub.s32 0, %v216
      %v334 = vsel %vm332, %v333, %v216
      %v335 = vshrl.u32 %v334, 4
      %v336 = vand.u32 %v334, 15
      %v337 = vsub.s32 0, %v336
      %v338 = vsel %vm332, %v337, %v336
      %vm339 = vcmp.lt.s32.totalorder %v217, 0
      %v340 = vsub.s32 0, %v217
      %v341 = vsel %vm339, %v340, %v217
      %v342 = vshrl.u32 %v341, 4
      %v343 = vand.u32 %v341, 15
      %v344 = vsub.s32 0, %v343
      %v345 = vsel %vm339, %v344, %v343
      %vm346 = vcmp.lt.s32.totalorder %v218, 0
      %v347 = vsub.s32 0, %v218
      %v348 = vsel %vm346, %v347, %v218
      %v349 = vshrl.u32 %v348, 4
      %v350 = vand.u32 %v348, 15
      %v351 = vsub.s32 0, %v350
      %v352 = vsel %vm346, %v351, %v350
      %vm353 = vcmp.lt.s32.totalorder %v219, 0
      %v354 = vsub.s32 0, %v219
      %v355 = vsel %vm353, %v354, %v219
      %v356 = vshrl.u32 %v355, 4
      %v357 = vand.u32 %v355, 15
      %v358 = vsub.s32 0, %v357
      %v359 = vsel %vm353, %v358, %v357
      %vm360 = vcmp.lt.s32.totalorder %v220, 0
      %v361 = vsub.s32 0, %v220
      %v362 = vsel %vm360, %v361, %v220
      %v363 = vshrl.u32 %v362, 4
      %v364 = vand.u32 %v362, 15
      %v365 = vsub.s32 0, %v364
      %v366 = vsel %vm360, %v365, %v364
      %vm367 = vcmp.lt.s32.totalorder %v221, 0
      %v368 = vsub.s32 0, %v221
      %v369 = vsel %vm367, %v368, %v221
      %v370 = vshrl.u32 %v369, 4
      %v371 = vand.u32 %v369, 15
      %v372 = vsub.s32 0, %v371
      %v373 = vsel %vm367, %v372, %v371
      %vm374 = vcmp.lt.s32.totalorder %v222, 0
      %v375 = vsub.s32 0, %v222
      %v376 = vsel %vm374, %v375, %v222
      %v377 = vshrl.u32 %v376, 4
      %v378 = vand.u32 %v376, 15
      %v379 = vsub.s32 0, %v378
      %v380 = vsel %vm374, %v379, %v378
      %vm381 = vcmp.lt.s32.totalorder %v223, 0
      %v382 = vsub.s32 0, %v223
      %v383 = vsel %vm381, %v382, %v223
      %v384 = vshrl.u32 %v383, 4
      %v385 = vand.u32 %v383, 15
      %v386 = vsub.s32 0, %v385
      %v387 = vsel %vm381, %v386, %v385
      %vm388 = vcmp.lt.s32.totalorder %v224, 0
      %v389 = vsub.s32 0, %v224
      %v390 = vsel %vm388, %v389, %v224
      %v391 = vshrl.u32 %v390, 4
      %v392 = vand.u32 %v390, 15
      %v393 = vsub.s32 0, %v392
      %v394 = vsel %vm388, %v393, %v392
      %vm395 = vcmp.lt.s32.totalorder %v225, 0
      %v396 = vsub.s32 0, %v225
      %v397 = vsel %vm395, %v396, %v225
      %v398 = vshrl.u32 %v397, 4
      %v399 = vand.u32 %v397, 15
      %v400 = vsub.s32 0, %v399
      %v401 = vsel %vm395, %v400, %v399
      %vm402 = vcmp.lt.s32.totalorder %v226, 0
      %v403 = vsub.s32 0, %v226
      %v404 = vsel %vm402, %v403, %v226
      %v405 = vshrl.u32 %v404, 4
      %v406 = vand.u32 %v404, 15
      %v407 = vsub.s32 0, %v406
      %v408 = vsel %vm402, %v407, %v406
      %vm409 = vcmp.lt.s32.totalorder %v227, 0
      %v410 = vsub.s32 0, %v227
      %v411 = vsel %vm409, %v410, %v227
      %v412 = vshrl.u32 %v411, 4
      %v413 = vand.u32 %v411, 15
      %v414 = vsub.s32 0, %v413
      %v415 = vsel %vm409, %v414, %v413
      %vm416 = vcmp.lt.s32.totalorder %v228, 0
      %v417 = vsub.s32 0, %v228
      %v418 = vsel %vm416, %v417, %v228
      %v419 = vshrl.u32 %v418, 4
      %v420 = vand.u32 %v418, 15
      %v421 = vsub.s32 0, %v420
      %v422 = vsel %vm416, %v421, %v420
      %vm423 = vcmp.lt.s32.totalorder %v229, 0
      %v424 = vsub.s32 0, %v229
      %v425 = vsel %vm423, %v424, %v229
      %v426 = vshrl.u32 %v425, 4
      %v427 = vand.u32 %v425, 15
      %v428 = vsub.s32 0, %v427
      %v429 = vsel %vm423, %v428, %v427
      %vm430 = vcmp.lt.s32.totalorder %v230, 0
      %v431 = vsub.s32 0, %v230
      %v432 = vsel %vm430, %v431, %v230
      %v433 = vshrl.u32 %v432, 4
      %v434 = vand.u32 %v432, 15
      %v435 = vsub.s32 0, %v434
      %v436 = vsel %vm430, %v435, %v434
      %vm437 = vcmp.lt.s32.totalorder %v231, 0
      %v438 = vsub.s32 0, %v231
      %v439 = vsel %vm437, %v438, %v231
      %v440 = vshrl.u32 %v439, 4
      %v441 = vand.u32 %v439, 15
      %v442 = vsub.s32 0, %v441
      %v443 = vsel %vm437, %v442, %v441
      %vm444 = vcmp.lt.s32.totalorder %v232, 0
      %v445 = vsub.s32 0, %v232
      %v446 = vsel %vm444, %v445, %v232
      %v447 = vshrl.u32 %v446, 4
      %v448 = vand.u32 %v446, 15
      %v449 = vsub.s32 0, %v448
      %v450 = vsel %vm444, %v449, %v448
      %vm451 = vcmp.lt.s32.totalorder %v233, 0
      %v452 = vsub.s32 0, %v233
      %v453 = vsel %vm451, %v452, %v233
      %v454 = vshrl.u32 %v453, 4
      %v455 = vand.u32 %v453, 15
      %v456 = vsub.s32 0, %v455
      %v457 = vsel %vm451, %v456, %v455
      %vm458 = vcmp.ne.s32.totalorder %v240, 0
      %vm459 = vcmp.ne.s32.totalorder %v247, 0
      %vm460 = vcmp.ne.s32.totalorder %v254, 0
      %vm461 = vcmp.ne.s32.totalorder %v261, 0
      %vm462 = vcmp.ne.s32.totalorder %v268, 0
      %vm463 = vcmp.ne.s32.totalorder %v275, 0
      %vm464 = vcmp.ne.s32.totalorder %v282, 0
      %vm465 = vcmp.ne.s32.totalorder %v289, 0
      %vm466 = vcmp.ne.s32.totalorder %v296, 0
      %vm467 = vcmp.ne.s32.totalorder %v303, 0
      %vm468 = vcmp.ne.s32.totalorder %v310, 0
      %vm469 = vcmp.ne.s32.totalorder %v317, 0
      %vm470 = vcmp.ne.s32.totalorder %v324, 0
      %vm471 = vcmp.ne.s32.totalorder %v331, 0
      %vm472 = vcmp.ne.s32.totalorder %v338, 0
      %vm473 = vcmp.ne.s32.totalorder %v345, 0
      %vm474 = vcmp.ne.s32.totalorder %v352, 0
      %vm475 = vcmp.ne.s32.totalorder %v359, 0
      %vm476 = vcmp.ne.s32.totalorder %v366, 0
      %vm477 = vcmp.ne.s32.totalorder %v373, 0
      %vm478 = vcmp.ne.s32.totalorder %v380, 0
      %vm479 = vcmp.ne.s32.totalorder %v387, 0
      %vm480 = vcmp.ne.s32.totalorder %v394, 0
      %vm481 = vcmp.ne.s32.totalorder %v401, 0
      %vm482 = vcmp.ne.s32.totalorder %v408, 0
      %vm483 = vcmp.ne.s32.totalorder %v415, 0
      %vm484 = vcmp.ne.s32.totalorder %v422, 0
      %vm485 = vcmp.ne.s32.totalorder %v429, 0
      %vm486 = vcmp.ne.s32.totalorder %v436, 0
      %vm487 = vcmp.ne.s32.totalorder %v443, 0
      %vm488 = vcmp.ne.s32.totalorder %v450, 0
      %vm489 = vcmp.ne.s32.totalorder %v457, 0
      %vm490 = vcmp.lt.s32.totalorder %v240, 0
      %vm491 = vcmp.lt.s32.totalorder %v247, 0
      %vm492 = vcmp.lt.s32.totalorder %v254, 0
      %vm493 = vcmp.lt.s32.totalorder %v261, 0
      %vm494 = vcmp.lt.s32.totalorder %v268, 0
      %vm495 = vcmp.lt.s32.totalorder %v275, 0
      %vm496 = vcmp.lt.s32.totalorder %v282, 0
      %vm497 = vcmp.lt.s32.totalorder %v289, 0
      %vm498 = vcmp.lt.s32.totalorder %v296, 0
      %vm499 = vcmp.lt.s32.totalorder %v303, 0
      %vm500 = vcmp.lt.s32.totalorder %v310, 0
      %vm501 = vcmp.lt.s32.totalorder %v317, 0
      %vm502 = vcmp.lt.s32.totalorder %v324, 0
      %vm503 = vcmp.lt.s32.totalorder %v331, 0
      %vm504 = vcmp.lt.s32.totalorder %v338, 0
      %vm505 = vcmp.lt.s32.totalorder %v345, 0
      %vm506 = vcmp.lt.s32.totalorder %v352, 0
      %vm507 = vcmp.lt.s32.totalorder %v359, 0
      %vm508 = vcmp.lt.s32.totalorder %v366, 0
      %vm509 = vcmp.lt.s32.totalorder %v373, 0
      %vm510 = vcmp.lt.s32.totalorder %v380, 0
      %vm511 = vcmp.lt.s32.totalorder %v387, 0
      %vm512 = vcmp.lt.s32.totalorder %v394, 0
      %vm513 = vcmp.lt.s32.totalorder %v401, 0
      %vm514 = vcmp.lt.s32.totalorder %v408, 0
      %vm515 = vcmp.lt.s32.totalorder %v415, 0
      %vm516 = vcmp.lt.s32.totalorder %v422, 0
      %vm517 = vcmp.lt.s32.totalorder %v429, 0
      %vm518 = vcmp.lt.s32.totalorder %v436, 0
      %vm519 = vcmp.lt.s32.totalorder %v443, 0
      %vm520 = vcmp.lt.s32.totalorder %v450, 0
      %vm521 = vcmp.lt.s32.totalorder %v457, 0
      %vm522 = vmand %vm490, %vm458
      %vm523 = vmand %vm491, %vm459
      %vm524 = vmand %vm492, %vm460
      %vm525 = vmand %vm493, %vm461
      %vm526 = vmand %vm494, %vm462
      %vm527 = vmand %vm495, %vm463
      %vm528 = vmand %vm496, %vm464
      %vm529 = vmand %vm497, %vm465
      %vm530 = vmand %vm498, %vm466
      %vm531 = vmand %vm499, %vm467
      %vm532 = vmand %vm500, %vm468
      %vm533 = vmand %vm501, %vm469
      %vm534 = vmand %vm502, %vm470
      %vm535 = vmand %vm503, %vm471
      %vm536 = vmand %vm504, %vm472
      %vm537 = vmand %vm505, %vm473
      %vm538 = vmand %vm506, %vm474
      %vm539 = vmand %vm507, %vm475
      %vm540 = vmand %vm508, %vm476
      %vm541 = vmand %vm509, %vm477
      %vm542 = vmand %vm510, %vm478
      %vm543 = vmand %vm511, %vm479
      %vm544 = vmand %vm512, %vm480
      %vm545 = vmand %vm513, %vm481
      %vm546 = vmand %vm514, %vm482
      %vm547 = vmand %vm515, %vm483
      %vm548 = vmand %vm516, %vm484
      %vm549 = vmand %vm517, %vm485
      %vm550 = vmand %vm518, %vm486
      %vm551 = vmand %vm519, %vm487
      %vm552 = vmand %vm520, %vm488
      %vm553 = vmand %vm521, %vm489
      %v554 = vadd.s32 %v240, 16
      %v555 = vadd.s32 %v247, 16
      %v556 = vadd.s32 %v254, 16
      %v557 = vadd.s32 %v261, 16
      %v558 = vadd.s32 %v268, 16
      %v559 = vadd.s32 %v275, 16
      %v560 = vadd.s32 %v282, 16
      %v561 = vadd.s32 %v289, 16
      %v562 = vadd.s32 %v296, 16
      %v563 = vadd.s32 %v303, 16
      %v564 = vadd.s32 %v310, 16
      %v565 = vadd.s32 %v317, 16
      %v566 = vadd.s32 %v324, 16
      %v567 = vadd.s32 %v331, 16
      %v568 = vadd.s32 %v338, 16
      %v569 = vadd.s32 %v345, 16
      %v570 = vadd.s32 %v352, 16
      %v571 = vadd.s32 %v359, 16
      %v572 = vadd.s32 %v366, 16
      %v573 = vadd.s32 %v373, 16
      %v574 = vadd.s32 %v380, 16
      %v575 = vadd.s32 %v387, 16
      %v576 = vadd.s32 %v394, 16
      %v577 = vadd.s32 %v401, 16
      %v578 = vadd.s32 %v408, 16
      %v579 = vadd.s32 %v415, 16
      %v580 = vadd.s32 %v422, 16
      %v581 = vadd.s32 %v429, 16
      %v582 = vadd.s32 %v436, 16
      %v583 = vadd.s32 %v443, 16
      %v584 = vadd.s32 %v450, 16
      %v585 = vadd.s32 %v457, 16
      %v586 = vsel %vm522, %v554, %v240
      %v587 = vsel %vm523, %v555, %v247
      %v588 = vsel %vm524, %v556, %v254
      %v589 = vsel %vm525, %v557, %v261
      %v590 = vsel %vm526, %v558, %v268
      %v591 = vsel %vm527, %v559, %v275
      %v592 = vsel %vm528, %v560, %v282
      %v593 = vsel %vm529, %v561, %v289
      %v594 = vsel %vm530, %v562, %v296
      %v595 = vsel %vm531, %v563, %v303
      %v596 = vsel %vm532, %v564, %v310
      %v597 = vsel %vm533, %v565, %v317
      %v598 = vsel %vm534, %v566, %v324
      %v599 = vsel %vm535, %v567, %v331
      %v600 = vsel %vm536, %v568, %v338
      %v601 = vsel %vm537, %v569, %v345
      %v602 = vsel %vm538, %v570, %v352
      %v603 = vsel %vm539, %v571, %v359
      %v604 = vsel %vm540, %v572, %v366
      %v605 = vsel %vm541, %v573, %v373
      %v606 = vsel %vm542, %v574, %v380
      %v607 = vsel %vm543, %v575, %v387
      %v608 = vsel %vm544, %v576, %v394
      %v609 = vsel %vm545, %v577, %v401
      %v610 = vsel %vm546, %v578, %v408
      %v611 = vsel %vm547, %v579, %v415
      %v612 = vsel %vm548, %v580, %v422
      %v613 = vsel %vm549, %v581, %v429
      %v614 = vsel %vm550, %v582, %v436
      %v615 = vsel %vm551, %v583, %v443
      %v616 = vsel %vm552, %v584, %v450
      %v617 = vsel %vm553, %v585, %v457
      %vm621 = vcmask 1040384
      %v622 = vrot.slane %v198, 7
      %v623 = vrot.slane %v199, 7
      %v624 = vsel %vm621, %v622, %v623
      %v625 = vrot.slane %v200, 7
      %v626 = vsel %vm621, %v623, %v625
      %v659 = vrot.slane %v169, 7
      %v660 = vrot.slane %v170, 7
      %v661 = vsel %vm621, %v659, %v660
      %v662 = vrot.slane %v171, 7
      %v663 = vsel %vm621, %v660, %v662
      %v664 = vrot.slane %v172, 7
      %v665 = vsel %vm621, %v662, %v664
      %v666 = vrot.slane %v173, 7
      %v667 = vsel %vm621, %v664, %v666
      %v668 = vrot.slane %v174, 7
      %v669 = vsel %vm621, %v666, %v668
      %v670 = vrot.slane %v175, 7
      %v671 = vsel %vm621, %v668, %v670
      %v672 = vrot.slane %v176, 7
      %v673 = vsel %vm621, %v670, %v672
      %v674 = vrot.slane %v177, 7
      %v675 = vsel %vm621, %v672, %v674
      %v676 = vrot.slane %v178, 7
      %v677 = vsel %vm621, %v674, %v676
      %v678 = vrot.slane %v179, 7
      %v679 = vsel %vm621, %v676, %v678
      %v680 = vrot.slane %v180, 7
      %v681 = vsel %vm621, %v678, %v680
      %v682 = vrot.slane %v181, 7
      %v683 = vsel %vm621, %v680, %v682
      %v684 = vrot.slane %v182, 7
      %v685 = vsel %vm621, %v682, %v684
      %v686 = vrot.slane %v183, 7
      %v687 = vsel %vm621, %v684, %v686
      %v688 = vrot.slane %v184, 7
      %v689 = vsel %vm621, %v686, %v688
      %v690 = vrot.slane %v185, 7
      %v691 = vsel %vm621, %v688, %v690
      %v692 = vrot.slane %v186, 7
      %v693 = vsel %vm621, %v690, %v692
      %v694 = vrot.slane %v187, 7
      %v695 = vsel %vm621, %v692, %v694
      %v696 = vrot.slane %v188, 7
      %v697 = vsel %vm621, %v694, %v696
      %v698 = vrot.slane %v189, 7
      %v699 = vsel %vm621, %v696, %v698
      %v700 = vrot.slane %v190, 7
      %v701 = vsel %vm621, %v698, %v700
      %v702 = vrot.slane %v191, 7
      %v703 = vsel %vm621, %v700, %v702
      %v704 = vrot.slane %v192, 7
      %v705 = vsel %vm621, %v702, %v704
      %v706 = vrot.slane %v193, 7
      %v707 = vsel %vm621, %v704, %v706
      %v708 = vrot.slane %v194, 7
      %v709 = vsel %vm621, %v706, %v708
      %v710 = vrot.slane %v195, 7
      %v711 = vsel %vm621, %v708, %v710
      %v712 = vrot.slane %v196, 7
      %v713 = vsel %vm621, %v710, %v712
      %v714 = vrot.slane %v197, 7
      %v715 = vsel %vm621, %v712, %v714
      %v716 = vsel %vm621, %v714, %v622
      %v747 = vsel %vm621, %v625, %v659
      %vm748 = vcmp.ge.s32.totalorder %v202, 16
      %vm749 = vcmp.ge.s32.totalorder %v203, 16
      %vm750 = vcmp.ge.s32.totalorder %v204, 16
      %vm751 = vcmp.ge.s32.totalorder %v205, 16
      %vm752 = vcmp.ge.s32.totalorder %v206, 16
      %vm753 = vcmp.ge.s32.totalorder %v207, 16
      %vm754 = vcmp.ge.s32.totalorder %v208, 16
      %vm755 = vcmp.ge.s32.totalorder %v209, 16
      %vm756 = vcmp.ge.s32.totalorder %v210, 16
      %vm757 = vcmp.ge.s32.totalorder %v211, 16
      %vm758 = vcmp.ge.s32.totalorder %v212, 16
      %vm759 = vcmp.ge.s32.totalorder %v213, 16
      %vm760 = vcmp.ge.s32.totalorder %v214, 16
      %vm761 = vcmp.ge.s32.totalorder %v215, 16
      %vm762 = vcmp.ge.s32.totalorder %v216, 16
      %vm763 = vcmp.ge.s32.totalorder %v217, 16
      %vm764 = vcmp.ge.s32.totalorder %v218, 16
      %vm765 = vcmp.ge.s32.totalorder %v219, 16
      %vm766 = vcmp.ge.s32.totalorder %v220, 16
      %vm767 = vcmp.ge.s32.totalorder %v221, 16
      %vm768 = vcmp.ge.s32.totalorder %v222, 16
      %vm769 = vcmp.ge.s32.totalorder %v223, 16
      %vm770 = vcmp.ge.s32.totalorder %v224, 16
      %vm771 = vcmp.ge.s32.totalorder %v225, 16
      %vm772 = vcmp.ge.s32.totalorder %v226, 16
      %vm773 = vcmp.ge.s32.totalorder %v227, 16
      %vm774 = vcmp.ge.s32.totalorder %v228, 16
      %vm775 = vcmp.ge.s32.totalorder %v229, 16
      %vm776 = vcmp.ge.s32.totalorder %v230, 16
      %vm777 = vcmp.ge.s32.totalorder %v231, 16
      %vm778 = vcmp.ge.s32.totalorder %v232, 16
      %vm779 = vcmp.ge.s32.totalorder %v233, 16
      %vm780 = vcmp.ge.s32.totalorder %v586, 1
      %vm781 = vcmp.ge.s32.totalorder %v587, 1
      %vm782 = vcmp.ge.s32.totalorder %v588, 1
      %vm783 = vcmp.ge.s32.totalorder %v589, 1
      %vm784 = vcmp.ge.s32.totalorder %v590, 1
      %vm785 = vcmp.ge.s32.totalorder %v591, 1
      %vm786 = vcmp.ge.s32.totalorder %v592, 1
      %vm787 = vcmp.ge.s32.totalorder %v593, 1
      %vm788 = vcmp.ge.s32.totalorder %v594, 1
      %vm789 = vcmp.ge.s32.totalorder %v595, 1
      %vm790 = vcmp.ge.s32.totalorder %v596, 1
      %vm791 = vcmp.ge.s32.totalorder %v597, 1
      %vm792 = vcmp.ge.s32.totalorder %v598, 1
      %vm793 = vcmp.ge.s32.totalorder %v599, 1
      %vm794 = vcmp.ge.s32.totalorder %v600, 1
      %vm795 = vcmp.ge.s32.totalorder %v601, 1
      %vm796 = vcmp.ge.s32.totalorder %v602, 1
      %vm797 = vcmp.ge.s32.totalorder %v603, 1
      %vm798 = vcmp.ge.s32.totalorder %v604, 1
      %vm799 = vcmp.ge.s32.totalorder %v605, 1
      %vm800 = vcmp.ge.s32.totalorder %v606, 1
      %vm801 = vcmp.ge.s32.totalorder %v607, 1
      %vm802 = vcmp.ge.s32.totalorder %v608, 1
      %vm803 = vcmp.ge.s32.totalorder %v609, 1
      %vm804 = vcmp.ge.s32.totalorder %v610, 1
      %vm805 = vcmp.ge.s32.totalorder %v611, 1
      %vm806 = vcmp.ge.s32.totalorder %v612, 1
      %vm807 = vcmp.ge.s32.totalorder %v613, 1
      %vm808 = vcmp.ge.s32.totalorder %v614, 1
      %vm809 = vcmp.ge.s32.totalorder %v615, 1
      %vm810 = vcmp.ge.s32.totalorder %v616, 1
      %vm811 = vcmp.ge.s32.totalorder %v617, 1
      %vm812 = vmand %vm748, %vm780
      %vm813 = vmand %vm749, %vm781
      %vm814 = vmand %vm750, %vm782
      %vm815 = vmand %vm751, %vm783
      %vm816 = vmand %vm752, %vm784
      %vm817 = vmand %vm753, %vm785
      %vm818 = vmand %vm754, %vm786
      %vm819 = vmand %vm755, %vm787
      %vm820 = vmand %vm756, %vm788
      %vm821 = vmand %vm757, %vm789
      %vm822 = vmand %vm758, %vm790
      %vm823 = vmand %vm759, %vm791
      %vm824 = vmand %vm760, %vm792
      %vm825 = vmand %vm761, %vm793
      %vm826 = vmand %vm762, %vm794
      %vm827 = vmand %vm763, %vm795
      %vm828 = vmand %vm764, %vm796
      %vm829 = vmand %vm765, %vm797
      %vm830 = vmand %vm766, %vm798
      %vm831 = vmand %vm767, %vm799
      %vm832 = vmand %vm768, %vm800
      %vm833 = vmand %vm769, %vm801
      %vm834 = vmand %vm770, %vm802
      %vm835 = vmand %vm771, %vm803
      %vm836 = vmand %vm772, %vm804
      %vm837 = vmand %vm773, %vm805
      %vm838 = vmand %vm774, %vm806
      %vm839 = vmand %vm775, %vm807
      %vm840 = vmand %vm776, %vm808
      %vm841 = vmand %vm777, %vm809
      %vm842 = vmand %vm778, %vm810
      %vm843 = vmand %vm779, %vm811
      %v844 = vsel %vm812, 1, 0
      %v845 = vsel %vm813, 1, 0
      %v846 = vsel %vm814, 1, 0
      %v847 = vsel %vm815, 1, 0
      %v848 = vsel %vm816, 1, 0
      %v849 = vsel %vm817, 1, 0
      %v850 = vsel %vm818, 1, 0
      %v851 = vsel %vm819, 1, 0
      %v852 = vsel %vm820, 1, 0
      %v853 = vsel %vm821, 1, 0
      %v854 = vsel %vm822, 1, 0
      %v855 = vsel %vm823, 1, 0
      %v856 = vsel %vm824, 1, 0
      %v857 = vsel %vm825, 1, 0
      %v858 = vsel %vm826, 1, 0
      %v859 = vsel %vm827, 1, 0
      %v860 = vsel %vm828, 1, 0
      %v861 = vsel %vm829, 1, 0
      %v862 = vsel %vm830, 1, 0
      %v863 = vsel %vm831, 1, 0
      %v864 = vsel %vm832, 1, 0
      %v865 = vsel %vm833, 1, 0
      %v866 = vsel %vm834, 1, 0
      %v867 = vsel %vm835, 1, 0
      %v868 = vsel %vm836, 1, 0
      %v869 = vsel %vm837, 1, 0
      %v870 = vsel %vm838, 1, 0
      %v871 = vsel %vm839, 1, 0
      %v872 = vsel %vm840, 1, 0
      %v873 = vsel %vm841, 1, 0
      %v874 = vsel %vm842, 1, 0
      %v875 = vsel %vm843, 1, 0
      %v876 = vcvt.s32.f32 %v844
      %v877 = vcvt.s32.f32 %v845
      %v878 = vcvt.s32.f32 %v846
      %v879 = vcvt.s32.f32 %v847
      %v880 = vcvt.s32.f32 %v848
      %v881 = vcvt.s32.f32 %v849
      %v882 = vcvt.s32.f32 %v850
      %v883 = vcvt.s32.f32 %v851
      %v884 = vcvt.s32.f32 %v852
      %v885 = vcvt.s32.f32 %v853
      %v886 = vcvt.s32.f32 %v854
      %v887 = vcvt.s32.f32 %v855
      %v888 = vcvt.s32.f32 %v856
      %v889 = vcvt.s32.f32 %v857
      %v890 = vcvt.s32.f32 %v858
      %v891 = vcvt.s32.f32 %v859
      %v892 = vcvt.s32.f32 %v860
      %v893 = vcvt.s32.f32 %v861
      %v894 = vcvt.s32.f32 %v862
      %v895 = vcvt.s32.f32 %v863
      %v896 = vcvt.s32.f32 %v864
      %v897 = vcvt.s32.f32 %v865
      %v898 = vcvt.s32.f32 %v866
      %v899 = vcvt.s32.f32 %v867
      %v900 = vcvt.s32.f32 %v868
      %v901 = vcvt.s32.f32 %v869
      %v902 = vcvt.s32.f32 %v870
      %v903 = vcvt.s32.f32 %v871
      %v904 = vcvt.s32.f32 %v872
      %v905 = vcvt.s32.f32 %v873
      %v906 = vcvt.s32.f32 %v874
      %v907 = vcvt.s32.f32 %v875
      %v908 = vmul.f32 %v624, %v876
      %v909 = vmul.f32 %v626, %v877
      %v910 = vmul.f32 %v747, %v878
      %v911 = vmul.f32 %v661, %v879
      %v912 = vmul.f32 %v663, %v880
      %v913 = vmul.f32 %v665, %v881
      %v914 = vmul.f32 %v667, %v882
      %v915 = vmul.f32 %v669, %v883
      %v916 = vmul.f32 %v671, %v884
      %v917 = vmul.f32 %v673, %v885
      %v918 = vmul.f32 %v675, %v886
      %v919 = vmul.f32 %v677, %v887
      %v920 = vmul.f32 %v679, %v888
      %v921 = vmul.f32 %v681, %v889
      %v922 = vmul.f32 %v683, %v890
      %v923 = vmul.f32 %v685, %v891
      %v924 = vmul.f32 %v687, %v892
      %v925 = vmul.f32 %v689, %v893
      %v926 = vmul.f32 %v691, %v894
      %v927 = vmul.f32 %v693, %v895
      %v928 = vmul.f32 %v695, %v896
      %v929 = vmul.f32 %v697, %v897
      %v930 = vmul.f32 %v699, %v898
      %v931 = vmul.f32 %v701, %v899
      %v932 = vmul.f32 %v703, %v900
      %v933 = vmul.f32 %v705, %v901
      %v934 = vmul.f32 %v707, %v902
      %v935 = vmul.f32 %v709, %v903
      %v936 = vmul.f32 %v711, %v904
      %v937 = vmul.f32 %v713, %v905
      %v938 = vmul.f32 %v715, %v906
      %v939 = vmul.f32 %v716, %v907
      %v940 = vsel %vm748, 1, 0
      %v941 = vsel %vm749, 1, 0
      %v942 = vsel %vm750, 1, 0
      %v943 = vsel %vm751, 1, 0
      %v944 = vsel %vm752, 1, 0
      %v945 = vsel %vm753, 1, 0
      %v946 = vsel %vm754, 1, 0
      %v947 = vsel %vm755, 1, 0
      %v948 = vsel %vm756, 1, 0
      %v949 = vsel %vm757, 1, 0
      %v950 = vsel %vm758, 1, 0
      %v951 = vsel %vm759, 1, 0
      %v952 = vsel %vm760, 1, 0
      %v953 = vsel %vm761, 1, 0
      %v954 = vsel %vm762, 1, 0
      %v955 = vsel %vm763, 1, 0
      %v956 = vsel %vm764, 1, 0
      %v957 = vsel %vm765, 1, 0
      %v958 = vsel %vm766, 1, 0
      %v959 = vsel %vm767, 1, 0
      %v960 = vsel %vm768, 1, 0
      %v961 = vsel %vm769, 1, 0
      %v962 = vsel %vm770, 1, 0
      %v963 = vsel %vm771, 1, 0
      %v964 = vsel %vm772, 1, 0
      %v965 = vsel %vm773, 1, 0
      %v966 = vsel %vm774, 1, 0
      %v967 = vsel %vm775, 1, 0
      %v968 = vsel %vm776, 1, 0
      %v969 = vsel %vm777, 1, 0
      %v970 = vsel %vm778, 1, 0
      %v971 = vsel %vm779, 1, 0
      %v972 = vcvt.s32.f32 %v940
      %v973 = vcvt.s32.f32 %v941
      %v974 = vcvt.s32.f32 %v942
      %v975 = vcvt.s32.f32 %v943
      %v976 = vcvt.s32.f32 %v944
      %v977 = vcvt.s32.f32 %v945
      %v978 = vcvt.s32.f32 %v946
      %v979 = vcvt.s32.f32 %v947
      %v980 = vcvt.s32.f32 %v948
      %v981 = vcvt.s32.f32 %v949
      %v982 = vcvt.s32.f32 %v950
      %v983 = vcvt.s32.f32 %v951
      %v984 = vcvt.s32.f32 %v952
      %v985 = vcvt.s32.f32 %v953
      %v986 = vcvt.s32.f32 %v954
      %v987 = vcvt.s32.f32 %v955
      %v988 = vcvt.s32.f32 %v956
      %v989 = vcvt.s32.f32 %v957
      %v990 = vcvt.s32.f32 %v958
      %v991 = vcvt.s32.f32 %v959
      %v992 = vcvt.s32.f32 %v960
      %v993 = vcvt.s32.f32 %v961
      %v994 = vcvt.s32.f32 %v962
      %v995 = vcvt.s32.f32 %v963
      %v996 = vcvt.s32.f32 %v964
      %v997 = vcvt.s32.f32 %v965
      %v998 = vcvt.s32.f32 %v966
      %v999 = vcvt.s32.f32 %v967
      %v1000 = vcvt.s32.f32 %v968
      %v1001 = vcvt.s32.f32 %v969
      %v1002 = vcvt.s32.f32 %v970
      %v1003 = vcvt.s32.f32 %v971
      %v1004 = vmul.f32 %v199, %v972
      %v1005 = vmul.f32 %v200, %v973
      %v1006 = vmul.f32 %v169, %v974
      %v1007 = vmul.f32 %v170, %v975
      %v1008 = vmul.f32 %v171, %v976
      %v1009 = vmul.f32 %v172, %v977
      %v1010 = vmul.f32 %v173, %v978
      %v1011 = vmul.f32 %v174, %v979
      %v1012 = vmul.f32 %v175, %v980
      %v1013 = vmul.f32 %v176, %v981
      %v1014 = vmul.f32 %v177, %v982
      %v1015 = vmul.f32 %v178, %v983
      %v1016 = vmul.f32 %v179, %v984
      %v1017 = vmul.f32 %v180, %v985
      %v1018 = vmul.f32 %v181, %v986
      %v1019 = vmul.f32 %v182, %v987
      %v1020 = vmul.f32 %v183, %v988
      %v1021 = vmul.f32 %v184, %v989
      %v1022 = vmul.f32 %v185, %v990
      %v1023 = vmul.f32 %v186, %v991
      %v1024 = vmul.f32 %v187, %v992
      %v1025 = vmul.f32 %v188, %v993
      %v1026 = vmul.f32 %v189, %v994
      %v1027 = vmul.f32 %v190, %v995
      %v1028 = vmul.f32 %v191, %v996
      %v1029 = vmul.f32 %v192, %v997
      %v1030 = vmul.f32 %v193, %v998
      %v1031 = vmul.f32 %v194, %v999
      %v1032 = vmul.f32 %v195, %v1000
      %v1033 = vmul.f32 %v196, %v1001
      %v1034 = vmul.f32 %v197, %v1002
      %v1035 = vmul.f32 %v198, %v1003
      %vm1036 = vcmask 1046528
      %v1037 = vrot.slane %v199, 1
      %v1038 = vrot.slane %v200, 1
      %v1039 = vsel %vm1036, %v1037, %v1038
      %v1042 = vrot.slane %v169, 1
      %v1043 = vrot.slane %v170, 1
      %v1044 = vsel %vm1036, %v1042, %v1043
      %v1045 = vrot.slane %v171, 1
      %v1046 = vsel %vm1036, %v1043, %v1045
      %v1047 = vrot.slane %v172, 1
      %v1048 = vsel %vm1036, %v1045, %v1047
      %v1049 = vrot.slane %v173, 1
      %v1050 = vsel %vm1036, %v1047, %v1049
      %v1051 = vrot.slane %v174, 1
      %v1052 = vsel %vm1036, %v1049, %v1051
      %v1053 = vrot.slane %v175, 1
      %v1054 = vsel %vm1036, %v1051, %v1053
      %v1055 = vrot.slane %v176, 1
      %v1056 = vsel %vm1036, %v1053, %v1055
      %v1057 = vrot.slane %v177, 1
      %v1058 = vsel %vm1036, %v1055, %v1057
      %v1059 = vrot.slane %v178, 1
      %v1060 = vsel %vm1036, %v1057, %v1059
      %v1061 = vrot.slane %v179, 1
      %v1062 = vsel %vm1036, %v1059, %v1061
      %v1063 = vrot.slane %v180, 1
      %v1064 = vsel %vm1036, %v1061, %v1063
      %v1065 = vrot.slane %v181, 1
      %v1066 = vsel %vm1036, %v1063, %v1065
      %v1067 = vrot.slane %v182, 1
      %v1068 = vsel %vm1036, %v1065, %v1067
      %v1069 = vrot.slane %v183, 1
      %v1070 = vsel %vm1036, %v1067, %v1069
      %v1071 = vrot.slane %v184, 1
      %v1072 = vsel %vm1036, %v1069, %v1071
      %v1073 = vrot.slane %v185, 1
      %v1074 = vsel %vm1036, %v1071, %v1073
      %v1075 = vrot.slane %v186, 1
      %v1076 = vsel %vm1036, %v1073, %v1075
      %v1077 = vrot.slane %v187, 1
      %v1078 = vsel %vm1036, %v1075, %v1077
      %v1079 = vrot.slane %v188, 1
      %v1080 = vsel %vm1036, %v1077, %v1079
      %v1081 = vrot.slane %v189, 1
      %v1082 = vsel %vm1036, %v1079, %v1081
      %v1083 = vrot.slane %v190, 1
      %v1084 = vsel %vm1036, %v1081, %v1083
      %v1085 = vrot.slane %v191, 1
      %v1086 = vsel %vm1036, %v1083, %v1085
      %v1087 = vrot.slane %v192, 1
      %v1088 = vsel %vm1036, %v1085, %v1087
      %v1089 = vrot.slane %v193, 1
      %v1090 = vsel %vm1036, %v1087, %v1089
      %v1091 = vrot.slane %v194, 1
      %v1092 = vsel %vm1036, %v1089, %v1091
      %v1093 = vrot.slane %v195, 1
      %v1094 = vsel %vm1036, %v1091, %v1093
      %v1095 = vrot.slane %v196, 1
      %v1096 = vsel %vm1036, %v1093, %v1095
      %v1097 = vrot.slane %v197, 1
      %v1098 = vsel %vm1036, %v1095, %v1097
      %v1099 = vrot.slane %v198, 1
      %v1100 = vsel %vm1036, %v1097, %v1099
      %v1101 = vsel %vm1036, %v1099, %v1037
      %v1133 = vsel %vm1036, %v1038, %v1042
      %vm1134 = vcmp.lt.s32.totalorder %v586, 15
      %vm1135 = vcmp.lt.s32.totalorder %v587, 15
      %vm1136 = vcmp.lt.s32.totalorder %v588, 15
      %vm1137 = vcmp.lt.s32.totalorder %v589, 15
      %vm1138 = vcmp.lt.s32.totalorder %v590, 15
      %vm1139 = vcmp.lt.s32.totalorder %v591, 15
      %vm1140 = vcmp.lt.s32.totalorder %v592, 15
      %vm1141 = vcmp.lt.s32.totalorder %v593, 15
      %vm1142 = vcmp.lt.s32.totalorder %v594, 15
      %vm1143 = vcmp.lt.s32.totalorder %v595, 15
      %vm1144 = vcmp.lt.s32.totalorder %v596, 15
      %vm1145 = vcmp.lt.s32.totalorder %v597, 15
      %vm1146 = vcmp.lt.s32.totalorder %v598, 15
      %vm1147 = vcmp.lt.s32.totalorder %v599, 15
      %vm1148 = vcmp.lt.s32.totalorder %v600, 15
      %vm1149 = vcmp.lt.s32.totalorder %v601, 15
      %vm1150 = vcmp.lt.s32.totalorder %v602, 15
      %vm1151 = vcmp.lt.s32.totalorder %v603, 15
      %vm1152 = vcmp.lt.s32.totalorder %v604, 15
      %vm1153 = vcmp.lt.s32.totalorder %v605, 15
      %vm1154 = vcmp.lt.s32.totalorder %v606, 15
      %vm1155 = vcmp.lt.s32.totalorder %v607, 15
      %vm1156 = vcmp.lt.s32.totalorder %v608, 15
      %vm1157 = vcmp.lt.s32.totalorder %v609, 15
      %vm1158 = vcmp.lt.s32.totalorder %v610, 15
      %vm1159 = vcmp.lt.s32.totalorder %v611, 15
      %vm1160 = vcmp.lt.s32.totalorder %v612, 15
      %vm1161 = vcmp.lt.s32.totalorder %v613, 15
      %vm1162 = vcmp.lt.s32.totalorder %v614, 15
      %vm1163 = vcmp.lt.s32.totalorder %v615, 15
      %vm1164 = vcmp.lt.s32.totalorder %v616, 15
      %vm1165 = vcmp.lt.s32.totalorder %v617, 15
      %vm1166 = vmand %vm748, %vm1134
      %vm1167 = vmand %vm749, %vm1135
      %vm1168 = vmand %vm750, %vm1136
      %vm1169 = vmand %vm751, %vm1137
      %vm1170 = vmand %vm752, %vm1138
      %vm1171 = vmand %vm753, %vm1139
      %vm1172 = vmand %vm754, %vm1140
      %vm1173 = vmand %vm755, %vm1141
      %vm1174 = vmand %vm756, %vm1142
      %vm1175 = vmand %vm757, %vm1143
      %vm1176 = vmand %vm758, %vm1144
      %vm1177 = vmand %vm759, %vm1145
      %vm1178 = vmand %vm760, %vm1146
      %vm1179 = vmand %vm761, %vm1147
      %vm1180 = vmand %vm762, %vm1148
      %vm1181 = vmand %vm763, %vm1149
      %vm1182 = vmand %vm764, %vm1150
      %vm1183 = vmand %vm765, %vm1151
      %vm1184 = vmand %vm766, %vm1152
      %vm1185 = vmand %vm767, %vm1153
      %vm1186 = vmand %vm768, %vm1154
      %vm1187 = vmand %vm769, %vm1155
      %vm1188 = vmand %vm770, %vm1156
      %vm1189 = vmand %vm771, %vm1157
      %vm1190 = vmand %vm772, %vm1158
      %vm1191 = vmand %vm773, %vm1159
      %vm1192 = vmand %vm774, %vm1160
      %vm1193 = vmand %vm775, %vm1161
      %vm1194 = vmand %vm776, %vm1162
      %vm1195 = vmand %vm777, %vm1163
      %vm1196 = vmand %vm778, %vm1164
      %vm1197 = vmand %vm779, %vm1165
      %v1198 = vsel %vm1166, 1, 0
      %v1199 = vsel %vm1167, 1, 0
      %v1200 = vsel %vm1168, 1, 0
      %v1201 = vsel %vm1169, 1, 0
      %v1202 = vsel %vm1170, 1, 0
      %v1203 = vsel %vm1171, 1, 0
      %v1204 = vsel %vm1172, 1, 0
      %v1205 = vsel %vm1173, 1, 0
      %v1206 = vsel %vm1174, 1, 0
      %v1207 = vsel %vm1175, 1, 0
      %v1208 = vsel %vm1176, 1, 0
      %v1209 = vsel %vm1177, 1, 0
      %v1210 = vsel %vm1178, 1, 0
      %v1211 = vsel %vm1179, 1, 0
      %v1212 = vsel %vm1180, 1, 0
      %v1213 = vsel %vm1181, 1, 0
      %v1214 = vsel %vm1182, 1, 0
      %v1215 = vsel %vm1183, 1, 0
      %v1216 = vsel %vm1184, 1, 0
      %v1217 = vsel %vm1185, 1, 0
      %v1218 = vsel %vm1186, 1, 0
      %v1219 = vsel %vm1187, 1, 0
      %v1220 = vsel %vm1188, 1, 0
      %v1221 = vsel %vm1189, 1, 0
      %v1222 = vsel %vm1190, 1, 0
      %v1223 = vsel %vm1191, 1, 0
      %v1224 = vsel %vm1192, 1, 0
      %v1225 = vsel %vm1193, 1, 0
      %v1226 = vsel %vm1194, 1, 0
      %v1227 = vsel %vm1195, 1, 0
      %v1228 = vsel %vm1196, 1, 0
      %v1229 = vsel %vm1197, 1, 0
      %v1230 = vcvt.s32.f32 %v1198
      %v1231 = vcvt.s32.f32 %v1199
      %v1232 = vcvt.s32.f32 %v1200
      %v1233 = vcvt.s32.f32 %v1201
      %v1234 = vcvt.s32.f32 %v1202
      %v1235 = vcvt.s32.f32 %v1203
      %v1236 = vcvt.s32.f32 %v1204
      %v1237 = vcvt.s32.f32 %v1205
      %v1238 = vcvt.s32.f32 %v1206
      %v1239 = vcvt.s32.f32 %v1207
      %v1240 = vcvt.s32.f32 %v1208
      %v1241 = vcvt.s32.f32 %v1209
      %v1242 = vcvt.s32.f32 %v1210
      %v1243 = vcvt.s32.f32 %v1211
      %v1244 = vcvt.s32.f32 %v1212
      %v1245 = vcvt.s32.f32 %v1213
      %v1246 = vcvt.s32.f32 %v1214
      %v1247 = vcvt.s32.f32 %v1215
      %v1248 = vcvt.s32.f32 %v1216
      %v1249 = vcvt.s32.f32 %v1217
      %v1250 = vcvt.s32.f32 %v1218
      %v1251 = vcvt.s32.f32 %v1219
      %v1252 = vcvt.s32.f32 %v1220
      %v1253 = vcvt.s32.f32 %v1221
      %v1254 = vcvt.s32.f32 %v1222
      %v1255 = vcvt.s32.f32 %v1223
      %v1256 = vcvt.s32.f32 %v1224
      %v1257 = vcvt.s32.f32 %v1225
      %v1258 = vcvt.s32.f32 %v1226
      %v1259 = vcvt.s32.f32 %v1227
      %v1260 = vcvt.s32.f32 %v1228
      %v1261 = vcvt.s32.f32 %v1229
      %v1262 = vmul.f32 %v1039, %v1230
      %v1263 = vmul.f32 %v1133, %v1231
      %v1264 = vmul.f32 %v1044, %v1232
      %v1265 = vmul.f32 %v1046, %v1233
      %v1266 = vmul.f32 %v1048, %v1234
      %v1267 = vmul.f32 %v1050, %v1235
      %v1268 = vmul.f32 %v1052, %v1236
      %v1269 = vmul.f32 %v1054, %v1237
      %v1270 = vmul.f32 %v1056, %v1238
      %v1271 = vmul.f32 %v1058, %v1239
      %v1272 = vmul.f32 %v1060, %v1240
      %v1273 = vmul.f32 %v1062, %v1241
      %v1274 = vmul.f32 %v1064, %v1242
      %v1275 = vmul.f32 %v1066, %v1243
      %v1276 = vmul.f32 %v1068, %v1244
      %v1277 = vmul.f32 %v1070, %v1245
      %v1278 = vmul.f32 %v1072, %v1246
      %v1279 = vmul.f32 %v1074, %v1247
      %v1280 = vmul.f32 %v1076, %v1248
      %v1281 = vmul.f32 %v1078, %v1249
      %v1282 = vmul.f32 %v1080, %v1250
      %v1283 = vmul.f32 %v1082, %v1251
      %v1284 = vmul.f32 %v1084, %v1252
      %v1285 = vmul.f32 %v1086, %v1253
      %v1286 = vmul.f32 %v1088, %v1254
      %v1287 = vmul.f32 %v1090, %v1255
      %v1288 = vmul.f32 %v1092, %v1256
      %v1289 = vmul.f32 %v1094, %v1257
      %v1290 = vmul.f32 %v1096, %v1258
      %v1291 = vmul.f32 %v1098, %v1259
      %v1292 = vmul.f32 %v1100, %v1260
      %v1293 = vmul.f32 %v1101, %v1261
      %v1294 = vsel %vm780, 1, 0
      %v1295 = vsel %vm781, 1, 0
      %v1296 = vsel %vm782, 1, 0
      %v1297 = vsel %vm783, 1, 0
      %v1298 = vsel %vm784, 1, 0
      %v1299 = vsel %vm785, 1, 0
      %v1300 = vsel %vm786, 1, 0
      %v1301 = vsel %vm787, 1, 0
      %v1302 = vsel %vm788, 1, 0
      %v1303 = vsel %vm789, 1, 0
      %v1304 = vsel %vm790, 1, 0
      %v1305 = vsel %vm791, 1, 0
      %v1306 = vsel %vm792, 1, 0
      %v1307 = vsel %vm793, 1, 0
      %v1308 = vsel %vm794, 1, 0
      %v1309 = vsel %vm795, 1, 0
      %v1310 = vsel %vm796, 1, 0
      %v1311 = vsel %vm797, 1, 0
      %v1312 = vsel %vm798, 1, 0
      %v1313 = vsel %vm799, 1, 0
      %v1314 = vsel %vm800, 1, 0
      %v1315 = vsel %vm801, 1, 0
      %v1316 = vsel %vm802, 1, 0
      %v1317 = vsel %vm803, 1, 0
      %v1318 = vsel %vm804, 1, 0
      %v1319 = vsel %vm805, 1, 0
      %v1320 = vsel %vm806, 1, 0
      %v1321 = vsel %vm807, 1, 0
      %v1322 = vsel %vm808, 1, 0
      %v1323 = vsel %vm809, 1, 0
      %v1324 = vsel %vm810, 1, 0
      %v1325 = vsel %vm811, 1, 0
      %v1326 = vcvt.s32.f32 %v1294
      %v1327 = vcvt.s32.f32 %v1295
      %v1328 = vcvt.s32.f32 %v1296
      %v1329 = vcvt.s32.f32 %v1297
      %v1330 = vcvt.s32.f32 %v1298
      %v1331 = vcvt.s32.f32 %v1299
      %v1332 = vcvt.s32.f32 %v1300
      %v1333 = vcvt.s32.f32 %v1301
      %v1334 = vcvt.s32.f32 %v1302
      %v1335 = vcvt.s32.f32 %v1303
      %v1336 = vcvt.s32.f32 %v1304
      %v1337 = vcvt.s32.f32 %v1305
      %v1338 = vcvt.s32.f32 %v1306
      %v1339 = vcvt.s32.f32 %v1307
      %v1340 = vcvt.s32.f32 %v1308
      %v1341 = vcvt.s32.f32 %v1309
      %v1342 = vcvt.s32.f32 %v1310
      %v1343 = vcvt.s32.f32 %v1311
      %v1344 = vcvt.s32.f32 %v1312
      %v1345 = vcvt.s32.f32 %v1313
      %v1346 = vcvt.s32.f32 %v1314
      %v1347 = vcvt.s32.f32 %v1315
      %v1348 = vcvt.s32.f32 %v1316
      %v1349 = vcvt.s32.f32 %v1317
      %v1350 = vcvt.s32.f32 %v1318
      %v1351 = vcvt.s32.f32 %v1319
      %v1352 = vcvt.s32.f32 %v1320
      %v1353 = vcvt.s32.f32 %v1321
      %v1354 = vcvt.s32.f32 %v1322
      %v1355 = vcvt.s32.f32 %v1323
      %v1356 = vcvt.s32.f32 %v1324
      %v1357 = vcvt.s32.f32 %v1325
      %v1358 = vmul.f32 %v747, %v1326
      %v1359 = vmul.f32 %v661, %v1327
      %v1360 = vmul.f32 %v663, %v1328
      %v1361 = vmul.f32 %v665, %v1329
      %v1362 = vmul.f32 %v667, %v1330
      %v1363 = vmul.f32 %v669, %v1331
      %v1364 = vmul.f32 %v671, %v1332
      %v1365 = vmul.f32 %v673, %v1333
      %v1366 = vmul.f32 %v675, %v1334
      %v1367 = vmul.f32 %v677, %v1335
      %v1368 = vmul.f32 %v679, %v1336
      %v1369 = vmul.f32 %v681, %v1337
      %v1370 = vmul.f32 %v683, %v1338
      %v1371 = vmul.f32 %v685, %v1339
      %v1372 = vmul.f32 %v687, %v1340
      %v1373 = vmul.f32 %v689, %v1341
      %v1374 = vmul.f32 %v691, %v1342
      %v1375 = vmul.f32 %v693, %v1343
      %v1376 = vmul.f32 %v695, %v1344
      %v1377 = vmul.f32 %v697, %v1345
      %v1378 = vmul.f32 %v699, %v1346
      %v1379 = vmul.f32 %v701, %v1347
      %v1380 = vmul.f32 %v703, %v1348
      %v1381 = vmul.f32 %v705, %v1349
      %v1382 = vmul.f32 %v707, %v1350
      %v1383 = vmul.f32 %v709, %v1351
      %v1384 = vmul.f32 %v711, %v1352
      %v1385 = vmul.f32 %v713, %v1353
      %v1386 = vmul.f32 %v715, %v1354
      %v1387 = vmul.f32 %v716, %v1355
      %v1388 = vmul.f32 %v624, %v1356
      %v1389 = vmul.f32 %v626, %v1357
      %v1390 = vsel %vm1134, 1, 0
      %v1391 = vsel %vm1135, 1, 0
      %v1392 = vsel %vm1136, 1, 0
      %v1393 = vsel %vm1137, 1, 0
      %v1394 = vsel %vm1138, 1, 0
      %v1395 = vsel %vm1139, 1, 0
      %v1396 = vsel %vm1140, 1, 0
      %v1397 = vsel %vm1141, 1, 0
      %v1398 = vsel %vm1142, 1, 0
      %v1399 = vsel %vm1143, 1, 0
      %v1400 = vsel %vm1144, 1, 0
      %v1401 = vsel %vm1145, 1, 0
      %v1402 = vsel %vm1146, 1, 0
      %v1403 = vsel %vm1147, 1, 0
      %v1404 = vsel %vm1148, 1, 0
      %v1405 = vsel %vm1149, 1, 0
      %v1406 = vsel %vm1150, 1, 0
      %v1407 = vsel %vm1151, 1, 0
      %v1408 = vsel %vm1152, 1, 0
      %v1409 = vsel %vm1153, 1, 0
      %v1410 = vsel %vm1154, 1, 0
      %v1411 = vsel %vm1155, 1, 0
      %v1412 = vsel %vm1156, 1, 0
      %v1413 = vsel %vm1157, 1, 0
      %v1414 = vsel %vm1158, 1, 0
      %v1415 = vsel %vm1159, 1, 0
      %v1416 = vsel %vm1160, 1, 0
      %v1417 = vsel %vm1161, 1, 0
      %v1418 = vsel %vm1162, 1, 0
      %v1419 = vsel %vm1163, 1, 0
      %v1420 = vsel %vm1164, 1, 0
      %v1421 = vsel %vm1165, 1, 0
      %v1422 = vcvt.s32.f32 %v1390
      %v1423 = vcvt.s32.f32 %v1391
      %v1424 = vcvt.s32.f32 %v1392
      %v1425 = vcvt.s32.f32 %v1393
      %v1426 = vcvt.s32.f32 %v1394
      %v1427 = vcvt.s32.f32 %v1395
      %v1428 = vcvt.s32.f32 %v1396
      %v1429 = vcvt.s32.f32 %v1397
      %v1430 = vcvt.s32.f32 %v1398
      %v1431 = vcvt.s32.f32 %v1399
      %v1432 = vcvt.s32.f32 %v1400
      %v1433 = vcvt.s32.f32 %v1401
      %v1434 = vcvt.s32.f32 %v1402
      %v1435 = vcvt.s32.f32 %v1403
      %v1436 = vcvt.s32.f32 %v1404
      %v1437 = vcvt.s32.f32 %v1405
      %v1438 = vcvt.s32.f32 %v1406
      %v1439 = vcvt.s32.f32 %v1407
      %v1440 = vcvt.s32.f32 %v1408
      %v1441 = vcvt.s32.f32 %v1409
      %v1442 = vcvt.s32.f32 %v1410
      %v1443 = vcvt.s32.f32 %v1411
      %v1444 = vcvt.s32.f32 %v1412
      %v1445 = vcvt.s32.f32 %v1413
      %v1446 = vcvt.s32.f32 %v1414
      %v1447 = vcvt.s32.f32 %v1415
      %v1448 = vcvt.s32.f32 %v1416
      %v1449 = vcvt.s32.f32 %v1417
      %v1450 = vcvt.s32.f32 %v1418
      %v1451 = vcvt.s32.f32 %v1419
      %v1452 = vcvt.s32.f32 %v1420
      %v1453 = vcvt.s32.f32 %v1421
      %v1454 = vmul.f32 %v1044, %v1422
      %v1455 = vmul.f32 %v1046, %v1423
      %v1456 = vmul.f32 %v1048, %v1424
      %v1457 = vmul.f32 %v1050, %v1425
      %v1458 = vmul.f32 %v1052, %v1426
      %v1459 = vmul.f32 %v1054, %v1427
      %v1460 = vmul.f32 %v1056, %v1428
      %v1461 = vmul.f32 %v1058, %v1429
      %v1462 = vmul.f32 %v1060, %v1430
      %v1463 = vmul.f32 %v1062, %v1431
      %v1464 = vmul.f32 %v1064, %v1432
      %v1465 = vmul.f32 %v1066, %v1433
      %v1466 = vmul.f32 %v1068, %v1434
      %v1467 = vmul.f32 %v1070, %v1435
      %v1468 = vmul.f32 %v1072, %v1436
      %v1469 = vmul.f32 %v1074, %v1437
      %v1470 = vmul.f32 %v1076, %v1438
      %v1471 = vmul.f32 %v1078, %v1439
      %v1472 = vmul.f32 %v1080, %v1440
      %v1473 = vmul.f32 %v1082, %v1441
      %v1474 = vmul.f32 %v1084, %v1442
      %v1475 = vmul.f32 %v1086, %v1443
      %v1476 = vmul.f32 %v1088, %v1444
      %v1477 = vmul.f32 %v1090, %v1445
      %v1478 = vmul.f32 %v1092, %v1446
      %v1479 = vmul.f32 %v1094, %v1447
      %v1480 = vmul.f32 %v1096, %v1448
      %v1481 = vmul.f32 %v1098, %v1449
      %v1482 = vmul.f32 %v1100, %v1450
      %v1483 = vmul.f32 %v1101, %v1451
      %v1484 = vmul.f32 %v1039, %v1452
      %v1485 = vmul.f32 %v1133, %v1453
      %vm1486 = vcmp.lt.s32.totalorder %v202, 240
      %vm1487 = vcmp.lt.s32.totalorder %v203, 240
      %vm1488 = vcmp.lt.s32.totalorder %v204, 240
      %vm1489 = vcmp.lt.s32.totalorder %v205, 240
      %vm1490 = vcmp.lt.s32.totalorder %v206, 240
      %vm1491 = vcmp.lt.s32.totalorder %v207, 240
      %vm1492 = vcmp.lt.s32.totalorder %v208, 240
      %vm1493 = vcmp.lt.s32.totalorder %v209, 240
      %vm1494 = vcmp.lt.s32.totalorder %v210, 240
      %vm1495 = vcmp.lt.s32.totalorder %v211, 240
      %vm1496 = vcmp.lt.s32.totalorder %v212, 240
      %vm1497 = vcmp.lt.s32.totalorder %v213, 240
      %vm1498 = vcmp.lt.s32.totalorder %v214, 240
      %vm1499 = vcmp.lt.s32.totalorder %v215, 240
      %vm1500 = vcmp.lt.s32.totalorder %v216, 240
      %vm1501 = vcmp.lt.s32.totalorder %v217, 240
      %vm1502 = vcmp.lt.s32.totalorder %v218, 240
      %vm1503 = vcmp.lt.s32.totalorder %v219, 240
      %vm1504 = vcmp.lt.s32.totalorder %v220, 240
      %vm1505 = vcmp.lt.s32.totalorder %v221, 240
      %vm1506 = vcmp.lt.s32.totalorder %v222, 240
      %vm1507 = vcmp.lt.s32.totalorder %v223, 240
      %vm1508 = vcmp.lt.s32.totalorder %v224, 240
      %vm1509 = vcmp.lt.s32.totalorder %v225, 240
      %vm1510 = vcmp.lt.s32.totalorder %v226, 240
      %vm1511 = vcmp.lt.s32.totalorder %v227, 240
      %vm1512 = vcmp.lt.s32.totalorder %v228, 240
      %vm1513 = vcmp.lt.s32.totalorder %v229, 240
      %vm1514 = vcmp.lt.s32.totalorder %v230, 240
      %vm1515 = vcmp.lt.s32.totalorder %v231, 240
      %vm1516 = vcmp.lt.s32.totalorder %v232, 240
      %vm1517 = vcmp.lt.s32.totalorder %v233, 240
      %vm1518 = vmand %vm1486, %vm780
      %vm1519 = vmand %vm1487, %vm781
      %vm1520 = vmand %vm1488, %vm782
      %vm1521 = vmand %vm1489, %vm783
      %vm1522 = vmand %vm1490, %vm784
      %vm1523 = vmand %vm1491, %vm785
      %vm1524 = vmand %vm1492, %vm786
      %vm1525 = vmand %vm1493, %vm787
      %vm1526 = vmand %vm1494, %vm788
      %vm1527 = vmand %vm1495, %vm789
      %vm1528 = vmand %vm1496, %vm790
      %vm1529 = vmand %vm1497, %vm791
      %vm1530 = vmand %vm1498, %vm792
      %vm1531 = vmand %vm1499, %vm793
      %vm1532 = vmand %vm1500, %vm794
      %vm1533 = vmand %vm1501, %vm795
      %vm1534 = vmand %vm1502, %vm796
      %vm1535 = vmand %vm1503, %vm797
      %vm1536 = vmand %vm1504, %vm798
      %vm1537 = vmand %vm1505, %vm799
      %vm1538 = vmand %vm1506, %vm800
      %vm1539 = vmand %vm1507, %vm801
      %vm1540 = vmand %vm1508, %vm802
      %vm1541 = vmand %vm1509, %vm803
      %vm1542 = vmand %vm1510, %vm804
      %vm1543 = vmand %vm1511, %vm805
      %vm1544 = vmand %vm1512, %vm806
      %vm1545 = vmand %vm1513, %vm807
      %vm1546 = vmand %vm1514, %vm808
      %vm1547 = vmand %vm1515, %vm809
      %vm1548 = vmand %vm1516, %vm810
      %vm1549 = vmand %vm1517, %vm811
      %v1550 = vsel %vm1518, 1, 0
      %v1551 = vsel %vm1519, 1, 0
      %v1552 = vsel %vm1520, 1, 0
      %v1553 = vsel %vm1521, 1, 0
      %v1554 = vsel %vm1522, 1, 0
      %v1555 = vsel %vm1523, 1, 0
      %v1556 = vsel %vm1524, 1, 0
      %v1557 = vsel %vm1525, 1, 0
      %v1558 = vsel %vm1526, 1, 0
      %v1559 = vsel %vm1527, 1, 0
      %v1560 = vsel %vm1528, 1, 0
      %v1561 = vsel %vm1529, 1, 0
      %v1562 = vsel %vm1530, 1, 0
      %v1563 = vsel %vm1531, 1, 0
      %v1564 = vsel %vm1532, 1, 0
      %v1565 = vsel %vm1533, 1, 0
      %v1566 = vsel %vm1534, 1, 0
      %v1567 = vsel %vm1535, 1, 0
      %v1568 = vsel %vm1536, 1, 0
      %v1569 = vsel %vm1537, 1, 0
      %v1570 = vsel %vm1538, 1, 0
      %v1571 = vsel %vm1539, 1, 0
      %v1572 = vsel %vm1540, 1, 0
      %v1573 = vsel %vm1541, 1, 0
      %v1574 = vsel %vm1542, 1, 0
      %v1575 = vsel %vm1543, 1, 0
      %v1576 = vsel %vm1544, 1, 0
      %v1577 = vsel %vm1545, 1, 0
      %v1578 = vsel %vm1546, 1, 0
      %v1579 = vsel %vm1547, 1, 0
      %v1580 = vsel %vm1548, 1, 0
      %v1581 = vsel %vm1549, 1, 0
      %v1582 = vcvt.s32.f32 %v1550
      %v1583 = vcvt.s32.f32 %v1551
      %v1584 = vcvt.s32.f32 %v1552
      %v1585 = vcvt.s32.f32 %v1553
      %v1586 = vcvt.s32.f32 %v1554
      %v1587 = vcvt.s32.f32 %v1555
      %v1588 = vcvt.s32.f32 %v1556
      %v1589 = vcvt.s32.f32 %v1557
      %v1590 = vcvt.s32.f32 %v1558
      %v1591 = vcvt.s32.f32 %v1559
      %v1592 = vcvt.s32.f32 %v1560
      %v1593 = vcvt.s32.f32 %v1561
      %v1594 = vcvt.s32.f32 %v1562
      %v1595 = vcvt.s32.f32 %v1563
      %v1596 = vcvt.s32.f32 %v1564
      %v1597 = vcvt.s32.f32 %v1565
      %v1598 = vcvt.s32.f32 %v1566
      %v1599 = vcvt.s32.f32 %v1567
      %v1600 = vcvt.s32.f32 %v1568
      %v1601 = vcvt.s32.f32 %v1569
      %v1602 = vcvt.s32.f32 %v1570
      %v1603 = vcvt.s32.f32 %v1571
      %v1604 = vcvt.s32.f32 %v1572
      %v1605 = vcvt.s32.f32 %v1573
      %v1606 = vcvt.s32.f32 %v1574
      %v1607 = vcvt.s32.f32 %v1575
      %v1608 = vcvt.s32.f32 %v1576
      %v1609 = vcvt.s32.f32 %v1577
      %v1610 = vcvt.s32.f32 %v1578
      %v1611 = vcvt.s32.f32 %v1579
      %v1612 = vcvt.s32.f32 %v1580
      %v1613 = vcvt.s32.f32 %v1581
      %v1614 = vmul.f32 %v663, %v1582
      %v1615 = vmul.f32 %v665, %v1583
      %v1616 = vmul.f32 %v667, %v1584
      %v1617 = vmul.f32 %v669, %v1585
      %v1618 = vmul.f32 %v671, %v1586
      %v1619 = vmul.f32 %v673, %v1587
      %v1620 = vmul.f32 %v675, %v1588
      %v1621 = vmul.f32 %v677, %v1589
      %v1622 = vmul.f32 %v679, %v1590
      %v1623 = vmul.f32 %v681, %v1591
      %v1624 = vmul.f32 %v683, %v1592
      %v1625 = vmul.f32 %v685, %v1593
      %v1626 = vmul.f32 %v687, %v1594
      %v1627 = vmul.f32 %v689, %v1595
      %v1628 = vmul.f32 %v691, %v1596
      %v1629 = vmul.f32 %v693, %v1597
      %v1630 = vmul.f32 %v695, %v1598
      %v1631 = vmul.f32 %v697, %v1599
      %v1632 = vmul.f32 %v699, %v1600
      %v1633 = vmul.f32 %v701, %v1601
      %v1634 = vmul.f32 %v703, %v1602
      %v1635 = vmul.f32 %v705, %v1603
      %v1636 = vmul.f32 %v707, %v1604
      %v1637 = vmul.f32 %v709, %v1605
      %v1638 = vmul.f32 %v711, %v1606
      %v1639 = vmul.f32 %v713, %v1607
      %v1640 = vmul.f32 %v715, %v1608
      %v1641 = vmul.f32 %v716, %v1609
      %v1642 = vmul.f32 %v624, %v1610
      %v1643 = vmul.f32 %v626, %v1611
      %v1644 = vmul.f32 %v747, %v1612
      %v1645 = vmul.f32 %v661, %v1613
      %v1646 = vsel %vm1486, 1, 0
      %v1647 = vsel %vm1487, 1, 0
      %v1648 = vsel %vm1488, 1, 0
      %v1649 = vsel %vm1489, 1, 0
      %v1650 = vsel %vm1490, 1, 0
      %v1651 = vsel %vm1491, 1, 0
      %v1652 = vsel %vm1492, 1, 0
      %v1653 = vsel %vm1493, 1, 0
      %v1654 = vsel %vm1494, 1, 0
      %v1655 = vsel %vm1495, 1, 0
      %v1656 = vsel %vm1496, 1, 0
      %v1657 = vsel %vm1497, 1, 0
      %v1658 = vsel %vm1498, 1, 0
      %v1659 = vsel %vm1499, 1, 0
      %v1660 = vsel %vm1500, 1, 0
      %v1661 = vsel %vm1501, 1, 0
      %v1662 = vsel %vm1502, 1, 0
      %v1663 = vsel %vm1503, 1, 0
      %v1664 = vsel %vm1504, 1, 0
      %v1665 = vsel %vm1505, 1, 0
      %v1666 = vsel %vm1506, 1, 0
      %v1667 = vsel %vm1507, 1, 0
      %v1668 = vsel %vm1508, 1, 0
      %v1669 = vsel %vm1509, 1, 0
      %v1670 = vsel %vm1510, 1, 0
      %v1671 = vsel %vm1511, 1, 0
      %v1672 = vsel %vm1512, 1, 0
      %v1673 = vsel %vm1513, 1, 0
      %v1674 = vsel %vm1514, 1, 0
      %v1675 = vsel %vm1515, 1, 0
      %v1676 = vsel %vm1516, 1, 0
      %v1677 = vsel %vm1517, 1, 0
      %v1678 = vcvt.s32.f32 %v1646
      %v1679 = vcvt.s32.f32 %v1647
      %v1680 = vcvt.s32.f32 %v1648
      %v1681 = vcvt.s32.f32 %v1649
      %v1682 = vcvt.s32.f32 %v1650
      %v1683 = vcvt.s32.f32 %v1651
      %v1684 = vcvt.s32.f32 %v1652
      %v1685 = vcvt.s32.f32 %v1653
      %v1686 = vcvt.s32.f32 %v1654
      %v1687 = vcvt.s32.f32 %v1655
      %v1688 = vcvt.s32.f32 %v1656
      %v1689 = vcvt.s32.f32 %v1657
      %v1690 = vcvt.s32.f32 %v1658
      %v1691 = vcvt.s32.f32 %v1659
      %v1692 = vcvt.s32.f32 %v1660
      %v1693 = vcvt.s32.f32 %v1661
      %v1694 = vcvt.s32.f32 %v1662
      %v1695 = vcvt.s32.f32 %v1663
      %v1696 = vcvt.s32.f32 %v1664
      %v1697 = vcvt.s32.f32 %v1665
      %v1698 = vcvt.s32.f32 %v1666
      %v1699 = vcvt.s32.f32 %v1667
      %v1700 = vcvt.s32.f32 %v1668
      %v1701 = vcvt.s32.f32 %v1669
      %v1702 = vcvt.s32.f32 %v1670
      %v1703 = vcvt.s32.f32 %v1671
      %v1704 = vcvt.s32.f32 %v1672
      %v1705 = vcvt.s32.f32 %v1673
      %v1706 = vcvt.s32.f32 %v1674
      %v1707 = vcvt.s32.f32 %v1675
      %v1708 = vcvt.s32.f32 %v1676
      %v1709 = vcvt.s32.f32 %v1677
      %v1710 = vmul.f32 %v171, %v1678
      %v1711 = vmul.f32 %v172, %v1679
      %v1712 = vmul.f32 %v173, %v1680
      %v1713 = vmul.f32 %v174, %v1681
      %v1714 = vmul.f32 %v175, %v1682
      %v1715 = vmul.f32 %v176, %v1683
      %v1716 = vmul.f32 %v177, %v1684
      %v1717 = vmul.f32 %v178, %v1685
      %v1718 = vmul.f32 %v179, %v1686
      %v1719 = vmul.f32 %v180, %v1687
      %v1720 = vmul.f32 %v181, %v1688
      %v1721 = vmul.f32 %v182, %v1689
      %v1722 = vmul.f32 %v183, %v1690
      %v1723 = vmul.f32 %v184, %v1691
      %v1724 = vmul.f32 %v185, %v1692
      %v1725 = vmul.f32 %v186, %v1693
      %v1726 = vmul.f32 %v187, %v1694
      %v1727 = vmul.f32 %v188, %v1695
      %v1728 = vmul.f32 %v189, %v1696
      %v1729 = vmul.f32 %v190, %v1697
      %v1730 = vmul.f32 %v191, %v1698
      %v1731 = vmul.f32 %v192, %v1699
      %v1732 = vmul.f32 %v193, %v1700
      %v1733 = vmul.f32 %v194, %v1701
      %v1734 = vmul.f32 %v195, %v1702
      %v1735 = vmul.f32 %v196, %v1703
      %v1736 = vmul.f32 %v197, %v1704
      %v1737 = vmul.f32 %v198, %v1705
      %v1738 = vmul.f32 %v199, %v1706
      %v1739 = vmul.f32 %v200, %v1707
      %v1740 = vmul.f32 %v169, %v1708
      %v1741 = vmul.f32 %v170, %v1709
      %vm1742 = vmand %vm1486, %vm1134
      %vm1743 = vmand %vm1487, %vm1135
      %vm1744 = vmand %vm1488, %vm1136
      %vm1745 = vmand %vm1489, %vm1137
      %vm1746 = vmand %vm1490, %vm1138
      %vm1747 = vmand %vm1491, %vm1139
      %vm1748 = vmand %vm1492, %vm1140
      %vm1749 = vmand %vm1493, %vm1141
      %vm1750 = vmand %vm1494, %vm1142
      %vm1751 = vmand %vm1495, %vm1143
      %vm1752 = vmand %vm1496, %vm1144
      %vm1753 = vmand %vm1497, %vm1145
      %vm1754 = vmand %vm1498, %vm1146
      %vm1755 = vmand %vm1499, %vm1147
      %vm1756 = vmand %vm1500, %vm1148
      %vm1757 = vmand %vm1501, %vm1149
      %vm1758 = vmand %vm1502, %vm1150
      %vm1759 = vmand %vm1503, %vm1151
      %vm1760 = vmand %vm1504, %vm1152
      %vm1761 = vmand %vm1505, %vm1153
      %vm1762 = vmand %vm1506, %vm1154
      %vm1763 = vmand %vm1507, %vm1155
      %vm1764 = vmand %vm1508, %vm1156
      %vm1765 = vmand %vm1509, %vm1157
      %vm1766 = vmand %vm1510, %vm1158
      %vm1767 = vmand %vm1511, %vm1159
      %vm1768 = vmand %vm1512, %vm1160
      %vm1769 = vmand %vm1513, %vm1161
      %vm1770 = vmand %vm1514, %vm1162
      %vm1771 = vmand %vm1515, %vm1163
      %vm1772 = vmand %vm1516, %vm1164
      %vm1773 = vmand %vm1517, %vm1165
      %v1774 = vsel %vm1742, 1, 0
      %v1775 = vsel %vm1743, 1, 0
      %v1776 = vsel %vm1744, 1, 0
      %v1777 = vsel %vm1745, 1, 0
      %v1778 = vsel %vm1746, 1, 0
      %v1779 = vsel %vm1747, 1, 0
      %v1780 = vsel %vm1748, 1, 0
      %v1781 = vsel %vm1749, 1, 0
      %v1782 = vsel %vm1750, 1, 0
      %v1783 = vsel %vm1751, 1, 0
      %v1784 = vsel %vm1752, 1, 0
      %v1785 = vsel %vm1753, 1, 0
      %v1786 = vsel %vm1754, 1, 0
      %v1787 = vsel %vm1755, 1, 0
      %v1788 = vsel %vm1756, 1, 0
      %v1789 = vsel %vm1757, 1, 0
      %v1790 = vsel %vm1758, 1, 0
      %v1791 = vsel %vm1759, 1, 0
      %v1792 = vsel %vm1760, 1, 0
      %v1793 = vsel %vm1761, 1, 0
      %v1794 = vsel %vm1762, 1, 0
      %v1795 = vsel %vm1763, 1, 0
      %v1796 = vsel %vm1764, 1, 0
      %v1797 = vsel %vm1765, 1, 0
      %v1798 = vsel %vm1766, 1, 0
      %v1799 = vsel %vm1767, 1, 0
      %v1800 = vsel %vm1768, 1, 0
      %v1801 = vsel %vm1769, 1, 0
      %v1802 = vsel %vm1770, 1, 0
      %v1803 = vsel %vm1771, 1, 0
      %v1804 = vsel %vm1772, 1, 0
      %v1805 = vsel %vm1773, 1, 0
      %v1806 = vcvt.s32.f32 %v1774
      %v1807 = vcvt.s32.f32 %v1775
      %v1808 = vcvt.s32.f32 %v1776
      %v1809 = vcvt.s32.f32 %v1777
      %v1810 = vcvt.s32.f32 %v1778
      %v1811 = vcvt.s32.f32 %v1779
      %v1812 = vcvt.s32.f32 %v1780
      %v1813 = vcvt.s32.f32 %v1781
      %v1814 = vcvt.s32.f32 %v1782
      %v1815 = vcvt.s32.f32 %v1783
      %v1816 = vcvt.s32.f32 %v1784
      %v1817 = vcvt.s32.f32 %v1785
      %v1818 = vcvt.s32.f32 %v1786
      %v1819 = vcvt.s32.f32 %v1787
      %v1820 = vcvt.s32.f32 %v1788
      %v1821 = vcvt.s32.f32 %v1789
      %v1822 = vcvt.s32.f32 %v1790
      %v1823 = vcvt.s32.f32 %v1791
      %v1824 = vcvt.s32.f32 %v1792
      %v1825 = vcvt.s32.f32 %v1793
      %v1826 = vcvt.s32.f32 %v1794
      %v1827 = vcvt.s32.f32 %v1795
      %v1828 = vcvt.s32.f32 %v1796
      %v1829 = vcvt.s32.f32 %v1797
      %v1830 = vcvt.s32.f32 %v1798
      %v1831 = vcvt.s32.f32 %v1799
      %v1832 = vcvt.s32.f32 %v1800
      %v1833 = vcvt.s32.f32 %v1801
      %v1834 = vcvt.s32.f32 %v1802
      %v1835 = vcvt.s32.f32 %v1803
      %v1836 = vcvt.s32.f32 %v1804
      %v1837 = vcvt.s32.f32 %v1805
      %v1838 = vmul.f32 %v1048, %v1806
      %v1839 = vmul.f32 %v1050, %v1807
      %v1840 = vmul.f32 %v1052, %v1808
      %v1841 = vmul.f32 %v1054, %v1809
      %v1842 = vmul.f32 %v1056, %v1810
      %v1843 = vmul.f32 %v1058, %v1811
      %v1844 = vmul.f32 %v1060, %v1812
      %v1845 = vmul.f32 %v1062, %v1813
      %v1846 = vmul.f32 %v1064, %v1814
      %v1847 = vmul.f32 %v1066, %v1815
      %v1848 = vmul.f32 %v1068, %v1816
      %v1849 = vmul.f32 %v1070, %v1817
      %v1850 = vmul.f32 %v1072, %v1818
      %v1851 = vmul.f32 %v1074, %v1819
      %v1852 = vmul.f32 %v1076, %v1820
      %v1853 = vmul.f32 %v1078, %v1821
      %v1854 = vmul.f32 %v1080, %v1822
      %v1855 = vmul.f32 %v1082, %v1823
      %v1856 = vmul.f32 %v1084, %v1824
      %v1857 = vmul.f32 %v1086, %v1825
      %v1858 = vmul.f32 %v1088, %v1826
      %v1859 = vmul.f32 %v1090, %v1827
      %v1860 = vmul.f32 %v1092, %v1828
      %v1861 = vmul.f32 %v1094, %v1829
      %v1862 = vmul.f32 %v1096, %v1830
      %v1863 = vmul.f32 %v1098, %v1831
      %v1864 = vmul.f32 %v1100, %v1832
      %v1865 = vmul.f32 %v1101, %v1833
      %v1866 = vmul.f32 %v1039, %v1834
      %v1867 = vmul.f32 %v1133, %v1835
      %v1868 = vmul.f32 %v1044, %v1836
      %v1869 = vmul.f32 %v1046, %v1837
      %1902 = vrot.lane.b32.xlu0 %v1004, 64
      %v1903 = vpop.permute.xlu0 %1902
      %1904 = vrot.lane.b32.xlu0 %v1005, 64
      %v1905 = vpop.permute.xlu0 %1904
      %1906 = vrot.lane.b32.xlu0 %v1006, 64
      %v1907 = vpop.permute.xlu0 %1906
      %1908 = vrot.lane.b32.xlu0 %v1007, 64
      %v1909 = vpop.permute.xlu0 %1908
      %1910 = vrot.lane.b32.xlu0 %v1008, 64
      %v1911 = vpop.permute.xlu0 %1910
      %1912 = vrot.lane.b32.xlu0 %v1009, 64
      %v1913 = vpop.permute.xlu0 %1912
      %1914 = vrot.lane.b32.xlu0 %v1010, 64
      %v1915 = vpop.permute.xlu0 %1914
      %1916 = vrot.lane.b32.xlu0 %v1011, 64
      %v1917 = vpop.permute.xlu0 %1916
      %1918 = vrot.lane.b32.xlu0 %v1012, 64
      %v1919 = vpop.permute.xlu0 %1918
      %1920 = vrot.lane.b32.xlu0 %v1013, 64
      %v1921 = vpop.permute.xlu0 %1920
      %1922 = vrot.lane.b32.xlu0 %v1014, 64
      %v1923 = vpop.permute.xlu0 %1922
      %1924 = vrot.lane.b32.xlu0 %v1015, 64
      %v1925 = vpop.permute.xlu0 %1924
      %1926 = vrot.lane.b32.xlu0 %v1016, 64
      %v1927 = vpop.permute.xlu0 %1926
      %1928 = vrot.lane.b32.xlu0 %v1017, 64
      %v1929 = vpop.permute.xlu0 %1928
      %1930 = vrot.lane.b32.xlu0 %v1018, 64
      %v1931 = vpop.permute.xlu0 %1930
      %1932 = vrot.lane.b32.xlu0 %v1019, 64
      %v1933 = vpop.permute.xlu0 %1932
      %1934 = vrot.lane.b32.xlu0 %v1020, 64
      %v1935 = vpop.permute.xlu0 %1934
      %1936 = vrot.lane.b32.xlu0 %v1021, 64
      %v1937 = vpop.permute.xlu0 %1936
      %1938 = vrot.lane.b32.xlu0 %v1022, 64
      %v1939 = vpop.permute.xlu0 %1938
      %1940 = vrot.lane.b32.xlu0 %v1023, 64
      %v1941 = vpop.permute.xlu0 %1940
      %1942 = vrot.lane.b32.xlu0 %v1024, 64
      %v1943 = vpop.permute.xlu0 %1942
      %1944 = vrot.lane.b32.xlu0 %v1025, 64
      %v1945 = vpop.permute.xlu0 %1944
      %1946 = vrot.lane.b32.xlu0 %v1026, 64
      %v1947 = vpop.permute.xlu0 %1946
      %1948 = vrot.lane.b32.xlu0 %v1027, 64
      %v1949 = vpop.permute.xlu0 %1948
      %1950 = vrot.lane.b32.xlu0 %v1028, 64
      %v1951 = vpop.permute.xlu0 %1950
      %1952 = vrot.lane.b32.xlu0 %v1029, 64
      %v1953 = vpop.permute.xlu0 %1952
      %1954 = vrot.lane.b32.xlu0 %v1030, 64
      %v1955 = vpop.permute.xlu0 %1954
      %1956 = vrot.lane.b32.xlu0 %v1031, 64
      %v1957 = vpop.permute.xlu0 %1956
      %1958 = vrot.lane.b32.xlu0 %v1032, 64
      %v1959 = vpop.permute.xlu0 %1958
      %1960 = vrot.lane.b32.xlu0 %v1033, 64
      %v1961 = vpop.permute.xlu0 %1960
      %1962 = vrot.lane.b32.xlu0 %v1034, 64
      %v1963 = vpop.permute.xlu0 %1962
      %1964 = vrot.lane.b32.xlu0 %v1035, 64
      %v1965 = vpop.permute.xlu0 %1964
      %2030 = vrot.lane.b32.xlu0 %v1358, 64
      %v2031 = vpop.permute.xlu0 %2030
      %2032 = vrot.lane.b32.xlu0 %v1359, 64
      %v2033 = vpop.permute.xlu0 %2032
      %2034 = vrot.lane.b32.xlu0 %v1360, 64
      %v2035 = vpop.permute.xlu0 %2034
      %2036 = vrot.lane.b32.xlu0 %v1361, 64
      %v2037 = vpop.permute.xlu0 %2036
      %2038 = vrot.lane.b32.xlu0 %v1362, 64
      %v2039 = vpop.permute.xlu0 %2038
      %2040 = vrot.lane.b32.xlu0 %v1363, 64
      %v2041 = vpop.permute.xlu0 %2040
      %2042 = vrot.lane.b32.xlu0 %v1364, 64
      %v2043 = vpop.permute.xlu0 %2042
      %2044 = vrot.lane.b32.xlu0 %v1365, 64
      %v2045 = vpop.permute.xlu0 %2044
      %2046 = vrot.lane.b32.xlu0 %v1366, 64
      %v2047 = vpop.permute.xlu0 %2046
      %2048 = vrot.lane.b32.xlu0 %v1367, 64
      %v2049 = vpop.permute.xlu0 %2048
      %2050 = vrot.lane.b32.xlu0 %v1368, 64
      %v2051 = vpop.permute.xlu0 %2050
      %2052 = vrot.lane.b32.xlu0 %v1369, 64
      %v2053 = vpop.permute.xlu0 %2052
      %2054 = vrot.lane.b32.xlu0 %v1370, 64
      %v2055 = vpop.permute.xlu0 %2054
      %2056 = vrot.lane.b32.xlu0 %v1371, 64
      %v2057 = vpop.permute.xlu0 %2056
      %2058 = vrot.lane.b32.xlu0 %v1372, 64
      %v2059 = vpop.permute.xlu0 %2058
      %2060 = vrot.lane.b32.xlu0 %v1373, 64
      %v2061 = vpop.permute.xlu0 %2060
      %2062 = vrot.lane.b32.xlu0 %v1374, 64
      %v2063 = vpop.permute.xlu0 %2062
      %2064 = vrot.lane.b32.xlu0 %v1375, 64
      %v2065 = vpop.permute.xlu0 %2064
      %2066 = vrot.lane.b32.xlu0 %v1376, 64
      %v2067 = vpop.permute.xlu0 %2066
      %2068 = vrot.lane.b32.xlu0 %v1377, 64
      %v2069 = vpop.permute.xlu0 %2068
      %2070 = vrot.lane.b32.xlu0 %v1378, 64
      %v2071 = vpop.permute.xlu0 %2070
      %2072 = vrot.lane.b32.xlu0 %v1379, 64
      %v2073 = vpop.permute.xlu0 %2072
      %2074 = vrot.lane.b32.xlu0 %v1380, 64
      %v2075 = vpop.permute.xlu0 %2074
      %2076 = vrot.lane.b32.xlu0 %v1381, 64
      %v2077 = vpop.permute.xlu0 %2076
      %2078 = vrot.lane.b32.xlu0 %v1382, 64
      %v2079 = vpop.permute.xlu0 %2078
      %2080 = vrot.lane.b32.xlu0 %v1383, 64
      %v2081 = vpop.permute.xlu0 %2080
      %2082 = vrot.lane.b32.xlu0 %v1384, 64
      %v2083 = vpop.permute.xlu0 %2082
      %2084 = vrot.lane.b32.xlu0 %v1385, 64
      %v2085 = vpop.permute.xlu0 %2084
      %2086 = vrot.lane.b32.xlu0 %v1386, 64
      %v2087 = vpop.permute.xlu0 %2086
      %2088 = vrot.lane.b32.xlu0 %v1387, 64
      %v2089 = vpop.permute.xlu0 %2088
      %2090 = vrot.lane.b32.xlu0 %v1388, 64
      %v2091 = vpop.permute.xlu0 %2090
      %2092 = vrot.lane.b32.xlu0 %v1389, 64
      %v2093 = vpop.permute.xlu0 %2092
      %2158 = vrot.lane.b32.xlu0 %v1454, 64
      %v2159 = vpop.permute.xlu0 %2158
      %2160 = vrot.lane.b32.xlu0 %v1455, 64
      %v2161 = vpop.permute.xlu0 %2160
      %2162 = vrot.lane.b32.xlu0 %v1456, 64
      %v2163 = vpop.permute.xlu0 %2162
      %2164 = vrot.lane.b32.xlu0 %v1457, 64
      %v2165 = vpop.permute.xlu0 %2164
      %2166 = vrot.lane.b32.xlu0 %v1458, 64
      %v2167 = vpop.permute.xlu0 %2166
      %2168 = vrot.lane.b32.xlu0 %v1459, 64
      %v2169 = vpop.permute.xlu0 %2168
      %2170 = vrot.lane.b32.xlu0 %v1460, 64
      %v2171 = vpop.permute.xlu0 %2170
      %2172 = vrot.lane.b32.xlu0 %v1461, 64
      %v2173 = vpop.permute.xlu0 %2172
      %2174 = vrot.lane.b32.xlu0 %v1462, 64
      %v2175 = vpop.permute.xlu0 %2174
      %2176 = vrot.lane.b32.xlu0 %v1463, 64
      %v2177 = vpop.permute.xlu0 %2176
      %2178 = vrot.lane.b32.xlu0 %v1464, 64
      %v2179 = vpop.permute.xlu0 %2178
      %2180 = vrot.lane.b32.xlu0 %v1465, 64
      %v2181 = vpop.permute.xlu0 %2180
      %2182 = vrot.lane.b32.xlu0 %v1466, 64
      %v2183 = vpop.permute.xlu0 %2182
      %2184 = vrot.lane.b32.xlu0 %v1467, 64
      %v2185 = vpop.permute.xlu0 %2184
      %2186 = vrot.lane.b32.xlu0 %v1468, 64
      %v2187 = vpop.permute.xlu0 %2186
      %2188 = vrot.lane.b32.xlu0 %v1469, 64
      %v2189 = vpop.permute.xlu0 %2188
      %2190 = vrot.lane.b32.xlu0 %v1470, 64
      %v2191 = vpop.permute.xlu0 %2190
      %2192 = vrot.lane.b32.xlu0 %v1471, 64
      %v2193 = vpop.permute.xlu0 %2192
      %2194 = vrot.lane.b32.xlu0 %v1472, 64
      %v2195 = vpop.permute.xlu0 %2194
      %2196 = vrot.lane.b32.xlu0 %v1473, 64
      %v2197 = vpop.permute.xlu0 %2196
      %2198 = vrot.lane.b32.xlu0 %v1474, 64
      %v2199 = vpop.permute.xlu0 %2198
      %2200 = vrot.lane.b32.xlu0 %v1475, 64
      %v2201 = vpop.permute.xlu0 %2200
      %2202 = vrot.lane.b32.xlu0 %v1476, 64
      %v2203 = vpop.permute.xlu0 %2202
      %2204 = vrot.lane.b32.xlu0 %v1477, 64
      %v2205 = vpop.permute.xlu0 %2204
      %2206 = vrot.lane.b32.xlu0 %v1478, 64
      %v2207 = vpop.permute.xlu0 %2206
      %2208 = vrot.lane.b32.xlu0 %v1479, 64
      %v2209 = vpop.permute.xlu0 %2208
      %2210 = vrot.lane.b32.xlu0 %v1480, 64
      %v2211 = vpop.permute.xlu0 %2210
      %2212 = vrot.lane.b32.xlu0 %v1481, 64
      %v2213 = vpop.permute.xlu0 %2212
      %2214 = vrot.lane.b32.xlu0 %v1482, 64
      %v2215 = vpop.permute.xlu0 %2214
      %2216 = vrot.lane.b32.xlu0 %v1483, 64
      %v2217 = vpop.permute.xlu0 %2216
      %2218 = vrot.lane.b32.xlu0 %v1484, 64
      %v2219 = vpop.permute.xlu0 %2218
      %2220 = vrot.lane.b32.xlu0 %v1485, 64
      %v2221 = vpop.permute.xlu0 %2220
      %2286 = vrot.lane.b32.xlu0 %v1710, 64
      %v2287 = vpop.permute.xlu0 %2286
      %2288 = vrot.lane.b32.xlu0 %v1711, 64
      %v2289 = vpop.permute.xlu0 %2288
      %2290 = vrot.lane.b32.xlu0 %v1712, 64
      %v2291 = vpop.permute.xlu0 %2290
      %2292 = vrot.lane.b32.xlu0 %v1713, 64
      %v2293 = vpop.permute.xlu0 %2292
      %2294 = vrot.lane.b32.xlu0 %v1714, 64
      %v2295 = vpop.permute.xlu0 %2294
      %2296 = vrot.lane.b32.xlu0 %v1715, 64
      %v2297 = vpop.permute.xlu0 %2296
      %2298 = vrot.lane.b32.xlu0 %v1716, 64
      %v2299 = vpop.permute.xlu0 %2298
      %2300 = vrot.lane.b32.xlu0 %v1717, 64
      %v2301 = vpop.permute.xlu0 %2300
      %2302 = vrot.lane.b32.xlu0 %v1718, 64
      %v2303 = vpop.permute.xlu0 %2302
      %2304 = vrot.lane.b32.xlu0 %v1719, 64
      %v2305 = vpop.permute.xlu0 %2304
      %2306 = vrot.lane.b32.xlu0 %v1720, 64
      %v2307 = vpop.permute.xlu0 %2306
      %2308 = vrot.lane.b32.xlu0 %v1721, 64
      %v2309 = vpop.permute.xlu0 %2308
      %2310 = vrot.lane.b32.xlu0 %v1722, 64
      %v2311 = vpop.permute.xlu0 %2310
      %2312 = vrot.lane.b32.xlu0 %v1723, 64
      %v2313 = vpop.permute.xlu0 %2312
      %2314 = vrot.lane.b32.xlu0 %v1724, 64
      %v2315 = vpop.permute.xlu0 %2314
      %2316 = vrot.lane.b32.xlu0 %v1725, 64
      %v2317 = vpop.permute.xlu0 %2316
      %2318 = vrot.lane.b32.xlu0 %v1726, 64
      %v2319 = vpop.permute.xlu0 %2318
      %2320 = vrot.lane.b32.xlu0 %v1727, 64
      %v2321 = vpop.permute.xlu0 %2320
      %2322 = vrot.lane.b32.xlu0 %v1728, 64
      %v2323 = vpop.permute.xlu0 %2322
      %2324 = vrot.lane.b32.xlu0 %v1729, 64
      %v2325 = vpop.permute.xlu0 %2324
      %2326 = vrot.lane.b32.xlu0 %v1730, 64
      %v2327 = vpop.permute.xlu0 %2326
      %2328 = vrot.lane.b32.xlu0 %v1731, 64
      %v2329 = vpop.permute.xlu0 %2328
      %2330 = vrot.lane.b32.xlu0 %v1732, 64
      %v2331 = vpop.permute.xlu0 %2330
      %2332 = vrot.lane.b32.xlu0 %v1733, 64
      %v2333 = vpop.permute.xlu0 %2332
      %2334 = vrot.lane.b32.xlu0 %v1734, 64
      %v2335 = vpop.permute.xlu0 %2334
      %2336 = vrot.lane.b32.xlu0 %v1735, 64
      %v2337 = vpop.permute.xlu0 %2336
      %2338 = vrot.lane.b32.xlu0 %v1736, 64
      %v2339 = vpop.permute.xlu0 %2338
      %2340 = vrot.lane.b32.xlu0 %v1737, 64
      %v2341 = vpop.permute.xlu0 %2340
      %2342 = vrot.lane.b32.xlu0 %v1738, 64
      %v2343 = vpop.permute.xlu0 %2342
      %2344 = vrot.lane.b32.xlu0 %v1739, 64
      %v2345 = vpop.permute.xlu0 %2344
      %2346 = vrot.lane.b32.xlu0 %v1740, 64
      %v2347 = vpop.permute.xlu0 %2346
      %2348 = vrot.lane.b32.xlu0 %v1741, 64
      %v2349 = vpop.permute.xlu0 %2348
      %vm2382 = vcmask 523264
      %v2383 = vsel %vm2382, %v908, %v1903
      %v2384 = vsel %vm2382, %v909, %v1905
      %v2385 = vsel %vm2382, %v910, %v1907
      %v2386 = vsel %vm2382, %v911, %v1909
      %v2387 = vsel %vm2382, %v912, %v1911
      %v2388 = vsel %vm2382, %v913, %v1913
      %v2389 = vsel %vm2382, %v914, %v1915
      %v2390 = vsel %vm2382, %v915, %v1917
      %v2391 = vsel %vm2382, %v916, %v1919
      %v2392 = vsel %vm2382, %v917, %v1921
      %v2393 = vsel %vm2382, %v918, %v1923
      %v2394 = vsel %vm2382, %v919, %v1925
      %v2395 = vsel %vm2382, %v920, %v1927
      %v2396 = vsel %vm2382, %v921, %v1929
      %v2397 = vsel %vm2382, %v922, %v1931
      %v2398 = vsel %vm2382, %v923, %v1933
      %v2399 = vsel %vm2382, %v924, %v1935
      %v2400 = vsel %vm2382, %v925, %v1937
      %v2401 = vsel %vm2382, %v926, %v1939
      %v2402 = vsel %vm2382, %v927, %v1941
      %v2403 = vsel %vm2382, %v928, %v1943
      %v2404 = vsel %vm2382, %v929, %v1945
      %v2405 = vsel %vm2382, %v930, %v1947
      %v2406 = vsel %vm2382, %v931, %v1949
      %v2407 = vsel %vm2382, %v932, %v1951
      %v2408 = vsel %vm2382, %v933, %v1953
      %v2409 = vsel %vm2382, %v934, %v1955
      %v2410 = vsel %vm2382, %v935, %v1957
      %v2411 = vsel %vm2382, %v936, %v1959
      %v2412 = vsel %vm2382, %v937, %v1961
      %v2413 = vsel %vm2382, %v938, %v1963
      %v2414 = vsel %vm2382, %v939, %v1965
      %v2415 = vsel %vm2382, %v1262, %v2031
      %v2416 = vsel %vm2382, %v1263, %v2033
      %v2417 = vsel %vm2382, %v1264, %v2035
      %v2418 = vsel %vm2382, %v1265, %v2037
      %v2419 = vsel %vm2382, %v1266, %v2039
      %v2420 = vsel %vm2382, %v1267, %v2041
      %v2421 = vsel %vm2382, %v1268, %v2043
      %v2422 = vsel %vm2382, %v1269, %v2045
      %v2423 = vsel %vm2382, %v1270, %v2047
      %v2424 = vsel %vm2382, %v1271, %v2049
      %v2425 = vsel %vm2382, %v1272, %v2051
      %v2426 = vsel %vm2382, %v1273, %v2053
      %v2427 = vsel %vm2382, %v1274, %v2055
      %v2428 = vsel %vm2382, %v1275, %v2057
      %v2429 = vsel %vm2382, %v1276, %v2059
      %v2430 = vsel %vm2382, %v1277, %v2061
      %v2431 = vsel %vm2382, %v1278, %v2063
      %v2432 = vsel %vm2382, %v1279, %v2065
      %v2433 = vsel %vm2382, %v1280, %v2067
      %v2434 = vsel %vm2382, %v1281, %v2069
      %v2435 = vsel %vm2382, %v1282, %v2071
      %v2436 = vsel %vm2382, %v1283, %v2073
      %v2437 = vsel %vm2382, %v1284, %v2075
      %v2438 = vsel %vm2382, %v1285, %v2077
      %v2439 = vsel %vm2382, %v1286, %v2079
      %v2440 = vsel %vm2382, %v1287, %v2081
      %v2441 = vsel %vm2382, %v1288, %v2083
      %v2442 = vsel %vm2382, %v1289, %v2085
      %v2443 = vsel %vm2382, %v1290, %v2087
      %v2444 = vsel %vm2382, %v1291, %v2089
      %v2445 = vsel %vm2382, %v1292, %v2091
      %v2446 = vsel %vm2382, %v1293, %v2093
      %v2447 = vsel %vm2382, %v169, %v2159
      %v2448 = vsel %vm2382, %v170, %v2161
      %v2449 = vsel %vm2382, %v171, %v2163
      %v2450 = vsel %vm2382, %v172, %v2165
      %v2451 = vsel %vm2382, %v173, %v2167
      %v2452 = vsel %vm2382, %v174, %v2169
      %v2453 = vsel %vm2382, %v175, %v2171
      %v2454 = vsel %vm2382, %v176, %v2173
      %v2455 = vsel %vm2382, %v177, %v2175
      %v2456 = vsel %vm2382, %v178, %v2177
      %v2457 = vsel %vm2382, %v179, %v2179
      %v2458 = vsel %vm2382, %v180, %v2181
      %v2459 = vsel %vm2382, %v181, %v2183
      %v2460 = vsel %vm2382, %v182, %v2185
      %v2461 = vsel %vm2382, %v183, %v2187
      %v2462 = vsel %vm2382, %v184, %v2189
      %v2463 = vsel %vm2382, %v185, %v2191
      %v2464 = vsel %vm2382, %v186, %v2193
      %v2465 = vsel %vm2382, %v187, %v2195
      %v2466 = vsel %vm2382, %v188, %v2197
      %v2467 = vsel %vm2382, %v189, %v2199
      %v2468 = vsel %vm2382, %v190, %v2201
      %v2469 = vsel %vm2382, %v191, %v2203
      %v2470 = vsel %vm2382, %v192, %v2205
      %v2471 = vsel %vm2382, %v193, %v2207
      %v2472 = vsel %vm2382, %v194, %v2209
      %v2473 = vsel %vm2382, %v195, %v2211
      %v2474 = vsel %vm2382, %v196, %v2213
      %v2475 = vsel %vm2382, %v197, %v2215
      %v2476 = vsel %vm2382, %v198, %v2217
      %v2477 = vsel %vm2382, %v199, %v2219
      %v2478 = vsel %vm2382, %v200, %v2221
      %v2479 = vsel %vm2382, %v1614, %v2287
      %v2480 = vsel %vm2382, %v1615, %v2289
      %v2481 = vsel %vm2382, %v1616, %v2291
      %v2482 = vsel %vm2382, %v1617, %v2293
      %v2483 = vsel %vm2382, %v1618, %v2295
      %v2484 = vsel %vm2382, %v1619, %v2297
      %v2485 = vsel %vm2382, %v1620, %v2299
      %v2486 = vsel %vm2382, %v1621, %v2301
      %v2487 = vsel %vm2382, %v1622, %v2303
      %v2488 = vsel %vm2382, %v1623, %v2305
      %v2489 = vsel %vm2382, %v1624, %v2307
      %v2490 = vsel %vm2382, %v1625, %v2309
      %v2491 = vsel %vm2382, %v1626, %v2311
      %v2492 = vsel %vm2382, %v1627, %v2313
      %v2493 = vsel %vm2382, %v1628, %v2315
      %v2494 = vsel %vm2382, %v1629, %v2317
      %v2495 = vsel %vm2382, %v1630, %v2319
      %v2496 = vsel %vm2382, %v1631, %v2321
      %v2497 = vsel %vm2382, %v1632, %v2323
      %v2498 = vsel %vm2382, %v1633, %v2325
      %v2499 = vsel %vm2382, %v1634, %v2327
      %v2500 = vsel %vm2382, %v1635, %v2329
      %v2501 = vsel %vm2382, %v1636, %v2331
      %v2502 = vsel %vm2382, %v1637, %v2333
      %v2503 = vsel %vm2382, %v1638, %v2335
      %v2504 = vsel %vm2382, %v1639, %v2337
      %v2505 = vsel %vm2382, %v1640, %v2339
      %v2506 = vsel %vm2382, %v1641, %v2341
      %v2507 = vsel %vm2382, %v1642, %v2343
      %v2508 = vsel %vm2382, %v1643, %v2345
      %v2509 = vsel %vm2382, %v1644, %v2347
      %v2510 = vsel %vm2382, %v1645, %v2349
      %v2511 = vld [vmem:[%s1] sm:$0xff]
      %v2512 = vld [vmem:[%s1 + $0x8] sm:$0xff]
      %v2513 = vld [vmem:[%s1 + $0x10] sm:$0xff]
      %v2514 = vld [vmem:[%s1 + $0x18] sm:$0xff]
      %v2515 = vld [vmem:[%s1 + $0x20] sm:$0xff]
      %v2516 = vld [vmem:[%s1 + $0x28] sm:$0xff]
      %v2517 = vld [vmem:[%s1 + $0x30] sm:$0xff]
      %v2518 = vld [vmem:[%s1 + $0x38] sm:$0xff]
      %v2519 = vld [vmem:[%s1 + $0x40] sm:$0xff]
      %v2520 = vld [vmem:[%s1 + $0x48] sm:$0xff]
      %v2521 = vld [vmem:[%s1 + $0x50] sm:$0xff]
      %v2522 = vld [vmem:[%s1 + $0x58] sm:$0xff]
      %v2523 = vld [vmem:[%s1 + $0x60] sm:$0xff]
      %v2524 = vld [vmem:[%s1 + $0x68] sm:$0xff]
      %v2525 = vld [vmem:[%s1 + $0x70] sm:$0xff]
      %v2526 = vld [vmem:[%s1 + $0x78] sm:$0xff]
      %v2527 = vld [vmem:[%s1 + $0x80] sm:$0xff]
      %v2528 = vld [vmem:[%s1 + $0x88] sm:$0xff]
      %v2529 = vld [vmem:[%s1 + $0x90] sm:$0xff]
      %v2530 = vld [vmem:[%s1 + $0x98] sm:$0xff]
      %v2531 = vld [vmem:[%s1 + $0xa0] sm:$0xff]
      %v2532 = vld [vmem:[%s1 + $0xa8] sm:$0xff]
      %v2533 = vld [vmem:[%s1 + $0xb0] sm:$0xff]
      %v2534 = vld [vmem:[%s1 + $0xb8] sm:$0xff]
      %v2535 = vld [vmem:[%s1 + $0xc0] sm:$0xff]
      %v2536 = vld [vmem:[%s1 + $0xc8] sm:$0xff]
      %v2537 = vld [vmem:[%s1 + $0xd0] sm:$0xff]
      %v2538 = vld [vmem:[%s1 + $0xd8] sm:$0xff]
      %v2539 = vld [vmem:[%s1 + $0xe0] sm:$0xff]
      %v2540 = vld [vmem:[%s1 + $0xe8] sm:$0xff]
      %v2541 = vld [vmem:[%s1 + $0xf0] sm:$0xff]
      %v2542 = vld [vmem:[%s1 + $0xf8] sm:$0xff]
      %v2543 = vld [vmem:[%s1 + $0x100] sm:$0xff]
      %v2544 = vld [vmem:[%s1 + $0x108] sm:$0xff]
      %v2545 = vld [vmem:[%s1 + $0x110] sm:$0xff]
      %v2546 = vld [vmem:[%s1 + $0x118] sm:$0xff]
      %v2547 = vld [vmem:[%s1 + $0x120] sm:$0xff]
      %v2548 = vld [vmem:[%s1 + $0x128] sm:$0xff]
      %v2549 = vld [vmem:[%s1 + $0x130] sm:$0xff]
      %v2550 = vld [vmem:[%s1 + $0x138] sm:$0xff]
      %v2551 = vld [vmem:[%s1 + $0x140] sm:$0xff]
      %v2552 = vld [vmem:[%s1 + $0x148] sm:$0xff]
      %v2553 = vld [vmem:[%s1 + $0x150] sm:$0xff]
      %v2554 = vld [vmem:[%s1 + $0x158] sm:$0xff]
      %v2555 = vld [vmem:[%s1 + $0x160] sm:$0xff]
      %v2556 = vld [vmem:[%s1 + $0x168] sm:$0xff]
      %v2557 = vld [vmem:[%s1 + $0x170] sm:$0xff]
      %v2558 = vld [vmem:[%s1 + $0x178] sm:$0xff]
      %v2559 = vld [vmem:[%s1 + $0x180] sm:$0xff]
      %v2560 = vld [vmem:[%s1 + $0x188] sm:$0xff]
      %v2561 = vld [vmem:[%s1 + $0x190] sm:$0xff]
      %v2562 = vld [vmem:[%s1 + $0x198] sm:$0xff]
      %v2563 = vld [vmem:[%s1 + $0x1a0] sm:$0xff]
      %v2564 = vld [vmem:[%s1 + $0x1a8] sm:$0xff]
      %v2565 = vld [vmem:[%s1 + $0x1b0] sm:$0xff]
      %v2566 = vld [vmem:[%s1 + $0x1b8] sm:$0xff]
      %v2567 = vld [vmem:[%s1 + $0x1c0] sm:$0xff]
      %v2568 = vld [vmem:[%s1 + $0x1c8] sm:$0xff]
      %v2569 = vld [vmem:[%s1 + $0x1d0] sm:$0xff]
      %v2570 = vld [vmem:[%s1 + $0x1d8] sm:$0xff]
      %v2571 = vld [vmem:[%s1 + $0x1e0] sm:$0xff]
      %v2572 = vld [vmem:[%s1 + $0x1e8] sm:$0xff]
      %v2573 = vld [vmem:[%s1 + $0x1f0] sm:$0xff]
      %v2574 = vld [vmem:[%s1 + $0x1f8] sm:$0xff]
      %v2575 = vld [vmem:[%s1 + $0x200] sm:$0xff]
      %v2576 = vld [vmem:[%s1 + $0x208] sm:$0xff]
      %v2577 = vld [vmem:[%s1 + $0x210] sm:$0xff]
      %v2578 = vld [vmem:[%s1 + $0x218] sm:$0xff]
      %v2579 = vld [vmem:[%s1 + $0x220] sm:$0xff]
      %v2580 = vld [vmem:[%s1 + $0x228] sm:$0xff]
      %v2581 = vld [vmem:[%s1 + $0x230] sm:$0xff]
      %v2582 = vld [vmem:[%s1 + $0x238] sm:$0xff]
      %v2583 = vld [vmem:[%s2] sm:$0x1]
      %v2585 = vlaneseq
      %v2586 = vshrl.u32 %v2585, 7
      %v2587 = vsub.s32 0, %v2586
      %v2588 = vrot.slane %v2583, %v2587
      %v2591 = vsel %vm2382, %v1838, 0
      %v2594 = vsel %vm2382, %v1839, 0
      %v2597 = vsel %vm2382, %v1840, 0
      %v2600 = vsel %vm2382, %v1841, 0
      %v2603 = vsel %vm2382, %v1842, 0
      %v2606 = vsel %vm2382, %v1843, 0
      %v2609 = vsel %vm2382, %v1844, 0
      %v2612 = vsel %vm2382, %v1845, 0
      %v2615 = vsel %vm2382, %v1846, 0
      %v2618 = vsel %vm2382, %v1847, 0
      %v2621 = vsel %vm2382, %v1848, 0
      %v2624 = vsel %vm2382, %v1849, 0
      %v2627 = vsel %vm2382, %v1850, 0
      %v2630 = vsel %vm2382, %v1851, 0
      %v2633 = vsel %vm2382, %v1852, 0
      %v2636 = vsel %vm2382, %v1853, 0
      %v2639 = vsel %vm2382, %v1854, 0
      %v2642 = vsel %vm2382, %v1855, 0
      %v2645 = vsel %vm2382, %v1856, 0
      %v2648 = vsel %vm2382, %v1857, 0
      %v2651 = vsel %vm2382, %v1858, 0
      %v2654 = vsel %vm2382, %v1859, 0
      %v2657 = vsel %vm2382, %v1860, 0
      %v2660 = vsel %vm2382, %v1861, 0
      %v2663 = vsel %vm2382, %v1862, 0
      %v2666 = vsel %vm2382, %v1863, 0
      %v2669 = vsel %vm2382, %v1864, 0
      %v2672 = vsel %vm2382, %v1865, 0
      %v2675 = vsel %vm2382, %v1866, 0
      %v2678 = vsel %vm2382, %v1867, 0
      %v2681 = vsel %vm2382, %v1868, 0
      %v2684 = vsel %vm2382, %v1869, 0
      %2686 = vmatprep.subr.mxu0 0.0
      %2687 = vmatpush1.msra.mxu0 %v2511
      %2688 = vmatprep.subr.mxu0 0.0
      %2689 = vmatpush1.msra.mxu0 %v2512
      %2690 = vmatprep.subr.mxu0 0.0
      %2691 = vmatpush1.msra.mxu0 %v2513
      %2692 = vmatprep.subr.mxu0 0.0
      %2693 = vmatpush1.msra.mxu0 %v2514
      %2694 = vmatprep.subr.mxu0 0.0
      %2695 = vmatpush1.msra.mxu0 %v2515
      %2696 = vmatprep.subr.mxu0 0.0
      %2697 = vmatpush1.msra.mxu0 %v2516
      %2698 = vmatprep.subr.mxu0 0.0
      %2699 = vmatpush1.msra.mxu0 %v2517
      %2700 = vmatprep.subr.mxu0 0.0
      %2701 = vmatpush1.msra.mxu0 %v2518
      %2702 = vmatprep.subr.mxu0 0.0
      %2703 = vmatpush1.msra.mxu0 %v2519
      %2704 = vmatprep.subr.mxu0 0.0
      %2705 = vmatpush1.msra.mxu0 %v2520
      %2706 = vmatprep.subr.mxu0 0.0
      %2707 = vmatpush1.msra.mxu0 %v2521
      %2708 = vmatprep.subr.mxu0 0.0
      %2709 = vmatpush1.msra.mxu0 %v2522
      %2710 = vmatprep.subr.mxu0 0.0
      %2711 = vmatpush1.msra.mxu0 %v2523
      %2712 = vmatprep.subr.mxu0 0.0
      %2713 = vmatpush1.msra.mxu0 %v2524
      %2714 = vmatprep.subr.mxu0 0.0
      %2715 = vmatpush1.msra.mxu0 %v2525
      %2716 = vmatprep.subr.mxu0 0.0
      %2717 = vmatpush1.msra.mxu0 %v2526
      %2718 = vmatprep.subr.mxu0 0.0
      %2719 = vmatpush1.msra.mxu0 %v2527
      %2720 = vmatprep.subr.mxu0 0.0
      %2721 = vmatpush1.msra.mxu0 %v2528
      %2722 = vmatprep.subr.mxu0 0.0
      %2723 = vmatpush1.msra.mxu0 %v2529
      %2724 = vmatprep.subr.mxu0 0.0
      %2725 = vmatpush1.msra.mxu0 %v2530
      %2726 = vmatprep.subr.mxu0 0.0
      %2727 = vmatpush1.msra.mxu0 %v2531
      %2728 = vmatprep.subr.mxu0 0.0
      %2729 = vmatpush1.msra.mxu0 %v2532
      %2730 = vmatprep.subr.mxu0 0.0
      %2731 = vmatpush1.msra.mxu0 %v2533
      %2732 = vmatprep.subr.mxu0 0.0
      %2733 = vmatpush1.msra.mxu0 %v2534
      %2734 = vmatprep.subr.mxu0 0.0
      %2735 = vmatpush1.msra.mxu0 %v2535
      %2736 = vmatprep.subr.mxu0 0.0
      %2737 = vmatpush1.msra.mxu0 %v2536
      %2738 = vmatprep.subr.mxu0 0.0
      %2739 = vmatpush1.msra.mxu0 %v2537
      %2740 = vmatprep.subr.mxu0 0.0
      %2741 = vmatpush1.msra.mxu0 %v2538
      %2742 = vmatprep.subr.mxu0 0.0
      %2743 = vmatpush1.msra.mxu0 %v2539
      %2744 = vmatprep.subr.mxu0 0.0
      %2745 = vmatpush1.msra.mxu0 %v2540
      %2746 = vmatprep.subr.mxu0 0.0
      %2747 = vmatpush1.msra.mxu0 %v2541
      %2748 = vmatprep.subr.mxu0 0.0
      %2749 = vmatpush1.msra.mxu0 %v2542
      %2750 = vmatprep.mubr.f32.mxu0 %v2415
      %2751 = vmatmul.mubr.f32.gmra.mrb[0].mxu0 %v2383
      %v2752 = vpop.f32.mrb[0].mxu0
      %v2753 = vadd.f32 %v2588, %v2752
      %v2754 = vpop.f32.mrb[0].mxu0
      %2755 = vmatprep.mubr.f32.mxu0 %v2416
      %2756 = vmatmul.mubr.f32.gmra.mrb[0].mxu0 %v2384
      %v2757 = vpop.f32.mrb[0].mxu0
      %v2758 = vadd.f32 %v2588, %v2757
      %v2759 = vpop.f32.mrb[0].mxu0
      %2760 = vmatprep.mubr.f32.mxu0 %v2417
      %2761 = vmatmul.mubr.f32.gmra.mrb[0].mxu0 %v2385
      %v2762 = vpop.f32.mrb[0].mxu0
      %v2763 = vadd.f32 %v2588, %v2762
      %v2764 = vpop.f32.mrb[0].mxu0
      %2765 = vmatprep.mubr.f32.mxu0 %v2418
      %2766 = vmatmul.mubr.f32.gmra.mrb[0].mxu0 %v2386
      %v2767 = vpop.f32.mrb[0].mxu0
      %v2768 = vadd.f32 %v2588, %v2767
      %v2769 = vpop.f32.mrb[0].mxu0
      %2770 = vmatprep.mubr.f32.mxu0 %v2419
      %2771 = vmatmul.mubr.f32.gmra.mrb[0].mxu0 %v2387
      %v2772 = vpop.f32.mrb[0].mxu0
      %v2773 = vadd.f32 %v2588, %v2772
      %v2774 = vpop.f32.mrb[0].mxu0
      %2775 = vmatprep.mubr.f32.mxu0 %v2420
      %2776 = vmatmul.mubr.f32.gmra.mrb[0].mxu0 %v2388
      %v2777 = vpop.f32.mrb[0].mxu0
      %v2778 = vadd.f32 %v2588, %v2777
      %v2779 = vpop.f32.mrb[0].mxu0
      %2780 = vmatprep.mubr.f32.mxu0 %v2421
      %2781 = vmatmul.mubr.f32.gmra.mrb[0].mxu0 %v2389
      %v2782 = vpop.f32.mrb[0].mxu0
      %v2783 = vadd.f32 %v2588, %v2782
      %v2784 = vpop.f32.mrb[0].mxu0
      %2785 = vmatprep.mubr.f32.mxu0 %v2422
      %2786 = vmatmul.mubr.f32.gmra.mrb[0].mxu0 %v2390
      %v2787 = vpop.f32.mrb[0].mxu0
      %v2788 = vadd.f32 %v2588, %v2787
      %v2789 = vpop.f32.mrb[0].mxu0
      %2790 = vmatprep.mubr.f32.mxu0 %v2423
      %2791 = vmatmul.mubr.f32.gmra.mrb[0].mxu0 %v2391
      %v2792 = vpop.f32.mrb[0].mxu0
      %v2793 = vadd.f32 %v2588, %v2792
      %v2794 = vpop.f32.mrb[0].mxu0
      %2795 = vmatprep.mubr.f32.mxu0 %v2424
      %2796 = vmatmul.mubr.f32.gmra.mrb[0].mxu0 %v2392
      %v2797 = vpop.f32.mrb[0].mxu0
      %v2798 = vadd.f32 %v2588, %v2797
      %v2799 = vpop.f32.mrb[0].mxu0
      %2800 = vmatprep.mubr.f32.mxu0 %v2425
      %2801 = vmatmul.mubr.f32.gmra.mrb[0].mxu0 %v2393
      %v2802 = vpop.f32.mrb[0].mxu0
      %v2803 = vadd.f32 %v2588, %v2802
      %v2804 = vpop.f32.mrb[0].mxu0
      %2805 = vmatprep.mubr.f32.mxu0 %v2426
      %2806 = vmatmul.mubr.f32.gmra.mrb[0].mxu0 %v2394
      %v2807 = vpop.f32.mrb[0].mxu0
      %v2808 = vadd.f32 %v2588, %v2807
      %v2809 = vpop.f32.mrb[0].mxu0
      %2810 = vmatprep.mubr.f32.mxu0 %v2427
      %2811 = vmatmul.mubr.f32.gmra.mrb[0].mxu0 %v2395
      %v2812 = vpop.f32.mrb[0].mxu0
      %v2813 = vadd.f32 %v2588, %v2812
      %v2814 = vpop.f32.mrb[0].mxu0
      %2815 = vmatprep.mubr.f32.mxu0 %v2428
      %2816 = vmatmul.mubr.f32.gmra.mrb[0].mxu0 %v2396
      %v2817 = vpop.f32.mrb[0].mxu0
      %v2818 = vadd.f32 %v2588, %v2817
      %v2819 = vpop.f32.mrb[0].mxu0
      %2820 = vmatprep.mubr.f32.mxu0 %v2429
      %2821 = vmatmul.mubr.f32.gmra.mrb[0].mxu0 %v2397
      %v2822 = vpop.f32.mrb[0].mxu0
      %v2823 = vadd.f32 %v2588, %v2822
      %v2824 = vpop.f32.mrb[0].mxu0
      %2825 = vmatprep.mubr.f32.mxu0 %v2430
      %2826 = vmatmul.mubr.f32.gmra.mrb[0].mxu0 %v2398
      %v2827 = vpop.f32.mrb[0].mxu0
      %v2828 = vadd.f32 %v2588, %v2827
      %v2829 = vpop.f32.mrb[0].mxu0
      %2830 = vmatprep.mubr.f32.mxu0 %v2431
      %2831 = vmatmul.mubr.f32.gmra.mrb[0].mxu0 %v2399
      %v2832 = vpop.f32.mrb[0].mxu0
      %v2833 = vadd.f32 %v2588, %v2832
      %v2834 = vpop.f32.mrb[0].mxu0
      %2835 = vmatprep.mubr.f32.mxu0 %v2432
      %2836 = vmatmul.mubr.f32.gmra.mrb[0].mxu0 %v2400
      %v2837 = vpop.f32.mrb[0].mxu0
      %v2838 = vadd.f32 %v2588, %v2837
      %v2839 = vpop.f32.mrb[0].mxu0
      %2840 = vmatprep.mubr.f32.mxu0 %v2433
      %2841 = vmatmul.mubr.f32.gmra.mrb[0].mxu0 %v2401
      %v2842 = vpop.f32.mrb[0].mxu0
      %v2843 = vadd.f32 %v2588, %v2842
      %v2844 = vpop.f32.mrb[0].mxu0
      %2845 = vmatprep.mubr.f32.mxu0 %v2434
      %2846 = vmatmul.mubr.f32.gmra.mrb[0].mxu0 %v2402
      %v2847 = vpop.f32.mrb[0].mxu0
      %v2848 = vadd.f32 %v2588, %v2847
      %v2849 = vpop.f32.mrb[0].mxu0
      %2850 = vmatprep.mubr.f32.mxu0 %v2435
      %2851 = vmatmul.mubr.f32.gmra.mrb[0].mxu0 %v2403
      %v2852 = vpop.f32.mrb[0].mxu0
      %v2853 = vadd.f32 %v2588, %v2852
      %v2854 = vpop.f32.mrb[0].mxu0
      %2855 = vmatprep.mubr.f32.mxu0 %v2436
      %2856 = vmatmul.mubr.f32.gmra.mrb[0].mxu0 %v2404
      %v2857 = vpop.f32.mrb[0].mxu0
      %v2858 = vadd.f32 %v2588, %v2857
      %v2859 = vpop.f32.mrb[0].mxu0
      %2860 = vmatprep.mubr.f32.mxu0 %v2437
      %2861 = vmatmul.mubr.f32.gmra.mrb[0].mxu0 %v2405
      %v2862 = vpop.f32.mrb[0].mxu0
      %v2863 = vadd.f32 %v2588, %v2862
      %v2864 = vpop.f32.mrb[0].mxu0
      %2865 = vmatprep.mubr.f32.mxu0 %v2438
      %2866 = vmatmul.mubr.f32.gmra.mrb[0].mxu0 %v2406
      %v2867 = vpop.f32.mrb[0].mxu0
      %v2868 = vadd.f32 %v2588, %v2867
      %v2869 = vpop.f32.mrb[0].mxu0
      %2870 = vmatprep.mubr.f32.mxu0 %v2439
      %2871 = vmatmul.mubr.f32.gmra.mrb[0].mxu0 %v2407
      %v2872 = vpop.f32.mrb[0].mxu0
      %v2873 = vadd.f32 %v2588, %v2872
      %v2874 = vpop.f32.mrb[0].mxu0
      %2875 = vmatprep.mubr.f32.mxu0 %v2440
      %2876 = vmatmul.mubr.f32.gmra.mrb[0].mxu0 %v2408
      %v2877 = vpop.f32.mrb[0].mxu0
      %v2878 = vadd.f32 %v2588, %v2877
      %v2879 = vpop.f32.mrb[0].mxu0
      %2880 = vmatprep.mubr.f32.mxu0 %v2441
      %2881 = vmatmul.mubr.f32.gmra.mrb[0].mxu0 %v2409
      %v2882 = vpop.f32.mrb[0].mxu0
      %v2883 = vadd.f32 %v2588, %v2882
      %v2884 = vpop.f32.mrb[0].mxu0
      %2885 = vmatprep.mubr.f32.mxu0 %v2442
      %2886 = vmatmul.mubr.f32.gmra.mrb[0].mxu0 %v2410
      %v2887 = vpop.f32.mrb[0].mxu0
      %v2888 = vadd.f32 %v2588, %v2887
      %v2889 = vpop.f32.mrb[0].mxu0
      %2890 = vmatprep.mubr.f32.mxu0 %v2443
      %2891 = vmatmul.mubr.f32.gmra.mrb[0].mxu0 %v2411
      %v2892 = vpop.f32.mrb[0].mxu0
      %v2893 = vadd.f32 %v2588, %v2892
      %v2894 = vpop.f32.mrb[0].mxu0
      %2895 = vmatprep.mubr.f32.mxu0 %v2444
      %2896 = vmatmul.mubr.f32.gmra.mrb[0].mxu0 %v2412
      %v2897 = vpop.f32.mrb[0].mxu0
      %v2898 = vadd.f32 %v2588, %v2897
      %v2899 = vpop.f32.mrb[0].mxu0
      %2900 = vmatprep.mubr.f32.mxu0 %v2445
      %2901 = vmatmul.mubr.f32.gmra.mrb[0].mxu0 %v2413
      %v2902 = vpop.f32.mrb[0].mxu0
      %v2903 = vadd.f32 %v2588, %v2902
      %v2904 = vpop.f32.mrb[0].mxu0
      %2905 = vmatprep.mubr.f32.mxu0 %v2446
      %2906 = vmatmul.mubr.f32.gmra.mrb[0].mxu0 %v2414
      %v2907 = vpop.f32.mrb[0].mxu0
      %v2908 = vadd.f32 %v2588, %v2907
      %v2909 = vpop.f32.mrb[0].mxu0
      %2910 = vdwg.mxu0
      %2911 = vmatprep.subr.mxu0 0.0
      %2912 = vmatpush1.msra.mxu0 %v2543
      %2913 = vmatprep.subr.mxu0 0.0
      %2914 = vmatpush1.msra.mxu0 %v2544
      %2915 = vmatprep.subr.mxu0 0.0
      %2916 = vmatpush1.msra.mxu0 %v2545
      %2917 = vmatprep.subr.mxu0 0.0
      %2918 = vmatpush1.msra.mxu0 %v2546
      %2919 = vmatprep.subr.mxu0 0.0
      %2920 = vmatpush1.msra.mxu0 %v2547
      %2921 = vmatprep.subr.mxu0 0.0
      %2922 = vmatpush1.msra.mxu0 %v2548
      %2923 = vmatprep.subr.mxu0 0.0
      %2924 = vmatpush1.msra.mxu0 %v2549
      %2925 = vmatprep.subr.mxu0 0.0
      %2926 = vmatpush1.msra.mxu0 %v2550
      %2927 = vmatprep.subr.mxu0 0.0
      %2928 = vmatpush1.msra.mxu0 %v2551
      %2929 = vmatprep.subr.mxu0 0.0
      %2930 = vmatpush1.msra.mxu0 %v2552
      %2931 = vmatprep.subr.mxu0 0.0
      %2932 = vmatpush1.msra.mxu0 %v2553
      %2933 = vmatprep.subr.mxu0 0.0
      %2934 = vmatpush1.msra.mxu0 %v2554
      %2935 = vmatprep.subr.mxu0 0.0
      %2936 = vmatpush1.msra.mxu0 %v2555
      %2937 = vmatprep.subr.mxu0 0.0
      %2938 = vmatpush1.msra.mxu0 %v2556
      %2939 = vmatprep.subr.mxu0 0.0
      %2940 = vmatpush1.msra.mxu0 %v2557
      %2941 = vmatprep.subr.mxu0 0.0
      %2942 = vmatpush1.msra.mxu0 %v2558
      %2943 = vmatprep.subr.mxu0 0.0
      %2944 = vmatpush1.msra.mxu0 %v2559
      %2945 = vmatprep.subr.mxu0 0.0
      %2946 = vmatpush1.msra.mxu0 %v2560
      %2947 = vmatprep.subr.mxu0 0.0
      %2948 = vmatpush1.msra.mxu0 %v2561
      %2949 = vmatprep.subr.mxu0 0.0
      %2950 = vmatpush1.msra.mxu0 %v2562
      %2951 = vmatprep.subr.mxu0 0.0
      %2952 = vmatpush1.msra.mxu0 %v2563
      %2953 = vmatprep.subr.mxu0 0.0
      %2954 = vmatpush1.msra.mxu0 %v2564
      %2955 = vmatprep.subr.mxu0 0.0
      %2956 = vmatpush1.msra.mxu0 %v2565
      %2957 = vmatprep.subr.mxu0 0.0
      %2958 = vmatpush1.msra.mxu0 %v2566
      %2959 = vmatprep.subr.mxu0 0.0
      %2960 = vmatpush1.msra.mxu0 %v2567
      %2961 = vmatprep.subr.mxu0 0.0
      %2962 = vmatpush1.msra.mxu0 %v2568
      %2963 = vmatprep.subr.mxu0 0.0
      %2964 = vmatpush1.msra.mxu0 %v2569
      %2965 = vmatprep.subr.mxu0 0.0
      %2966 = vmatpush1.msra.mxu0 %v2570
      %2967 = vmatprep.subr.mxu0 0.0
      %2968 = vmatpush1.msra.mxu0 %v2571
      %2969 = vmatprep.subr.mxu0 0.0
      %2970 = vmatpush1.msra.mxu0 %v2572
      %2971 = vmatprep.subr.mxu0 0.0
      %2972 = vmatpush1.msra.mxu0 %v2573
      %2973 = vmatprep.subr.mxu0 0.0
      %2974 = vmatpush1.msra.mxu0 %v2574
      %2975 = vmatprep.mubr.f32.mxu0 %v2479
      %2976 = vmatmul.mubr.f32.gmra.mrb[0].mxu0 %v2447
      %v2977 = vpop.f32.mrb[0].mxu0
      %v2978 = vadd.f32 %v2753, %v2977
      %v2979 = vpop.f32.mrb[0].mxu0
      %2980 = vmatprep.mubr.f32.mxu0 %v2480
      %2981 = vmatmul.mubr.f32.gmra.mrb[0].mxu0 %v2448
      %v2982 = vpop.f32.mrb[0].mxu0
      %v2983 = vadd.f32 %v2758, %v2982
      %v2984 = vpop.f32.mrb[0].mxu0
      %2985 = vmatprep.mubr.f32.mxu0 %v2481
      %2986 = vmatmul.mubr.f32.gmra.mrb[0].mxu0 %v2449
      %v2987 = vpop.f32.mrb[0].mxu0
      %v2988 = vadd.f32 %v2763, %v2987
      %v2989 = vpop.f32.mrb[0].mxu0
      %2990 = vmatprep.mubr.f32.mxu0 %v2482
      %2991 = vmatmul.mubr.f32.gmra.mrb[0].mxu0 %v2450
      %v2992 = vpop.f32.mrb[0].mxu0
      %v2993 = vadd.f32 %v2768, %v2992
      %v2994 = vpop.f32.mrb[0].mxu0
      %2995 = vmatprep.mubr.f32.mxu0 %v2483
      %2996 = vmatmul.mubr.f32.gmra.mrb[0].mxu0 %v2451
      %v2997 = vpop.f32.mrb[0].mxu0
      %v2998 = vadd.f32 %v2773, %v2997
      %v2999 = vpop.f32.mrb[0].mxu0
      %3000 = vmatprep.mubr.f32.mxu0 %v2484
      %3001 = vmatmul.mubr.f32.gmra.mrb[0].mxu0 %v2452
      %v3002 = vpop.f32.mrb[0].mxu0
      %v3003 = vadd.f32 %v2778, %v3002
      %v3004 = vpop.f32.mrb[0].mxu0
      %3005 = vmatprep.mubr.f32.mxu0 %v2485
      %3006 = vmatmul.mubr.f32.gmra.mrb[0].mxu0 %v2453
      %v3007 = vpop.f32.mrb[0].mxu0
      %v3008 = vadd.f32 %v2783, %v3007
      %v3009 = vpop.f32.mrb[0].mxu0
      %3010 = vmatprep.mubr.f32.mxu0 %v2486
      %3011 = vmatmul.mubr.f32.gmra.mrb[0].mxu0 %v2454
      %v3012 = vpop.f32.mrb[0].mxu0
      %v3013 = vadd.f32 %v2788, %v3012
      %v3014 = vpop.f32.mrb[0].mxu0
      %3015 = vmatprep.mubr.f32.mxu0 %v2487
      %3016 = vmatmul.mubr.f32.gmra.mrb[0].mxu0 %v2455
      %v3017 = vpop.f32.mrb[0].mxu0
      %v3018 = vadd.f32 %v2793, %v3017
      %v3019 = vpop.f32.mrb[0].mxu0
      %3020 = vmatprep.mubr.f32.mxu0 %v2488
      %3021 = vmatmul.mubr.f32.gmra.mrb[0].mxu0 %v2456
      %v3022 = vpop.f32.mrb[0].mxu0
      %v3023 = vadd.f32 %v2798, %v3022
      %v3024 = vpop.f32.mrb[0].mxu0
      %3025 = vmatprep.mubr.f32.mxu0 %v2489
      %3026 = vmatmul.mubr.f32.gmra.mrb[0].mxu0 %v2457
      %v3027 = vpop.f32.mrb[0].mxu0
      %v3028 = vadd.f32 %v2803, %v3027
      %v3029 = vpop.f32.mrb[0].mxu0
      %3030 = vmatprep.mubr.f32.mxu0 %v2490
      %3031 = vmatmul.mubr.f32.gmra.mrb[0].mxu0 %v2458
      %v3032 = vpop.f32.mrb[0].mxu0
      %v3033 = vadd.f32 %v2808, %v3032
      %v3034 = vpop.f32.mrb[0].mxu0
      %3035 = vmatprep.mubr.f32.mxu0 %v2491
      %3036 = vmatmul.mubr.f32.gmra.mrb[0].mxu0 %v2459
      %v3037 = vpop.f32.mrb[0].mxu0
      %v3038 = vadd.f32 %v2813, %v3037
      %v3039 = vpop.f32.mrb[0].mxu0
      %3040 = vmatprep.mubr.f32.mxu0 %v2492
      %3041 = vmatmul.mubr.f32.gmra.mrb[0].mxu0 %v2460
      %v3042 = vpop.f32.mrb[0].mxu0
      %v3043 = vadd.f32 %v2818, %v3042
      %v3044 = vpop.f32.mrb[0].mxu0
      %3045 = vmatprep.mubr.f32.mxu0 %v2493
      %3046 = vmatmul.mubr.f32.gmra.mrb[0].mxu0 %v2461
      %v3047 = vpop.f32.mrb[0].mxu0
      %v3048 = vadd.f32 %v2823, %v3047
      %v3049 = vpop.f32.mrb[0].mxu0
      %3050 = vmatprep.mubr.f32.mxu0 %v2494
      %3051 = vmatmul.mubr.f32.gmra.mrb[0].mxu0 %v2462
      %v3052 = vpop.f32.mrb[0].mxu0
      %v3053 = vadd.f32 %v2828, %v3052
      %v3054 = vpop.f32.mrb[0].mxu0
      %3055 = vmatprep.mubr.f32.mxu0 %v2495
      %3056 = vmatmul.mubr.f32.gmra.mrb[0].mxu0 %v2463
      %v3057 = vpop.f32.mrb[0].mxu0
      %v3058 = vadd.f32 %v2833, %v3057
      %v3059 = vpop.f32.mrb[0].mxu0
      %3060 = vmatprep.mubr.f32.mxu0 %v2496
      %3061 = vmatmul.mubr.f32.gmra.mrb[0].mxu0 %v2464
      %v3062 = vpop.f32.mrb[0].mxu0
      %v3063 = vadd.f32 %v2838, %v3062
      %v3064 = vpop.f32.mrb[0].mxu0
      %3065 = vmatprep.mubr.f32.mxu0 %v2497
      %3066 = vmatmul.mubr.f32.gmra.mrb[0].mxu0 %v2465
      %v3067 = vpop.f32.mrb[0].mxu0
      %v3068 = vadd.f32 %v2843, %v3067
      %v3069 = vpop.f32.mrb[0].mxu0
      %3070 = vmatprep.mubr.f32.mxu0 %v2498
      %3071 = vmatmul.mubr.f32.gmra.mrb[0].mxu0 %v2466
      %v3072 = vpop.f32.mrb[0].mxu0
      %v3073 = vadd.f32 %v2848, %v3072
      %v3074 = vpop.f32.mrb[0].mxu0
      %3075 = vmatprep.mubr.f32.mxu0 %v2499
      %3076 = vmatmul.mubr.f32.gmra.mrb[0].mxu0 %v2467
      %v3077 = vpop.f32.mrb[0].mxu0
      %v3078 = vadd.f32 %v2853, %v3077
      %v3079 = vpop.f32.mrb[0].mxu0
      %3080 = vmatprep.mubr.f32.mxu0 %v2500
      %3081 = vmatmul.mubr.f32.gmra.mrb[0].mxu0 %v2468
      %v3082 = vpop.f32.mrb[0].mxu0
      %v3083 = vadd.f32 %v2858, %v3082
      %v3084 = vpop.f32.mrb[0].mxu0
      %3085 = vmatprep.mubr.f32.mxu0 %v2501
      %3086 = vmatmul.mubr.f32.gmra.mrb[0].mxu0 %v2469
      %v3087 = vpop.f32.mrb[0].mxu0
      %v3088 = vadd.f32 %v2863, %v3087
      %v3089 = vpop.f32.mrb[0].mxu0
      %3090 = vmatprep.mubr.f32.mxu0 %v2502
      %3091 = vmatmul.mubr.f32.gmra.mrb[0].mxu0 %v2470
      %v3092 = vpop.f32.mrb[0].mxu0
      %v3093 = vadd.f32 %v2868, %v3092
      %v3094 = vpop.f32.mrb[0].mxu0
      %3095 = vmatprep.mubr.f32.mxu0 %v2503
      %3096 = vmatmul.mubr.f32.gmra.mrb[0].mxu0 %v2471
      %v3097 = vpop.f32.mrb[0].mxu0
      %v3098 = vadd.f32 %v2873, %v3097
      %v3099 = vpop.f32.mrb[0].mxu0
      %3100 = vmatprep.mubr.f32.mxu0 %v2504
      %3101 = vmatmul.mubr.f32.gmra.mrb[0].mxu0 %v2472
      %v3102 = vpop.f32.mrb[0].mxu0
      %v3103 = vadd.f32 %v2878, %v3102
      %v3104 = vpop.f32.mrb[0].mxu0
      %3105 = vmatprep.mubr.f32.mxu0 %v2505
      %3106 = vmatmul.mubr.f32.gmra.mrb[0].mxu0 %v2473
      %v3107 = vpop.f32.mrb[0].mxu0
      %v3108 = vadd.f32 %v2883, %v3107
      %v3109 = vpop.f32.mrb[0].mxu0
      %3110 = vmatprep.mubr.f32.mxu0 %v2506
      %3111 = vmatmul.mubr.f32.gmra.mrb[0].mxu0 %v2474
      %v3112 = vpop.f32.mrb[0].mxu0
      %v3113 = vadd.f32 %v2888, %v3112
      %v3114 = vpop.f32.mrb[0].mxu0
      %3115 = vmatprep.mubr.f32.mxu0 %v2507
      %3116 = vmatmul.mubr.f32.gmra.mrb[0].mxu0 %v2475
      %v3117 = vpop.f32.mrb[0].mxu0
      %v3118 = vadd.f32 %v2893, %v3117
      %v3119 = vpop.f32.mrb[0].mxu0
      %3120 = vmatprep.mubr.f32.mxu0 %v2508
      %3121 = vmatmul.mubr.f32.gmra.mrb[0].mxu0 %v2476
      %v3122 = vpop.f32.mrb[0].mxu0
      %v3123 = vadd.f32 %v2898, %v3122
      %v3124 = vpop.f32.mrb[0].mxu0
      %3125 = vmatprep.mubr.f32.mxu0 %v2509
      %3126 = vmatmul.mubr.f32.gmra.mrb[0].mxu0 %v2477
      %v3127 = vpop.f32.mrb[0].mxu0
      %v3128 = vadd.f32 %v2903, %v3127
      %v3129 = vpop.f32.mrb[0].mxu0
      %3130 = vmatprep.mubr.f32.mxu0 %v2510
      %3131 = vmatmul.mubr.f32.gmra.mrb[0].mxu0 %v2478
      %v3132 = vpop.f32.mrb[0].mxu0
      %v3133 = vadd.f32 %v2908, %v3132
      %v3134 = vpop.f32.mrb[0].mxu0
      %3135 = vdwg.mxu0
      %3136 = vmatprep.subr.mxu0 0.0
      %3137 = vmatpush1.msra.mxu0 %v2575
      %3138 = vmatprep.subr.mxu0 0.0
      %3139 = vmatpush1.msra.mxu0 %v2576
      %3140 = vmatprep.subr.mxu0 0.0
      %3141 = vmatpush1.msra.mxu0 %v2577
      %3142 = vmatprep.subr.mxu0 0.0
      %3143 = vmatpush1.msra.mxu0 %v2578
      %3144 = vmatprep.subr.mxu0 0.0
      %3145 = vmatpush1.msra.mxu0 %v2579
      %3146 = vmatprep.subr.mxu0 0.0
      %3147 = vmatpush1.msra.mxu0 %v2580
      %3148 = vmatprep.subr.mxu0 0.0
      %3149 = vmatpush1.msra.mxu0 %v2581
      %3150 = vmatprep.subr.mxu0 0.0
      %3151 = vmatpush1.msra.mxu0 %v2582
      %3152 = vmatprep.subr.mxu0 0.0
      %3153 = vmatpush1.msra.mxu0 0.0
      %3154 = vmatprep.subr.mxu0 0.0
      %3155 = vmatpush1.msra.mxu0 0.0
      %3156 = vmatprep.subr.mxu0 0.0
      %3157 = vmatpush1.msra.mxu0 0.0
      %3158 = vmatprep.subr.mxu0 0.0
      %3159 = vmatpush1.msra.mxu0 0.0
      %3160 = vmatprep.subr.mxu0 0.0
      %3161 = vmatpush1.msra.mxu0 0.0
      %3162 = vmatprep.subr.mxu0 0.0
      %3163 = vmatpush1.msra.mxu0 0.0
      %3164 = vmatprep.subr.mxu0 0.0
      %3165 = vmatpush1.msra.mxu0 0.0
      %3166 = vmatprep.subr.mxu0 0.0
      %3167 = vmatpush1.msra.mxu0 0.0
      %3168 = vmatprep.subr.mxu0 0.0
      %3169 = vmatpush1.msra.mxu0 0.0
      %3170 = vmatprep.subr.mxu0 0.0
      %3171 = vmatpush1.msra.mxu0 0.0
      %3172 = vmatprep.subr.mxu0 0.0
      %3173 = vmatpush1.msra.mxu0 0.0
      %3174 = vmatprep.subr.mxu0 0.0
      %3175 = vmatpush1.msra.mxu0 0.0
      %3176 = vmatprep.subr.mxu0 0.0
      %3177 = vmatpush1.msra.mxu0 0.0
      %3178 = vmatprep.subr.mxu0 0.0
      %3179 = vmatpush1.msra.mxu0 0.0
      %3180 = vmatprep.subr.mxu0 0.0
      %3181 = vmatpush1.msra.mxu0 0.0
      %3182 = vmatprep.subr.mxu0 0.0
      %3183 = vmatpush1.msra.mxu0 0.0
      %3184 = vmatprep.subr.mxu0 0.0
      %3185 = vmatpush1.msra.mxu0 0.0
      %3186 = vmatprep.subr.mxu0 0.0
      %3187 = vmatpush1.msra.mxu0 0.0
      %3188 = vmatprep.subr.mxu0 0.0
      %3189 = vmatpush1.msra.mxu0 0.0
      %3190 = vmatprep.subr.mxu0 0.0
      %3191 = vmatpush1.msra.mxu0 0.0
      %3192 = vmatprep.subr.mxu0 0.0
      %3193 = vmatpush1.msra.mxu0 0.0
      %3194 = vmatprep.subr.mxu0 0.0
      %3195 = vmatpush1.msra.mxu0 0.0
      %3196 = vmatprep.subr.mxu0 0.0
      %3197 = vmatpush1.msra.mxu0 0.0
      %3198 = vmatprep.subr.mxu0 0.0
      %3199 = vmatpush1.msra.mxu0 0.0
      %3200 = vmatprep.mubr.f32.mxu0 0.0
      %3201 = vmatmul.mubr.f32.gmra.mrb[0].mxu0 %v2591
      %v3202 = vpop.f32.mrb[0].mxu0
      %v3203 = vadd.f32 %v2978, %v3202
      %v3204 = vpop.f32.mrb[0].mxu0
      %3205 = vmatprep.mubr.f32.mxu0 0.0
      %3206 = vmatmul.mubr.f32.gmra.mrb[0].mxu0 %v2594
      %v3207 = vpop.f32.mrb[0].mxu0
      %v3208 = vadd.f32 %v2983, %v3207
      %v3209 = vpop.f32.mrb[0].mxu0
      %3210 = vmatprep.mubr.f32.mxu0 0.0
      %3211 = vmatmul.mubr.f32.gmra.mrb[0].mxu0 %v2597
      %v3212 = vpop.f32.mrb[0].mxu0
      %v3213 = vadd.f32 %v2988, %v3212
      %v3214 = vpop.f32.mrb[0].mxu0
      %3215 = vmatprep.mubr.f32.mxu0 0.0
      %3216 = vmatmul.mubr.f32.gmra.mrb[0].mxu0 %v2600
      %v3217 = vpop.f32.mrb[0].mxu0
      %v3218 = vadd.f32 %v2993, %v3217
      %v3219 = vpop.f32.mrb[0].mxu0
      %3220 = vmatprep.mubr.f32.mxu0 0.0
      %3221 = vmatmul.mubr.f32.gmra.mrb[0].mxu0 %v2603
      %v3222 = vpop.f32.mrb[0].mxu0
      %v3223 = vadd.f32 %v2998, %v3222
      %v3224 = vpop.f32.mrb[0].mxu0
      %3225 = vmatprep.mubr.f32.mxu0 0.0
      %3226 = vmatmul.mubr.f32.gmra.mrb[0].mxu0 %v2606
      %v3227 = vpop.f32.mrb[0].mxu0
      %v3228 = vadd.f32 %v3003, %v3227
      %v3229 = vpop.f32.mrb[0].mxu0
      %3230 = vmatprep.mubr.f32.mxu0 0.0
      %3231 = vmatmul.mubr.f32.gmra.mrb[0].mxu0 %v2609
      %v3232 = vpop.f32.mrb[0].mxu0
      %v3233 = vadd.f32 %v3008, %v3232
      %v3234 = vpop.f32.mrb[0].mxu0
      %3235 = vmatprep.mubr.f32.mxu0 0.0
      %3236 = vmatmul.mubr.f32.gmra.mrb[0].mxu0 %v2612
      %v3237 = vpop.f32.mrb[0].mxu0
      %v3238 = vadd.f32 %v3013, %v3237
      %v3239 = vpop.f32.mrb[0].mxu0
      %3240 = vmatprep.mubr.f32.mxu0 0.0
      %3241 = vmatmul.mubr.f32.gmra.mrb[0].mxu0 %v2615
      %v3242 = vpop.f32.mrb[0].mxu0
      %v3243 = vadd.f32 %v3018, %v3242
      %v3244 = vpop.f32.mrb[0].mxu0
      %3245 = vmatprep.mubr.f32.mxu0 0.0
      %3246 = vmatmul.mubr.f32.gmra.mrb[0].mxu0 %v2618
      %v3247 = vpop.f32.mrb[0].mxu0
      %v3248 = vadd.f32 %v3023, %v3247
      %v3249 = vpop.f32.mrb[0].mxu0
      %3250 = vmatprep.mubr.f32.mxu0 0.0
      %3251 = vmatmul.mubr.f32.gmra.mrb[0].mxu0 %v2621
      %v3252 = vpop.f32.mrb[0].mxu0
      %v3253 = vadd.f32 %v3028, %v3252
      %v3254 = vpop.f32.mrb[0].mxu0
      %3255 = vmatprep.mubr.f32.mxu0 0.0
      %3256 = vmatmul.mubr.f32.gmra.mrb[0].mxu0 %v2624
      %v3257 = vpop.f32.mrb[0].mxu0
      %v3258 = vadd.f32 %v3033, %v3257
      %v3259 = vpop.f32.mrb[0].mxu0
      %3260 = vmatprep.mubr.f32.mxu0 0.0
      %3261 = vmatmul.mubr.f32.gmra.mrb[0].mxu0 %v2627
      %v3262 = vpop.f32.mrb[0].mxu0
      %v3263 = vadd.f32 %v3038, %v3262
      %v3264 = vpop.f32.mrb[0].mxu0
      %3265 = vmatprep.mubr.f32.mxu0 0.0
      %3266 = vmatmul.mubr.f32.gmra.mrb[0].mxu0 %v2630
      %v3267 = vpop.f32.mrb[0].mxu0
      %v3268 = vadd.f32 %v3043, %v3267
      %v3269 = vpop.f32.mrb[0].mxu0
      %3270 = vmatprep.mubr.f32.mxu0 0.0
      %3271 = vmatmul.mubr.f32.gmra.mrb[0].mxu0 %v2633
      %v3272 = vpop.f32.mrb[0].mxu0
      %v3273 = vadd.f32 %v3048, %v3272
      %v3274 = vpop.f32.mrb[0].mxu0
      %3275 = vmatprep.mubr.f32.mxu0 0.0
      %3276 = vmatmul.mubr.f32.gmra.mrb[0].mxu0 %v2636
      %v3277 = vpop.f32.mrb[0].mxu0
      %v3278 = vadd.f32 %v3053, %v3277
      %v3279 = vpop.f32.mrb[0].mxu0
      %3280 = vmatprep.mubr.f32.mxu0 0.0
      %3281 = vmatmul.mubr.f32.gmra.mrb[0].mxu0 %v2639
      %v3282 = vpop.f32.mrb[0].mxu0
      %v3283 = vadd.f32 %v3058, %v3282
      %v3284 = vpop.f32.mrb[0].mxu0
      %3285 = vmatprep.mubr.f32.mxu0 0.0
      %3286 = vmatmul.mubr.f32.gmra.mrb[0].mxu0 %v2642
      %v3287 = vpop.f32.mrb[0].mxu0
      %v3288 = vadd.f32 %v3063, %v3287
      %v3289 = vpop.f32.mrb[0].mxu0
      %3290 = vmatprep.mubr.f32.mxu0 0.0
      %3291 = vmatmul.mubr.f32.gmra.mrb[0].mxu0 %v2645
      %v3292 = vpop.f32.mrb[0].mxu0
      %v3293 = vadd.f32 %v3068, %v3292
      %v3294 = vpop.f32.mrb[0].mxu0
      %3295 = vmatprep.mubr.f32.mxu0 0.0
      %3296 = vmatmul.mubr.f32.gmra.mrb[0].mxu0 %v2648
      %v3297 = vpop.f32.mrb[0].mxu0
      %v3298 = vadd.f32 %v3073, %v3297
      %v3299 = vpop.f32.mrb[0].mxu0
      %3300 = vmatprep.mubr.f32.mxu0 0.0
      %3301 = vmatmul.mubr.f32.gmra.mrb[0].mxu0 %v2651
      %v3302 = vpop.f32.mrb[0].mxu0
      %v3303 = vadd.f32 %v3078, %v3302
      %v3304 = vpop.f32.mrb[0].mxu0
      %3305 = vmatprep.mubr.f32.mxu0 0.0
      %3306 = vmatmul.mubr.f32.gmra.mrb[0].mxu0 %v2654
      %v3307 = vpop.f32.mrb[0].mxu0
      %v3308 = vadd.f32 %v3083, %v3307
      %v3309 = vpop.f32.mrb[0].mxu0
      %3310 = vmatprep.mubr.f32.mxu0 0.0
      %3311 = vmatmul.mubr.f32.gmra.mrb[0].mxu0 %v2657
      %v3312 = vpop.f32.mrb[0].mxu0
      %v3313 = vadd.f32 %v3088, %v3312
      %v3314 = vpop.f32.mrb[0].mxu0
      %3315 = vmatprep.mubr.f32.mxu0 0.0
      %3316 = vmatmul.mubr.f32.gmra.mrb[0].mxu0 %v2660
      %v3317 = vpop.f32.mrb[0].mxu0
      %v3318 = vadd.f32 %v3093, %v3317
      %v3319 = vpop.f32.mrb[0].mxu0
      %3320 = vmatprep.mubr.f32.mxu0 0.0
      %3321 = vmatmul.mubr.f32.gmra.mrb[0].mxu0 %v2663
      %v3322 = vpop.f32.mrb[0].mxu0
      %v3323 = vadd.f32 %v3098, %v3322
      %v3324 = vpop.f32.mrb[0].mxu0
      %3325 = vmatprep.mubr.f32.mxu0 0.0
      %3326 = vmatmul.mubr.f32.gmra.mrb[0].mxu0 %v2666
      %v3327 = vpop.f32.mrb[0].mxu0
      %v3328 = vadd.f32 %v3103, %v3327
      %v3329 = vpop.f32.mrb[0].mxu0
      %3330 = vmatprep.mubr.f32.mxu0 0.0
      %3331 = vmatmul.mubr.f32.gmra.mrb[0].mxu0 %v2669
      %v3332 = vpop.f32.mrb[0].mxu0
      %v3333 = vadd.f32 %v3108, %v3332
      %v3334 = vpop.f32.mrb[0].mxu0
      %3335 = vmatprep.mubr.f32.mxu0 0.0
      %3336 = vmatmul.mubr.f32.gmra.mrb[0].mxu0 %v2672
      %v3337 = vpop.f32.mrb[0].mxu0
      %v3338 = vadd.f32 %v3113, %v3337
      %v3339 = vpop.f32.mrb[0].mxu0
      %3340 = vmatprep.mubr.f32.mxu0 0.0
      %3341 = vmatmul.mubr.f32.gmra.mrb[0].mxu0 %v2675
      %v3342 = vpop.f32.mrb[0].mxu0
      %v3343 = vadd.f32 %v3118, %v3342
      %v3344 = vpop.f32.mrb[0].mxu0
      %3345 = vmatprep.mubr.f32.mxu0 0.0
      %3346 = vmatmul.mubr.f32.gmra.mrb[0].mxu0 %v2678
      %v3347 = vpop.f32.mrb[0].mxu0
      %v3348 = vadd.f32 %v3123, %v3347
      %v3349 = vpop.f32.mrb[0].mxu0
      %3350 = vmatprep.mubr.f32.mxu0 0.0
      %3351 = vmatmul.mubr.f32.gmra.mrb[0].mxu0 %v2681
      %v3352 = vpop.f32.mrb[0].mxu0
      %v3353 = vadd.f32 %v3128, %v3352
      %v3354 = vpop.f32.mrb[0].mxu0
      %3355 = vmatprep.mubr.f32.mxu0 0.0
      %3356 = vmatmul.mubr.f32.gmra.mrb[0].mxu0 %v2684
      %v3357 = vpop.f32.mrb[0].mxu0
      %v3358 = vadd.f32 %v3133, %v3357
      %v3359 = vpop.f32.mrb[0].mxu0
      %3360 = vdwg.mxu0
      %v3361 = vadd.f32 %v3203, %v3208
      %v3362 = vadd.f32 %v3361, %v3213
      %v3363 = vadd.f32 %v3362, %v3218
      %v3364 = vadd.f32 %v3363, %v3223
      %v3365 = vadd.f32 %v3364, %v3228
      %v3366 = vadd.f32 %v3365, %v3233
      %v3367 = vadd.f32 %v3366, %v3238
      %v3368 = vadd.f32 %v3367, %v3243
      %v3369 = vadd.f32 %v3368, %v3248
      %v3370 = vadd.f32 %v3369, %v3253
      %v3371 = vadd.f32 %v3370, %v3258
      %v3372 = vadd.f32 %v3371, %v3263
      %v3373 = vadd.f32 %v3372, %v3268
      %v3374 = vadd.f32 %v3373, %v3273
      %v3375 = vadd.f32 %v3374, %v3278
      %v3376 = vadd.f32 %v3375, %v3283
      %v3377 = vadd.f32 %v3376, %v3288
      %v3378 = vadd.f32 %v3377, %v3293
      %v3379 = vadd.f32 %v3378, %v3298
      %v3380 = vadd.f32 %v3379, %v3303
      %v3381 = vadd.f32 %v3380, %v3308
      %v3382 = vadd.f32 %v3381, %v3313
      %v3383 = vadd.f32 %v3382, %v3318
      %v3384 = vadd.f32 %v3383, %v3323
      %v3385 = vadd.f32 %v3384, %v3328
      %v3386 = vadd.f32 %v3385, %v3333
      %v3387 = vadd.f32 %v3386, %v3338
      %v3388 = vadd.f32 %v3387, %v3343
      %v3389 = vadd.f32 %v3388, %v3348
      %v3390 = vadd.f32 %v3389, %v3353
      %v3391 = vadd.f32 %v3390, %v3358
      %v3392 = vrot.slane %v3391, 4
      %v3393 = vadd.f32 %v3391, %v3392
      %v3394 = vrot.slane %v3393, 2
      %v3395 = vadd.f32 %v3393, %v3394
      %v3396 = vrot.slane %v3395, 1
      %v3397 = vadd.f32 %v3395, %v3396
      %3398 = vst [vmem:[%s168] sm:$0x1] %v3397
      %v3399 = vmul.f32 %v3203, %v3203
      %v3400 = vmul.f32 %v3208, %v3208
      %v3401 = vmul.f32 %v3213, %v3213
      %v3402 = vmul.f32 %v3218, %v3218
      %v3403 = vmul.f32 %v3223, %v3223
      %v3404 = vmul.f32 %v3228, %v3228
      %v3405 = vmul.f32 %v3233, %v3233
      %v3406 = vmul.f32 %v3238, %v3238
      %v3407 = vmul.f32 %v3243, %v3243
      %v3408 = vmul.f32 %v3248, %v3248
      %v3409 = vmul.f32 %v3253, %v3253
      %v3410 = vmul.f32 %v3258, %v3258
      %v3411 = vmul.f32 %v3263, %v3263
      %v3412 = vmul.f32 %v3268, %v3268
      %v3413 = vmul.f32 %v3273, %v3273
      %v3414 = vmul.f32 %v3278, %v3278
      %v3415 = vmul.f32 %v3283, %v3283
      %v3416 = vmul.f32 %v3288, %v3288
      %v3417 = vmul.f32 %v3293, %v3293
      %v3418 = vmul.f32 %v3298, %v3298
      %v3419 = vmul.f32 %v3303, %v3303
      %v3420 = vmul.f32 %v3308, %v3308
      %v3421 = vmul.f32 %v3313, %v3313
      %v3422 = vmul.f32 %v3318, %v3318
      %v3423 = vmul.f32 %v3323, %v3323
      %v3424 = vmul.f32 %v3328, %v3328
      %v3425 = vmul.f32 %v3333, %v3333
      %v3426 = vmul.f32 %v3338, %v3338
      %v3427 = vmul.f32 %v3343, %v3343
      %v3428 = vmul.f32 %v3348, %v3348
      %v3429 = vmul.f32 %v3353, %v3353
      %v3430 = vmul.f32 %v3358, %v3358
      %v3431 = vadd.f32 %v3399, %v3400
      %v3432 = vadd.f32 %v3431, %v3401
      %v3433 = vadd.f32 %v3432, %v3402
      %v3434 = vadd.f32 %v3433, %v3403
      %v3435 = vadd.f32 %v3434, %v3404
      %v3436 = vadd.f32 %v3435, %v3405
      %v3437 = vadd.f32 %v3436, %v3406
      %v3438 = vadd.f32 %v3437, %v3407
      %v3439 = vadd.f32 %v3438, %v3408
      %v3440 = vadd.f32 %v3439, %v3409
      %v3441 = vadd.f32 %v3440, %v3410
      %v3442 = vadd.f32 %v3441, %v3411
      %v3443 = vadd.f32 %v3442, %v3412
      %v3444 = vadd.f32 %v3443, %v3413
      %v3445 = vadd.f32 %v3444, %v3414
      %v3446 = vadd.f32 %v3445, %v3415
      %v3447 = vadd.f32 %v3446, %v3416
      %v3448 = vadd.f32 %v3447, %v3417
      %v3449 = vadd.f32 %v3448, %v3418
      %v3450 = vadd.f32 %v3449, %v3419
      %v3451 = vadd.f32 %v3450, %v3420
      %v3452 = vadd.f32 %v3451, %v3421
      %v3453 = vadd.f32 %v3452, %v3422
      %v3454 = vadd.f32 %v3453, %v3423
      %v3455 = vadd.f32 %v3454, %v3424
      %v3456 = vadd.f32 %v3455, %v3425
      %v3457 = vadd.f32 %v3456, %v3426
      %v3458 = vadd.f32 %v3457, %v3427
      %v3459 = vadd.f32 %v3458, %v3428
      %v3460 = vadd.f32 %v3459, %v3429
      %v3461 = vadd.f32 %v3460, %v3430
      %v3462 = vrot.slane %v3461, 4
      %v3463 = vadd.f32 %v3461, %v3462
      %v3464 = vrot.slane %v3463, 2
      %v3465 = vadd.f32 %v3463, %v3464
      %v3466 = vrot.slane %v3465, 1
      %v3467 = vadd.f32 %v3465, %v3466
      %3468 = vst [vmem:[%s168 + $0x1] sm:$0x1] %v3467
      %p3469 = scmp.lt.s32.totalorder %s14, 1
      %s3470 = scalar_select %p3469, %s14, 1
      %s3471 = smul.addr %s3470, 2
      %s3472 = scalar_lea.vmem %s3, %s3471
      // Predicated region
      $region33: #{conv_up_bn_relu.2} parent=31 // pred_check
        %p3473 = pneg %p100
      $region34: #{conv_up_bn_relu.2} parent=31 // pred_check_branch
        %3475 = sbr.rel (%p3473) target = $region36
      $region35: #{conv_up_bn_relu.2} parent=31 // pred_region
        _
      $region36: #{conv_up_bn_relu.2} parent=31 // pred_fallthru
        _
    $region32: #{conv_up_bn_relu.2} parent=5 // pred_fallthru
      _
    %p3476 = scmp.le.s32.totalorder 2, %s9
    // Predicated region
    $region37: #{conv_up_bn_relu.2} parent=5 // pred_check
      %p3477 = pneg %p3476
    $region38: #{conv_up_bn_relu.2} parent=5 // pred_check_branch
      %3479 = sbr.rel (%p3477) target = $region40
    $region39: #{conv_up_bn_relu.2} parent=5 // pred_region
      %s3480 = ssub.s32 %s9, 2
      // Predicated region
      $region41: #{conv_up_bn_relu.2} parent=39 // pred_check
        %p3481 = pneg %p106
      $region42: #{conv_up_bn_relu.2} parent=39 // pred_check_branch
        %3483 = sbr.rel (%p3481) target = $region44
      $region43: #{conv_up_bn_relu.2} parent=39 // pred_region
        %p3484 = scmp.lt.s32.totalorder %s15, 1
        %s3485 = scalar_select %p3484, %s15, 1
        %s3486 = smul.addr %s3485, 2
        %s3487 = scalar_lea.vmem %s3, %s3486
      $region44: #{conv_up_bn_relu.2} parent=39 // pred_fallthru
        _
    $region40: #{conv_up_bn_relu.2} parent=5 // pred_fallthru
      _
  $region6: #{conv_up_bn_relu.2} parent=0 // loop_footer
    %s13 = sadd.s32 1, %s9
  $region7: #{conv_up_bn_relu.2} parent=0 // loop_footer_branch
    %8 = sbr.rel target = $region3
  $region8: #{conv_up_bn_relu.2} parent=0 // loop_exit
    _

// kernel: conv_up_bn_relu.3
$region0: #{conv_up_bn_relu.3}
  #allocation0 [shape = 'u32[]', space=smem, size = 0x4, offset = 0x4, fixed_abs, tag = 'smem constant byte address 0x4 - core index']
  #allocation1 [shape = 'u32[144,128]{1,0:T(1,128)}', space=vmem, size = 0x12000, scoped, tag = 'internal scratch']
  %s0 = inlined_call_operand.vmem [shape: f32[2,256,64], index: 0, kind: input, shape index: {}]
  %s1 = inlined_call_operand.vmem [shape: f32[576,128], index: 1, kind: input, shape index: {}]
  %s2 = inlined_call_operand.vmem [shape: f32[1,128], index: 2, kind: input, shape index: {}]
  %s3 = inlined_call_operand.vmem [shape: f32[2,128], index: 3, kind: input, shape index: {}]
  %s4 = inlined_call_operand.vmem [shape: f32[2,256,128], index: 4, kind: output, shape index: {}]
  %s5 = sld [smem:[#allocation0]]
  $region49: #{conv_up_bn_relu.3} parent=0
    _
  %s7 = ssub.s32 1, %s5
  %s8 = scalar_select 0, %s7, %s5
  loop: start=0, step=1, limit=4
  $region2: #{conv_up_bn_relu.3} parent=0 // loop_pre_header
    _
  $region3: #{conv_up_bn_relu.3} parent=0 // loop_header
    %s10 = sphi 0, %s14
    %p11 = scmp.ge.s32.totalorder %s10, 4
    %s20 = sphi 0, %s22
    %s23 = sphi 0, %s20
    %s24 = sphi 0, %s23
    %s40 = sphi 0, %s24
    %s44 = sphi 0, %s44
    %s46 = sphi 0, %s44
    %s47 = sphi 0, %s46
    %s61 = sphi 0, %s47
    %s65 = sphi 0, %s65
    %s67 = sphi 0, %s65
    %s68 = sphi 0, %s67
    %s82 = sphi 0, %s68
    %s86 = sphi 0, %s86
    %s88 = sphi 0, %s86
    %s89 = sphi 0, %s88
    %s103 = sphi 0, %s89
    %s109 = sphi 0, %s111
    %s112 = sphi 0, %s109
    %s113 = sphi 0, %s112
    %s129 = sphi 0, %s113
  $region4: #{conv_up_bn_relu.3} parent=0 // loop_header_branch
    %13 = sbr.rel (%p11) target = $region8
  $region5: #{conv_up_bn_relu.3} parent=0 // loop_body
    %s15 = ssub.s32 %s10, 1
    %s16 = ssub.s32 %s10, 2
    %s17 = sadd.s32 %s10, 1
    %s18 = ssub.s32 %s10, %s17
    %p19 = scmp.eq.s32.totalorder %s18, 0
    %s21 = sadd.s32 %s20, 1
    %s22 = scalar_select %p19, %s20, %s21
    %p25 = pneg %p19
    %p26 = scmp.eq.s32.totalorder %s10, 1
    %p27 = por %p25, %p26
    %p28 = scmp.ne.s32.totalorder %s20, %s23
    %p29 = scmp.eq.s32.totalorder %s10, 0
    %p30 = por %p28, %p29
    %p31 = scmp.ne.s32.totalorder %s20, %s23
    %p32 = scmp.eq.s32.totalorder %s15, 1
    %p33 = por %p31, %p32
    %p34 = scmp.ne.s32.totalorder %s23, %s24
    %p35 = scmp.eq.s32.totalorder %s15, 0
    %p36 = por %p34, %p35
    %p37 = scmp.ne.s32.totalorder %s23, %s24
    %p38 = scmp.eq.s32.totalorder %s16, 1
    %p39 = por %p37, %p38
    %p41 = scmp.ne.s32.totalorder %s24, %s40
    %p42 = scmp.eq.s32.totalorder %s16, 0
    %p43 = por %p41, %p42
    %s45 = sadd.s32 %s44, 1
    %p48 = scmp.eq.s32.totalorder %s10, 1
    %p49 = scmp.ne.s32.totalorder %s44, %s46
    %p50 = scmp.eq.s32.totalorder %s10, 0
    %p51 = por %p49, %p50
    %p52 = scmp.ne.s32.totalorder %s44, %s46
    %p53 = scmp.eq.s32.totalorder %s15, 1
    %p54 = por %p52, %p53
    %p55 = scmp.ne.s32.totalorder %s46, %s47
    %p56 = scmp.eq.s32.totalorder %s15, 0
    %p57 = por %p55, %p56
    %p58 = scmp.ne.s32.totalorder %s46, %s47
    %p59 = scmp.eq.s32.totalorder %s16, 1
    %p60 = por %p58, %p59
    %p62 = scmp.ne.s32.totalorder %s47, %s61
    %p63 = scmp.eq.s32.totalorder %s16, 0
    %p64 = por %p62, %p63
    %s66 = sadd.s32 %s65, 1
    %p69 = scmp.eq.s32.totalorder %s10, 1
    %p70 = scmp.ne.s32.totalorder %s65, %s67
    %p71 = scmp.eq.s32.totalorder %s10, 0
    %p72 = por %p70, %p71
    %p73 = scmp.ne.s32.totalorder %s65, %s67
    %p74 = scmp.eq.s32.totalorder %s15, 1
    %p75 = por %p73, %p74
    %p76 = scmp.ne.s32.totalorder %s67, %s68
    %p77 = scmp.eq.s32.totalorder %s15, 0
    %p78 = por %p76, %p77
    %p79 = scmp.ne.s32.totalorder %s67, %s68
    %p80 = scmp.eq.s32.totalorder %s16, 1
    %p81 = por %p79, %p80
    %p83 = scmp.ne.s32.totalorder %s68, %s82
    %p84 = scmp.eq.s32.totalorder %s16, 0
    %p85 = por %p83, %p84
    %s87 = sadd.s32 %s86, 1
    %p90 = scmp.eq.s32.totalorder %s10, 1
    %p91 = scmp.ne.s32.totalorder %s86, %s88
    %p92 = scmp.eq.s32.totalorder %s10, 0
    %p93 = por %p91, %p92
    %p94 = scmp.ne.s32.totalorder %s86, %s88
    %p95 = scmp.eq.s32.totalorder %s15, 1
    %p96 = por %p94, %p95
    %p97 = scmp.ne.s32.totalorder %s88, %s89
    %p98 = scmp.eq.s32.totalorder %s15, 0
    %p99 = por %p97, %p98
    %p100 = scmp.ne.s32.totalorder %s88, %s89
    %p101 = scmp.eq.s32.totalorder %s16, 1
    %p102 = por %p100, %p101
    %p104 = scmp.ne.s32.totalorder %s89, %s103
    %p105 = scmp.eq.s32.totalorder %s16, 0
    %p106 = por %p104, %p105
    %s107 = ssub.s32 %s10, %s17
    %p108 = scmp.eq.s32.totalorder %s107, 0
    %s110 = sadd.s32 %s109, 1
    %s111 = scalar_select %p108, %s109, %s110
    %p114 = pneg %p108
    %p115 = scmp.eq.s32.totalorder %s10, 1
    %p116 = por %p114, %p115
    %p117 = scmp.ne.s32.totalorder %s109, %s112
    %p118 = scmp.eq.s32.totalorder %s10, 0
    %p119 = por %p117, %p118
    %p120 = scmp.ne.s32.totalorder %s109, %s112
    %p121 = scmp.eq.s32.totalorder %s15, 1
    %p122 = por %p120, %p121
    %p123 = scmp.ne.s32.totalorder %s112, %s113
    %p124 = scmp.eq.s32.totalorder %s15, 0
    %p125 = por %p123, %p124
    %p126 = scmp.ne.s32.totalorder %s112, %s113
    %p127 = scmp.eq.s32.totalorder %s16, 1
    %p128 = por %p126, %p127
    %p130 = scmp.ne.s32.totalorder %s113, %s129
    %p131 = scmp.eq.s32.totalorder %s16, 0
    %p132 = por %p130, %p131
    %p133 = scmp.le.s32.totalorder 1, %s10
    %p134 = scmp.lt.s32.totalorder %s10, 3
    %p135 = pnand %p133, %p134
    %p136 = pneg %p135
    // Predicated region
    $region9: #{conv_up_bn_relu.3} parent=5 // pred_check
      _
    $region10: #{conv_up_bn_relu.3} parent=5 // pred_check_branch
      %138 = sbr.rel (%p135) target = $region12
    $region11: #{conv_up_bn_relu.3} parent=5 // pred_region
      %s139 = ssub.s32 %s10, 1
      // Predicated region
      $region13: #{conv_up_bn_relu.3} parent=11 // pred_check
        %p140 = pneg %p57
      $region14: #{conv_up_bn_relu.3} parent=11 // pred_check_branch
        %142 = sbr.rel (%p140) target = $region16
      $region15: #{conv_up_bn_relu.3} parent=11 // pred_region
        _
      $region16: #{conv_up_bn_relu.3} parent=11 // pred_fallthru
        _
      // Predicated region
      $region17: #{conv_up_bn_relu.3} parent=11 // pred_check
        %p143 = pneg %p78
      $region18: #{conv_up_bn_relu.3} parent=11 // pred_check_branch
        %145 = sbr.rel (%p143) target = $region20
      $region19: #{conv_up_bn_relu.3} parent=11 // pred_region
        _
      $region20: #{conv_up_bn_relu.3} parent=11 // pred_fallthru
        _
      // Predicated region
      $region21: #{conv_up_bn_relu.3} parent=11 // pred_check
        %p146 = pneg %p99
      $region22: #{conv_up_bn_relu.3} parent=11 // pred_check_branch
        %148 = sbr.rel (%p146) target = $region24
      $region23: #{conv_up_bn_relu.3} parent=11 // pred_region
        _
      $region24: #{conv_up_bn_relu.3} parent=11 // pred_fallthru
        _
    $region12: #{conv_up_bn_relu.3} parent=5 // pred_fallthru
      _
    %p149 = scmp.lt.s32.totalorder %s10, 2
    // Predicated region
    $region25: #{conv_up_bn_relu.3} parent=5 // pred_check
      %p150 = pneg %p149
    $region26: #{conv_up_bn_relu.3} parent=5 // pred_check_branch
      %152 = sbr.rel (%p150) target = $region28
    $region27: #{conv_up_bn_relu.3} parent=5 // pred_region
      // Predicated region
      $region29: #{conv_up_bn_relu.3} parent=27 // pred_check
        %p153 = pneg %p30
      $region30: #{conv_up_bn_relu.3} parent=27 // pred_check_branch
        %155 = sbr.rel (%p153) target = $region32
      $region31: #{conv_up_bn_relu.3} parent=27 // pred_region
        %p156 = scmp.lt.s32.totalorder %s10, 1
        %s157 = scalar_select %p156, %s10, 1
        %s158 = smul.addr %s157, 32
        %s159 = smul.addr %s158, 8
        %s160 = scalar_lea.vmem %s0, %s159
      $region32: #{conv_up_bn_relu.3} parent=27 // pred_fallthru
        _
    $region28: #{conv_up_bn_relu.3} parent=5 // pred_fallthru
      _
    %p161 = scmp.le.s32.totalorder 1, %s10
    %p162 = scmp.lt.s32.totalorder %s10, 3
    %p163 = pnand %p161, %p162
    %p164 = pneg %p163
    // Predicated region
    $region33: #{conv_up_bn_relu.3} parent=5 // pred_check
      _
    $region34: #{conv_up_bn_relu.3} parent=5 // pred_check_branch
      %166 = sbr.rel (%p163) target = $region36
    $region35: #{conv_up_bn_relu.3} parent=5 // pred_region
      %s167 = ssub.s32 %s10, 1
      %p168 = scmp.lt.s32.totalorder %s15, 1
      %s169 = scalar_select %p168, %s15, 1
      %s170 = smul.addr %s169, 32
      %s171 = smul.addr %s170, 8
      %s172 = scalar_lea.vmem %s0, %s171
      %p173 = pneg %p36
      %p174 = pneg %p33
      %p175 = pneg %p57
      %p176 = pneg %p54
      %p177 = pneg %p78
      %p178 = pneg %p75
      %p179 = pneg %p99
      %p180 = pneg %p96
      %p181 = pneg %p125
      %p182 = pneg %p122
      %p183 = scmp.lt.s32.totalorder %s15, 1
      %s184 = scalar_select %p183, %s15, 1
      %s185 = smul.addr %s184, 32
      %s186 = smul.addr %s185, 8
      %s187 = scalar_lea.vmem %s4, %s186
      %p188 = scmp.lt.s32.totalorder %s15, 1
      %s189 = scalar_select %p188, %s15, 1
      %s190 = smul.addr %s189, 32
      %s191 = smul.addr %s190, 8
      %s192 = scalar_lea.vmem %s0, %s191
      %p193 = scmp.lt.s32.totalorder %s15, 1
      %s194 = scalar_select %p193, %s15, 1
      %s195 = smul.addr %s194, 32
      %s196 = smul.addr %s195, 8
      %s197 = scalar_lea.vmem %s4, %s196
      %v198 = vld [vmem:[%s192] sm:$0xff]
      %v199 = vld [vmem:[%s192 + $0x8] sm:$0xff]
      %v200 = vld [vmem:[%s192 + $0x10] sm:$0xff]
      %v201 = vld [vmem:[%s192 + $0x18] sm:$0xff]
      %v202 = vld [vmem:[%s192 + $0x20] sm:$0xff]
      %v203 = vld [vmem:[%s192 + $0x28] sm:$0xff]
      %v204 = vld [vmem:[%s192 + $0x30] sm:$0xff]
      %v205 = vld [vmem:[%s192 + $0x38] sm:$0xff]
      %v206 = vld [vmem:[%s192 + $0x40] sm:$0xff]
      %v207 = vld [vmem:[%s192 + $0x48] sm:$0xff]
      %v208 = vld [vmem:[%s192 + $0x50] sm:$0xff]
      %v209 = vld [vmem:[%s192 + $0x58] sm:$0xff]
      %v210 = vld [vmem:[%s192 + $0x60] sm:$0xff]
      %v211 = vld [vmem:[%s192 + $0x68] sm:$0xff]
      %v212 = vld [vmem:[%s192 + $0x70] sm:$0xff]
      %v213 = vld [vmem:[%s192 + $0x78] sm:$0xff]
      %v214 = vld [vmem:[%s192 + $0x80] sm:$0xff]
      %v215 = vld [vmem:[%s192 + $0x88] sm:$0xff]
      %v216 = vld [vmem:[%s192 + $0x90] sm:$0xff]
      %v217 = vld [vmem:[%s192 + $0x98] sm:$0xff]
      %v218 = vld [vmem:[%s192 + $0xa0] sm:$0xff]
      %v219 = vld [vmem:[%s192 + $0xa8] sm:$0xff]
      %v220 = vld [vmem:[%s192 + $0xb0] sm:$0xff]
      %v221 = vld [vmem:[%s192 + $0xb8] sm:$0xff]
      %v222 = vld [vmem:[%s192 + $0xc0] sm:$0xff]
      %v223 = vld [vmem:[%s192 + $0xc8] sm:$0xff]
      %v224 = vld [vmem:[%s192 + $0xd0] sm:$0xff]
      %v225 = vld [vmem:[%s192 + $0xd8] sm:$0xff]
      %v226 = vld [vmem:[%s192 + $0xe0] sm:$0xff]
      %v227 = vld [vmem:[%s192 + $0xe8] sm:$0xff]
      %v228 = vld [vmem:[%s192 + $0xf0] sm:$0xff]
      %v229 = vld [vmem:[%s192 + $0xf8] sm:$0xff]
      %v230 = vlaneseq
      %v231 = vshrl.u32 %v230, 7
      %v232 = vadd.s32 %v231, 8
      %v233 = vadd.s32 %v231, 16
      %v234 = vadd.s32 %v231, 24
      %v235 = vadd.s32 %v231, 32
      %v236 = vadd.s32 %v231, 40
      %v237 = vadd.s32 %v231, 48
      %v238 = vadd.s32 %v231, 56
      %v239 = vadd.s32 %v231, 64
      %v240 = vadd.s32 %v231, 72
      %v241 = vadd.s32 %v231, 80
      %v242 = vadd.s32 %v231, 88
      %v243 = vadd.s32 %v231, 96
      %v244 = vadd.s32 %v231, 104
      %v245 = vadd.s32 %v231, 112
      %v246 = vadd.s32 %v231, 120
      %v247 = vadd.s32 %v231, 128
      %v248 = vadd.s32 %v231, 136
      %v249 = vadd.s32 %v231, 144
      %v250 = vadd.s32 %v231, 152
      %v251 = vadd.s32 %v231, 160
      %v252 = vadd.s32 %v231, 168
      %v253 = vadd.s32 %v231, 176
      %v254 = vadd.s32 %v231, 184
      %v255 = vadd.s32 %v231, 192
      %v256 = vadd.s32 %v231, 200
      %v257 = vadd.s32 %v231, 208
      %v258 = vadd.s32 %v231, 216
      %v259 = vadd.s32 %v231, 224
      %v260 = vadd.s32 %v231, 232
      %v261 = vadd.s32 %v231, 240
      %v262 = vadd.s32 %v231, 248
      %vm263 = vcmp.lt.s32.totalorder %v231, 0
      %v264 = vsub.s32 0, %v231
      %v265 = vsel %vm263, %v264, %v231
      %v266 = vshrl.u32 %v265, 4
      %v267 = vand.u32 %v265, 15
      %v268 = vsub.s32 0, %v267
      %v269 = vsel %vm263, %v268, %v267
      %vm270 = vcmp.lt.s32.totalorder %v232, 0
      %v271 = vsub.s32 0, %v232
      %v272 = vsel %vm270, %v271, %v232
      %v273 = vshrl.u32 %v272, 4
      %v274 = vand.u32 %v272, 15
      %v275 = vsub.s32 0, %v274
      %v276 = vsel %vm270, %v275, %v274
      %vm277 = vcmp.lt.s32.totalorder %v233, 0
      %v278 = vsub.s32 0, %v233
      %v279 = vsel %vm277, %v278, %v233
      %v280 = vshrl.u32 %v279, 4
      %v281 = vand.u32 %v279, 15
      %v282 = vsub.s32 0, %v281
      %v283 = vsel %vm277, %v282, %v281
      %vm284 = vcmp.lt.s32.totalorder %v234, 0
      %v285 = vsub.s32 0, %v234
      %v286 = vsel %vm284, %v285, %v234
      %v287 = vshrl.u32 %v286, 4
      %v288 = vand.u32 %v286, 15
      %v289 = vsub.s32 0, %v288
      %v290 = vsel %vm284, %v289, %v288
      %vm291 = vcmp.lt.s32.totalorder %v235, 0
      %v292 = vsub.s32 0, %v235
      %v293 = vsel %vm291, %v292, %v235
      %v294 = vshrl.u32 %v293, 4
      %v295 = vand.u32 %v293, 15
      %v296 = vsub.s32 0, %v295
      %v297 = vsel %vm291, %v296, %v295
      %vm298 = vcmp.lt.s32.totalorder %v236, 0
      %v299 = vsub.s32 0, %v236
      %v300 = vsel %vm298, %v299, %v236
      %v301 = vshrl.u32 %v300, 4
      %v302 = vand.u32 %v300, 15
      %v303 = vsub.s32 0, %v302
      %v304 = vsel %vm298, %v303, %v302
      %vm305 = vcmp.lt.s32.totalorder %v237, 0
      %v306 = vsub.s32 0, %v237
      %v307 = vsel %vm305, %v306, %v237
      %v308 = vshrl.u32 %v307, 4
      %v309 = vand.u32 %v307, 15
      %v310 = vsub.s32 0, %v309
      %v311 = vsel %vm305, %v310, %v309
      %vm312 = vcmp.lt.s32.totalorder %v238, 0
      %v313 = vsub.s32 0, %v238
      %v314 = vsel %vm312, %v313, %v238
      %v315 = vshrl.u32 %v314, 4
      %v316 = vand.u32 %v314, 15
      %v317 = vsub.s32 0, %v316
      %v318 = vsel %vm312, %v317, %v316
      %vm319 = vcmp.lt.s32.totalorder %v239, 0
      %v320 = vsub.s32 0, %v239
      %v321 = vsel %vm319, %v320, %v239
      %v322 = vshrl.u32 %v321, 4
      %v323 = vand.u32 %v321, 15
      %v324 = vsub.s32 0, %v323
      %v325 = vsel %vm319, %v324, %v323
      %vm326 = vcmp.lt.s32.totalorder %v240, 0
      %v327 = vsub.s32 0, %v240
      %v328 = vsel %vm326, %v327, %v240
      %v329 = vshrl.u32 %v328, 4
      %v330 = vand.u32 %v328, 15
      %v331 = vsub.s32 0, %v330
      %v332 = vsel %vm326, %v331, %v330
      %vm333 = vcmp.lt.s32.totalorder %v241, 0
      %v334 = vsub.s32 0, %v241
      %v335 = vsel %vm333, %v334, %v241
      %v336 = vshrl.u32 %v335, 4
      %v337 = vand.u32 %v335, 15
      %v338 = vsub.s32 0, %v337
      %v339 = vsel %vm333, %v338, %v337
      %vm340 = vcmp.lt.s32.totalorder %v242, 0
      %v341 = vsub.s32 0, %v242
      %v342 = vsel %vm340, %v341, %v242
      %v343 = vshrl.u32 %v342, 4
      %v344 = vand.u32 %v342, 15
      %v345 = vsub.s32 0, %v344
      %v346 = vsel %vm340, %v345, %v344
      %vm347 = vcmp.lt.s32.totalorder %v243, 0
      %v348 = vsub.s32 0, %v243
      %v349 = vsel %vm347, %v348, %v243
      %v350 = vshrl.u32 %v349, 4
      %v351 = vand.u32 %v349, 15
      %v352 = vsub.s32 0, %v351
      %v353 = vsel %vm347, %v352, %v351
      %vm354 = vcmp.lt.s32.totalorder %v244, 0
      %v355 = vsub.s32 0, %v244
      %v356 = vsel %vm354, %v355, %v244
      %v357 = vshrl.u32 %v356, 4
      %v358 = vand.u32 %v356, 15
      %v359 = vsub.s32 0, %v358
      %v360 = vsel %vm354, %v359, %v358
      %vm361 = vcmp.lt.s32.totalorder %v245, 0
      %v362 = vsub.s32 0, %v245
      %v363 = vsel %vm361, %v362, %v245
      %v364 = vshrl.u32 %v363, 4
      %v365 = vand.u32 %v363, 15
      %v366 = vsub.s32 0, %v365
      %v367 = vsel %vm361, %v366, %v365
      %vm368 = vcmp.lt.s32.totalorder %v246, 0
      %v369 = vsub.s32 0, %v246
      %v370 = vsel %vm368, %v369, %v246
      %v371 = vshrl.u32 %v370, 4
      %v372 = vand.u32 %v370, 15
      %v373 = vsub.s32 0, %v372
      %v374 = vsel %vm368, %v373, %v372
      %vm375 = vcmp.lt.s32.totalorder %v247, 0
      %v376 = vsub.s32 0, %v247
      %v377 = vsel %vm375, %v376, %v247
      %v378 = vshrl.u32 %v377, 4
      %v379 = vand.u32 %v377, 15
      %v380 = vsub.s32 0, %v379
      %v381 = vsel %vm375, %v380, %v379
      %vm382 = vcmp.lt.s32.totalorder %v248, 0
      %v383 = vsub.s32 0, %v248
      %v384 = vsel %vm382, %v383, %v248
      %v385 = vshrl.u32 %v384, 4
      %v386 = vand.u32 %v384, 15
      %v387 = vsub.s32 0, %v386
      %v388 = vsel %vm382, %v387, %v386
      %vm389 = vcmp.lt.s32.totalorder %v249, 0
      %v390 = vsub.s32 0, %v249
      %v391 = vsel %vm389, %v390, %v249
      %v392 = vshrl.u32 %v391, 4
      %v393 = vand.u32 %v391, 15
      %v394 = vsub.s32 0, %v393
      %v395 = vsel %vm389, %v394, %v393
      %vm396 = vcmp.lt.s32.totalorder %v250, 0
      %v397 = vsub.s32 0, %v250
      %v398 = vsel %vm396, %v397, %v250
      %v399 = vshrl.u32 %v398, 4
      %v400 = vand.u32 %v398, 15
      %v401 = vsub.s32 0, %v400
      %v402 = vsel %vm396, %v401, %v400
      %vm403 = vcmp.lt.s32.totalorder %v251, 0
      %v404 = vsub.s32 0, %v251
      %v405 = vsel %vm403, %v404, %v251
      %v406 = vshrl.u32 %v405, 4
      %v407 = vand.u32 %v405, 15
      %v408 = vsub.s32 0, %v407
      %v409 = vsel %vm403, %v408, %v407
      %vm410 = vcmp.lt.s32.totalorder %v252, 0
      %v411 = vsub.s32 0, %v252
      %v412 = vsel %vm410, %v411, %v252
      %v413 = vshrl.u32 %v412, 4
      %v414 = vand.u32 %v412, 15
      %v415 = vsub.s32 0, %v414
      %v416 = vsel %vm410, %v415, %v414
      %vm417 = vcmp.lt.s32.totalorder %v253, 0
      %v418 = vsub.s32 0, %v253
      %v419 = vsel %vm417, %v418, %v253
      %v420 = vshrl.u32 %v419, 4
      %v421 = vand.u32 %v419, 15
      %v422 = vsub.s32 0, %v421
      %v423 = vsel %vm417, %v422, %v421
      %vm424 = vcmp.lt.s32.totalorder %v254, 0
      %v425 = vsub.s32 0, %v254
      %v426 = vsel %vm424, %v425, %v254
      %v427 = vshrl.u32 %v426, 4
      %v428 = vand.u32 %v426, 15
      %v429 = vsub.s32 0, %v428
      %v430 = vsel %vm424, %v429, %v428
      %vm431 = vcmp.lt.s32.totalorder %v255, 0
      %v432 = vsub.s32 0, %v255
      %v433 = vsel %vm431, %v432, %v255
      %v434 = vshrl.u32 %v433, 4
      %v435 = vand.u32 %v433, 15
      %v436 = vsub.s32 0, %v435
      %v437 = vsel %vm431, %v436, %v435
      %vm438 = vcmp.lt.s32.totalorder %v256, 0
      %v439 = vsub.s32 0, %v256
      %v440 = vsel %vm438, %v439, %v256
      %v441 = vshrl.u32 %v440, 4
      %v442 = vand.u32 %v440, 15
      %v443 = vsub.s32 0, %v442
      %v444 = vsel %vm438, %v443, %v442
      %vm445 = vcmp.lt.s32.totalorder %v257, 0
      %v446 = vsub.s32 0, %v257
      %v447 = vsel %vm445, %v446, %v257
      %v448 = vshrl.u32 %v447, 4
      %v449 = vand.u32 %v447, 15
      %v450 = vsub.s32 0, %v449
      %v451 = vsel %vm445, %v450, %v449
      %vm452 = vcmp.lt.s32.totalorder %v258, 0
      %v453 = vsub.s32 0, %v258
      %v454 = vsel %vm452, %v453, %v258
      %v455 = vshrl.u32 %v454, 4
      %v456 = vand.u32 %v454, 15
      %v457 = vsub.s32 0, %v456
      %v458 = vsel %vm452, %v457, %v456
      %vm459 = vcmp.lt.s32.totalorder %v259, 0
      %v460 = vsub.s32 0, %v259
      %v461 = vsel %vm459, %v460, %v259
      %v462 = vshrl.u32 %v461, 4
      %v463 = vand.u32 %v461, 15
      %v464 = vsub.s32 0, %v463
      %v465 = vsel %vm459, %v464, %v463
      %vm466 = vcmp.lt.s32.totalorder %v260, 0
      %v467 = vsub.s32 0, %v260
      %v468 = vsel %vm466, %v467, %v260
      %v469 = vshrl.u32 %v468, 4
      %v470 = vand.u32 %v468, 15
      %v471 = vsub.s32 0, %v470
      %v472 = vsel %vm466, %v471, %v470
      %vm473 = vcmp.lt.s32.totalorder %v261, 0
      %v474 = vsub.s32 0, %v261
      %v475 = vsel %vm473, %v474, %v261
      %v476 = vshrl.u32 %v475, 4
      %v477 = vand.u32 %v475, 15
      %v478 = vsub.s32 0, %v477
      %v479 = vsel %vm473, %v478, %v477
      %vm480 = vcmp.lt.s32.totalorder %v262, 0
      %v481 = vsub.s32 0, %v262
      %v482 = vsel %vm480, %v481, %v262
      %v483 = vshrl.u32 %v482, 4
      %v484 = vand.u32 %v482, 15
      %v485 = vsub.s32 0, %v484
      %v486 = vsel %vm480, %v485, %v484
      %vm487 = vcmp.ne.s32.totalorder %v269, 0
      %vm488 = vcmp.ne.s32.totalorder %v276, 0
      %vm489 = vcmp.ne.s32.totalorder %v283, 0
      %vm490 = vcmp.ne.s32.totalorder %v290, 0
      %vm491 = vcmp.ne.s32.totalorder %v297, 0
      %vm492 = vcmp.ne.s32.totalorder %v304, 0
      %vm493 = vcmp.ne.s32.totalorder %v311, 0
      %vm494 = vcmp.ne.s32.totalorder %v318, 0
      %vm495 = vcmp.ne.s32.totalorder %v325, 0
      %vm496 = vcmp.ne.s32.totalorder %v332, 0
      %vm497 = vcmp.ne.s32.totalorder %v339, 0
      %vm498 = vcmp.ne.s32.totalorder %v346, 0
      %vm499 = vcmp.ne.s32.totalorder %v353, 0
      %vm500 = vcmp.ne.s32.totalorder %v360, 0
      %vm501 = vcmp.ne.s32.totalorder %v367, 0
      %vm502 = vcmp.ne.s32.totalorder %v374, 0
      %vm503 = vcmp.ne.s32.totalorder %v381, 0
      %vm504 = vcmp.ne.s32.totalorder %v388, 0
      %vm505 = vcmp.ne.s32.totalorder %v395, 0
      %vm506 = vcmp.ne.s32.totalorder %v402, 0
      %vm507 = vcmp.ne.s32.totalorder %v409, 0
      %vm508 = vcmp.ne.s32.totalorder %v416, 0
      %vm509 = vcmp.ne.s32.totalorder %v423, 0
      %vm510 = vcmp.ne.s32.totalorder %v430, 0
      %vm511 = vcmp.ne.s32.totalorder %v437, 0
      %vm512 = vcmp.ne.s32.totalorder %v444, 0
      %vm513 = vcmp.ne.s32.totalorder %v451, 0
      %vm514 = vcmp.ne.s32.totalorder %v458, 0
      %vm515 = vcmp.ne.s32.totalorder %v465, 0
      %vm516 = vcmp.ne.s32.totalorder %v472, 0
      %vm517 = vcmp.ne.s32.totalorder %v479, 0
      %vm518 = vcmp.ne.s32.totalorder %v486, 0
      %vm519 = vcmp.lt.s32.totalorder %v269, 0
      %vm520 = vcmp.lt.s32.totalorder %v276, 0
      %vm521 = vcmp.lt.s32.totalorder %v283, 0
      %vm522 = vcmp.lt.s32.totalorder %v290, 0
      %vm523 = vcmp.lt.s32.totalorder %v297, 0
      %vm524 = vcmp.lt.s32.totalorder %v304, 0
      %vm525 = vcmp.lt.s32.totalorder %v311, 0
      %vm526 = vcmp.lt.s32.totalorder %v318, 0
      %vm527 = vcmp.lt.s32.totalorder %v325, 0
      %vm528 = vcmp.lt.s32.totalorder %v332, 0
      %vm529 = vcmp.lt.s32.totalorder %v339, 0
      %vm530 = vcmp.lt.s32.totalorder %v346, 0
      %vm531 = vcmp.lt.s32.totalorder %v353, 0
      %vm532 = vcmp.lt.s32.totalorder %v360, 0
      %vm533 = vcmp.lt.s32.totalorder %v367, 0
      %vm534 = vcmp.lt.s32.totalorder %v374, 0
      %vm535 = vcmp.lt.s32.totalorder %v381, 0
      %vm536 = vcmp.lt.s32.totalorder %v388, 0
      %vm537 = vcmp.lt.s32.totalorder %v395, 0
      %vm538 = vcmp.lt.s32.totalorder %v402, 0
      %vm539 = vcmp.lt.s32.totalorder %v409, 0
      %vm540 = vcmp.lt.s32.totalorder %v416, 0
      %vm541 = vcmp.lt.s32.totalorder %v423, 0
      %vm542 = vcmp.lt.s32.totalorder %v430, 0
      %vm543 = vcmp.lt.s32.totalorder %v437, 0
      %vm544 = vcmp.lt.s32.totalorder %v444, 0
      %vm545 = vcmp.lt.s32.totalorder %v451, 0
      %vm546 = vcmp.lt.s32.totalorder %v458, 0
      %vm547 = vcmp.lt.s32.totalorder %v465, 0
      %vm548 = vcmp.lt.s32.totalorder %v472, 0
      %vm549 = vcmp.lt.s32.totalorder %v479, 0
      %vm550 = vcmp.lt.s32.totalorder %v486, 0
      %vm551 = vmand %vm519, %vm487
      %vm552 = vmand %vm520, %vm488
      %vm553 = vmand %vm521, %vm489
      %vm554 = vmand %vm522, %vm490
      %vm555 = vmand %vm523, %vm491
      %vm556 = vmand %vm524, %vm492
      %vm557 = vmand %vm525, %vm493
      %vm558 = vmand %vm526, %vm494
      %vm559 = vmand %vm527, %vm495
      %vm560 = vmand %vm528, %vm496
      %vm561 = vmand %vm529, %vm497
      %vm562 = vmand %vm530, %vm498
      %vm563 = vmand %vm531, %vm499
      %vm564 = vmand %vm532, %vm500
      %vm565 = vmand %vm533, %vm501
      %vm566 = vmand %vm534, %vm502
      %vm567 = vmand %vm535, %vm503
      %vm568 = vmand %vm536, %vm504
      %vm569 = vmand %vm537, %vm505
      %vm570 = vmand %vm538, %vm506
      %vm571 = vmand %vm539, %vm507
      %vm572 = vmand %vm540, %vm508
      %vm573 = vmand %vm541, %vm509
      %vm574 = vmand %vm542, %vm510
      %vm575 = vmand %vm543, %vm511
      %vm576 = vmand %vm544, %vm512
      %vm577 = vmand %vm545, %vm513
      %vm578 = vmand %vm546, %vm514
      %vm579 = vmand %vm547, %vm515
      %vm580 = vmand %vm548, %vm516
      %vm581 = vmand %vm549, %vm517
      %vm582 = vmand %vm550, %vm518
      %v583 = vadd.s32 %v269, 16
      %v584 = vadd.s32 %v276, 16
      %v585 = vadd.s32 %v283, 16
      %v586 = vadd.s32 %v290, 16
      %v587 = vadd.s32 %v297, 16
      %v588 = vadd.s32 %v304, 16
      %v589 = vadd.s32 %v311, 16
      %v590 = vadd.s32 %v318, 16
      %v591 = vadd.s32 %v325, 16
      %v592 = vadd.s32 %v332, 16
      %v593 = vadd.s32 %v339, 16
      %v594 = vadd.s32 %v346, 16
      %v595 = vadd.s32 %v353, 16
      %v596 = vadd.s32 %v360, 16
      %v597 = vadd.s32 %v367, 16
      %v598 = vadd.s32 %v374, 16
      %v599 = vadd.s32 %v381, 16
      %v600 = vadd.s32 %v388, 16
      %v601 = vadd.s32 %v395, 16
      %v602 = vadd.s32 %v402, 16
      %v603 = vadd.s32 %v409, 16
      %v604 = vadd.s32 %v416, 16
      %v605 = vadd.s32 %v423, 16
      %v606 = vadd.s32 %v430, 16
      %v607 = vadd.s32 %v437, 16
      %v608 = vadd.s32 %v444, 16
      %v609 = vadd.s32 %v451, 16
      %v610 = vadd.s32 %v458, 16
      %v611 = vadd.s32 %v465, 16
      %v612 = vadd.s32 %v472, 16
      %v613 = vadd.s32 %v479, 16
      %v614 = vadd.s32 %v486, 16
      %v615 = vsel %vm551, %v583, %v269
      %v616 = vsel %vm552, %v584, %v276
      %v617 = vsel %vm553, %v585, %v283
      %v618 = vsel %vm554, %v586, %v290
      %v619 = vsel %vm555, %v587, %v297
      %v620 = vsel %vm556, %v588, %v304
      %v621 = vsel %vm557, %v589, %v311
      %v622 = vsel %vm558, %v590, %v318
      %v623 = vsel %vm559, %v591, %v325
      %v624 = vsel %vm560, %v592, %v332
      %v625 = vsel %vm561, %v593, %v339
      %v626 = vsel %vm562, %v594, %v346
      %v627 = vsel %vm563, %v595, %v353
      %v628 = vsel %vm564, %v596, %v360
      %v629 = vsel %vm565, %v597, %v367
      %v630 = vsel %vm566, %v598, %v374
      %v631 = vsel %vm567, %v599, %v381
      %v632 = vsel %vm568, %v600, %v388
      %v633 = vsel %vm569, %v601, %v395
      %v634 = vsel %vm570, %v602, %v402
      %v635 = vsel %vm571, %v603, %v409
      %v636 = vsel %vm572, %v604, %v416
      %v637 = vsel %vm573, %v605, %v423
      %v638 = vsel %vm574, %v606, %v430
      %v639 = vsel %vm575, %v607, %v437
      %v640 = vsel %vm576, %v608, %v444
      %v641 = vsel %vm577, %v609, %v451
      %v642 = vsel %vm578, %v610, %v458
      %v643 = vsel %vm579, %v611, %v465
      %v644 = vsel %vm580, %v612, %v472
      %v645 = vsel %vm581, %v613, %v479
      %v646 = vsel %vm582, %v614, %v486
      %vm650 = vcmask 1040384
      %v651 = vrot.slane %v227, 7
      %v652 = vrot.slane %v228, 7
      %v653 = vsel %vm650, %v651, %v652
      %v654 = vrot.slane %v229, 7
      %v655 = vsel %vm650, %v652, %v654
      %v688 = vrot.slane %v198, 7
      %v689 = vrot.slane %v199, 7
      %v690 = vsel %vm650, %v688, %v689
      %v691 = vrot.slane %v200, 7
      %v692 = vsel %vm650, %v689, %v691
      %v693 = vrot.slane %v201, 7
      %v694 = vsel %vm650, %v691, %v693
      %v695 = vrot.slane %v202, 7
      %v696 = vsel %vm650, %v693, %v695
      %v697 = vrot.slane %v203, 7
      %v698 = vsel %vm650, %v695, %v697
      %v699 = vrot.slane %v204, 7
      %v700 = vsel %vm650, %v697, %v699
      %v701 = vrot.slane %v205, 7
      %v702 = vsel %vm650, %v699, %v701
      %v703 = vrot.slane %v206, 7
      %v704 = vsel %vm650, %v701, %v703
      %v705 = vrot.slane %v207, 7
      %v706 = vsel %vm650, %v703, %v705
      %v707 = vrot.slane %v208, 7
      %v708 = vsel %vm650, %v705, %v707
      %v709 = vrot.slane %v209, 7
      %v710 = vsel %vm650, %v707, %v709
      %v711 = vrot.slane %v210, 7
      %v712 = vsel %vm650, %v709, %v711
      %v713 = vrot.slane %v211, 7
      %v714 = vsel %vm650, %v711, %v713
      %v715 = vrot.slane %v212, 7
      %v716 = vsel %vm650, %v713, %v715
      %v717 = vrot.slane %v213, 7
      %v718 = vsel %vm650, %v715, %v717
      %v719 = vrot.slane %v214, 7
      %v720 = vsel %vm650, %v717, %v719
      %v721 = vrot.slane %v215, 7
      %v722 = vsel %vm650, %v719, %v721
      %v723 = vrot.slane %v216, 7
      %v724 = vsel %vm650, %v721, %v723
      %v725 = vrot.slane %v217, 7
      %v726 = vsel %vm650, %v723, %v725
      %v727 = vrot.slane %v218, 7
      %v728 = vsel %vm650, %v725, %v727
      %v729 = vrot.slane %v219, 7
      %v730 = vsel %vm650, %v727, %v729
      %v731 = vrot.slane %v220, 7
      %v732 = vsel %vm650, %v729, %v731
      %v733 = vrot.slane %v221, 7
      %v734 = vsel %vm650, %v731, %v733
      %v735 = vrot.slane %v222, 7
      %v736 = vsel %vm650, %v733, %v735
      %v737 = vrot.slane %v223, 7
      %v738 = vsel %vm650, %v735, %v737
      %v739 = vrot.slane %v224, 7
      %v740 = vsel %vm650, %v737, %v739
      %v741 = vrot.slane %v225, 7
      %v742 = vsel %vm650, %v739, %v741
      %v743 = vrot.slane %v226, 7
      %v744 = vsel %vm650, %v741, %v743
      %v745 = vsel %vm650, %v743, %v651
      %v776 = vsel %vm650, %v654, %v688
      %vm777 = vcmp.ge.s32.totalorder %v231, 16
      %vm778 = vcmp.ge.s32.totalorder %v232, 16
      %vm779 = vcmp.ge.s32.totalorder %v233, 16
      %vm780 = vcmp.ge.s32.totalorder %v234, 16
      %vm781 = vcmp.ge.s32.totalorder %v235, 16
      %vm782 = vcmp.ge.s32.totalorder %v236, 16
      %vm783 = vcmp.ge.s32.totalorder %v237, 16
      %vm784 = vcmp.ge.s32.totalorder %v238, 16
      %vm785 = vcmp.ge.s32.totalorder %v239, 16
      %vm786 = vcmp.ge.s32.totalorder %v240, 16
      %vm787 = vcmp.ge.s32.totalorder %v241, 16
      %vm788 = vcmp.ge.s32.totalorder %v242, 16
      %vm789 = vcmp.ge.s32.totalorder %v243, 16
      %vm790 = vcmp.ge.s32.totalorder %v244, 16
      %vm791 = vcmp.ge.s32.totalorder %v245, 16
      %vm792 = vcmp.ge.s32.totalorder %v246, 16
      %vm793 = vcmp.ge.s32.totalorder %v247, 16
      %vm794 = vcmp.ge.s32.totalorder %v248, 16
      %vm795 = vcmp.ge.s32.totalorder %v249, 16
      %vm796 = vcmp.ge.s32.totalorder %v250, 16
      %vm797 = vcmp.ge.s32.totalorder %v251, 16
      %vm798 = vcmp.ge.s32.totalorder %v252, 16
      %vm799 = vcmp.ge.s32.totalorder %v253, 16
      %vm800 = vcmp.ge.s32.totalorder %v254, 16
      %vm801 = vcmp.ge.s32.totalorder %v255, 16
      %vm802 = vcmp.ge.s32.totalorder %v256, 16
      %vm803 = vcmp.ge.s32.totalorder %v257, 16
      %vm804 = vcmp.ge.s32.totalorder %v258, 16
      %vm805 = vcmp.ge.s32.totalorder %v259, 16
      %vm806 = vcmp.ge.s32.totalorder %v260, 16
      %vm807 = vcmp.ge.s32.totalorder %v261, 16
      %vm808 = vcmp.ge.s32.totalorder %v262, 16
      %vm809 = vcmp.ge.s32.totalorder %v615, 1
      %vm810 = vcmp.ge.s32.totalorder %v616, 1
      %vm811 = vcmp.ge.s32.totalorder %v617, 1
      %vm812 = vcmp.ge.s32.totalorder %v618, 1
      %vm813 = vcmp.ge.s32.totalorder %v619, 1
      %vm814 = vcmp.ge.s32.totalorder %v620, 1
      %vm815 = vcmp.ge.s32.totalorder %v621, 1
      %vm816 = vcmp.ge.s32.totalorder %v622, 1
      %vm817 = vcmp.ge.s32.totalorder %v623, 1
      %vm818 = vcmp.ge.s32.totalorder %v624, 1
      %vm819 = vcmp.ge.s32.totalorder %v625, 1
      %vm820 = vcmp.ge.s32.totalorder %v626, 1
      %vm821 = vcmp.ge.s32.totalorder %v627, 1
      %vm822 = vcmp.ge.s32.totalorder %v628, 1
      %vm823 = vcmp.ge.s32.totalorder %v629, 1
      %vm824 = vcmp.ge.s32.totalorder %v630, 1
      %vm825 = vcmp.ge.s32.totalorder %v631, 1
      %vm826 = vcmp.ge.s32.totalorder %v632, 1
      %vm827 = vcmp.ge.s32.totalorder %v633, 1
      %vm828 = vcmp.ge.s32.totalorder %v634, 1
      %vm829 = vcmp.ge.s32.totalorder %v635, 1
      %vm830 = vcmp.ge.s32.totalorder %v636, 1
      %vm831 = vcmp.ge.s32.totalorder %v637, 1
      %vm832 = vcmp.ge.s32.totalorder %v638, 1
      %vm833 = vcmp.ge.s32.totalorder %v639, 1
      %vm834 = vcmp.ge.s32.totalorder %v640, 1
      %vm835 = vcmp.ge.s32.totalorder %v641, 1
      %vm836 = vcmp.ge.s32.totalorder %v642, 1
      %vm837 = vcmp.ge.s32.totalorder %v643, 1
      %vm838 = vcmp.ge.s32.totalorder %v644, 1
      %vm839 = vcmp.ge.s32.totalorder %v645, 1
      %vm840 = vcmp.ge.s32.totalorder %v646, 1
      %vm841 = vmand %vm777, %vm809
      %vm842 = vmand %vm778, %vm810
      %vm843 = vmand %vm779, %vm811
      %vm844 = vmand %vm780, %vm812
      %vm845 = vmand %vm781, %vm813
      %vm846 = vmand %vm782, %vm814
      %vm847 = vmand %vm783, %vm815
      %vm848 = vmand %vm784, %vm816
      %vm849 = vmand %vm785, %vm817
      %vm850 = vmand %vm786, %vm818
      %vm851 = vmand %vm787, %vm819
      %vm852 = vmand %vm788, %vm820
      %vm853 = vmand %vm789, %vm821
      %vm854 = vmand %vm790, %vm822
      %vm855 = vmand %vm791, %vm823
      %vm856 = vmand %vm792, %vm824
      %vm857 = vmand %vm793, %vm825
      %vm858 = vmand %vm794, %vm826
      %vm859 = vmand %vm795, %vm827
      %vm860 = vmand %vm796, %vm828
      %vm861 = vmand %vm797, %vm829
      %vm862 = vmand %vm798, %vm830
      %vm863 = vmand %vm799, %vm831
      %vm864 = vmand %vm800, %vm832
      %vm865 = vmand %vm801, %vm833
      %vm866 = vmand %vm802, %vm834
      %vm867 = vmand %vm803, %vm835
      %vm868 = vmand %vm804, %vm836
      %vm869 = vmand %vm805, %vm837
      %vm870 = vmand %vm806, %vm838
      %vm871 = vmand %vm807, %vm839
      %vm872 = vmand %vm808, %vm840
      %v873 = vsel %vm841, 1, 0
      %v874 = vsel %vm842, 1, 0
      %v875 = vsel %vm843, 1, 0
      %v876 = vsel %vm844, 1, 0
      %v877 = vsel %vm845, 1, 0
      %v878 = vsel %vm846, 1, 0
      %v879 = vsel %vm847, 1, 0
      %v880 = vsel %vm848, 1, 0
      %v881 = vsel %vm849, 1, 0
      %v882 = vsel %vm850, 1, 0
      %v883 = vsel %vm851, 1, 0
      %v884 = vsel %vm852, 1, 0
      %v885 = vsel %vm853, 1, 0
      %v886 = vsel %vm854, 1, 0
      %v887 = vsel %vm855, 1, 0
      %v888 = vsel %vm856, 1, 0
      %v889 = vsel %vm857, 1, 0
      %v890 = vsel %vm858, 1, 0
      %v891 = vsel %vm859, 1, 0
      %v892 = vsel %vm860, 1, 0
      %v893 = vsel %vm861, 1, 0
      %v894 = vsel %vm862, 1, 0
      %v895 = vsel %vm863, 1, 0
      %v896 = vsel %vm864, 1, 0
      %v897 = vsel %vm865, 1, 0
      %v898 = vsel %vm866, 1, 0
      %v899 = vsel %vm867, 1, 0
      %v900 = vsel %vm868, 1, 0
      %v901 = vsel %vm869, 1, 0
      %v902 = vsel %vm870, 1, 0
      %v903 = vsel %vm871, 1, 0
      %v904 = vsel %vm872, 1, 0
      %v905 = vcvt.s32.f32 %v873
      %v906 = vcvt.s32.f32 %v874
      %v907 = vcvt.s32.f32 %v875
      %v908 = vcvt.s32.f32 %v876
      %v909 = vcvt.s32.f32 %v877
      %v910 = vcvt.s32.f32 %v878
      %v911 = vcvt.s32.f32 %v879
      %v912 = vcvt.s32.f32 %v880
      %v913 = vcvt.s32.f32 %v881
      %v914 = vcvt.s32.f32 %v882
      %v915 = vcvt.s32.f32 %v883
      %v916 = vcvt.s32.f32 %v884
      %v917 = vcvt.s32.f32 %v885
      %v918 = vcvt.s32.f32 %v886
      %v919 = vcvt.s32.f32 %v887
      %v920 = vcvt.s32.f32 %v888
      %v921 = vcvt.s32.f32 %v889
      %v922 = vcvt.s32.f32 %v890
      %v923 = vcvt.s32.f32 %v891
      %v924 = vcvt.s32.f32 %v892
      %v925 = vcvt.s32.f32 %v893
      %v926 = vcvt.s32.f32 %v894
      %v927 = vcvt.s32.f32 %v895
      %v928 = vcvt.s32.f32 %v896
      %v929 = vcvt.s32.f32 %v897
      %v930 = vcvt.s32.f32 %v898
      %v931 = vcvt.s32.f32 %v899
      %v932 = vcvt.s32.f32 %v900
      %v933 = vcvt.s32.f32 %v901
      %v934 = vcvt.s32.f32 %v902
      %v935 = vcvt.s32.f32 %v903
      %v936 = vcvt.s32.f32 %v904
      %v937 = vmul.f32 %v653, %v905
      %v938 = vmul.f32 %v655, %v906
      %v939 = vmul.f32 %v776, %v907
      %v940 = vmul.f32 %v690, %v908
      %v941 = vmul.f32 %v692, %v909
      %v942 = vmul.f32 %v694, %v910
      %v943 = vmul.f32 %v696, %v911
      %v944 = vmul.f32 %v698, %v912
      %v945 = vmul.f32 %v700, %v913
      %v946 = vmul.f32 %v702, %v914
      %v947 = vmul.f32 %v704, %v915
      %v948 = vmul.f32 %v706, %v916
      %v949 = vmul.f32 %v708, %v917
      %v950 = vmul.f32 %v710, %v918
      %v951 = vmul.f32 %v712, %v919
      %v952 = vmul.f32 %v714, %v920
      %v953 = vmul.f32 %v716, %v921
      %v954 = vmul.f32 %v718, %v922
      %v955 = vmul.f32 %v720, %v923
      %v956 = vmul.f32 %v722, %v924
      %v957 = vmul.f32 %v724, %v925
      %v958 = vmul.f32 %v726, %v926
      %v959 = vmul.f32 %v728, %v927
      %v960 = vmul.f32 %v730, %v928
      %v961 = vmul.f32 %v732, %v929
      %v962 = vmul.f32 %v734, %v930
      %v963 = vmul.f32 %v736, %v931
      %v964 = vmul.f32 %v738, %v932
      %v965 = vmul.f32 %v740, %v933
      %v966 = vmul.f32 %v742, %v934
      %v967 = vmul.f32 %v744, %v935
      %v968 = vmul.f32 %v745, %v936
      %v969 = vsel %vm777, 1, 0
      %v970 = vsel %vm778, 1, 0
      %v971 = vsel %vm779, 1, 0
      %v972 = vsel %vm780, 1, 0
      %v973 = vsel %vm781, 1, 0
      %v974 = vsel %vm782, 1, 0
      %v975 = vsel %vm783, 1, 0
      %v976 = vsel %vm784, 1, 0
      %v977 = vsel %vm785, 1, 0
      %v978 = vsel %vm786, 1, 0
      %v979 = vsel %vm787, 1, 0
      %v980 = vsel %vm788, 1, 0
      %v981 = vsel %vm789, 1, 0
      %v982 = vsel %vm790, 1, 0
      %v983 = vsel %vm791, 1, 0
      %v984 = vsel %vm792, 1, 0
      %v985 = vsel %vm793, 1, 0
      %v986 = vsel %vm794, 1, 0
      %v987 = vsel %vm795, 1, 0
      %v988 = vsel %vm796, 1, 0
      %v989 = vsel %vm797, 1, 0
      %v990 = vsel %vm798, 1, 0
      %v991 = vsel %vm799, 1, 0
      %v992 = vsel %vm800, 1, 0
      %v993 = vsel %vm801, 1, 0
      %v994 = vsel %vm802, 1, 0
      %v995 = vsel %vm803, 1, 0
      %v996 = vsel %vm804, 1, 0
      %v997 = vsel %vm805, 1, 0
      %v998 = vsel %vm806, 1, 0
      %v999 = vsel %vm807, 1, 0
      %v1000 = vsel %vm808, 1, 0
      %v1001 = vcvt.s32.f32 %v969
      %v1002 = vcvt.s32.f32 %v970
      %v1003 = vcvt.s32.f32 %v971
      %v1004 = vcvt.s32.f32 %v972
      %v1005 = vcvt.s32.f32 %v973
      %v1006 = vcvt.s32.f32 %v974
      %v1007 = vcvt.s32.f32 %v975
      %v1008 = vcvt.s32.f32 %v976
      %v1009 = vcvt.s32.f32 %v977
      %v1010 = vcvt.s32.f32 %v978
      %v1011 = vcvt.s32.f32 %v979
      %v1012 = vcvt.s32.f32 %v980
      %v1013 = vcvt.s32.f32 %v981
      %v1014 = vcvt.s32.f32 %v982
      %v1015 = vcvt.s32.f32 %v983
      %v1016 = vcvt.s32.f32 %v984
      %v1017 = vcvt.s32.f32 %v985
      %v1018 = vcvt.s32.f32 %v986
      %v1019 = vcvt.s32.f32 %v987
      %v1020 = vcvt.s32.f32 %v988
      %v1021 = vcvt.s32.f32 %v989
      %v1022 = vcvt.s32.f32 %v990
      %v1023 = vcvt.s32.f32 %v991
      %v1024 = vcvt.s32.f32 %v992
      %v1025 = vcvt.s32.f32 %v993
      %v1026 = vcvt.s32.f32 %v994
      %v1027 = vcvt.s32.f32 %v995
      %v1028 = vcvt.s32.f32 %v996
      %v1029 = vcvt.s32.f32 %v997
      %v1030 = vcvt.s32.f32 %v998
      %v1031 = vcvt.s32.f32 %v999
      %v1032 = vcvt.s32.f32 %v1000
      %v1033 = vmul.f32 %v228, %v1001
      %v1034 = vmul.f32 %v229, %v1002
      %v1035 = vmul.f32 %v198, %v1003
      %v1036 = vmul.f32 %v199, %v1004
      %v1037 = vmul.f32 %v200, %v1005
      %v1038 = vmul.f32 %v201, %v1006
      %v1039 = vmul.f32 %v202, %v1007
      %v1040 = vmul.f32 %v203, %v1008
      %v1041 = vmul.f32 %v204, %v1009
      %v1042 = vmul.f32 %v205, %v1010
      %v1043 = vmul.f32 %v206, %v1011
      %v1044 = vmul.f32 %v207, %v1012
      %v1045 = vmul.f32 %v208, %v1013
      %v1046 = vmul.f32 %v209, %v1014
      %v1047 = vmul.f32 %v210, %v1015
      %v1048 = vmul.f32 %v211, %v1016
      %v1049 = vmul.f32 %v212, %v1017
      %v1050 = vmul.f32 %v213, %v1018
      %v1051 = vmul.f32 %v214, %v1019
      %v1052 = vmul.f32 %v215, %v1020
      %v1053 = vmul.f32 %v216, %v1021
      %v1054 = vmul.f32 %v217, %v1022
      %v1055 = vmul.f32 %v218, %v1023
      %v1056 = vmul.f32 %v219, %v1024
      %v1057 = vmul.f32 %v220, %v1025
      %v1058 = vmul.f32 %v221, %v1026
      %v1059 = vmul.f32 %v222, %v1027
      %v1060 = vmul.f32 %v223, %v1028
      %v1061 = vmul.f32 %v224, %v1029
      %v1062 = vmul.f32 %v225, %v1030
      %v1063 = vmul.f32 %v226, %v1031
      %v1064 = vmul.f32 %v227, %v1032
      %vm1065 = vcmask 1046528
      %v1066 = vrot.slane %v228, 1
      %v1067 = vrot.slane %v229, 1
      %v1068 = vsel %vm1065, %v1066, %v1067
      %v1071 = vrot.slane %v198, 1
      %v1072 = vrot.slane %v199, 1
      %v1073 = vsel %vm1065, %v1071, %v1072
      %v1074 = vrot.slane %v200, 1
      %v1075 = vsel %vm1065, %v1072, %v1074
      %v1076 = vrot.slane %v201, 1
      %v1077 = vsel %vm1065, %v1074, %v1076
      %v1078 = vrot.slane %v202, 1
      %v1079 = vsel %vm1065, %v1076, %v1078
      %v1080 = vrot.slane %v203, 1
      %v1081 = vsel %vm1065, %v1078, %v1080
      %v1082 = vrot.slane %v204, 1
      %v1083 = vsel %vm1065, %v1080, %v1082
      %v1084 = vrot.slane %v205, 1
      %v1085 = vsel %vm1065, %v1082, %v1084
      %v1086 = vrot.slane %v206, 1
      %v1087 = vsel %vm1065, %v1084, %v1086
      %v1088 = vrot.slane %v207, 1
      %v1089 = vsel %vm1065, %v1086, %v1088
      %v1090 = vrot.slane %v208, 1
      %v1091 = vsel %vm1065, %v1088, %v1090
      %v1092 = vrot.slane %v209, 1
      %v1093 = vsel %vm1065, %v1090, %v1092
      %v1094 = vrot.slane %v210, 1
      %v1095 = vsel %vm1065, %v1092, %v1094
      %v1096 = vrot.slane %v211, 1
      %v1097 = vsel %vm1065, %v1094, %v1096
      %v1098 = vrot.slane %v212, 1
      %v1099 = vsel %vm1065, %v1096, %v1098
      %v1100 = vrot.slane %v213, 1
      %v1101 = vsel %vm1065, %v1098, %v1100
      %v1102 = vrot.slane %v214, 1
      %v1103 = vsel %vm1065, %v1100, %v1102
      %v1104 = vrot.slane %v215, 1
      %v1105 = vsel %vm1065, %v1102, %v1104
      %v1106 = vrot.slane %v216, 1
      %v1107 = vsel %vm1065, %v1104, %v1106
      %v1108 = vrot.slane %v217, 1
      %v1109 = vsel %vm1065, %v1106, %v1108
      %v1110 = vrot.slane %v218, 1
      %v1111 = vsel %vm1065, %v1108, %v1110
      %v1112 = vrot.slane %v219, 1
      %v1113 = vsel %vm1065, %v1110, %v1112
      %v1114 = vrot.slane %v220, 1
      %v1115 = vsel %vm1065, %v1112, %v1114
      %v1116 = vrot.slane %v221, 1
      %v1117 = vsel %vm1065, %v1114, %v1116
      %v1118 = vrot.slane %v222, 1
      %v1119 = vsel %vm1065, %v1116, %v1118
      %v1120 = vrot.slane %v223, 1
      %v1121 = vsel %vm1065, %v1118, %v1120
      %v1122 = vrot.slane %v224, 1
      %v1123 = vsel %vm1065, %v1120, %v1122
      %v1124 = vrot.slane %v225, 1
      %v1125 = vsel %vm1065, %v1122, %v1124
      %v1126 = vrot.slane %v226, 1
      %v1127 = vsel %vm1065, %v1124, %v1126
      %v1128 = vrot.slane %v227, 1
      %v1129 = vsel %vm1065, %v1126, %v1128
      %v1130 = vsel %vm1065, %v1128, %v1066
      %v1162 = vsel %vm1065, %v1067, %v1071
      %vm1163 = vcmp.lt.s32.totalorder %v615, 15
      %vm1164 = vcmp.lt.s32.totalorder %v616, 15
      %vm1165 = vcmp.lt.s32.totalorder %v617, 15
      %vm1166 = vcmp.lt.s32.totalorder %v618, 15
      %vm1167 = vcmp.lt.s32.totalorder %v619, 15
      %vm1168 = vcmp.lt.s32.totalorder %v620, 15
      %vm1169 = vcmp.lt.s32.totalorder %v621, 15
      %vm1170 = vcmp.lt.s32.totalorder %v622, 15
      %vm1171 = vcmp.lt.s32.totalorder %v623, 15
      %vm1172 = vcmp.lt.s32.totalorder %v624, 15
      %vm1173 = vcmp.lt.s32.totalorder %v625, 15
      %vm1174 = vcmp.lt.s32.totalorder %v626, 15
      %vm1175 = vcmp.lt.s32.totalorder %v627, 15
      %vm1176 = vcmp.lt.s32.totalorder %v628, 15
      %vm1177 = vcmp.lt.s32.totalorder %v629, 15
      %vm1178 = vcmp.lt.s32.totalorder %v630, 15
      %vm1179 = vcmp.lt.s32.totalorder %v631, 15
      %vm1180 = vcmp.lt.s32.totalorder %v632, 15
      %vm1181 = vcmp.lt.s32.totalorder %v633, 15
      %vm1182 = vcmp.lt.s32.totalorder %v634, 15
      %vm1183 = vcmp.lt.s32.totalorder %v635, 15
      %vm1184 = vcmp.lt.s32.totalorder %v636, 15
      %vm1185 = vcmp.lt.s32.totalorder %v637, 15
      %vm1186 = vcmp.lt.s32.totalorder %v638, 15
      %vm1187 = vcmp.lt.s32.totalorder %v639, 15
      %vm1188 = vcmp.lt.s32.totalorder %v640, 15
      %vm1189 = vcmp.lt.s32.totalorder %v641, 15
      %vm1190 = vcmp.lt.s32.totalorder %v642, 15
      %vm1191 = vcmp.lt.s32.totalorder %v643, 15
      %vm1192 = vcmp.lt.s32.totalorder %v644, 15
      %vm1193 = vcmp.lt.s32.totalorder %v645, 15
      %vm1194 = vcmp.lt.s32.totalorder %v646, 15
      %vm1195 = vmand %vm777, %vm1163
      %vm1196 = vmand %vm778, %vm1164
      %vm1197 = vmand %vm779, %vm1165
      %vm1198 = vmand %vm780, %vm1166
      %vm1199 = vmand %vm781, %vm1167
      %vm1200 = vmand %vm782, %vm1168
      %vm1201 = vmand %vm783, %vm1169
      %vm1202 = vmand %vm784, %vm1170
      %vm1203 = vmand %vm785, %vm1171
      %vm1204 = vmand %vm786, %vm1172
      %vm1205 = vmand %vm787, %vm1173
      %vm1206 = vmand %vm788, %vm1174
      %vm1207 = vmand %vm789, %vm1175
      %vm1208 = vmand %vm790, %vm1176
      %vm1209 = vmand %vm791, %vm1177
      %vm1210 = vmand %vm792, %vm1178
      %vm1211 = vmand %vm793, %vm1179
      %vm1212 = vmand %vm794, %vm1180
      %vm1213 = vmand %vm795, %vm1181
      %vm1214 = vmand %vm796, %vm1182
      %vm1215 = vmand %vm797, %vm1183
      %vm1216 = vmand %vm798, %vm1184
      %vm1217 = vmand %vm799, %vm1185
      %vm1218 = vmand %vm800, %vm1186
      %vm1219 = vmand %vm801, %vm1187
      %vm1220 = vmand %vm802, %vm1188
      %vm1221 = vmand %vm803, %vm1189
      %vm1222 = vmand %vm804, %vm1190
      %vm1223 = vmand %vm805, %vm1191
      %vm1224 = vmand %vm806, %vm1192
      %vm1225 = vmand %vm807, %vm1193
      %vm1226 = vmand %vm808, %vm1194
      %v1227 = vsel %vm1195, 1, 0
      %v1228 = vsel %vm1196, 1, 0
      %v1229 = vsel %vm1197, 1, 0
      %v1230 = vsel %vm1198, 1, 0
      %v1231 = vsel %vm1199, 1, 0
      %v1232 = vsel %vm1200, 1, 0
      %v1233 = vsel %vm1201, 1, 0
      %v1234 = vsel %vm1202, 1, 0
      %v1235 = vsel %vm1203, 1, 0
      %v1236 = vsel %vm1204, 1, 0
      %v1237 = vsel %vm1205, 1, 0
      %v1238 = vsel %vm1206, 1, 0
      %v1239 = vsel %vm1207, 1, 0
      %v1240 = vsel %vm1208, 1, 0
      %v1241 = vsel %vm1209, 1, 0
      %v1242 = vsel %vm1210, 1, 0
      %v1243 = vsel %vm1211, 1, 0
      %v1244 = vsel %vm1212, 1, 0
      %v1245 = vsel %vm1213, 1, 0
      %v1246 = vsel %vm1214, 1, 0
      %v1247 = vsel %vm1215, 1, 0
      %v1248 = vsel %vm1216, 1, 0
      %v1249 = vsel %vm1217, 1, 0
      %v1250 = vsel %vm1218, 1, 0
      %v1251 = vsel %vm1219, 1, 0
      %v1252 = vsel %vm1220, 1, 0
      %v1253 = vsel %vm1221, 1, 0
      %v1254 = vsel %vm1222, 1, 0
      %v1255 = vsel %vm1223, 1, 0
      %v1256 = vsel %vm1224, 1, 0
      %v1257 = vsel %vm1225, 1, 0
      %v1258 = vsel %vm1226, 1, 0
      %v1259 = vcvt.s32.f32 %v1227
      %v1260 = vcvt.s32.f32 %v1228
      %v1261 = vcvt.s32.f32 %v1229
      %v1262 = vcvt.s32.f32 %v1230
      %v1263 = vcvt.s32.f32 %v1231
      %v1264 = vcvt.s32.f32 %v1232
      %v1265 = vcvt.s32.f32 %v1233
      %v1266 = vcvt.s32.f32 %v1234
      %v1267 = vcvt.s32.f32 %v1235
      %v1268 = vcvt.s32.f32 %v1236
      %v1269 = vcvt.s32.f32 %v1237
      %v1270 = vcvt.s32.f32 %v1238
      %v1271 = vcvt.s32.f32 %v1239
      %v1272 = vcvt.s32.f32 %v1240
      %v1273 = vcvt.s32.f32 %v1241
      %v1274 = vcvt.s32.f32 %v1242
      %v1275 = vcvt.s32.f32 %v1243
      %v1276 = vcvt.s32.f32 %v1244
      %v1277 = vcvt.s32.f32 %v1245
      %v1278 = vcvt.s32.f32 %v1246
      %v1279 = vcvt.s32.f32 %v1247
      %v1280 = vcvt.s32.f32 %v1248
      %v1281 = vcvt.s32.f32 %v1249
      %v1282 = vcvt.s32.f32 %v1250
      %v1283 = vcvt.s32.f32 %v1251
      %v1284 = vcvt.s32.f32 %v1252
      %v1285 = vcvt.s32.f32 %v1253
      %v1286 = vcvt.s32.f32 %v1254
      %v1287 = vcvt.s32.f32 %v1255
      %v1288 = vcvt.s32.f32 %v1256
      %v1289 = vcvt.s32.f32 %v1257
      %v1290 = vcvt.s32.f32 %v1258
      %v1291 = vmul.f32 %v1068, %v1259
      %v1292 = vmul.f32 %v1162, %v1260
      %v1293 = vmul.f32 %v1073, %v1261
      %v1294 = vmul.f32 %v1075, %v1262
      %v1295 = vmul.f32 %v1077, %v1263
      %v1296 = vmul.f32 %v1079, %v1264
      %v1297 = vmul.f32 %v1081, %v1265
      %v1298 = vmul.f32 %v1083, %v1266
      %v1299 = vmul.f32 %v1085, %v1267
      %v1300 = vmul.f32 %v1087, %v1268
      %v1301 = vmul.f32 %v1089, %v1269
      %v1302 = vmul.f32 %v1091, %v1270
      %v1303 = vmul.f32 %v1093, %v1271
      %v1304 = vmul.f32 %v1095, %v1272
      %v1305 = vmul.f32 %v1097, %v1273
      %v1306 = vmul.f32 %v1099, %v1274
      %v1307 = vmul.f32 %v1101, %v1275
      %v1308 = vmul.f32 %v1103, %v1276
      %v1309 = vmul.f32 %v1105, %v1277
      %v1310 = vmul.f32 %v1107, %v1278
      %v1311 = vmul.f32 %v1109, %v1279
      %v1312 = vmul.f32 %v1111, %v1280
      %v1313 = vmul.f32 %v1113, %v1281
      %v1314 = vmul.f32 %v1115, %v1282
      %v1315 = vmul.f32 %v1117, %v1283
      %v1316 = vmul.f32 %v1119, %v1284
      %v1317 = vmul.f32 %v1121, %v1285
      %v1318 = vmul.f32 %v1123, %v1286
      %v1319 = vmul.f32 %v1125, %v1287
      %v1320 = vmul.f32 %v1127, %v1288
      %v1321 = vmul.f32 %v1129, %v1289
      %v1322 = vmul.f32 %v1130, %v1290
      %v1323 = vsel %vm809, 1, 0
      %v1324 = vsel %vm810, 1, 0
      %v1325 = vsel %vm811, 1, 0
      %v1326 = vsel %vm812, 1, 0
      %v1327 = vsel %vm813, 1, 0
      %v1328 = vsel %vm814, 1, 0
      %v1329 = vsel %vm815, 1, 0
      %v1330 = vsel %vm816, 1, 0
      %v1331 = vsel %vm817, 1, 0
      %v1332 = vsel %vm818, 1, 0
      %v1333 = vsel %vm819, 1, 0
      %v1334 = vsel %vm820, 1, 0
      %v1335 = vsel %vm821, 1, 0
      %v1336 = vsel %vm822, 1, 0
      %v1337 = vsel %vm823, 1, 0
      %v1338 = vsel %vm824, 1, 0
      %v1339 = vsel %vm825, 1, 0
      %v1340 = vsel %vm826, 1, 0
      %v1341 = vsel %vm827, 1, 0
      %v1342 = vsel %vm828, 1, 0
      %v1343 = vsel %vm829, 1, 0
      %v1344 = vsel %vm830, 1, 0
      %v1345 = vsel %vm831, 1, 0
      %v1346 = vsel %vm832, 1, 0
      %v1347 = vsel %vm833, 1, 0
      %v1348 = vsel %vm834, 1, 0
      %v1349 = vsel %vm835, 1, 0
      %v1350 = vsel %vm836, 1, 0
      %v1351 = vsel %vm837, 1, 0
      %v1352 = vsel %vm838, 1, 0
      %v1353 = vsel %vm839, 1, 0
      %v1354 = vsel %vm840, 1, 0
      %v1355 = vcvt.s32.f32 %v1323
      %v1356 = vcvt.s32.f32 %v1324
      %v1357 = vcvt.s32.f32 %v1325
      %v1358 = vcvt.s32.f32 %v1326
      %v1359 = vcvt.s32.f32 %v1327
      %v1360 = vcvt.s32.f32 %v1328
      %v1361 = vcvt.s32.f32 %v1329
      %v1362 = vcvt.s32.f32 %v1330
      %v1363 = vcvt.s32.f32 %v1331
      %v1364 = vcvt.s32.f32 %v1332
      %v1365 = vcvt.s32.f32 %v1333
      %v1366 = vcvt.s32.f32 %v1334
      %v1367 = vcvt.s32.f32 %v1335
      %v1368 = vcvt.s32.f32 %v1336
      %v1369 = vcvt.s32.f32 %v1337
      %v1370 = vcvt.s32.f32 %v1338
      %v1371 = vcvt.s32.f32 %v1339
      %v1372 = vcvt.s32.f32 %v1340
      %v1373 = vcvt.s32.f32 %v1341
      %v1374 = vcvt.s32.f32 %v1342
      %v1375 = vcvt.s32.f32 %v1343
      %v1376 = vcvt.s32.f32 %v1344
      %v1377 = vcvt.s32.f32 %v1345
      %v1378 = vcvt.s32.f32 %v1346
      %v1379 = vcvt.s32.f32 %v1347
      %v1380 = vcvt.s32.f32 %v1348
      %v1381 = vcvt.s32.f32 %v1349
      %v1382 = vcvt.s32.f32 %v1350
      %v1383 = vcvt.s32.f32 %v1351
      %v1384 = vcvt.s32.f32 %v1352
      %v1385 = vcvt.s32.f32 %v1353
      %v1386 = vcvt.s32.f32 %v1354
      %v1387 = vmul.f32 %v776, %v1355
      %v1388 = vmul.f32 %v690, %v1356
      %v1389 = vmul.f32 %v692, %v1357
      %v1390 = vmul.f32 %v694, %v1358
      %v1391 = vmul.f32 %v696, %v1359
      %v1392 = vmul.f32 %v698, %v1360
      %v1393 = vmul.f32 %v700, %v1361
      %v1394 = vmul.f32 %v702, %v1362
      %v1395 = vmul.f32 %v704, %v1363
      %v1396 = vmul.f32 %v706, %v1364
      %v1397 = vmul.f32 %v708, %v1365
      %v1398 = vmul.f32 %v710, %v1366
      %v1399 = vmul.f32 %v712, %v1367
      %v1400 = vmul.f32 %v714, %v1368
      %v1401 = vmul.f32 %v716, %v1369
      %v1402 = vmul.f32 %v718, %v1370
      %v1403 = vmul.f32 %v720, %v1371
      %v1404 = vmul.f32 %v722, %v1372
      %v1405 = vmul.f32 %v724, %v1373
      %v1406 = vmul.f32 %v726, %v1374
      %v1407 = vmul.f32 %v728, %v1375
      %v1408 = vmul.f32 %v730, %v1376
      %v1409 = vmul.f32 %v732, %v1377
      %v1410 = vmul.f32 %v734, %v1378
      %v1411 = vmul.f32 %v736, %v1379
      %v1412 = vmul.f32 %v738, %v1380
      %v1413 = vmul.f32 %v740, %v1381
      %v1414 = vmul.f32 %v742, %v1382
      %v1415 = vmul.f32 %v744, %v1383
      %v1416 = vmul.f32 %v745, %v1384
      %v1417 = vmul.f32 %v653, %v1385
      %v1418 = vmul.f32 %v655, %v1386
      %v1419 = vsel %vm1163, 1, 0
      %v1420 = vsel %vm1164, 1, 0
      %v1421 = vsel %vm1165, 1, 0
      %v1422 = vsel %vm1166, 1, 0
      %v1423 = vsel %vm1167, 1, 0
      %v1424 = vsel %vm1168, 1, 0
      %v1425 = vsel %vm1169, 1, 0
      %v1426 = vsel %vm1170, 1, 0
      %v1427 = vsel %vm1171, 1, 0
      %v1428 = vsel %vm1172, 1, 0
      %v1429 = vsel %vm1173, 1, 0
      %v1430 = vsel %vm1174, 1, 0
      %v1431 = vsel %vm1175, 1, 0
      %v1432 = vsel %vm1176, 1, 0
      %v1433 = vsel %vm1177, 1, 0
      %v1434 = vsel %vm1178, 1, 0
      %v1435 = vsel %vm1179, 1, 0
      %v1436 = vsel %vm1180, 1, 0
      %v1437 = vsel %vm1181, 1, 0
      %v1438 = vsel %vm1182, 1, 0
      %v1439 = vsel %vm1183, 1, 0
      %v1440 = vsel %vm1184, 1, 0
      %v1441 = vsel %vm1185, 1, 0
      %v1442 = vsel %vm1186, 1, 0
      %v1443 = vsel %vm1187, 1, 0
      %v1444 = vsel %vm1188, 1, 0
      %v1445 = vsel %vm1189, 1, 0
      %v1446 = vsel %vm1190, 1, 0
      %v1447 = vsel %vm1191, 1, 0
      %v1448 = vsel %vm1192, 1, 0
      %v1449 = vsel %vm1193, 1, 0
      %v1450 = vsel %vm1194, 1, 0
      %v1451 = vcvt.s32.f32 %v1419
      %v1452 = vcvt.s32.f32 %v1420
      %v1453 = vcvt.s32.f32 %v1421
      %v1454 = vcvt.s32.f32 %v1422
      %v1455 = vcvt.s32.f32 %v1423
      %v1456 = vcvt.s32.f32 %v1424
      %v1457 = vcvt.s32.f32 %v1425
      %v1458 = vcvt.s32.f32 %v1426
      %v1459 = vcvt.s32.f32 %v1427
      %v1460 = vcvt.s32.f32 %v1428
      %v1461 = vcvt.s32.f32 %v1429
      %v1462 = vcvt.s32.f32 %v1430
      %v1463 = vcvt.s32.f32 %v1431
      %v1464 = vcvt.s32.f32 %v1432
      %v1465 = vcvt.s32.f32 %v1433
      %v1466 = vcvt.s32.f32 %v1434
      %v1467 = vcvt.s32.f32 %v1435
      %v1468 = vcvt.s32.f32 %v1436
      %v1469 = vcvt.s32.f32 %v1437
      %v1470 = vcvt.s32.f32 %v1438
      %v1471 = vcvt.s32.f32 %v1439
      %v1472 = vcvt.s32.f32 %v1440
      %v1473 = vcvt.s32.f32 %v1441
      %v1474 = vcvt.s32.f32 %v1442
      %v1475 = vcvt.s32.f32 %v1443
      %v1476 = vcvt.s32.f32 %v1444
      %v1477 = vcvt.s32.f32 %v1445
      %v1478 = vcvt.s32.f32 %v1446
      %v1479 = vcvt.s32.f32 %v1447
      %v1480 = vcvt.s32.f32 %v1448
      %v1481 = vcvt.s32.f32 %v1449
      %v1482 = vcvt.s32.f32 %v1450
      %v1483 = vmul.f32 %v1073, %v1451
      %v1484 = vmul.f32 %v1075, %v1452
      %v1485 = vmul.f32 %v1077, %v1453
      %v1486 = vmul.f32 %v1079, %v1454
      %v1487 = vmul.f32 %v1081, %v1455
      %v1488 = vmul.f32 %v1083, %v1456
      %v1489 = vmul.f32 %v1085, %v1457
      %v1490 = vmul.f32 %v1087, %v1458
      %v1491 = vmul.f32 %v1089, %v1459
      %v1492 = vmul.f32 %v1091, %v1460
      %v1493 = vmul.f32 %v1093, %v1461
      %v1494 = vmul.f32 %v1095, %v1462
      %v1495 = vmul.f32 %v1097, %v1463
      %v1496 = vmul.f32 %v1099, %v1464
      %v1497 = vmul.f32 %v1101, %v1465
      %v1498 = vmul.f32 %v1103, %v1466
      %v1499 = vmul.f32 %v1105, %v1467
      %v1500 = vmul.f32 %v1107, %v1468
      %v1501 = vmul.f32 %v1109, %v1469
      %v1502 = vmul.f32 %v1111, %v1470
      %v1503 = vmul.f32 %v1113, %v1471
      %v1504 = vmul.f32 %v1115, %v1472
      %v1505 = vmul.f32 %v1117, %v1473
      %v1506 = vmul.f32 %v1119, %v1474
      %v1507 = vmul.f32 %v1121, %v1475
      %v1508 = vmul.f32 %v1123, %v1476
      %v1509 = vmul.f32 %v1125, %v1477
      %v1510 = vmul.f32 %v1127, %v1478
      %v1511 = vmul.f32 %v1129, %v1479
      %v1512 = vmul.f32 %v1130, %v1480
      %v1513 = vmul.f32 %v1068, %v1481
      %v1514 = vmul.f32 %v1162, %v1482
      %vm1515 = vcmp.lt.s32.totalorder %v231, 240
      %vm1516 = vcmp.lt.s32.totalorder %v232, 240
      %vm1517 = vcmp.lt.s32.totalorder %v233, 240
      %vm1518 = vcmp.lt.s32.totalorder %v234, 240
      %vm1519 = vcmp.lt.s32.totalorder %v235, 240
      %vm1520 = vcmp.lt.s32.totalorder %v236, 240
      %vm1521 = vcmp.lt.s32.totalorder %v237, 240
      %vm1522 = vcmp.lt.s32.totalorder %v238, 240
      %vm1523 = vcmp.lt.s32.totalorder %v239, 240
      %vm1524 = vcmp.lt.s32.totalorder %v240, 240
      %vm1525 = vcmp.lt.s32.totalorder %v241, 240
      %vm1526 = vcmp.lt.s32.totalorder %v242, 240
      %vm1527 = vcmp.lt.s32.totalorder %v243, 240
      %vm1528 = vcmp.lt.s32.totalorder %v244, 240
      %vm1529 = vcmp.lt.s32.totalorder %v245, 240
      %vm1530 = vcmp.lt.s32.totalorder %v246, 240
      %vm1531 = vcmp.lt.s32.totalorder %v247, 240
      %vm1532 = vcmp.lt.s32.totalorder %v248, 240
      %vm1533 = vcmp.lt.s32.totalorder %v249, 240
      %vm1534 = vcmp.lt.s32.totalorder %v250, 240
      %vm1535 = vcmp.lt.s32.totalorder %v251, 240
      %vm1536 = vcmp.lt.s32.totalorder %v252, 240
      %vm1537 = vcmp.lt.s32.totalorder %v253, 240
      %vm1538 = vcmp.lt.s32.totalorder %v254, 240
      %vm1539 = vcmp.lt.s32.totalorder %v255, 240
      %vm1540 = vcmp.lt.s32.totalorder %v256, 240
      %vm1541 = vcmp.lt.s32.totalorder %v257, 240
      %vm1542 = vcmp.lt.s32.totalorder %v258, 240
      %vm1543 = vcmp.lt.s32.totalorder %v259, 240
      %vm1544 = vcmp.lt.s32.totalorder %v260, 240
      %vm1545 = vcmp.lt.s32.totalorder %v261, 240
      %vm1546 = vcmp.lt.s32.totalorder %v262, 240
      %vm1547 = vmand %vm1515, %vm809
      %vm1548 = vmand %vm1516, %vm810
      %vm1549 = vmand %vm1517, %vm811
      %vm1550 = vmand %vm1518, %vm812
      %vm1551 = vmand %vm1519, %vm813
      %vm1552 = vmand %vm1520, %vm814
      %vm1553 = vmand %vm1521, %vm815
      %vm1554 = vmand %vm1522, %vm816
      %vm1555 = vmand %vm1523, %vm817
      %vm1556 = vmand %vm1524, %vm818
      %vm1557 = vmand %vm1525, %vm819
      %vm1558 = vmand %vm1526, %vm820
      %vm1559 = vmand %vm1527, %vm821
      %vm1560 = vmand %vm1528, %vm822
      %vm1561 = vmand %vm1529, %vm823
      %vm1562 = vmand %vm1530, %vm824
      %vm1563 = vmand %vm1531, %vm825
      %vm1564 = vmand %vm1532, %vm826
      %vm1565 = vmand %vm1533, %vm827
      %vm1566 = vmand %vm1534, %vm828
      %vm1567 = vmand %vm1535, %vm829
      %vm1568 = vmand %vm1536, %vm830
      %vm1569 = vmand %vm1537, %vm831
      %vm1570 = vmand %vm1538, %vm832
      %vm1571 = vmand %vm1539, %vm833
      %vm1572 = vmand %vm1540, %vm834
      %vm1573 = vmand %vm1541, %vm835
      %vm1574 = vmand %vm1542, %vm836
      %vm1575 = vmand %vm1543, %vm837
      %vm1576 = vmand %vm1544, %vm838
      %vm1577 = vmand %vm1545, %vm839
      %vm1578 = vmand %vm1546, %vm840
      %v1579 = vsel %vm1547, 1, 0
      %v1580 = vsel %vm1548, 1, 0
      %v1581 = vsel %vm1549, 1, 0
      %v1582 = vsel %vm1550, 1, 0
      %v1583 = vsel %vm1551, 1, 0
      %v1584 = vsel %vm1552, 1, 0
      %v1585 = vsel %vm1553, 1, 0
      %v1586 = vsel %vm1554, 1, 0
      %v1587 = vsel %vm1555, 1, 0
      %v1588 = vsel %vm1556, 1, 0
      %v1589 = vsel %vm1557, 1, 0
      %v1590 = vsel %vm1558, 1, 0
      %v1591 = vsel %vm1559, 1, 0
      %v1592 = vsel %vm1560, 1, 0
      %v1593 = vsel %vm1561, 1, 0
      %v1594 = vsel %vm1562, 1, 0
      %v1595 = vsel %vm1563, 1, 0
      %v1596 = vsel %vm1564, 1, 0
      %v1597 = vsel %vm1565, 1, 0
      %v1598 = vsel %vm1566, 1, 0
      %v1599 = vsel %vm1567, 1, 0
      %v1600 = vsel %vm1568, 1, 0
      %v1601 = vsel %vm1569, 1, 0
      %v1602 = vsel %vm1570, 1, 0
      %v1603 = vsel %vm1571, 1, 0
      %v1604 = vsel %vm1572, 1, 0
      %v1605 = vsel %vm1573, 1, 0
      %v1606 = vsel %vm1574, 1, 0
      %v1607 = vsel %vm1575, 1, 0
      %v1608 = vsel %vm1576, 1, 0
      %v1609 = vsel %vm1577, 1, 0
      %v1610 = vsel %vm1578, 1, 0
      %v1611 = vcvt.s32.f32 %v1579
      %v1612 = vcvt.s32.f32 %v1580
      %v1613 = vcvt.s32.f32 %v1581
      %v1614 = vcvt.s32.f32 %v1582
      %v1615 = vcvt.s32.f32 %v1583
      %v1616 = vcvt.s32.f32 %v1584
      %v1617 = vcvt.s32.f32 %v1585
      %v1618 = vcvt.s32.f32 %v1586
      %v1619 = vcvt.s32.f32 %v1587
      %v1620 = vcvt.s32.f32 %v1588
      %v1621 = vcvt.s32.f32 %v1589
      %v1622 = vcvt.s32.f32 %v1590
      %v1623 = vcvt.s32.f32 %v1591
      %v1624 = vcvt.s32.f32 %v1592
      %v1625 = vcvt.s32.f32 %v1593
      %v1626 = vcvt.s32.f32 %v1594
      %v1627 = vcvt.s32.f32 %v1595
      %v1628 = vcvt.s32.f32 %v1596
      %v1629 = vcvt.s32.f32 %v1597
      %v1630 = vcvt.s32.f32 %v1598
      %v1631 = vcvt.s32.f32 %v1599
      %v1632 = vcvt.s32.f32 %v1600
      %v1633 = vcvt.s32.f32 %v1601
      %v1634 = vcvt.s32.f32 %v1602
      %v1635 = vcvt.s32.f32 %v1603
      %v1636 = vcvt.s32.f32 %v1604
      %v1637 = vcvt.s32.f32 %v1605
      %v1638 = vcvt.s32.f32 %v1606
      %v1639 = vcvt.s32.f32 %v1607
      %v1640 = vcvt.s32.f32 %v1608
      %v1641 = vcvt.s32.f32 %v1609
      %v1642 = vcvt.s32.f32 %v1610
      %v1643 = vmul.f32 %v692, %v1611
      %v1644 = vmul.f32 %v694, %v1612
      %v1645 = vmul.f32 %v696, %v1613
      %v1646 = vmul.f32 %v698, %v1614
      %v1647 = vmul.f32 %v700, %v1615
      %v1648 = vmul.f32 %v702, %v1616
      %v1649 = vmul.f32 %v704, %v1617
      %v1650 = vmul.f32 %v706, %v1618
      %v1651 = vmul.f32 %v708, %v1619
      %v1652 = vmul.f32 %v710, %v1620
      %v1653 = vmul.f32 %v712, %v1621
      %v1654 = vmul.f32 %v714, %v1622
      %v1655 = vmul.f32 %v716, %v1623
      %v1656 = vmul.f32 %v718, %v1624
      %v1657 = vmul.f32 %v720, %v1625
      %v1658 = vmul.f32 %v722, %v1626
      %v1659 = vmul.f32 %v724, %v1627
      %v1660 = vmul.f32 %v726, %v1628
      %v1661 = vmul.f32 %v728, %v1629
      %v1662 = vmul.f32 %v730, %v1630
      %v1663 = vmul.f32 %v732, %v1631
      %v1664 = vmul.f32 %v734, %v1632
      %v1665 = vmul.f32 %v736, %v1633
      %v1666 = vmul.f32 %v738, %v1634
      %v1667 = vmul.f32 %v740, %v1635
      %v1668 = vmul.f32 %v742, %v1636
      %v1669 = vmul.f32 %v744, %v1637
      %v1670 = vmul.f32 %v745, %v1638
      %v1671 = vmul.f32 %v653, %v1639
      %v1672 = vmul.f32 %v655, %v1640
      %v1673 = vmul.f32 %v776, %v1641
      %v1674 = vmul.f32 %v690, %v1642
      %v1675 = vsel %vm1515, 1, 0
      %v1676 = vsel %vm1516, 1, 0
      %v1677 = vsel %vm1517, 1, 0
      %v1678 = vsel %vm1518, 1, 0
      %v1679 = vsel %vm1519, 1, 0
      %v1680 = vsel %vm1520, 1, 0
      %v1681 = vsel %vm1521, 1, 0
      %v1682 = vsel %vm1522, 1, 0
      %v1683 = vsel %vm1523, 1, 0
      %v1684 = vsel %vm1524, 1, 0
      %v1685 = vsel %vm1525, 1, 0
      %v1686 = vsel %vm1526, 1, 0
      %v1687 = vsel %vm1527, 1, 0
      %v1688 = vsel %vm1528, 1, 0
      %v1689 = vsel %vm1529, 1, 0
      %v1690 = vsel %vm1530, 1, 0
      %v1691 = vsel %vm1531, 1, 0
      %v1692 = vsel %vm1532, 1, 0
      %v1693 = vsel %vm1533, 1, 0
      %v1694 = vsel %vm1534, 1, 0
      %v1695 = vsel %vm1535, 1, 0
      %v1696 = vsel %vm1536, 1, 0
      %v1697 = vsel %vm1537, 1, 0
      %v1698 = vsel %vm1538, 1, 0
      %v1699 = vsel %vm1539, 1, 0
      %v1700 = vsel %vm1540, 1, 0
      %v1701 = vsel %vm1541, 1, 0
      %v1702 = vsel %vm1542, 1, 0
      %v1703 = vsel %vm1543, 1, 0
      %v1704 = vsel %vm1544, 1, 0
      %v1705 = vsel %vm1545, 1, 0
      %v1706 = vsel %vm1546, 1, 0
      %v1707 = vcvt.s32.f32 %v1675
      %v1708 = vcvt.s32.f32 %v1676
      %v1709 = vcvt.s32.f32 %v1677
      %v1710 = vcvt.s32.f32 %v1678
      %v1711 = vcvt.s32.f32 %v1679
      %v1712 = vcvt.s32.f32 %v1680
      %v1713 = vcvt.s32.f32 %v1681
      %v1714 = vcvt.s32.f32 %v1682
      %v1715 = vcvt.s32.f32 %v1683
      %v1716 = vcvt.s32.f32 %v1684
      %v1717 = vcvt.s32.f32 %v1685
      %v1718 = vcvt.s32.f32 %v1686
      %v1719 = vcvt.s32.f32 %v1687
      %v1720 = vcvt.s32.f32 %v1688
      %v1721 = vcvt.s32.f32 %v1689
      %v1722 = vcvt.s32.f32 %v1690
      %v1723 = vcvt.s32.f32 %v1691
      %v1724 = vcvt.s32.f32 %v1692
      %v1725 = vcvt.s32.f32 %v1693
      %v1726 = vcvt.s32.f32 %v1694
      %v1727 = vcvt.s32.f32 %v1695
      %v1728 = vcvt.s32.f32 %v1696
      %v1729 = vcvt.s32.f32 %v1697
      %v1730 = vcvt.s32.f32 %v1698
      %v1731 = vcvt.s32.f32 %v1699
      %v1732 = vcvt.s32.f32 %v1700
      %v1733 = vcvt.s32.f32 %v1701
      %v1734 = vcvt.s32.f32 %v1702
      %v1735 = vcvt.s32.f32 %v1703
      %v1736 = vcvt.s32.f32 %v1704
      %v1737 = vcvt.s32.f32 %v1705
      %v1738 = vcvt.s32.f32 %v1706
      %v1739 = vmul.f32 %v200, %v1707
      %v1740 = vmul.f32 %v201, %v1708
      %v1741 = vmul.f32 %v202, %v1709
      %v1742 = vmul.f32 %v203, %v1710
      %v1743 = vmul.f32 %v204, %v1711
      %v1744 = vmul.f32 %v205, %v1712
      %v1745 = vmul.f32 %v206, %v1713
      %v1746 = vmul.f32 %v207, %v1714
      %v1747 = vmul.f32 %v208, %v1715
      %v1748 = vmul.f32 %v209, %v1716
      %v1749 = vmul.f32 %v210, %v1717
      %v1750 = vmul.f32 %v211, %v1718
      %v1751 = vmul.f32 %v212, %v1719
      %v1752 = vmul.f32 %v213, %v1720
      %v1753 = vmul.f32 %v214, %v1721
      %v1754 = vmul.f32 %v215, %v1722
      %v1755 = vmul.f32 %v216, %v1723
      %v1756 = vmul.f32 %v217, %v1724
      %v1757 = vmul.f32 %v218, %v1725
      %v1758 = vmul.f32 %v219, %v1726
      %v1759 = vmul.f32 %v220, %v1727
      %v1760 = vmul.f32 %v221, %v1728
      %v1761 = vmul.f32 %v222, %v1729
      %v1762 = vmul.f32 %v223, %v1730
      %v1763 = vmul.f32 %v224, %v1731
      %v1764 = vmul.f32 %v225, %v1732
      %v1765 = vmul.f32 %v226, %v1733
      %v1766 = vmul.f32 %v227, %v1734
      %v1767 = vmul.f32 %v228, %v1735
      %v1768 = vmul.f32 %v229, %v1736
      %v1769 = vmul.f32 %v198, %v1737
      %v1770 = vmul.f32 %v199, %v1738
      %vm1771 = vmand %vm1515, %vm1163
      %vm1772 = vmand %vm1516, %vm1164
      %vm1773 = vmand %vm1517, %vm1165
      %vm1774 = vmand %vm1518, %vm1166
      %vm1775 = vmand %vm1519, %vm1167
      %vm1776 = vmand %vm1520, %vm1168
      %vm1777 = vmand %vm1521, %vm1169
      %vm1778 = vmand %vm1522, %vm1170
      %vm1779 = vmand %vm1523, %vm1171
      %vm1780 = vmand %vm1524, %vm1172
      %vm1781 = vmand %vm1525, %vm1173
      %vm1782 = vmand %vm1526, %vm1174
      %vm1783 = vmand %vm1527, %vm1175
      %vm1784 = vmand %vm1528, %vm1176
      %vm1785 = vmand %vm1529, %vm1177
      %vm1786 = vmand %vm1530, %vm1178
      %vm1787 = vmand %vm1531, %vm1179
      %vm1788 = vmand %vm1532, %vm1180
      %vm1789 = vmand %vm1533, %vm1181
      %vm1790 = vmand %vm1534, %vm1182
      %vm1791 = vmand %vm1535, %vm1183
      %vm1792 = vmand %vm1536, %vm1184
      %vm1793 = vmand %vm1537, %vm1185
      %vm1794 = vmand %vm1538, %vm1186
      %vm1795 = vmand %vm1539, %vm1187
      %vm1796 = vmand %vm1540, %vm1188
      %vm1797 = vmand %vm1541, %vm1189
      %vm1798 = vmand %vm1542, %vm1190
      %vm1799 = vmand %vm1543, %vm1191
      %vm1800 = vmand %vm1544, %vm1192
      %vm1801 = vmand %vm1545, %vm1193
      %vm1802 = vmand %vm1546, %vm1194
      %v1803 = vsel %vm1771, 1, 0
      %v1804 = vsel %vm1772, 1, 0
      %v1805 = vsel %vm1773, 1, 0
      %v1806 = vsel %vm1774, 1, 0
      %v1807 = vsel %vm1775, 1, 0
      %v1808 = vsel %vm1776, 1, 0
      %v1809 = vsel %vm1777, 1, 0
      %v1810 = vsel %vm1778, 1, 0
      %v1811 = vsel %vm1779, 1, 0
      %v1812 = vsel %vm1780, 1, 0
      %v1813 = vsel %vm1781, 1, 0
      %v1814 = vsel %vm1782, 1, 0
      %v1815 = vsel %vm1783, 1, 0
      %v1816 = vsel %vm1784, 1, 0
      %v1817 = vsel %vm1785, 1, 0
      %v1818 = vsel %vm1786, 1, 0
      %v1819 = vsel %vm1787, 1, 0
      %v1820 = vsel %vm1788, 1, 0
      %v1821 = vsel %vm1789, 1, 0
      %v1822 = vsel %vm1790, 1, 0
      %v1823 = vsel %vm1791, 1, 0
      %v1824 = vsel %vm1792, 1, 0
      %v1825 = vsel %vm1793, 1, 0
      %v1826 = vsel %vm1794, 1, 0
      %v1827 = vsel %vm1795, 1, 0
      %v1828 = vsel %vm1796, 1, 0
      %v1829 = vsel %vm1797, 1, 0
      %v1830 = vsel %vm1798, 1, 0
      %v1831 = vsel %vm1799, 1, 0
      %v1832 = vsel %vm1800, 1, 0
      %v1833 = vsel %vm1801, 1, 0
      %v1834 = vsel %vm1802, 1, 0
      %v1835 = vcvt.s32.f32 %v1803
      %v1836 = vcvt.s32.f32 %v1804
      %v1837 = vcvt.s32.f32 %v1805
      %v1838 = vcvt.s32.f32 %v1806
      %v1839 = vcvt.s32.f32 %v1807
      %v1840 = vcvt.s32.f32 %v1808
      %v1841 = vcvt.s32.f32 %v1809
      %v1842 = vcvt.s32.f32 %v1810
      %v1843 = vcvt.s32.f32 %v1811
      %v1844 = vcvt.s32.f32 %v1812
      %v1845 = vcvt.s32.f32 %v1813
      %v1846 = vcvt.s32.f32 %v1814
      %v1847 = vcvt.s32.f32 %v1815
      %v1848 = vcvt.s32.f32 %v1816
      %v1849 = vcvt.s32.f32 %v1817
      %v1850 = vcvt.s32.f32 %v1818
      %v1851 = vcvt.s32.f32 %v1819
      %v1852 = vcvt.s32.f32 %v1820
      %v1853 = vcvt.s32.f32 %v1821
      %v1854 = vcvt.s32.f32 %v1822
      %v1855 = vcvt.s32.f32 %v1823
      %v1856 = vcvt.s32.f32 %v1824
      %v1857 = vcvt.s32.f32 %v1825
      %v1858 = vcvt.s32.f32 %v1826
      %v1859 = vcvt.s32.f32 %v1827
      %v1860 = vcvt.s32.f32 %v1828
      %v1861 = vcvt.s32.f32 %v1829
      %v1862 = vcvt.s32.f32 %v1830
      %v1863 = vcvt.s32.f32 %v1831
      %v1864 = vcvt.s32.f32 %v1832
      %v1865 = vcvt.s32.f32 %v1833
      %v1866 = vcvt.s32.f32 %v1834
      %v1867 = vmul.f32 %v1077, %v1835
      %v1868 = vmul.f32 %v1079, %v1836
      %v1869 = vmul.f32 %v1081, %v1837
      %v1870 = vmul.f32 %v1083, %v1838
      %v1871 = vmul.f32 %v1085, %v1839
      %v1872 = vmul.f32 %v1087, %v1840
      %v1873 = vmul.f32 %v1089, %v1841
      %v1874 = vmul.f32 %v1091, %v1842
      %v1875 = vmul.f32 %v1093, %v1843
      %v1876 = vmul.f32 %v1095, %v1844
      %v1877 = vmul.f32 %v1097, %v1845
      %v1878 = vmul.f32 %v1099, %v1846
      %v1879 = vmul.f32 %v1101, %v1847
      %v1880 = vmul.f32 %v1103, %v1848
      %v1881 = vmul.f32 %v1105, %v1849
      %v1882 = vmul.f32 %v1107, %v1850
      %v1883 = vmul.f32 %v1109, %v1851
      %v1884 = vmul.f32 %v1111, %v1852
      %v1885 = vmul.f32 %v1113, %v1853
      %v1886 = vmul.f32 %v1115, %v1854
      %v1887 = vmul.f32 %v1117, %v1855
      %v1888 = vmul.f32 %v1119, %v1856
      %v1889 = vmul.f32 %v1121, %v1857
      %v1890 = vmul.f32 %v1123, %v1858
      %v1891 = vmul.f32 %v1125, %v1859
      %v1892 = vmul.f32 %v1127, %v1860
      %v1893 = vmul.f32 %v1129, %v1861
      %v1894 = vmul.f32 %v1130, %v1862
      %v1895 = vmul.f32 %v1068, %v1863
      %v1896 = vmul.f32 %v1162, %v1864
      %v1897 = vmul.f32 %v1073, %v1865
      %v1898 = vmul.f32 %v1075, %v1866
      %1931 = vrot.lane.b32.xlu0 %v1033, 64
      %v1932 = vpop.permute.xlu0 %1931
      %1933 = vrot.lane.b32.xlu0 %v1034, 64
      %v1934 = vpop.permute.xlu0 %1933
      %1935 = vrot.lane.b32.xlu0 %v1035, 64
      %v1936 = vpop.permute.xlu0 %1935
      %1937 = vrot.lane.b32.xlu0 %v1036, 64
      %v1938 = vpop.permute.xlu0 %1937
      %1939 = vrot.lane.b32.xlu0 %v1037, 64
      %v1940 = vpop.permute.xlu0 %1939
      %1941 = vrot.lane.b32.xlu0 %v1038, 64
      %v1942 = vpop.permute.xlu0 %1941
      %1943 = vrot.lane.b32.xlu0 %v1039, 64
      %v1944 = vpop.permute.xlu0 %1943
      %1945 = vrot.lane.b32.xlu0 %v1040, 64
      %v1946 = vpop.permute.xlu0 %1945
      %1947 = vrot.lane.b32.xlu0 %v1041, 64
      %v1948 = vpop.permute.xlu0 %1947
      %1949 = vrot.lane.b32.xlu0 %v1042, 64
      %v1950 = vpop.permute.xlu0 %1949
      %1951 = vrot.lane.b32.xlu0 %v1043, 64
      %v1952 = vpop.permute.xlu0 %1951
      %1953 = vrot.lane.b32.xlu0 %v1044, 64
      %v1954 = vpop.permute.xlu0 %1953
      %1955 = vrot.lane.b32.xlu0 %v1045, 64
      %v1956 = vpop.permute.xlu0 %1955
      %1957 = vrot.lane.b32.xlu0 %v1046, 64
      %v1958 = vpop.permute.xlu0 %1957
      %1959 = vrot.lane.b32.xlu0 %v1047, 64
      %v1960 = vpop.permute.xlu0 %1959
      %1961 = vrot.lane.b32.xlu0 %v1048, 64
      %v1962 = vpop.permute.xlu0 %1961
      %1963 = vrot.lane.b32.xlu0 %v1049, 64
      %v1964 = vpop.permute.xlu0 %1963
      %1965 = vrot.lane.b32.xlu0 %v1050, 64
      %v1966 = vpop.permute.xlu0 %1965
      %1967 = vrot.lane.b32.xlu0 %v1051, 64
      %v1968 = vpop.permute.xlu0 %1967
      %1969 = vrot.lane.b32.xlu0 %v1052, 64
      %v1970 = vpop.permute.xlu0 %1969
      %1971 = vrot.lane.b32.xlu0 %v1053, 64
      %v1972 = vpop.permute.xlu0 %1971
      %1973 = vrot.lane.b32.xlu0 %v1054, 64
      %v1974 = vpop.permute.xlu0 %1973
      %1975 = vrot.lane.b32.xlu0 %v1055, 64
      %v1976 = vpop.permute.xlu0 %1975
      %1977 = vrot.lane.b32.xlu0 %v1056, 64
      %v1978 = vpop.permute.xlu0 %1977
      %1979 = vrot.lane.b32.xlu0 %v1057, 64
      %v1980 = vpop.permute.xlu0 %1979
      %1981 = vrot.lane.b32.xlu0 %v1058, 64
      %v1982 = vpop.permute.xlu0 %1981
      %1983 = vrot.lane.b32.xlu0 %v1059, 64
      %v1984 = vpop.permute.xlu0 %1983
      %1985 = vrot.lane.b32.xlu0 %v1060, 64
      %v1986 = vpop.permute.xlu0 %1985
      %1987 = vrot.lane.b32.xlu0 %v1061, 64
      %v1988 = vpop.permute.xlu0 %1987
      %1989 = vrot.lane.b32.xlu0 %v1062, 64
      %v1990 = vpop.permute.xlu0 %1989
      %1991 = vrot.lane.b32.xlu0 %v1063, 64
      %v1992 = vpop.permute.xlu0 %1991
      %1993 = vrot.lane.b32.xlu0 %v1064, 64
      %v1994 = vpop.permute.xlu0 %1993
      %2059 = vrot.lane.b32.xlu0 %v1387, 64
      %v2060 = vpop.permute.xlu0 %2059
      %2061 = vrot.lane.b32.xlu0 %v1388, 64
      %v2062 = vpop.permute.xlu0 %2061
      %2063 = vrot.lane.b32.xlu0 %v1389, 64
      %v2064 = vpop.permute.xlu0 %2063
      %2065 = vrot.lane.b32.xlu0 %v1390, 64
      %v2066 = vpop.permute.xlu0 %2065
      %2067 = vrot.lane.b32.xlu0 %v1391, 64
      %v2068 = vpop.permute.xlu0 %2067
      %2069 = vrot.lane.b32.xlu0 %v1392, 64
      %v2070 = vpop.permute.xlu0 %2069
      %2071 = vrot.lane.b32.xlu0 %v1393, 64
      %v2072 = vpop.permute.xlu0 %2071
      %2073 = vrot.lane.b32.xlu0 %v1394, 64
      %v2074 = vpop.permute.xlu0 %2073
      %2075 = vrot.lane.b32.xlu0 %v1395, 64
      %v2076 = vpop.permute.xlu0 %2075
      %2077 = vrot.lane.b32.xlu0 %v1396, 64
      %v2078 = vpop.permute.xlu0 %2077
      %2079 = vrot.lane.b32.xlu0 %v1397, 64
      %v2080 = vpop.permute.xlu0 %2079
      %2081 = vrot.lane.b32.xlu0 %v1398, 64
      %v2082 = vpop.permute.xlu0 %2081
      %2083 = vrot.lane.b32.xlu0 %v1399, 64
      %v2084 = vpop.permute.xlu0 %2083
      %2085 = vrot.lane.b32.xlu0 %v1400, 64
      %v2086 = vpop.permute.xlu0 %2085
      %2087 = vrot.lane.b32.xlu0 %v1401, 64
      %v2088 = vpop.permute.xlu0 %2087
      %2089 = vrot.lane.b32.xlu0 %v1402, 64
      %v2090 = vpop.permute.xlu0 %2089
      %2091 = vrot.lane.b32.xlu0 %v1403, 64
      %v2092 = vpop.permute.xlu0 %2091
      %2093 = vrot.lane.b32.xlu0 %v1404, 64
      %v2094 = vpop.permute.xlu0 %2093
      %2095 = vrot.lane.b32.xlu0 %v1405, 64
      %v2096 = vpop.permute.xlu0 %2095
      %2097 = vrot.lane.b32.xlu0 %v1406, 64
      %v2098 = vpop.permute.xlu0 %2097
      %2099 = vrot.lane.b32.xlu0 %v1407, 64
      %v2100 = vpop.permute.xlu0 %2099
      %2101 = vrot.lane.b32.xlu0 %v1408, 64
      %v2102 = vpop.permute.xlu0 %2101
      %2103 = vrot.lane.b32.xlu0 %v1409, 64
      %v2104 = vpop.permute.xlu0 %2103
      %2105 = vrot.lane.b32.xlu0 %v1410, 64
      %v2106 = vpop.permute.xlu0 %2105
      %2107 = vrot.lane.b32.xlu0 %v1411, 64
      %v2108 = vpop.permute.xlu0 %2107
      %2109 = vrot.lane.b32.xlu0 %v1412, 64
      %v2110 = vpop.permute.xlu0 %2109
      %2111 = vrot.lane.b32.xlu0 %v1413, 64
      %v2112 = vpop.permute.xlu0 %2111
      %2113 = vrot.lane.b32.xlu0 %v1414, 64
      %v2114 = vpop.permute.xlu0 %2113
      %2115 = vrot.lane.b32.xlu0 %v1415, 64
      %v2116 = vpop.permute.xlu0 %2115
      %2117 = vrot.lane.b32.xlu0 %v1416, 64
      %v2118 = vpop.permute.xlu0 %2117
      %2119 = vrot.lane.b32.xlu0 %v1417, 64
      %v2120 = vpop.permute.xlu0 %2119
      %2121 = vrot.lane.b32.xlu0 %v1418, 64
      %v2122 = vpop.permute.xlu0 %2121
      %2187 = vrot.lane.b32.xlu0 %v1483, 64
      %v2188 = vpop.permute.xlu0 %2187
      %2189 = vrot.lane.b32.xlu0 %v1484, 64
      %v2190 = vpop.permute.xlu0 %2189
      %2191 = vrot.lane.b32.xlu0 %v1485, 64
      %v2192 = vpop.permute.xlu0 %2191
      %2193 = vrot.lane.b32.xlu0 %v1486, 64
      %v2194 = vpop.permute.xlu0 %2193
      %2195 = vrot.lane.b32.xlu0 %v1487, 64
      %v2196 = vpop.permute.xlu0 %2195
      %2197 = vrot.lane.b32.xlu0 %v1488, 64
      %v2198 = vpop.permute.xlu0 %2197
      %2199 = vrot.lane.b32.xlu0 %v1489, 64
      %v2200 = vpop.permute.xlu0 %2199
      %2201 = vrot.lane.b32.xlu0 %v1490, 64
      %v2202 = vpop.permute.xlu0 %2201
      %2203 = vrot.lane.b32.xlu0 %v1491, 64
      %v2204 = vpop.permute.xlu0 %2203
      %2205 = vrot.lane.b32.xlu0 %v1492, 64
      %v2206 = vpop.permute.xlu0 %2205
      %2207 = vrot.lane.b32.xlu0 %v1493, 64
      %v2208 = vpop.permute.xlu0 %2207
      %2209 = vrot.lane.b32.xlu0 %v1494, 64
      %v2210 = vpop.permute.xlu0 %2209
      %2211 = vrot.lane.b32.xlu0 %v1495, 64
      %v2212 = vpop.permute.xlu0 %2211
      %2213 = vrot.lane.b32.xlu0 %v1496, 64
      %v2214 = vpop.permute.xlu0 %2213
      %2215 = vrot.lane.b32.xlu0 %v1497, 64
      %v2216 = vpop.permute.xlu0 %2215
      %2217 = vrot.lane.b32.xlu0 %v1498, 64
      %v2218 = vpop.permute.xlu0 %2217
      %2219 = vrot.lane.b32.xlu0 %v1499, 64
      %v2220 = vpop.permute.xlu0 %2219
      %2221 = vrot.lane.b32.xlu0 %v1500, 64
      %v2222 = vpop.permute.xlu0 %2221
      %2223 = vrot.lane.b32.xlu0 %v1501, 64
      %v2224 = vpop.permute.xlu0 %2223
      %2225 = vrot.lane.b32.xlu0 %v1502, 64
      %v2226 = vpop.permute.xlu0 %2225
      %2227 = vrot.lane.b32.xlu0 %v1503, 64
      %v2228 = vpop.permute.xlu0 %2227
      %2229 = vrot.lane.b32.xlu0 %v1504, 64
      %v2230 = vpop.permute.xlu0 %2229
      %2231 = vrot.lane.b32.xlu0 %v1505, 64
      %v2232 = vpop.permute.xlu0 %2231
      %2233 = vrot.lane.b32.xlu0 %v1506, 64
      %v2234 = vpop.permute.xlu0 %2233
      %2235 = vrot.lane.b32.xlu0 %v1507, 64
      %v2236 = vpop.permute.xlu0 %2235
      %2237 = vrot.lane.b32.xlu0 %v1508, 64
      %v2238 = vpop.permute.xlu0 %2237
      %2239 = vrot.lane.b32.xlu0 %v1509, 64
      %v2240 = vpop.permute.xlu0 %2239
      %2241 = vrot.lane.b32.xlu0 %v1510, 64
      %v2242 = vpop.permute.xlu0 %2241
      %2243 = vrot.lane.b32.xlu0 %v1511, 64
      %v2244 = vpop.permute.xlu0 %2243
      %2245 = vrot.lane.b32.xlu0 %v1512, 64
      %v2246 = vpop.permute.xlu0 %2245
      %2247 = vrot.lane.b32.xlu0 %v1513, 64
      %v2248 = vpop.permute.xlu0 %2247
      %2249 = vrot.lane.b32.xlu0 %v1514, 64
      %v2250 = vpop.permute.xlu0 %2249
      %2315 = vrot.lane.b32.xlu0 %v1739, 64
      %v2316 = vpop.permute.xlu0 %2315
      %2317 = vrot.lane.b32.xlu0 %v1740, 64
      %v2318 = vpop.permute.xlu0 %2317
      %2319 = vrot.lane.b32.xlu0 %v1741, 64
      %v2320 = vpop.permute.xlu0 %2319
      %2321 = vrot.lane.b32.xlu0 %v1742, 64
      %v2322 = vpop.permute.xlu0 %2321
      %2323 = vrot.lane.b32.xlu0 %v1743, 64
      %v2324 = vpop.permute.xlu0 %2323
      %2325 = vrot.lane.b32.xlu0 %v1744, 64
      %v2326 = vpop.permute.xlu0 %2325
      %2327 = vrot.lane.b32.xlu0 %v1745, 64
      %v2328 = vpop.permute.xlu0 %2327
      %2329 = vrot.lane.b32.xlu0 %v1746, 64
      %v2330 = vpop.permute.xlu0 %2329
      %2331 = vrot.lane.b32.xlu0 %v1747, 64
      %v2332 = vpop.permute.xlu0 %2331
      %2333 = vrot.lane.b32.xlu0 %v1748, 64
      %v2334 = vpop.permute.xlu0 %2333
      %2335 = vrot.lane.b32.xlu0 %v1749, 64
      %v2336 = vpop.permute.xlu0 %2335
      %2337 = vrot.lane.b32.xlu0 %v1750, 64
      %v2338 = vpop.permute.xlu0 %2337
      %2339 = vrot.lane.b32.xlu0 %v1751, 64
      %v2340 = vpop.permute.xlu0 %2339
      %2341 = vrot.lane.b32.xlu0 %v1752, 64
      %v2342 = vpop.permute.xlu0 %2341
      %2343 = vrot.lane.b32.xlu0 %v1753, 64
      %v2344 = vpop.permute.xlu0 %2343
      %2345 = vrot.lane.b32.xlu0 %v1754, 64
      %v2346 = vpop.permute.xlu0 %2345
      %2347 = vrot.lane.b32.xlu0 %v1755, 64
      %v2348 = vpop.permute.xlu0 %2347
      %2349 = vrot.lane.b32.xlu0 %v1756, 64
      %v2350 = vpop.permute.xlu0 %2349
      %2351 = vrot.lane.b32.xlu0 %v1757, 64
      %v2352 = vpop.permute.xlu0 %2351
      %2353 = vrot.lane.b32.xlu0 %v1758, 64
      %v2354 = vpop.permute.xlu0 %2353
      %2355 = vrot.lane.b32.xlu0 %v1759, 64
      %v2356 = vpop.permute.xlu0 %2355
      %2357 = vrot.lane.b32.xlu0 %v1760, 64
      %v2358 = vpop.permute.xlu0 %2357
      %2359 = vrot.lane.b32.xlu0 %v1761, 64
      %v2360 = vpop.permute.xlu0 %2359
      %2361 = vrot.lane.b32.xlu0 %v1762, 64
      %v2362 = vpop.permute.xlu0 %2361
      %2363 = vrot.lane.b32.xlu0 %v1763, 64
      %v2364 = vpop.permute.xlu0 %2363
      %2365 = vrot.lane.b32.xlu0 %v1764, 64
      %v2366 = vpop.permute.xlu0 %2365
      %2367 = vrot.lane.b32.xlu0 %v1765, 64
      %v2368 = vpop.permute.xlu0 %2367
      %2369 = vrot.lane.b32.xlu0 %v1766, 64
      %v2370 = vpop.permute.xlu0 %2369
      %2371 = vrot.lane.b32.xlu0 %v1767, 64
      %v2372 = vpop.permute.xlu0 %2371
      %2373 = vrot.lane.b32.xlu0 %v1768, 64
      %v2374 = vpop.permute.xlu0 %2373
      %2375 = vrot.lane.b32.xlu0 %v1769, 64
      %v2376 = vpop.permute.xlu0 %2375
      %2377 = vrot.lane.b32.xlu0 %v1770, 64
      %v2378 = vpop.permute.xlu0 %2377
      %vm2411 = vcmask 523264
      %v2412 = vsel %vm2411, %v937, %v1932
      %v2413 = vsel %vm2411, %v938, %v1934
      %v2414 = vsel %vm2411, %v939, %v1936
      %v2415 = vsel %vm2411, %v940, %v1938
      %v2416 = vsel %vm2411, %v941, %v1940
      %v2417 = vsel %vm2411, %v942, %v1942
      %v2418 = vsel %vm2411, %v943, %v1944
      %v2419 = vsel %vm2411, %v944, %v1946
      %v2420 = vsel %vm2411, %v945, %v1948
      %v2421 = vsel %vm2411, %v946, %v1950
      %v2422 = vsel %vm2411, %v947, %v1952
      %v2423 = vsel %vm2411, %v948, %v1954
      %v2424 = vsel %vm2411, %v949, %v1956
      %v2425 = vsel %vm2411, %v950, %v1958
      %v2426 = vsel %vm2411, %v951, %v1960
      %v2427 = vsel %vm2411, %v952, %v1962
      %v2428 = vsel %vm2411, %v953, %v1964
      %v2429 = vsel %vm2411, %v954, %v1966
      %v2430 = vsel %vm2411, %v955, %v1968
      %v2431 = vsel %vm2411, %v956, %v1970
      %v2432 = vsel %vm2411, %v957, %v1972
      %v2433 = vsel %vm2411, %v958, %v1974
      %v2434 = vsel %vm2411, %v959, %v1976
      %v2435 = vsel %vm2411, %v960, %v1978
      %v2436 = vsel %vm2411, %v961, %v1980
      %v2437 = vsel %vm2411, %v962, %v1982
      %v2438 = vsel %vm2411, %v963, %v1984
      %v2439 = vsel %vm2411, %v964, %v1986
      %v2440 = vsel %vm2411, %v965, %v1988
      %v2441 = vsel %vm2411, %v966, %v1990
      %v2442 = vsel %vm2411, %v967, %v1992
      %v2443 = vsel %vm2411, %v968, %v1994
      %v2444 = vsel %vm2411, %v1291, %v2060
      %v2445 = vsel %vm2411, %v1292, %v2062
      %v2446 = vsel %vm2411, %v1293, %v2064
      %v2447 = vsel %vm2411, %v1294, %v2066
      %v2448 = vsel %vm2411, %v1295, %v2068
      %v2449 = vsel %vm2411, %v1296, %v2070
      %v2450 = vsel %vm2411, %v1297, %v2072
      %v2451 = vsel %vm2411, %v1298, %v2074
      %v2452 = vsel %vm2411, %v1299, %v2076
      %v2453 = vsel %vm2411, %v1300, %v2078
      %v2454 = vsel %vm2411, %v1301, %v2080
      %v2455 = vsel %vm2411, %v1302, %v2082
      %v2456 = vsel %vm2411, %v1303, %v2084
      %v2457 = vsel %vm2411, %v1304, %v2086
      %v2458 = vsel %vm2411, %v1305, %v2088
      %v2459 = vsel %vm2411, %v1306, %v2090
      %v2460 = vsel %vm2411, %v1307, %v2092
      %v2461 = vsel %vm2411, %v1308, %v2094
      %v2462 = vsel %vm2411, %v1309, %v2096
      %v2463 = vsel %vm2411, %v1310, %v2098
      %v2464 = vsel %vm2411, %v1311, %v2100
      %v2465 = vsel %vm2411, %v1312, %v2102
      %v2466 = vsel %vm2411, %v1313, %v2104
      %v2467 = vsel %vm2411, %v1314, %v2106
      %v2468 = vsel %vm2411, %v1315, %v2108
      %v2469 = vsel %vm2411, %v1316, %v2110
      %v2470 = vsel %vm2411, %v1317, %v2112
      %v2471 = vsel %vm2411, %v1318, %v2114
      %v2472 = vsel %vm2411, %v1319, %v2116
      %v2473 = vsel %vm2411, %v1320, %v2118
      %v2474 = vsel %vm2411, %v1321, %v2120
      %v2475 = vsel %vm2411, %v1322, %v2122
      %v2476 = vsel %vm2411, %v198, %v2188
      %v2477 = vsel %vm2411, %v199, %v2190
      %v2478 = vsel %vm2411, %v200, %v2192
      %v2479 = vsel %vm2411, %v201, %v2194
      %v2480 = vsel %vm2411, %v202, %v2196
      %v2481 = vsel %vm2411, %v203, %v2198
      %v2482 = vsel %vm2411, %v204, %v2200
      %v2483 = vsel %vm2411, %v205, %v2202
      %v2484 = vsel %vm2411, %v206, %v2204
      %v2485 = vsel %vm2411, %v207, %v2206
      %v2486 = vsel %vm2411, %v208, %v2208
      %v2487 = vsel %vm2411, %v209, %v2210
      %v2488 = vsel %vm2411, %v210, %v2212
      %v2489 = vsel %vm2411, %v211, %v2214
      %v2490 = vsel %vm2411, %v212, %v2216
      %v2491 = vsel %vm2411, %v213, %v2218
      %v2492 = vsel %vm2411, %v214, %v2220
      %v2493 = vsel %vm2411, %v215, %v2222
      %v2494 = vsel %vm2411, %v216, %v2224
      %v2495 = vsel %vm2411, %v217, %v2226
      %v2496 = vsel %vm2411, %v218, %v2228
      %v2497 = vsel %vm2411, %v219, %v2230
      %v2498 = vsel %vm2411, %v220, %v2232
      %v2499 = vsel %vm2411, %v221, %v2234
      %v2500 = vsel %vm2411, %v222, %v2236
      %v2501 = vsel %vm2411, %v223, %v2238
      %v2502 = vsel %vm2411, %v224, %v2240
      %v2503 = vsel %vm2411, %v225, %v2242
      %v2504 = vsel %vm2411, %v226, %v2244
      %v2505 = vsel %vm2411, %v227, %v2246
      %v2506 = vsel %vm2411, %v228, %v2248
      %v2507 = vsel %vm2411, %v229, %v2250
      %v2508 = vsel %vm2411, %v1643, %v2316
      %v2509 = vsel %vm2411, %v1644, %v2318
      %v2510 = vsel %vm2411, %v1645, %v2320
      %v2511 = vsel %vm2411, %v1646, %v2322
      %v2512 = vsel %vm2411, %v1647, %v2324
      %v2513 = vsel %vm2411, %v1648, %v2326
      %v2514 = vsel %vm2411, %v1649, %v2328
      %v2515 = vsel %vm2411, %v1650, %v2330
      %v2516 = vsel %vm2411, %v1651, %v2332
      %v2517 = vsel %vm2411, %v1652, %v2334
      %v2518 = vsel %vm2411, %v1653, %v2336
      %v2519 = vsel %vm2411, %v1654, %v2338
      %v2520 = vsel %vm2411, %v1655, %v2340
      %v2521 = vsel %vm2411, %v1656, %v2342
      %v2522 = vsel %vm2411, %v1657, %v2344
      %v2523 = vsel %vm2411, %v1658, %v2346
      %v2524 = vsel %vm2411, %v1659, %v2348
      %v2525 = vsel %vm2411, %v1660, %v2350
      %v2526 = vsel %vm2411, %v1661, %v2352
      %v2527 = vsel %vm2411, %v1662, %v2354
      %v2528 = vsel %vm2411, %v1663, %v2356
      %v2529 = vsel %vm2411, %v1664, %v2358
      %v2530 = vsel %vm2411, %v1665, %v2360
      %v2531 = vsel %vm2411, %v1666, %v2362
      %v2532 = vsel %vm2411, %v1667, %v2364
      %v2533 = vsel %vm2411, %v1668, %v2366
      %v2534 = vsel %vm2411, %v1669, %v2368
      %v2535 = vsel %vm2411, %v1670, %v2370
      %v2536 = vsel %vm2411, %v1671, %v2372
      %v2537 = vsel %vm2411, %v1672, %v2374
      %v2538 = vsel %vm2411, %v1673, %v2376
      %v2539 = vsel %vm2411, %v1674, %v2378
      %v2540 = vld [vmem:[%s1] sm:$0xff]
      %v2541 = vld [vmem:[%s1 + $0x8] sm:$0xff]
      %v2542 = vld [vmem:[%s1 + $0x10] sm:$0xff]
      %v2543 = vld [vmem:[%s1 + $0x18] sm:$0xff]
      %v2544 = vld [vmem:[%s1 + $0x20] sm:$0xff]
      %v2545 = vld [vmem:[%s1 + $0x28] sm:$0xff]
      %v2546 = vld [vmem:[%s1 + $0x30] sm:$0xff]
      %v2547 = vld [vmem:[%s1 + $0x38] sm:$0xff]
      %v2548 = vld [vmem:[%s1 + $0x40] sm:$0xff]
      %v2549 = vld [vmem:[%s1 + $0x48] sm:$0xff]
      %v2550 = vld [vmem:[%s1 + $0x50] sm:$0xff]
      %v2551 = vld [vmem:[%s1 + $0x58] sm:$0xff]
      %v2552 = vld [vmem:[%s1 + $0x60] sm:$0xff]
      %v2553 = vld [vmem:[%s1 + $0x68] sm:$0xff]
      %v2554 = vld [vmem:[%s1 + $0x70] sm:$0xff]
      %v2555 = vld [vmem:[%s1 + $0x78] sm:$0xff]
      %v2556 = vld [vmem:[%s1 + $0x80] sm:$0xff]
      %v2557 = vld [vmem:[%s1 + $0x88] sm:$0xff]
      %v2558 = vld [vmem:[%s1 + $0x90] sm:$0xff]
      %v2559 = vld [vmem:[%s1 + $0x98] sm:$0xff]
      %v2560 = vld [vmem:[%s1 + $0xa0] sm:$0xff]
      %v2561 = vld [vmem:[%s1 + $0xa8] sm:$0xff]
      %v2562 = vld [vmem:[%s1 + $0xb0] sm:$0xff]
      %v2563 = vld [vmem:[%s1 + $0xb8] sm:$0xff]
      %v2564 = vld [vmem:[%s1 + $0xc0] sm:$0xff]
      %v2565 = vld [vmem:[%s1 + $0xc8] sm:$0xff]
      %v2566 = vld [vmem:[%s1 + $0xd0] sm:$0xff]
      %v2567 = vld [vmem:[%s1 + $0xd8] sm:$0xff]
      %v2568 = vld [vmem:[%s1 + $0xe0] sm:$0xff]
      %v2569 = vld [vmem:[%s1 + $0xe8] sm:$0xff]
      %v2570 = vld [vmem:[%s1 + $0xf0] sm:$0xff]
      %v2571 = vld [vmem:[%s1 + $0xf8] sm:$0xff]
      %v2572 = vld [vmem:[%s1 + $0x100] sm:$0xff]
      %v2573 = vld [vmem:[%s1 + $0x108] sm:$0xff]
      %v2574 = vld [vmem:[%s1 + $0x110] sm:$0xff]
      %v2575 = vld [vmem:[%s1 + $0x118] sm:$0xff]
      %v2576 = vld [vmem:[%s1 + $0x120] sm:$0xff]
      %v2577 = vld [vmem:[%s1 + $0x128] sm:$0xff]
      %v2578 = vld [vmem:[%s1 + $0x130] sm:$0xff]
      %v2579 = vld [vmem:[%s1 + $0x138] sm:$0xff]
      %v2580 = vld [vmem:[%s1 + $0x140] sm:$0xff]
      %v2581 = vld [vmem:[%s1 + $0x148] sm:$0xff]
      %v2582 = vld [vmem:[%s1 + $0x150] sm:$0xff]
      %v2583 = vld [vmem:[%s1 + $0x158] sm:$0xff]
      %v2584 = vld [vmem:[%s1 + $0x160] sm:$0xff]
      %v2585 = vld [vmem:[%s1 + $0x168] sm:$0xff]
      %v2586 = vld [vmem:[%s1 + $0x170] sm:$0xff]
      %v2587 = vld [vmem:[%s1 + $0x178] sm:$0xff]
      %v2588 = vld [vmem:[%s1 + $0x180] sm:$0xff]
      %v2589 = vld [vmem:[%s1 + $0x188] sm:$0xff]
      %v2590 = vld [vmem:[%s1 + $0x190] sm:$0xff]
      %v2591 = vld [vmem:[%s1 + $0x198] sm:$0xff]
      %v2592 = vld [vmem:[%s1 + $0x1a0] sm:$0xff]
      %v2593 = vld [vmem:[%s1 + $0x1a8] sm:$0xff]
      %v2594 = vld [vmem:[%s1 + $0x1b0] sm:$0xff]
      %v2595 = vld [vmem:[%s1 + $0x1b8] sm:$0xff]
      %v2596 = vld [vmem:[%s1 + $0x1c0] sm:$0xff]
      %v2597 = vld [vmem:[%s1 + $0x1c8] sm:$0xff]
      %v2598 = vld [vmem:[%s1 + $0x1d0] sm:$0xff]
      %v2599 = vld [vmem:[%s1 + $0x1d8] sm:$0xff]
      %v2600 = vld [vmem:[%s1 + $0x1e0] sm:$0xff]
      %v2601 = vld [vmem:[%s1 + $0x1e8] sm:$0xff]
      %v2602 = vld [vmem:[%s1 + $0x1f0] sm:$0xff]
      %v2603 = vld [vmem:[%s1 + $0x1f8] sm:$0xff]
      %v2604 = vld [vmem:[%s1 + $0x200] sm:$0xff]
      %v2605 = vld [vmem:[%s1 + $0x208] sm:$0xff]
      %v2606 = vld [vmem:[%s1 + $0x210] sm:$0xff]
      %v2607 = vld [vmem:[%s1 + $0x218] sm:$0xff]
      %v2608 = vld [vmem:[%s1 + $0x220] sm:$0xff]
      %v2609 = vld [vmem:[%s1 + $0x228] sm:$0xff]
      %v2610 = vld [vmem:[%s1 + $0x230] sm:$0xff]
      %v2611 = vld [vmem:[%s1 + $0x238] sm:$0xff]
      %v2612 = vld [vmem:[%s2] sm:$0x1]
      %v2614 = vlaneseq
      %v2615 = vshrl.u32 %v2614, 7
      %v2616 = vsub.s32 0, %v2615
      %v2617 = vrot.slane %v2612, %v2616
      %v2620 = vsel %vm2411, %v1867, 0
      %v2623 = vsel %vm2411, %v1868, 0
      %v2626 = vsel %vm2411, %v1869, 0
      %v2629 = vsel %vm2411, %v1870, 0
      %v2632 = vsel %vm2411, %v1871, 0
      %v2635 = vsel %vm2411, %v1872, 0
      %v2638 = vsel %vm2411, %v1873, 0
      %v2641 = vsel %vm2411, %v1874, 0
      %v2644 = vsel %vm2411, %v1875, 0
      %v2647 = vsel %vm2411, %v1876, 0
      %v2650 = vsel %vm2411, %v1877, 0
      %v2653 = vsel %vm2411, %v1878, 0
      %v2656 = vsel %vm2411, %v1879, 0
      %v2659 = vsel %vm2411, %v1880, 0
      %v2662 = vsel %vm2411, %v1881, 0
      %v2665 = vsel %vm2411, %v1882, 0
      %v2668 = vsel %vm2411, %v1883, 0
      %v2671 = vsel %vm2411, %v1884, 0
      %v2674 = vsel %vm2411, %v1885, 0
      %v2677 = vsel %vm2411, %v1886, 0
      %v2680 = vsel %vm2411, %v1887, 0
      %v2683 = vsel %vm2411, %v1888, 0
      %v2686 = vsel %vm2411, %v1889, 0
      %v2689 = vsel %vm2411, %v1890, 0
      %v2692 = vsel %vm2411, %v1891, 0
      %v2695 = vsel %vm2411, %v1892, 0
      %v2698 = vsel %vm2411, %v1893, 0
      %v2701 = vsel %vm2411, %v1894, 0
      %v2704 = vsel %vm2411, %v1895, 0
      %v2707 = vsel %vm2411, %v1896, 0
      %v2710 = vsel %vm2411, %v1897, 0
      %v2713 = vsel %vm2411, %v1898, 0
      %2715 = vmatprep.subr.mxu0 0.0
      %2716 = vmatpush1.msra.mxu0 %v2540
      %2717 = vmatprep.subr.mxu0 0.0
      %2718 = vmatpush1.msra.mxu0 %v2541
      %2719 = vmatprep.subr.mxu0 0.0
      %2720 = vmatpush1.msra.mxu0 %v2542
      %2721 = vmatprep.subr.mxu0 0.0
      %2722 = vmatpush1.msra.mxu0 %v2543
      %2723 = vmatprep.subr.mxu0 0.0
      %2724 = vmatpush1.msra.mxu0 %v2544
      %2725 = vmatprep.subr.mxu0 0.0
      %2726 = vmatpush1.msra.mxu0 %v2545
      %2727 = vmatprep.subr.mxu0 0.0
      %2728 = vmatpush1.msra.mxu0 %v2546
      %2729 = vmatprep.subr.mxu0 0.0
      %2730 = vmatpush1.msra.mxu0 %v2547
      %2731 = vmatprep.subr.mxu0 0.0
      %2732 = vmatpush1.msra.mxu0 %v2548
      %2733 = vmatprep.subr.mxu0 0.0
      %2734 = vmatpush1.msra.mxu0 %v2549
      %2735 = vmatprep.subr.mxu0 0.0
      %2736 = vmatpush1.msra.mxu0 %v2550
      %2737 = vmatprep.subr.mxu0 0.0
      %2738 = vmatpush1.msra.mxu0 %v2551
      %2739 = vmatprep.subr.mxu0 0.0
      %2740 = vmatpush1.msra.mxu0 %v2552
      %2741 = vmatprep.subr.mxu0 0.0
      %2742 = vmatpush1.msra.mxu0 %v2553
      %2743 = vmatprep.subr.mxu0 0.0
      %2744 = vmatpush1.msra.mxu0 %v2554
      %2745 = vmatprep.subr.mxu0 0.0
      %2746 = vmatpush1.msra.mxu0 %v2555
      %2747 = vmatprep.subr.mxu0 0.0
      %2748 = vmatpush1.msra.mxu0 %v2556
      %2749 = vmatprep.subr.mxu0 0.0
      %2750 = vmatpush1.msra.mxu0 %v2557
      %2751 = vmatprep.subr.mxu0 0.0
      %2752 = vmatpush1.msra.mxu0 %v2558
      %2753 = vmatprep.subr.mxu0 0.0
      %2754 = vmatpush1.msra.mxu0 %v2559
      %2755 = vmatprep.subr.mxu0 0.0
      %2756 = vmatpush1.msra.mxu0 %v2560
      %2757 = vmatprep.subr.mxu0 0.0
      %2758 = vmatpush1.msra.mxu0 %v2561
      %2759 = vmatprep.subr.mxu0 0.0
      %2760 = vmatpush1.msra.mxu0 %v2562
      %2761 = vmatprep.subr.mxu0 0.0
      %2762 = vmatpush1.msra.mxu0 %v2563
      %2763 = vmatprep.subr.mxu0 0.0
      %2764 = vmatpush1.msra.mxu0 %v2564
      %2765 = vmatprep.subr.mxu0 0.0
      %2766 = vmatpush1.msra.mxu0 %v2565
      %2767 = vmatprep.subr.mxu0 0.0
      %2768 = vmatpush1.msra.mxu0 %v2566
      %2769 = vmatprep.subr.mxu0 0.0
      %2770 = vmatpush1.msra.mxu0 %v2567
      %2771 = vmatprep.subr.mxu0 0.0
      %2772 = vmatpush1.msra.mxu0 %v2568
      %2773 = vmatprep.subr.mxu0 0.0
      %2774 = vmatpush1.msra.mxu0 %v2569
      %2775 = vmatprep.subr.mxu0 0.0
      %2776 = vmatpush1.msra.mxu0 %v2570
      %2777 = vmatprep.subr.mxu0 0.0
      %2778 = vmatpush1.msra.mxu0 %v2571
      %2779 = vmatprep.mubr.f32.mxu0 %v2444
      %2780 = vmatmul.mubr.f32.gmra.mrb[0].mxu0 %v2412
      %v2781 = vpop.f32.mrb[0].mxu0
      %v2782 = vadd.f32 %v2617, %v2781
      %v2783 = vpop.f32.mrb[0].mxu0
      %2784 = vmatprep.mubr.f32.mxu0 %v2445
      %2785 = vmatmul.mubr.f32.gmra.mrb[0].mxu0 %v2413
      %v2786 = vpop.f32.mrb[0].mxu0
      %v2787 = vadd.f32 %v2617, %v2786
      %v2788 = vpop.f32.mrb[0].mxu0
      %2789 = vmatprep.mubr.f32.mxu0 %v2446
      %2790 = vmatmul.mubr.f32.gmra.mrb[0].mxu0 %v2414
      %v2791 = vpop.f32.mrb[0].mxu0
      %v2792 = vadd.f32 %v2617, %v2791
      %v2793 = vpop.f32.mrb[0].mxu0
      %2794 = vmatprep.mubr.f32.mxu0 %v2447
      %2795 = vmatmul.mubr.f32.gmra.mrb[0].mxu0 %v2415
      %v2796 = vpop.f32.mrb[0].mxu0
      %v2797 = vadd.f32 %v2617, %v2796
      %v2798 = vpop.f32.mrb[0].mxu0
      %2799 = vmatprep.mubr.f32.mxu0 %v2448
      %2800 = vmatmul.mubr.f32.gmra.mrb[0].mxu0 %v2416
      %v2801 = vpop.f32.mrb[0].mxu0
      %v2802 = vadd.f32 %v2617, %v2801
      %v2803 = vpop.f32.mrb[0].mxu0
      %2804 = vmatprep.mubr.f32.mxu0 %v2449
      %2805 = vmatmul.mubr.f32.gmra.mrb[0].mxu0 %v2417
      %v2806 = vpop.f32.mrb[0].mxu0
      %v2807 = vadd.f32 %v2617, %v2806
      %v2808 = vpop.f32.mrb[0].mxu0
      %2809 = vmatprep.mubr.f32.mxu0 %v2450
      %2810 = vmatmul.mubr.f32.gmra.mrb[0].mxu0 %v2418
      %v2811 = vpop.f32.mrb[0].mxu0
      %v2812 = vadd.f32 %v2617, %v2811
      %v2813 = vpop.f32.mrb[0].mxu0
      %2814 = vmatprep.mubr.f32.mxu0 %v2451
      %2815 = vmatmul.mubr.f32.gmra.mrb[0].mxu0 %v2419
      %v2816 = vpop.f32.mrb[0].mxu0
      %v2817 = vadd.f32 %v2617, %v2816
      %v2818 = vpop.f32.mrb[0].mxu0
      %2819 = vmatprep.mubr.f32.mxu0 %v2452
      %2820 = vmatmul.mubr.f32.gmra.mrb[0].mxu0 %v2420
      %v2821 = vpop.f32.mrb[0].mxu0
      %v2822 = vadd.f32 %v2617, %v2821
      %v2823 = vpop.f32.mrb[0].mxu0
      %2824 = vmatprep.mubr.f32.mxu0 %v2453
      %2825 = vmatmul.mubr.f32.gmra.mrb[0].mxu0 %v2421
      %v2826 = vpop.f32.mrb[0].mxu0
      %v2827 = vadd.f32 %v2617, %v2826
      %v2828 = vpop.f32.mrb[0].mxu0
      %2829 = vmatprep.mubr.f32.mxu0 %v2454
      %2830 = vmatmul.mubr.f32.gmra.mrb[0].mxu0 %v2422
      %v2831 = vpop.f32.mrb[0].mxu0
      %v2832 = vadd.f32 %v2617, %v2831
      %v2833 = vpop.f32.mrb[0].mxu0
      %2834 = vmatprep.mubr.f32.mxu0 %v2455
      %2835 = vmatmul.mubr.f32.gmra.mrb[0].mxu0 %v2423
      %v2836 = vpop.f32.mrb[0].mxu0
      %v2837 = vadd.f32 %v2617, %v2836
      %v2838 = vpop.f32.mrb[0].mxu0
      %2839 = vmatprep.mubr.f32.mxu0 %v2456
      %2840 = vmatmul.mubr.f32.gmra.mrb[0].mxu0 %v2424
      %v2841 = vpop.f32.mrb[0].mxu0
      %v2842 = vadd.f32 %v2617, %v2841
      %v2843 = vpop.f32.mrb[0].mxu0
      %2844 = vmatprep.mubr.f32.mxu0 %v2457
      %2845 = vmatmul.mubr.f32.gmra.mrb[0].mxu0 %v2425
      %v2846 = vpop.f32.mrb[0].mxu0
      %v2847 = vadd.f32 %v2617, %v2846
      %v2848 = vpop.f32.mrb[0].mxu0
      %2849 = vmatprep.mubr.f32.mxu0 %v2458
      %2850 = vmatmul.mubr.f32.gmra.mrb[0].mxu0 %v2426
      %v2851 = vpop.f32.mrb[0].mxu0
      %v2852 = vadd.f32 %v2617, %v2851
      %v2853 = vpop.f32.mrb[0].mxu0
      %2854 = vmatprep.mubr.f32.mxu0 %v2459
      %2855 = vmatmul.mubr.f32.gmra.mrb[0].mxu0 %v2427
      %v2856 = vpop.f32.mrb[0].mxu0
      %v2857 = vadd.f32 %v2617, %v2856
      %v2858 = vpop.f32.mrb[0].mxu0
      %2859 = vmatprep.mubr.f32.mxu0 %v2460
      %2860 = vmatmul.mubr.f32.gmra.mrb[0].mxu0 %v2428
      %v2861 = vpop.f32.mrb[0].mxu0
      %v2862 = vadd.f32 %v2617, %v2861
      %v2863 = vpop.f32.mrb[0].mxu0
      %2864 = vmatprep.mubr.f32.mxu0 %v2461
      %2865 = vmatmul.mubr.f32.gmra.mrb[0].mxu0 %v2429
      %v2866 = vpop.f32.mrb[0].mxu0
      %v2867 = vadd.f32 %v2617, %v2866
      %v2868 = vpop.f32.mrb[0].mxu0
      %2869 = vmatprep.mubr.f32.mxu0 %v2462
      %2870 = vmatmul.mubr.f32.gmra.mrb[0].mxu0 %v2430
      %v2871 = vpop.f32.mrb[0].mxu0
      %v2872 = vadd.f32 %v2617, %v2871
      %v2873 = vpop.f32.mrb[0].mxu0
      %2874 = vmatprep.mubr.f32.mxu0 %v2463
      %2875 = vmatmul.mubr.f32.gmra.mrb[0].mxu0 %v2431
      %v2876 = vpop.f32.mrb[0].mxu0
      %v2877 = vadd.f32 %v2617, %v2876
      %v2878 = vpop.f32.mrb[0].mxu0
      %2879 = vmatprep.mubr.f32.mxu0 %v2464
      %2880 = vmatmul.mubr.f32.gmra.mrb[0].mxu0 %v2432
      %v2881 = vpop.f32.mrb[0].mxu0
      %v2882 = vadd.f32 %v2617, %v2881
      %v2883 = vpop.f32.mrb[0].mxu0
      %2884 = vmatprep.mubr.f32.mxu0 %v2465
      %2885 = vmatmul.mubr.f32.gmra.mrb[0].mxu0 %v2433
      %v2886 = vpop.f32.mrb[0].mxu0
      %v2887 = vadd.f32 %v2617, %v2886
      %v2888 = vpop.f32.mrb[0].mxu0
      %2889 = vmatprep.mubr.f32.mxu0 %v2466
      %2890 = vmatmul.mubr.f32.gmra.mrb[0].mxu0 %v2434
      %v2891 = vpop.f32.mrb[0].mxu0
      %v2892 = vadd.f32 %v2617, %v2891
      %v2893 = vpop.f32.mrb[0].mxu0
      %2894 = vmatprep.mubr.f32.mxu0 %v2467
      %2895 = vmatmul.mubr.f32.gmra.mrb[0].mxu0 %v2435
      %v2896 = vpop.f32.mrb[0].mxu0
      %v2897 = vadd.f32 %v2617, %v2896
      %v2898 = vpop.f32.mrb[0].mxu0
      %2899 = vmatprep.mubr.f32.mxu0 %v2468
      %2900 = vmatmul.mubr.f32.gmra.mrb[0].mxu0 %v2436
      %v2901 = vpop.f32.mrb[0].mxu0
      %v2902 = vadd.f32 %v2617, %v2901
      %v2903 = vpop.f32.mrb[0].mxu0
      %2904 = vmatprep.mubr.f32.mxu0 %v2469
      %2905 = vmatmul.mubr.f32.gmra.mrb[0].mxu0 %v2437
      %v2906 = vpop.f32.mrb[0].mxu0
      %v2907 = vadd.f32 %v2617, %v2906
      %v2908 = vpop.f32.mrb[0].mxu0
      %2909 = vmatprep.mubr.f32.mxu0 %v2470
      %2910 = vmatmul.mubr.f32.gmra.mrb[0].mxu0 %v2438
      %v2911 = vpop.f32.mrb[0].mxu0
      %v2912 = vadd.f32 %v2617, %v2911
      %v2913 = vpop.f32.mrb[0].mxu0
      %2914 = vmatprep.mubr.f32.mxu0 %v2471
      %2915 = vmatmul.mubr.f32.gmra.mrb[0].mxu0 %v2439
      %v2916 = vpop.f32.mrb[0].mxu0
      %v2917 = vadd.f32 %v2617, %v2916
      %v2918 = vpop.f32.mrb[0].mxu0
      %2919 = vmatprep.mubr.f32.mxu0 %v2472
      %2920 = vmatmul.mubr.f32.gmra.mrb[0].mxu0 %v2440
      %v2921 = vpop.f32.mrb[0].mxu0
      %v2922 = vadd.f32 %v2617, %v2921
      %v2923 = vpop.f32.mrb[0].mxu0
      %2924 = vmatprep.mubr.f32.mxu0 %v2473
      %2925 = vmatmul.mubr.f32.gmra.mrb[0].mxu0 %v2441
      %v2926 = vpop.f32.mrb[0].mxu0
      %v2927 = vadd.f32 %v2617, %v2926
      %v2928 = vpop.f32.mrb[0].mxu0
      %2929 = vmatprep.mubr.f32.mxu0 %v2474
      %2930 = vmatmul.mubr.f32.gmra.mrb[0].mxu0 %v2442
      %v2931 = vpop.f32.mrb[0].mxu0
      %v2932 = vadd.f32 %v2617, %v2931
      %v2933 = vpop.f32.mrb[0].mxu0
      %2934 = vmatprep.mubr.f32.mxu0 %v2475
      %2935 = vmatmul.mubr.f32.gmra.mrb[0].mxu0 %v2443
      %v2936 = vpop.f32.mrb[0].mxu0
      %v2937 = vadd.f32 %v2617, %v2936
      %v2938 = vpop.f32.mrb[0].mxu0
      %2939 = vdwg.mxu0
      %2940 = vmatprep.subr.mxu0 0.0
      %2941 = vmatpush1.msra.mxu0 %v2572
      %2942 = vmatprep.subr.mxu0 0.0
      %2943 = vmatpush1.msra.mxu0 %v2573
      %2944 = vmatprep.subr.mxu0 0.0
      %2945 = vmatpush1.msra.mxu0 %v2574
      %2946 = vmatprep.subr.mxu0 0.0
      %2947 = vmatpush1.msra.mxu0 %v2575
      %2948 = vmatprep.subr.mxu0 0.0
      %2949 = vmatpush1.msra.mxu0 %v2576
      %2950 = vmatprep.subr.mxu0 0.0
      %2951 = vmatpush1.msra.mxu0 %v2577
      %2952 = vmatprep.subr.mxu0 0.0
      %2953 = vmatpush1.msra.mxu0 %v2578
      %2954 = vmatprep.subr.mxu0 0.0
      %2955 = vmatpush1.msra.mxu0 %v2579
      %2956 = vmatprep.subr.mxu0 0.0
      %2957 = vmatpush1.msra.mxu0 %v2580
      %2958 = vmatprep.subr.mxu0 0.0
      %2959 = vmatpush1.msra.mxu0 %v2581
      %2960 = vmatprep.subr.mxu0 0.0
      %2961 = vmatpush1.msra.mxu0 %v2582
      %2962 = vmatprep.subr.mxu0 0.0
      %2963 = vmatpush1.msra.mxu0 %v2583
      %2964 = vmatprep.subr.mxu0 0.0
      %2965 = vmatpush1.msra.mxu0 %v2584
      %2966 = vmatprep.subr.mxu0 0.0
      %2967 = vmatpush1.msra.mxu0 %v2585
      %2968 = vmatprep.subr.mxu0 0.0
      %2969 = vmatpush1.msra.mxu0 %v2586
      %2970 = vmatprep.subr.mxu0 0.0
      %2971 = vmatpush1.msra.mxu0 %v2587
      %2972 = vmatprep.subr.mxu0 0.0
      %2973 = vmatpush1.msra.mxu0 %v2588
      %2974 = vmatprep.subr.mxu0 0.0
      %2975 = vmatpush1.msra.mxu0 %v2589
      %2976 = vmatprep.subr.mxu0 0.0
      %2977 = vmatpush1.msra.mxu0 %v2590
      %2978 = vmatprep.subr.mxu0 0.0
      %2979 = vmatpush1.msra.mxu0 %v2591
      %2980 = vmatprep.subr.mxu0 0.0
      %2981 = vmatpush1.msra.mxu0 %v2592
      %2982 = vmatprep.subr.mxu0 0.0
      %2983 = vmatpush1.msra.mxu0 %v2593
      %2984 = vmatprep.subr.mxu0 0.0
      %2985 = vmatpush1.msra.mxu0 %v2594
      %2986 = vmatprep.subr.mxu0 0.0
      %2987 = vmatpush1.msra.mxu0 %v2595
      %2988 = vmatprep.subr.mxu0 0.0
      %2989 = vmatpush1.msra.mxu0 %v2596
      %2990 = vmatprep.subr.mxu0 0.0
      %2991 = vmatpush1.msra.mxu0 %v2597
      %2992 = vmatprep.subr.mxu0 0.0
      %2993 = vmatpush1.msra.mxu0 %v2598
      %2994 = vmatprep.subr.mxu0 0.0
      %2995 = vmatpush1.msra.mxu0 %v2599
      %2996 = vmatprep.subr.mxu0 0.0
      %2997 = vmatpush1.msra.mxu0 %v2600
      %2998 = vmatprep.subr.mxu0 0.0
      %2999 = vmatpush1.msra.mxu0 %v2601
      %3000 = vmatprep.subr.mxu0 0.0
      %3001 = vmatpush1.msra.mxu0 %v2602
      %3002 = vmatprep.subr.mxu0 0.0
      %3003 = vmatpush1.msra.mxu0 %v2603
      %3004 = vmatprep.mubr.f32.mxu0 %v2508
      %3005 = vmatmul.mubr.f32.gmra.mrb[0].mxu0 %v2476
      %v3006 = vpop.f32.mrb[0].mxu0
      %v3007 = vadd.f32 %v2782, %v3006
      %v3008 = vpop.f32.mrb[0].mxu0
      %3009 = vmatprep.mubr.f32.mxu0 %v2509
      %3010 = vmatmul.mubr.f32.gmra.mrb[0].mxu0 %v2477
      %v3011 = vpop.f32.mrb[0].mxu0
      %v3012 = vadd.f32 %v2787, %v3011
      %v3013 = vpop.f32.mrb[0].mxu0
      %3014 = vmatprep.mubr.f32.mxu0 %v2510
      %3015 = vmatmul.mubr.f32.gmra.mrb[0].mxu0 %v2478
      %v3016 = vpop.f32.mrb[0].mxu0
      %v3017 = vadd.f32 %v2792, %v3016
      %v3018 = vpop.f32.mrb[0].mxu0
      %3019 = vmatprep.mubr.f32.mxu0 %v2511
      %3020 = vmatmul.mubr.f32.gmra.mrb[0].mxu0 %v2479
      %v3021 = vpop.f32.mrb[0].mxu0
      %v3022 = vadd.f32 %v2797, %v3021
      %v3023 = vpop.f32.mrb[0].mxu0
      %3024 = vmatprep.mubr.f32.mxu0 %v2512
      %3025 = vmatmul.mubr.f32.gmra.mrb[0].mxu0 %v2480
      %v3026 = vpop.f32.mrb[0].mxu0
      %v3027 = vadd.f32 %v2802, %v3026
      %v3028 = vpop.f32.mrb[0].mxu0
      %3029 = vmatprep.mubr.f32.mxu0 %v2513
      %3030 = vmatmul.mubr.f32.gmra.mrb[0].mxu0 %v2481
      %v3031 = vpop.f32.mrb[0].mxu0
      %v3032 = vadd.f32 %v2807, %v3031
      %v3033 = vpop.f32.mrb[0].mxu0
      %3034 = vmatprep.mubr.f32.mxu0 %v2514
      %3035 = vmatmul.mubr.f32.gmra.mrb[0].mxu0 %v2482
      %v3036 = vpop.f32.mrb[0].mxu0
      %v3037 = vadd.f32 %v2812, %v3036
      %v3038 = vpop.f32.mrb[0].mxu0
      %3039 = vmatprep.mubr.f32.mxu0 %v2515
      %3040 = vmatmul.mubr.f32.gmra.mrb[0].mxu0 %v2483
      %v3041 = vpop.f32.mrb[0].mxu0
      %v3042 = vadd.f32 %v2817, %v3041
      %v3043 = vpop.f32.mrb[0].mxu0
      %3044 = vmatprep.mubr.f32.mxu0 %v2516
      %3045 = vmatmul.mubr.f32.gmra.mrb[0].mxu0 %v2484
      %v3046 = vpop.f32.mrb[0].mxu0
      %v3047 = vadd.f32 %v2822, %v3046
      %v3048 = vpop.f32.mrb[0].mxu0
      %3049 = vmatprep.mubr.f32.mxu0 %v2517
      %3050 = vmatmul.mubr.f32.gmra.mrb[0].mxu0 %v2485
      %v3051 = vpop.f32.mrb[0].mxu0
      %v3052 = vadd.f32 %v2827, %v3051
      %v3053 = vpop.f32.mrb[0].mxu0
      %3054 = vmatprep.mubr.f32.mxu0 %v2518
      %3055 = vmatmul.mubr.f32.gmra.mrb[0].mxu0 %v2486
      %v3056 = vpop.f32.mrb[0].mxu0
      %v3057 = vadd.f32 %v2832, %v3056
      %v3058 = vpop.f32.mrb[0].mxu0
      %3059 = vmatprep.mubr.f32.mxu0 %v2519
      %3060 = vmatmul.mubr.f32.gmra.mrb[0].mxu0 %v2487
      %v3061 = vpop.f32.mrb[0].mxu0
      %v3062 = vadd.f32 %v2837, %v3061
      %v3063 = vpop.f32.mrb[0].mxu0
      %3064 = vmatprep.mubr.f32.mxu0 %v2520
      %3065 = vmatmul.mubr.f32.gmra.mrb[0].mxu0 %v2488
      %v3066 = vpop.f32.mrb[0].mxu0
      %v3067 = vadd.f32 %v2842, %v3066
      %v3068 = vpop.f32.mrb[0].mxu0
      %3069 = vmatprep.mubr.f32.mxu0 %v2521
      %3070 = vmatmul.mubr.f32.gmra.mrb[0].mxu0 %v2489
      %v3071 = vpop.f32.mrb[0].mxu0
      %v3072 = vadd.f32 %v2847, %v3071
      %v3073 = vpop.f32.mrb[0].mxu0
      %3074 = vmatprep.mubr.f32.mxu0 %v2522
      %3075 = vmatmul.mubr.f32.gmra.mrb[0].mxu0 %v2490
      %v3076 = vpop.f32.mrb[0].mxu0
      %v3077 = vadd.f32 %v2852, %v3076
      %v3078 = vpop.f32.mrb[0].mxu0
      %3079 = vmatprep.mubr.f32.mxu0 %v2523
      %3080 = vmatmul.mubr.f32.gmra.mrb[0].mxu0 %v2491
      %v3081 = vpop.f32.mrb[0].mxu0
      %v3082 = vadd.f32 %v2857, %v3081
      %v3083 = vpop.f32.mrb[0].mxu0
      %3084 = vmatprep.mubr.f32.mxu0 %v2524
      %3085 = vmatmul.mubr.f32.gmra.mrb[0].mxu0 %v2492
      %v3086 = vpop.f32.mrb[0].mxu0
      %v3087 = vadd.f32 %v2862, %v3086
      %v3088 = vpop.f32.mrb[0].mxu0
      %3089 = vmatprep.mubr.f32.mxu0 %v2525
      %3090 = vmatmul.mubr.f32.gmra.mrb[0].mxu0 %v2493
      %v3091 = vpop.f32.mrb[0].mxu0
      %v3092 = vadd.f32 %v2867, %v3091
      %v3093 = vpop.f32.mrb[0].mxu0
      %3094 = vmatprep.mubr.f32.mxu0 %v2526
      %3095 = vmatmul.mubr.f32.gmra.mrb[0].mxu0 %v2494
      %v3096 = vpop.f32.mrb[0].mxu0
      %v3097 = vadd.f32 %v2872, %v3096
      %v3098 = vpop.f32.mrb[0].mxu0
      %3099 = vmatprep.mubr.f32.mxu0 %v2527
      %3100 = vmatmul.mubr.f32.gmra.mrb[0].mxu0 %v2495
      %v3101 = vpop.f32.mrb[0].mxu0
      %v3102 = vadd.f32 %v2877, %v3101
      %v3103 = vpop.f32.mrb[0].mxu0
      %3104 = vmatprep.mubr.f32.mxu0 %v2528
      %3105 = vmatmul.mubr.f32.gmra.mrb[0].mxu0 %v2496
      %v3106 = vpop.f32.mrb[0].mxu0
      %v3107 = vadd.f32 %v2882, %v3106
      %v3108 = vpop.f32.mrb[0].mxu0
      %3109 = vmatprep.mubr.f32.mxu0 %v2529
      %3110 = vmatmul.mubr.f32.gmra.mrb[0].mxu0 %v2497
      %v3111 = vpop.f32.mrb[0].mxu0
      %v3112 = vadd.f32 %v2887, %v3111
      %v3113 = vpop.f32.mrb[0].mxu0
      %3114 = vmatprep.mubr.f32.mxu0 %v2530
      %3115 = vmatmul.mubr.f32.gmra.mrb[0].mxu0 %v2498
      %v3116 = vpop.f32.mrb[0].mxu0
      %v3117 = vadd.f32 %v2892, %v3116
      %v3118 = vpop.f32.mrb[0].mxu0
      %3119 = vmatprep.mubr.f32.mxu0 %v2531
      %3120 = vmatmul.mubr.f32.gmra.mrb[0].mxu0 %v2499
      %v3121 = vpop.f32.mrb[0].mxu0
      %v3122 = vadd.f32 %v2897, %v3121
      %v3123 = vpop.f32.mrb[0].mxu0
      %3124 = vmatprep.mubr.f32.mxu0 %v2532
      %3125 = vmatmul.mubr.f32.gmra.mrb[0].mxu0 %v2500
      %v3126 = vpop.f32.mrb[0].mxu0
      %v3127 = vadd.f32 %v2902, %v3126
      %v3128 = vpop.f32.mrb[0].mxu0
      %3129 = vmatprep.mubr.f32.mxu0 %v2533
      %3130 = vmatmul.mubr.f32.gmra.mrb[0].mxu0 %v2501
      %v3131 = vpop.f32.mrb[0].mxu0
      %v3132 = vadd.f32 %v2907, %v3131
      %v3133 = vpop.f32.mrb[0].mxu0
      %3134 = vmatprep.mubr.f32.mxu0 %v2534
      %3135 = vmatmul.mubr.f32.gmra.mrb[0].mxu0 %v2502
      %v3136 = vpop.f32.mrb[0].mxu0
      %v3137 = vadd.f32 %v2912, %v3136
      %v3138 = vpop.f32.mrb[0].mxu0
      %3139 = vmatprep.mubr.f32.mxu0 %v2535
      %3140 = vmatmul.mubr.f32.gmra.mrb[0].mxu0 %v2503
      %v3141 = vpop.f32.mrb[0].mxu0
      %v3142 = vadd.f32 %v2917, %v3141
      %v3143 = vpop.f32.mrb[0].mxu0
      %3144 = vmatprep.mubr.f32.mxu0 %v2536
      %3145 = vmatmul.mubr.f32.gmra.mrb[0].mxu0 %v2504
      %v3146 = vpop.f32.mrb[0].mxu0
      %v3147 = vadd.f32 %v2922, %v3146
      %v3148 = vpop.f32.mrb[0].mxu0
      %3149 = vmatprep.mubr.f32.mxu0 %v2537
      %3150 = vmatmul.mubr.f32.gmra.mrb[0].mxu0 %v2505
      %v3151 = vpop.f32.mrb[0].mxu0
      %v3152 = vadd.f32 %v2927, %v3151
      %v3153 = vpop.f32.mrb[0].mxu0
      %3154 = vmatprep.mubr.f32.mxu0 %v2538
      %3155 = vmatmul.mubr.f32.gmra.mrb[0].mxu0 %v2506
      %v3156 = vpop.f32.mrb[0].mxu0
      %v3157 = vadd.f32 %v2932, %v3156
      %v3158 = vpop.f32.mrb[0].mxu0
      %3159 = vmatprep.mubr.f32.mxu0 %v2539
      %3160 = vmatmul.mubr.f32.gmra.mrb[0].mxu0 %v2507
      %v3161 = vpop.f32.mrb[0].mxu0
      %v3162 = vadd.f32 %v2937, %v3161
      %v3163 = vpop.f32.mrb[0].mxu0
      %3164 = vdwg.mxu0
      %3165 = vmatprep.subr.mxu0 0.0
      %3166 = vmatpush1.msra.mxu0 %v2604
      %3167 = vmatprep.subr.mxu0 0.0
      %3168 = vmatpush1.msra.mxu0 %v2605
      %3169 = vmatprep.subr.mxu0 0.0
      %3170 = vmatpush1.msra.mxu0 %v2606
      %3171 = vmatprep.subr.mxu0 0.0
      %3172 = vmatpush1.msra.mxu0 %v2607
      %3173 = vmatprep.subr.mxu0 0.0
      %3174 = vmatpush1.msra.mxu0 %v2608
      %3175 = vmatprep.subr.mxu0 0.0
      %3176 = vmatpush1.msra.mxu0 %v2609
      %3177 = vmatprep.subr.mxu0 0.0
      %3178 = vmatpush1.msra.mxu0 %v2610
      %3179 = vmatprep.subr.mxu0 0.0
      %3180 = vmatpush1.msra.mxu0 %v2611
      %3181 = vmatprep.subr.mxu0 0.0
      %3182 = vmatpush1.msra.mxu0 0.0
      %3183 = vmatprep.subr.mxu0 0.0
      %3184 = vmatpush1.msra.mxu0 0.0
      %3185 = vmatprep.subr.mxu0 0.0
      %3186 = vmatpush1.msra.mxu0 0.0
      %3187 = vmatprep.subr.mxu0 0.0
      %3188 = vmatpush1.msra.mxu0 0.0
      %3189 = vmatprep.subr.mxu0 0.0
      %3190 = vmatpush1.msra.mxu0 0.0
      %3191 = vmatprep.subr.mxu0 0.0
      %3192 = vmatpush1.msra.mxu0 0.0
      %3193 = vmatprep.subr.mxu0 0.0
      %3194 = vmatpush1.msra.mxu0 0.0
      %3195 = vmatprep.subr.mxu0 0.0
      %3196 = vmatpush1.msra.mxu0 0.0
      %3197 = vmatprep.subr.mxu0 0.0
      %3198 = vmatpush1.msra.mxu0 0.0
      %3199 = vmatprep.subr.mxu0 0.0
      %3200 = vmatpush1.msra.mxu0 0.0
      %3201 = vmatprep.subr.mxu0 0.0
      %3202 = vmatpush1.msra.mxu0 0.0
      %3203 = vmatprep.subr.mxu0 0.0
      %3204 = vmatpush1.msra.mxu0 0.0
      %3205 = vmatprep.subr.mxu0 0.0
      %3206 = vmatpush1.msra.mxu0 0.0
      %3207 = vmatprep.subr.mxu0 0.0
      %3208 = vmatpush1.msra.mxu0 0.0
      %3209 = vmatprep.subr.mxu0 0.0
      %3210 = vmatpush1.msra.mxu0 0.0
      %3211 = vmatprep.subr.mxu0 0.0
      %3212 = vmatpush1.msra.mxu0 0.0
      %3213 = vmatprep.subr.mxu0 0.0
      %3214 = vmatpush1.msra.mxu0 0.0
      %3215 = vmatprep.subr.mxu0 0.0
      %3216 = vmatpush1.msra.mxu0 0.0
      %3217 = vmatprep.subr.mxu0 0.0
      %3218 = vmatpush1.msra.mxu0 0.0
      %3219 = vmatprep.subr.mxu0 0.0
      %3220 = vmatpush1.msra.mxu0 0.0
      %3221 = vmatprep.subr.mxu0 0.0
      %3222 = vmatpush1.msra.mxu0 0.0
      %3223 = vmatprep.subr.mxu0 0.0
      %3224 = vmatpush1.msra.mxu0 0.0
      %3225 = vmatprep.subr.mxu0 0.0
      %3226 = vmatpush1.msra.mxu0 0.0
      %3227 = vmatprep.subr.mxu0 0.0
      %3228 = vmatpush1.msra.mxu0 0.0
      %3229 = vmatprep.mubr.f32.mxu0 0.0
      %3230 = vmatmul.mubr.f32.gmra.mrb[0].mxu0 %v2620
      %v3231 = vpop.f32.mrb[0].mxu0
      %v3232 = vadd.f32 %v3007, %v3231
      %v3233 = vpop.f32.mrb[0].mxu0
      %3234 = vmatprep.mubr.f32.mxu0 0.0
      %3235 = vmatmul.mubr.f32.gmra.mrb[0].mxu0 %v2623
      %v3236 = vpop.f32.mrb[0].mxu0
      %v3237 = vadd.f32 %v3012, %v3236
      %v3238 = vpop.f32.mrb[0].mxu0
      %3239 = vmatprep.mubr.f32.mxu0 0.0
      %3240 = vmatmul.mubr.f32.gmra.mrb[0].mxu0 %v2626
      %v3241 = vpop.f32.mrb[0].mxu0
      %v3242 = vadd.f32 %v3017, %v3241
      %v3243 = vpop.f32.mrb[0].mxu0
      %3244 = vmatprep.mubr.f32.mxu0 0.0
      %3245 = vmatmul.mubr.f32.gmra.mrb[0].mxu0 %v2629
      %v3246 = vpop.f32.mrb[0].mxu0
      %v3247 = vadd.f32 %v3022, %v3246
      %v3248 = vpop.f32.mrb[0].mxu0
      %3249 = vmatprep.mubr.f32.mxu0 0.0
      %3250 = vmatmul.mubr.f32.gmra.mrb[0].mxu0 %v2632
      %v3251 = vpop.f32.mrb[0].mxu0
      %v3252 = vadd.f32 %v3027, %v3251
      %v3253 = vpop.f32.mrb[0].mxu0
      %3254 = vmatprep.mubr.f32.mxu0 0.0
      %3255 = vmatmul.mubr.f32.gmra.mrb[0].mxu0 %v2635
      %v3256 = vpop.f32.mrb[0].mxu0
      %v3257 = vadd.f32 %v3032, %v3256
      %v3258 = vpop.f32.mrb[0].mxu0
      %3259 = vmatprep.mubr.f32.mxu0 0.0
      %3260 = vmatmul.mubr.f32.gmra.mrb[0].mxu0 %v2638
      %v3261 = vpop.f32.mrb[0].mxu0
      %v3262 = vadd.f32 %v3037, %v3261
      %v3263 = vpop.f32.mrb[0].mxu0
      %3264 = vmatprep.mubr.f32.mxu0 0.0
      %3265 = vmatmul.mubr.f32.gmra.mrb[0].mxu0 %v2641
      %v3266 = vpop.f32.mrb[0].mxu0
      %v3267 = vadd.f32 %v3042, %v3266
      %v3268 = vpop.f32.mrb[0].mxu0
      %3269 = vmatprep.mubr.f32.mxu0 0.0
      %3270 = vmatmul.mubr.f32.gmra.mrb[0].mxu0 %v2644
      %v3271 = vpop.f32.mrb[0].mxu0
      %v3272 = vadd.f32 %v3047, %v3271
      %v3273 = vpop.f32.mrb[0].mxu0
      %3274 = vmatprep.mubr.f32.mxu0 0.0
      %3275 = vmatmul.mubr.f32.gmra.mrb[0].mxu0 %v2647
      %v3276 = vpop.f32.mrb[0].mxu0
      %v3277 = vadd.f32 %v3052, %v3276
      %v3278 = vpop.f32.mrb[0].mxu0
      %3279 = vmatprep.mubr.f32.mxu0 0.0
      %3280 = vmatmul.mubr.f32.gmra.mrb[0].mxu0 %v2650
      %v3281 = vpop.f32.mrb[0].mxu0
      %v3282 = vadd.f32 %v3057, %v3281
      %v3283 = vpop.f32.mrb[0].mxu0
      %3284 = vmatprep.mubr.f32.mxu0 0.0
      %3285 = vmatmul.mubr.f32.gmra.mrb[0].mxu0 %v2653
      %v3286 = vpop.f32.mrb[0].mxu0
      %v3287 = vadd.f32 %v3062, %v3286
      %v3288 = vpop.f32.mrb[0].mxu0
      %3289 = vmatprep.mubr.f32.mxu0 0.0
      %3290 = vmatmul.mubr.f32.gmra.mrb[0].mxu0 %v2656
      %v3291 = vpop.f32.mrb[0].mxu0
      %v3292 = vadd.f32 %v3067, %v3291
      %v3293 = vpop.f32.mrb[0].mxu0
      %3294 = vmatprep.mubr.f32.mxu0 0.0
      %3295 = vmatmul.mubr.f32.gmra.mrb[0].mxu0 %v2659
      %v3296 = vpop.f32.mrb[0].mxu0
      %v3297 = vadd.f32 %v3072, %v3296
      %v3298 = vpop.f32.mrb[0].mxu0
      %3299 = vmatprep.mubr.f32.mxu0 0.0
      %3300 = vmatmul.mubr.f32.gmra.mrb[0].mxu0 %v2662
      %v3301 = vpop.f32.mrb[0].mxu0
      %v3302 = vadd.f32 %v3077, %v3301
      %v3303 = vpop.f32.mrb[0].mxu0
      %3304 = vmatprep.mubr.f32.mxu0 0.0
      %3305 = vmatmul.mubr.f32.gmra.mrb[0].mxu0 %v2665
      %v3306 = vpop.f32.mrb[0].mxu0
      %v3307 = vadd.f32 %v3082, %v3306
      %v3308 = vpop.f32.mrb[0].mxu0
      %3309 = vmatprep.mubr.f32.mxu0 0.0
      %3310 = vmatmul.mubr.f32.gmra.mrb[0].mxu0 %v2668
      %v3311 = vpop.f32.mrb[0].mxu0
      %v3312 = vadd.f32 %v3087, %v3311
      %v3313 = vpop.f32.mrb[0].mxu0
      %3314 = vmatprep.mubr.f32.mxu0 0.0
      %3315 = vmatmul.mubr.f32.gmra.mrb[0].mxu0 %v2671
      %v3316 = vpop.f32.mrb[0].mxu0
      %v3317 = vadd.f32 %v3092, %v3316
      %v3318 = vpop.f32.mrb[0].mxu0
      %3319 = vmatprep.mubr.f32.mxu0 0.0
      %3320 = vmatmul.mubr.f32.gmra.mrb[0].mxu0 %v2674
      %v3321 = vpop.f32.mrb[0].mxu0
      %v3322 = vadd.f32 %v3097, %v3321
      %v3323 = vpop.f32.mrb[0].mxu0
      %3324 = vmatprep.mubr.f32.mxu0 0.0
      %3325 = vmatmul.mubr.f32.gmra.mrb[0].mxu0 %v2677
      %v3326 = vpop.f32.mrb[0].mxu0
      %v3327 = vadd.f32 %v3102, %v3326
      %v3328 = vpop.f32.mrb[0].mxu0
      %3329 = vmatprep.mubr.f32.mxu0 0.0
      %3330 = vmatmul.mubr.f32.gmra.mrb[0].mxu0 %v2680
      %v3331 = vpop.f32.mrb[0].mxu0
      %v3332 = vadd.f32 %v3107, %v3331
      %v3333 = vpop.f32.mrb[0].mxu0
      %3334 = vmatprep.mubr.f32.mxu0 0.0
      %3335 = vmatmul.mubr.f32.gmra.mrb[0].mxu0 %v2683
      %v3336 = vpop.f32.mrb[0].mxu0
      %v3337 = vadd.f32 %v3112, %v3336
      %v3338 = vpop.f32.mrb[0].mxu0
      %3339 = vmatprep.mubr.f32.mxu0 0.0
      %3340 = vmatmul.mubr.f32.gmra.mrb[0].mxu0 %v2686
      %v3341 = vpop.f32.mrb[0].mxu0
      %v3342 = vadd.f32 %v3117, %v3341
      %v3343 = vpop.f32.mrb[0].mxu0
      %3344 = vmatprep.mubr.f32.mxu0 0.0
      %3345 = vmatmul.mubr.f32.gmra.mrb[0].mxu0 %v2689
      %v3346 = vpop.f32.mrb[0].mxu0
      %v3347 = vadd.f32 %v3122, %v3346
      %v3348 = vpop.f32.mrb[0].mxu0
      %3349 = vmatprep.mubr.f32.mxu0 0.0
      %3350 = vmatmul.mubr.f32.gmra.mrb[0].mxu0 %v2692
      %v3351 = vpop.f32.mrb[0].mxu0
      %v3352 = vadd.f32 %v3127, %v3351
      %v3353 = vpop.f32.mrb[0].mxu0
      %3354 = vmatprep.mubr.f32.mxu0 0.0
      %3355 = vmatmul.mubr.f32.gmra.mrb[0].mxu0 %v2695
      %v3356 = vpop.f32.mrb[0].mxu0
      %v3357 = vadd.f32 %v3132, %v3356
      %v3358 = vpop.f32.mrb[0].mxu0
      %3359 = vmatprep.mubr.f32.mxu0 0.0
      %3360 = vmatmul.mubr.f32.gmra.mrb[0].mxu0 %v2698
      %v3361 = vpop.f32.mrb[0].mxu0
      %v3362 = vadd.f32 %v3137, %v3361
      %v3363 = vpop.f32.mrb[0].mxu0
      %3364 = vmatprep.mubr.f32.mxu0 0.0
      %3365 = vmatmul.mubr.f32.gmra.mrb[0].mxu0 %v2701
      %v3366 = vpop.f32.mrb[0].mxu0
      %v3367 = vadd.f32 %v3142, %v3366
      %v3368 = vpop.f32.mrb[0].mxu0
      %3369 = vmatprep.mubr.f32.mxu0 0.0
      %3370 = vmatmul.mubr.f32.gmra.mrb[0].mxu0 %v2704
      %v3371 = vpop.f32.mrb[0].mxu0
      %v3372 = vadd.f32 %v3147, %v3371
      %v3373 = vpop.f32.mrb[0].mxu0
      %3374 = vmatprep.mubr.f32.mxu0 0.0
      %3375 = vmatmul.mubr.f32.gmra.mrb[0].mxu0 %v2707
      %v3376 = vpop.f32.mrb[0].mxu0
      %v3377 = vadd.f32 %v3152, %v3376
      %v3378 = vpop.f32.mrb[0].mxu0
      %3379 = vmatprep.mubr.f32.mxu0 0.0
      %3380 = vmatmul.mubr.f32.gmra.mrb[0].mxu0 %v2710
      %v3381 = vpop.f32.mrb[0].mxu0
      %v3382 = vadd.f32 %v3157, %v3381
      %v3383 = vpop.f32.mrb[0].mxu0
      %3384 = vmatprep.mubr.f32.mxu0 0.0
      %3385 = vmatmul.mubr.f32.gmra.mrb[0].mxu0 %v2713
      %v3386 = vpop.f32.mrb[0].mxu0
      %v3387 = vadd.f32 %v3162, %v3386
      %v3388 = vpop.f32.mrb[0].mxu0
      %3389 = vdwg.mxu0
      %v3390 = vld [vmem:[%s3] sm:$0x1]
      %v3391 = vlaneseq
      %v3392 = vshrl.u32 %v3391, 7
      %v3393 = vsub.s32 0, %v3392
      %v3394 = vrot.slane %v3390, %v3393
      %v3395 = vmul.f32 %v3232, %v3394
      %v3396 = vmul.f32 %v3237, %v3394
      %v3397 = vmul.f32 %v3242, %v3394
      %v3398 = vmul.f32 %v3247, %v3394
      %v3399 = vmul.f32 %v3252, %v3394
      %v3400 = vmul.f32 %v3257, %v3394
      %v3401 = vmul.f32 %v3262, %v3394
      %v3402 = vmul.f32 %v3267, %v3394
      %v3403 = vmul.f32 %v3272, %v3394
      %v3404 = vmul.f32 %v3277, %v3394
      %v3405 = vmul.f32 %v3282, %v3394
      %v3406 = vmul.f32 %v3287, %v3394
      %v3407 = vmul.f32 %v3292, %v3394
      %v3408 = vmul.f32 %v3297, %v3394
      %v3409 = vmul.f32 %v3302, %v3394
      %v3410 = vmul.f32 %v3307, %v3394
      %v3411 = vmul.f32 %v3312, %v3394
      %v3412 = vmul.f32 %v3317, %v3394
      %v3413 = vmul.f32 %v3322, %v3394
      %v3414 = vmul.f32 %v3327, %v3394
      %v3415 = vmul.f32 %v3332, %v3394
      %v3416 = vmul.f32 %v3337, %v3394
      %v3417 = vmul.f32 %v3342, %v3394
      %v3418 = vmul.f32 %v3347, %v3394
      %v3419 = vmul.f32 %v3352, %v3394
      %v3420 = vmul.f32 %v3357, %v3394
      %v3421 = vmul.f32 %v3362, %v3394
      %v3422 = vmul.f32 %v3367, %v3394
      %v3423 = vmul.f32 %v3372, %v3394
      %v3424 = vmul.f32 %v3377, %v3394
      %v3425 = vmul.f32 %v3382, %v3394
      %v3426 = vmul.f32 %v3387, %v3394
      %v3427 = vld [vmem:[%s3 + $0x1] sm:$0x1]
      %v3428 = vlaneseq
      %v3429 = vshrl.u32 %v3428, 7
      %v3430 = vsub.s32 0, %v3429
      %v3431 = vrot.slane %v3427, %v3430
      %v3432 = vadd.f32 %v3395, %v3431
      %v3433 = vadd.f32 %v3396, %v3431
      %v3434 = vadd.f32 %v3397, %v3431
      %v3435 = vadd.f32 %v3398, %v3431
      %v3436 = vadd.f32 %v3399, %v3431
      %v3437 = vadd.f32 %v3400, %v3431
      %v3438 = vadd.f32 %v3401, %v3431
      %v3439 = vadd.f32 %v3402, %v3431
      %v3440 = vadd.f32 %v3403, %v3431
      %v3441 = vadd.f32 %v3404, %v3431
      %v3442 = vadd.f32 %v3405, %v3431
      %v3443 = vadd.f32 %v3406, %v3431
      %v3444 = vadd.f32 %v3407, %v3431
      %v3445 = vadd.f32 %v3408, %v3431
      %v3446 = vadd.f32 %v3409, %v3431
      %v3447 = vadd.f32 %v3410, %v3431
      %v3448 = vadd.f32 %v3411, %v3431
      %v3449 = vadd.f32 %v3412, %v3431
      %v3450 = vadd.f32 %v3413, %v3431
      %v3451 = vadd.f32 %v3414, %v3431
      %v3452 = vadd.f32 %v3415, %v3431
      %v3453 = vadd.f32 %v3416, %v3431
      %v3454 = vadd.f32 %v3417, %v3431
      %v3455 = vadd.f32 %v3418, %v3431
      %v3456 = vadd.f32 %v3419, %v3431
      %v3457 = vadd.f32 %v3420, %v3431
      %v3458 = vadd.f32 %v3421, %v3431
      %v3459 = vadd.f32 %v3422, %v3431
      %v3460 = vadd.f32 %v3423, %v3431
      %v3461 = vadd.f32 %v3424, %v3431
      %v3462 = vadd.f32 %v3425, %v3431
      %v3463 = vadd.f32 %v3426, %v3431
      %vm3464 = vcmp.ge.f32.partialorder %v3432, 0.0
      %vm3465 = vcmp.ge.f32.partialorder %v3433, 0.0
      %vm3466 = vcmp.ge.f32.partialorder %v3434, 0.0
      %vm3467 = vcmp.ge.f32.partialorder %v3435, 0.0
      %vm3468 = vcmp.ge.f32.partialorder %v3436, 0.0
      %vm3469 = vcmp.ge.f32.partialorder %v3437, 0.0
      %vm3470 = vcmp.ge.f32.partialorder %v3438, 0.0
      %vm3471 = vcmp.ge.f32.partialorder %v3439, 0.0
      %vm3472 = vcmp.ge.f32.partialorder %v3440, 0.0
      %vm3473 = vcmp.ge.f32.partialorder %v3441, 0.0
      %vm3474 = vcmp.ge.f32.partialorder %v3442, 0.0
      %vm3475 = vcmp.ge.f32.partialorder %v3443, 0.0
      %vm3476 = vcmp.ge.f32.partialorder %v3444, 0.0
      %vm3477 = vcmp.ge.f32.partialorder %v3445, 0.0
      %vm3478 = vcmp.ge.f32.partialorder %v3446, 0.0
      %vm3479 = vcmp.ge.f32.partialorder %v3447, 0.0
      %vm3480 = vcmp.ge.f32.partialorder %v3448, 0.0
      %vm3481 = vcmp.ge.f32.partialorder %v3449, 0.0
      %vm3482 = vcmp.ge.f32.partialorder %v3450, 0.0
      %vm3483 = vcmp.ge.f32.partialorder %v3451, 0.0
      %vm3484 = vcmp.ge.f32.partialorder %v3452, 0.0
      %vm3485 = vcmp.ge.f32.partialorder %v3453, 0.0
      %vm3486 = vcmp.ge.f32.partialorder %v3454, 0.0
      %vm3487 = vcmp.ge.f32.partialorder %v3455, 0.0
      %vm3488 = vcmp.ge.f32.partialorder %v3456, 0.0
      %vm3489 = vcmp.ge.f32.partialorder %v3457, 0.0
      %vm3490 = vcmp.ge.f32.partialorder %v3458, 0.0
      %vm3491 = vcmp.ge.f32.partialorder %v3459, 0.0
      %vm3492 = vcmp.ge.f32.partialorder %v3460, 0.0
      %vm3493 = vcmp.ge.f32.partialorder %v3461, 0.0
      %vm3494 = vcmp.ge.f32.partialorder %v3462, 0.0
      %vm3495 = vcmp.ge.f32.partialorder %v3463, 0.0
      %v3496 = vmul.f32 %v3432, 0.01
      %v3497 = vmul.f32 %v3433, 0.01
      %v3498 = vmul.f32 %v3434, 0.01
      %v3499 = vmul.f32 %v3435, 0.01
      %v3500 = vmul.f32 %v3436, 0.01
      %v3501 = vmul.f32 %v3437, 0.01
      %v3502 = vmul.f32 %v3438, 0.01
      %v3503 = vmul.f32 %v3439, 0.01
      %v3504 = vmul.f32 %v3440, 0.01
      %v3505 = vmul.f32 %v3441, 0.01
      %v3506 = vmul.f32 %v3442, 0.01
      %v3507 = vmul.f32 %v3443, 0.01
      %v3508 = vmul.f32 %v3444, 0.01
      %v3509 = vmul.f32 %v3445, 0.01
      %v3510 = vmul.f32 %v3446, 0.01
      %v3511 = vmul.f32 %v3447, 0.01
      %v3512 = vmul.f32 %v3448, 0.01
      %v3513 = vmul.f32 %v3449, 0.01
      %v3514 = vmul.f32 %v3450, 0.01
      %v3515 = vmul.f32 %v3451, 0.01
      %v3516 = vmul.f32 %v3452, 0.01
      %v3517 = vmul.f32 %v3453, 0.01
      %v3518 = vmul.f32 %v3454, 0.01
      %v3519 = vmul.f32 %v3455, 0.01
      %v3520 = vmul.f32 %v3456, 0.01
      %v3521 = vmul.f32 %v3457, 0.01
      %v3522 = vmul.f32 %v3458, 0.01
      %v3523 = vmul.f32 %v3459, 0.01
      %v3524 = vmul.f32 %v3460, 0.01
      %v3525 = vmul.f32 %v3461, 0.01
      %v3526 = vmul.f32 %v3462, 0.01
      %v3527 = vmul.f32 %v3463, 0.01
      %v3528 = vsel %vm3464, %v3432, %v3496
      %v3529 = vsel %vm3465, %v3433, %v3497
      %v3530 = vsel %vm3466, %v3434, %v3498
      %v3531 = vsel %vm3467, %v3435, %v3499
      %v3532 = vsel %vm3468, %v3436, %v3500
      %v3533 = vsel %vm3469, %v3437, %v3501
      %v3534 = vsel %vm3470, %v3438, %v3502
      %v3535 = vsel %vm3471, %v3439, %v3503
      %v3536 = vsel %vm3472, %v3440, %v3504
      %v3537 = vsel %vm3473, %v3441, %v3505
      %v3538 = vsel %vm3474, %v3442, %v3506
      %v3539 = vsel %vm3475, %v3443, %v3507
      %v3540 = vsel %vm3476, %v3444, %v3508
      %v3541 = vsel %vm3477, %v3445, %v3509
      %v3542 = vsel %vm3478, %v3446, %v3510
      %v3543 = vsel %vm3479, %v3447, %v3511
      %v3544 = vsel %vm3480, %v3448, %v3512
      %v3545 = vsel %vm3481, %v3449, %v3513
      %v3546 = vsel %vm3482, %v3450, %v3514
      %v3547 = vsel %vm3483, %v3451, %v3515
      %v3548 = vsel %vm3484, %v3452, %v3516
      %v3549 = vsel %vm3485, %v3453, %v3517
      %v3550 = vsel %vm3486, %v3454, %v3518
      %v3551 = vsel %vm3487, %v3455, %v3519
      %v3552 = vsel %vm3488, %v3456, %v3520
      %v3553 = vsel %vm3489, %v3457, %v3521
      %v3554 = vsel %vm3490, %v3458, %v3522
      %v3555 = vsel %vm3491, %v3459, %v3523
      %v3556 = vsel %vm3492, %v3460, %v3524
      %v3557 = vsel %vm3493, %v3461, %v3525
      %v3558 = vsel %vm3494, %v3462, %v3526
      %v3559 = vsel %vm3495, %v3463, %v3527
      %3560 = vst [vmem:[%s197] sm:$0xff] %v3528
      %3561 = vst [vmem:[%s197 + $0x8] sm:$0xff] %v3529
      %3562 = vst [vmem:[%s197 + $0x10] sm:$0xff] %v3530
      %3563 = vst [vmem:[%s197 + $0x18] sm:$0xff] %v3531
      %3564 = vst [vmem:[%s197 + $0x20] sm:$0xff] %v3532
      %3565 = vst [vmem:[%s197 + $0x28] sm:$0xff] %v3533
      %3566 = vst [vmem:[%s197 + $0x30] sm:$0xff] %v3534
      %3567 = vst [vmem:[%s197 + $0x38] sm:$0xff] %v3535
      %3568 = vst [vmem:[%s197 + $0x40] sm:$0xff] %v3536
      %3569 = vst [vmem:[%s197 + $0x48] sm:$0xff] %v3537
      %3570 = vst [vmem:[%s197 + $0x50] sm:$0xff] %v3538
      %3571 = vst [vmem:[%s197 + $0x58] sm:$0xff] %v3539
      %3572 = vst [vmem:[%s197 + $0x60] sm:$0xff] %v3540
      %3573 = vst [vmem:[%s197 + $0x68] sm:$0xff] %v3541
      %3574 = vst [vmem:[%s197 + $0x70] sm:$0xff] %v3542
      %3575 = vst [vmem:[%s197 + $0x78] sm:$0xff] %v3543
      %3576 = vst [vmem:[%s197 + $0x80] sm:$0xff] %v3544
      %3577 = vst [vmem:[%s197 + $0x88] sm:$0xff] %v3545
      %3578 = vst [vmem:[%s197 + $0x90] sm:$0xff] %v3546
      %3579 = vst [vmem:[%s197 + $0x98] sm:$0xff] %v3547
      %3580 = vst [vmem:[%s197 + $0xa0] sm:$0xff] %v3548
      %3581 = vst [vmem:[%s197 + $0xa8] sm:$0xff] %v3549
      %3582 = vst [vmem:[%s197 + $0xb0] sm:$0xff] %v3550
      %3583 = vst [vmem:[%s197 + $0xb8] sm:$0xff] %v3551
      %3584 = vst [vmem:[%s197 + $0xc0] sm:$0xff] %v3552
      %3585 = vst [vmem:[%s197 + $0xc8] sm:$0xff] %v3553
      %3586 = vst [vmem:[%s197 + $0xd0] sm:$0xff] %v3554
      %3587 = vst [vmem:[%s197 + $0xd8] sm:$0xff] %v3555
      %3588 = vst [vmem:[%s197 + $0xe0] sm:$0xff] %v3556
      %3589 = vst [vmem:[%s197 + $0xe8] sm:$0xff] %v3557
      %3590 = vst [vmem:[%s197 + $0xf0] sm:$0xff] %v3558
      %3591 = vst [vmem:[%s197 + $0xf8] sm:$0xff] %v3559
      %p3592 = scmp.lt.s32.totalorder %s15, 1
      %s3593 = scalar_select %p3592, %s15, 1
      %s3594 = smul.addr %s3593, 32
      %s3595 = smul.addr %s3594, 8
      %s3596 = scalar_lea.vmem %s4, %s3595
      // Predicated region
      $region37: #{conv_up_bn_relu.3} parent=35 // pred_check
        %p3597 = pneg %p122
      $region38: #{conv_up_bn_relu.3} parent=35 // pred_check_branch
        %3599 = sbr.rel (%p3597) target = $region40
      $region39: #{conv_up_bn_relu.3} parent=35 // pred_region
        _
      $region40: #{conv_up_bn_relu.3} parent=35 // pred_fallthru
        _
    $region36: #{conv_up_bn_relu.3} parent=5 // pred_fallthru
      _
    %p3600 = scmp.le.s32.totalorder 2, %s10
    // Predicated region
    $region41: #{conv_up_bn_relu.3} parent=5 // pred_check
      %p3601 = pneg %p3600
    $region42: #{conv_up_bn_relu.3} parent=5 // pred_check_branch
      %3603 = sbr.rel (%p3601) target = $region44
    $region43: #{conv_up_bn_relu.3} parent=5 // pred_region
      %s3604 = ssub.s32 %s10, 2
      // Predicated region
      $region45: #{conv_up_bn_relu.3} parent=43 // pred_check
        %p3605 = pneg %p128
      $region46: #{conv_up_bn_relu.3} parent=43 // pred_check_branch
        %3607 = sbr.rel (%p3605) target = $region48
      $region47: #{conv_up_bn_relu.3} parent=43 // pred_region
        %p3608 = scmp.lt.s32.totalorder %s16, 1
        %s3609 = scalar_select %p3608, %s16, 1
        %s3610 = smul.addr %s3609, 32
        %s3611 = smul.addr %s3610, 8
        %s3612 = scalar_lea.vmem %s4, %s3611
      $region48: #{conv_up_bn_relu.3} parent=43 // pred_fallthru
        _
    $region44: #{conv_up_bn_relu.3} parent=5 // pred_fallthru
      _
  $region6: #{conv_up_bn_relu.3} parent=0 // loop_footer
    %s14 = sadd.s32 1, %s10
  $region7: #{conv_up_bn_relu.3} parent=0 // loop_footer_branch
    %9 = sbr.rel target = $region3
  $region8: #{conv_up_bn_relu.3} parent=0 // loop_exit
    _

</llo_original>
